<compile_context>
chip_gen: v7x
topology: tpu7x:2x2x1
jax: 0.10.0
libtpu: 0.0.40
codegen_flags: <defaults>
</compile_context>

<pallas_src>
import functools
import math

import jax
import jax.numpy as jnp
from jax.experimental import pallas as pl
from jax.experimental.pallas import tpu as pltpu

# True-f32 matmuls everywhere (Pallas kernels AND the jnp reference) so the
# correctness check is tight instead of bf16-pass fuzzy.
jax.config.update("jax_default_matmul_precision", "highest")

_LN_EPS = 1e-5
_NEG_INF = -1e9


# ---------------------------------------------------------------------------
# PositionalEncoding buffer (same math as the PyTorch module).
# ---------------------------------------------------------------------------
def make_pe_table(d_model: int, max_len: int = 5000) -> jnp.ndarray:
    position = jnp.arange(max_len, dtype=jnp.float32)[:, None]
    div_term = jnp.exp(
        jnp.arange(0, d_model, 2, dtype=jnp.float32) * (-math.log(10000.0) / d_model)
    )
    pe = jnp.zeros((max_len, d_model), dtype=jnp.float32)
    pe = pe.at[:, 0::2].set(jnp.sin(position * div_term))
    pe = pe.at[:, 1::2].set(jnp.cos(position * div_term))
    return pe[:, None, :]  # [max_len, 1, d_model]


# ---------------------------------------------------------------------------
# Kernel 1: positional encoding  out = dropout(x + pe[:S])
# ---------------------------------------------------------------------------
def _choose_seq_tile(S, B, D, itemsize, target_bytes=1 << 20):
    """Largest seq tile (multiple of 8, dividing S) giving ~target_bytes per x tile."""
    if S <= 8:
        return S
    rows = target_bytes // max(1, B * D * itemsize)
    rows = max(8, (rows // 8) * 8)
    if rows >= S:
        return S
    t = rows
    while t >= 8:
        if S % t == 0:
            return t
        t -= 8
    return S


def _make_pe_kernel(pe_resident, with_dropout, ts):
    def kernel(*refs):
        if with_dropout:
            x_ref, pe_ref, m_ref, o_ref = refs
        else:
            x_ref, pe_ref, o_ref = refs
        if pe_resident:
            # pe_ref holds rows [0, S) for the whole grid; slice this tile's rows.
            start = pl.program_id(0) * ts
            if ts % 8 == 0:
                start = pl.multiple_of(start, 8)
            pe_blk = pe_ref[pl.ds(start, ts), :, :]           # (ts, 1, D)
        else:
            pe_blk = pe_ref[...]                              # per-step pe tile
        y = x_ref[...].astype(jnp.float32) + pe_blk           # broadcast over batch
        if with_dropout:
            y = y * m_ref[...]                                # 0.0 or 1/(1-p)
        o_ref[...] = y.astype(o_ref.dtype)

    return kernel


def positional_encoding(x, pe, drop_mask=None):
    """dropout(x + pe[:S]).  x: [S, B, D]; pe: [max_len, 1, D]."""
    S, B, D = x.shape
    max_len = pe.shape[0]
    assert pe.shape == (max_len, 1, D) and S <= max_len

    ts = _choose_seq_tile(S, B, D, jnp.dtype(x.dtype).itemsize)
    n_tiles = S // ts
    pe_resident = S * D * 4 <= 2 * 1024 * 1024  # keep whole [0,S) pe slab in VMEM

    x_spec = pl.BlockSpec((ts, B, D), lambda i: (i, 0, 0))
    out_spec = pl.BlockSpec((ts, B, D), lambda i: (i, 0, 0))
    if pe_resident:
        pe_spec = pl.BlockSpec((S, 1, D), lambda i: (0, 0, 0))   # loaded once
    else:
        pe_spec = pl.BlockSpec((ts, 1, D), lambda i: (i, 0, 0))

    in_specs = [x_spec, pe_spec]
    args = [x, pe]
    if drop_mask is not None:
        in_specs.append(pl.BlockSpec((ts, B, D), lambda i: (i, 0, 0)))
        args.append(drop_mask.astype(jnp.float32))

    kernel = _make_pe_kernel(pe_resident, drop_mask is not None, ts)
    return pl.pallas_call(
        kernel,
        out_shape=jax.ShapeDtypeStruct((S, B, D), x.dtype),
        grid=(n_tiles,),
        in_specs=in_specs,
        out_specs=out_spec,
        compiler_params=pltpu.CompilerParams(dimension_semantics=("parallel",)),
    )(*args)


# ---------------------------------------------------------------------------
# Shared row-tiling helper for the 2-D kernels.
# ---------------------------------------------------------------------------
def _row_tile(M, max_rows=512):
    """Row tile that is a multiple of 8 and divides M (or the full M)."""
    if M <= max_rows:
        return M
    t = (max_rows // 8) * 8
    while t >= 8:
        if M % t == 0:
            return t
        t -= 8
    return M


# ---------------------------------------------------------------------------
# Kernel 2: linear  y = x @ W^T + b
# ---------------------------------------------------------------------------
def _linear_kernel(x_ref, wt_ref, b_ref, o_ref):
    acc = jnp.dot(x_ref[...].astype(jnp.float32), wt_ref[...],
                  preferred_element_type=jnp.float32)
    o_ref[...] = (acc + b_ref[...]).astype(o_ref.dtype)


def pallas_linear(x2d, w, b):
    """x2d: [M, K], w: [N, K] (torch layout), b: [N] -> [M, N]."""
    M, K = x2d.shape
    N = w.shape[0]
    tm = _row_tile(M)
    return pl.pallas_call(
        _linear_kernel,
        out_shape=jax.ShapeDtypeStruct((M, N), x2d.dtype),
        grid=(M // tm,),
        in_specs=[
            pl.BlockSpec((tm, K), lambda i: (i, 0)),
            pl.BlockSpec((K, N), lambda i: (0, 0)),     # weight resident for all row tiles
            pl.BlockSpec((1, N), lambda i: (0, 0)),
        ],
        out_specs=pl.BlockSpec((tm, N), lambda i: (i, 0)),
        compiler_params=pltpu.CompilerParams(dimension_semantics=("parallel",)),
    )(x2d, w.T.astype(jnp.float32), b.reshape(1, N).astype(jnp.float32))


# ---------------------------------------------------------------------------
# Kernel 3: fused feed-forward  y = relu(x @ W1^T + b1) @ W2^T + b2
# ---------------------------------------------------------------------------
def _ffn_kernel(x_ref, w1t_ref, b1_ref, w2t_ref, b2_ref, o_ref):
    h = jnp.dot(x_ref[...].astype(jnp.float32), w1t_ref[...],
                preferred_element_type=jnp.float32) + b1_ref[...]
    h = jnp.maximum(h, 0.0)                                   # ReLU (torch default)
    y = jnp.dot(h, w2t_ref[...], preferred_element_type=jnp.float32) + b2_ref[...]
    o_ref[...] = y.astype(o_ref.dtype)


def pallas_ffn(x2d, w1, b1, w2, b2):
    M, E = x2d.shape
    H = w1.shape[0]
    tm = _row_tile(M)
    return pl.pallas_call(
        _ffn_kernel,
        out_shape=jax.ShapeDtypeStruct((M, E), x2d.dtype),
        grid=(M // tm,),
        in_specs=[
            pl.BlockSpec((tm, E), lambda i: (i, 0)),
            pl.BlockSpec((E, H), lambda i: (0, 0)),
            pl.BlockSpec((1, H), lambda i: (0, 0)),
            pl.BlockSpec((H, E), lambda i: (0, 0)),
            pl.BlockSpec((1, E), lambda i: (0, 0)),
        ],
        out_specs=pl.BlockSpec((tm, E), lambda i: (i, 0)),
        compiler_params=pltpu.CompilerParams(dimension_semantics=("parallel",)),
    )(x2d, w1.T.astype(jnp.float32), b1.reshape(1, H).astype(jnp.float32),
      w2.T.astype(jnp.float32), b2.reshape(1, E).astype(jnp.float32))


# ---------------------------------------------------------------------------
# Kernel 4: fused residual + LayerNorm  y = LN(x + r) * gamma + beta
# ---------------------------------------------------------------------------
def _add_ln_kernel(x_ref, r_ref, g_ref, b_ref, o_ref):
    y = x_ref[...].astype(jnp.float32) + r_ref[...].astype(jnp.float32)
    mu = jnp.mean(y, axis=-1, keepdims=True)
    var = jnp.mean(jnp.square(y - mu), axis=-1, keepdims=True)
    yn = (y - mu) * jax.lax.rsqrt(var + _LN_EPS)
    o_ref[...] = (yn * g_ref[...] + b_ref[...]).astype(o_ref.dtype)


def pallas_add_layernorm(x2d, r2d, gamma, beta):
    M, E = x2d.shape
    tm = _row_tile(M)
    return pl.pallas_call(
        _add_ln_kernel,
        out_shape=jax.ShapeDtypeStruct((M, E), x2d.dtype),
        grid=(M // tm,),
        in_specs=[
            pl.BlockSpec((tm, E), lambda i: (i, 0)),
            pl.BlockSpec((tm, E), lambda i: (i, 0)),
            pl.BlockSpec((1, E), lambda i: (0, 0)),
            pl.BlockSpec((1, E), lambda i: (0, 0)),
        ],
        out_specs=pl.BlockSpec((tm, E), lambda i: (i, 0)),
        compiler_params=pltpu.CompilerParams(dimension_semantics=("parallel",)),
    )(x2d, r2d, gamma.reshape(1, E).astype(jnp.float32),
      beta.reshape(1, E).astype(jnp.float32))


# ---------------------------------------------------------------------------
# Kernel 5: scaled-dot-product attention, one (batch*head) slice per grid step
# ---------------------------------------------------------------------------
def _attention_kernel(q_ref, k_ref, v_ref, bias_ref, o_ref, *, scale):
    q = q_ref[...].astype(jnp.float32)                        # (Lq, Dh)
    k = k_ref[...].astype(jnp.float32)                        # (Lk, Dh)
    v = v_ref[...].astype(jnp.float32)                        # (Lk, Dh)
    s = jnp.dot(q, k.T, preferred_element_type=jnp.float32) * scale + bias_ref[...]
    s = s - jnp.max(s, axis=-1, keepdims=True)
    p = jnp.exp(s)
    p = p / jnp.sum(p, axis=-1, keepdims=True)
    o_ref[...] = jnp.dot(p, v, preferred_element_type=jnp.float32).astype(o_ref.dtype)


def pallas_attention(q, k, v, bias):
    """q: [BH, Lq, Dh], k/v: [BH, Lk, Dh], bias: [BH, Lq, Lk] additive f32."""
    BH, Lq, Dh = q.shape
    Lk = k.shape[1]
    kern = functools.partial(_attention_kernel, scale=1.0 / math.sqrt(Dh))
    return pl.pallas_call(
        kern,
        out_shape=jax.ShapeDtypeStruct((BH, Lq, Dh), q.dtype),
        grid=(BH,),
        in_specs=[
            pl.BlockSpec((None, Lq, Dh), lambda i: (i, 0, 0)),
            pl.BlockSpec((None, Lk, Dh), lambda i: (i, 0, 0)),
            pl.BlockSpec((None, Lk, Dh), lambda i: (i, 0, 0)),
            pl.BlockSpec((None, Lq, Lk), lambda i: (i, 0, 0)),
        ],
        out_specs=pl.BlockSpec((None, Lq, Dh), lambda i: (i, 0, 0)),
        compiler_params=pltpu.CompilerParams(dimension_semantics=("parallel",)),
    )(q, k, v, bias)


# ---------------------------------------------------------------------------
# Pure-jnp reference ops (same math, no Pallas) for the correctness check.
# ---------------------------------------------------------------------------
def ref_pe_add(x, pe, drop_mask=None):
    y = x + pe[: x.shape[0]]
    return y if drop_mask is None else y * drop_mask


def ref_linear(x2d, w, b):
    return x2d @ w.T + b


def ref_ffn(x2d, w1, b1, w2, b2):
    return jnp.maximum(x2d @ w1.T + b1, 0.0) @ w2.T + b2


def ref_add_layernorm(x2d, r2d, gamma, beta):
    y = x2d + r2d
    mu = jnp.mean(y, axis=-1, keepdims=True)
    var = jnp.mean(jnp.square(y - mu), axis=-1, keepdims=True)
    return (y - mu) * jax.lax.rsqrt(var + _LN_EPS) * gamma + beta


def ref_attention(q, k, v, bias):
    scale = 1.0 / math.sqrt(q.shape[-1])
    s = jnp.einsum("bqd,bkd->bqk", q, k) * scale + bias
    p = jax.nn.softmax(s, axis=-1)
    return jnp.einsum("bqk,bkd->bqd", p, v)


# ---------------------------------------------------------------------------
# Model structure (shared between the Pallas and reference op tables).
# ---------------------------------------------------------------------------
def mha_forward(ops, x_q, x_kv, p, attn_mask, key_padding_mask, nhead):
    """torch.nn.MultiheadAttention semantics, [L, N, E] layout, eval mode."""
    Lq, N, E = x_q.shape
    Lk = x_kv.shape[0]
    Dh = E // nhead
    q = ops["lin"](x_q.reshape(Lq * N, E), p["wq"], p["bq"]).reshape(Lq, N, E)
    k = ops["lin"](x_kv.reshape(Lk * N, E), p["wk"], p["bk"]).reshape(Lk, N, E)
    v = ops["lin"](x_kv.reshape(Lk * N, E), p["wv"], p["bv"]).reshape(Lk, N, E)
    # [L, N, E] -> [N*H, L, Dh]  (same head layout as torch, bh = n*H + h)
    qh = q.reshape(Lq, N * nhead, Dh).transpose(1, 0, 2)
    kh = k.reshape(Lk, N * nhead, Dh).transpose(1, 0, 2)
    vh = v.reshape(Lk, N * nhead, Dh).transpose(1, 0, 2)
    bias = jnp.zeros((N, nhead, Lq, Lk), jnp.float32)
    if attn_mask is not None:
        bias = bias + attn_mask[None, None].astype(jnp.float32)
    if key_padding_mask is not None:
        bias = bias + jnp.where(key_padding_mask, _NEG_INF, 0.0)[:, None, None, :]
    bias = bias.reshape(N * nhead, Lq, Lk)
    oh = ops["attn"](qh, kh, vh, bias)                        # [N*H, Lq, Dh]
    o = oh.transpose(1, 0, 2).reshape(Lq, N, E)
    return ops["lin"](o.reshape(Lq * N, E), p["wo"], p["bo"]).reshape(Lq, N, E)


def encoder_layer(ops, x, p, src_mask, src_kpm, nhead):
    L, N, E = x.shape
    sa = mha_forward(ops, x, x, p["sa"], src_mask, src_kpm, nhead)
    x = ops["add_ln"](x.reshape(L * N, E), sa.reshape(L * N, E),
                      p["ln1_g"], p["ln1_b"]).reshape(L, N, E)
    ff = ops["ffn"](x.reshape(L * N, E), p["w1"], p["b1"], p["w2"], p["b2"])
    x = ops["add_ln"](x.reshape(L * N, E), ff, p["ln2_g"], p["ln2_b"]).reshape(L, N, E)
    return x


def decoder_layer(ops, x, memory, p, tgt_mask, tgt_kpm, mem_kpm, nhead):
    L, N, E = x.shape
    sa = mha_forward(ops, x, x, p["sa"], tgt_mask, tgt_kpm, nhead)
    x = ops["add_ln"](x.reshape(L * N, E), sa.reshape(L * N, E),
                      p["ln1_g"], p["ln1_b"]).reshape(L, N, E)
    ca = mha_forward(ops, x, memory, p["ca"], None, mem_kpm, nhead)
    x = ops["add_ln"](x.reshape(L * N, E), ca.reshape(L * N, E),
                      p["ln2_g"], p["ln2_b"]).reshape(L, N, E)
    ff = ops["ffn"](x.reshape(L * N, E), p["w1"], p["b1"], p["w2"], p["b2"])
    x = ops["add_ln"](x.reshape(L * N, E), ff, p["ln3_g"], p["ln3_b"]).reshape(L, N, E)
    return x


def transformer_forward(ops, params, src, tgt, src_mask, tgt_mask,
                        src_key_padding_mask, tgt_key_padding_mask, *, nhead):
    """TransformerModel.forward (eval mode)."""
    src = ops["pe_add"](src, params["pe"])
    tgt = ops["pe_add"](tgt, params["pe"])
    memory = src
    for lp in params["enc"]:
        memory = encoder_layer(ops, memory, lp, src_mask, src_key_padding_mask, nhead)
    out = tgt
    for lp in params["dec"]:
        out = decoder_layer(ops, out, memory, lp, tgt_mask,
                            tgt_key_padding_mask, src_key_padding_mask, nhead)
    L, N, E = out.shape
    logits = ops["lin"](out.reshape(L * N, E), params["dec_w"], params["dec_b"])
    return logits.reshape(L, N, -1)


PALLAS_OPS = dict(pe_add=positional_encoding, lin=pallas_linear, ffn=pallas_ffn,
                  add_ln=pallas_add_layernorm, attn=pallas_attention)
REF_OPS = dict(pe_add=ref_pe_add, lin=ref_linear, ffn=ref_ffn,
               add_ln=ref_add_layernorm, attn=ref_attention)


# ---------------------------------------------------------------------------
# Deterministic parameter init (analogous to the torch module's layers).
# ---------------------------------------------------------------------------
def init_params(key, d_model, nhead, d_hid, nlayers, ntoken, max_len=5000):
    def uniform(k, shape, scale):
        return jax.random.uniform(k, shape, jnp.float32, -scale, scale)

    def attn_params(k):
        ks = jax.random.split(k, 4)
        s = 1.0 / math.sqrt(d_model)
        z = jnp.zeros((d_model,), jnp.float32)
        return dict(wq=uniform(ks[0], (d_model, d_model), s), bq=z,
                    wk=uniform(ks[1], (d_model, d_model), s), bk=z,
                    wv=uniform(ks[2], (d_model, d_model), s), bv=z,
                    wo=uniform(ks[3], (d_model, d_model), s), bo=z)

    ones_e = jnp.ones((d_model,), jnp.float32)
    zeros_e = jnp.zeros((d_model,), jnp.float32)

    def ffn_params(k):
        k1, k2 = jax.random.split(k)
        return dict(w1=uniform(k1, (d_hid, d_model), 1.0 / math.sqrt(d_model)),
                    b1=jnp.zeros((d_hid,), jnp.float32),
                    w2=uniform(k2, (d_model, d_hid), 1.0 / math.sqrt(d_hid)),
                    b2=zeros_e)

    def enc_layer_params(k):
        k1, k2 = jax.random.split(k)
        p = dict(sa=attn_params(k1), ln1_g=ones_e, ln1_b=zeros_e,
                 ln2_g=ones_e, ln2_b=zeros_e)
        p.update(ffn_params(k2))
        return p

    def dec_layer_params(k):
        k1, k2, k3 = jax.random.split(k, 3)
        p = dict(sa=attn_params(k1), ca=attn_params(k2),
                 ln1_g=ones_e, ln1_b=zeros_e, ln2_g=ones_e, ln2_b=zeros_e,
                 ln3_g=ones_e, ln3_b=zeros_e)
        p.update(ffn_params(k3))
        return p

    keys = jax.random.split(key, 2 * nlayers + 1)
    enc = [enc_layer_params(keys[i]) for i in range(nlayers)]
    dec = [dec_layer_params(keys[nlayers + i]) for i in range(nlayers)]
    dec_w = uniform(keys[-1], (ntoken, d_model), 0.1)          # init_weights()
    dec_b = jnp.zeros((ntoken,), jnp.float32)
    return dict(pe=make_pe_table(d_model, max_len), enc=enc, dec=dec,
                dec_w=dec_w, dec_b=dec_b)


# ---------------------------------------------------------------------------
# Demo / self-check.
# ---------------------------------------------------------------------------
if __name__ == "__main__":
    d_model, nhead, d_hid, nlayers, ntoken = 32, 4, 64, 2, 16
    src_len, tgt_len, batch = 12, 8, 2

    key = jax.random.PRNGKey(0)
    kp, ksrc, ktgt, kmask = jax.random.split(key, 4)
    params = init_params(kp, d_model, nhead, d_hid, nlayers, ntoken)
    src = jax.random.normal(ksrc, (src_len, batch, d_model), jnp.float32)
    tgt = jax.random.normal(ktgt, (tgt_len, batch, d_model), jnp.float32)

    def causal_mask(L):
        i = jnp.arange(L)
        return jnp.where(i[None, :] > i[:, None], _NEG_INF, 0.0).astype(jnp.float32)

    src_mask = causal_mask(src_len)
    tgt_mask = causal_mask(tgt_len)
    src_kpm = jnp.zeros((batch, src_len), dtype=bool).at[1, -2:].set(True)
    tgt_kpm = jnp.zeros((batch, tgt_len), dtype=bool).at[0, -1].set(True)

    # --- full TransformerModel.forward, Pallas path ---
    fwd = jax.jit(functools.partial(transformer_forward, PALLAS_OPS, nhead=nhead))
    out = jax.block_until_ready(
        fwd(params, src, tgt, src_mask, tgt_mask, src_kpm, tgt_kpm))
    assert out.shape == (tgt_len, batch, ntoken)
    assert bool(jnp.all(jnp.isfinite(out)))

    # --- pure-jnp reference (same structure, no Pallas) ---
    ref = transformer_forward(REF_OPS, params, src, tgt, src_mask, tgt_mask,
                              src_kpm, tgt_kpm, nhead=nhead)
    max_diff = float(jnp.max(jnp.abs(out - ref)))
    assert jnp.allclose(out, ref, atol=2e-3, rtol=2e-3), f"model mismatch {max_diff}"

    # --- standalone PositionalEncoding check (eval + training-mode mask) ---
    kx, km = jax.random.split(kmask)
    x = jax.random.normal(kx, (16, 8, 128), jnp.float32)
    pe = make_pe_table(128)
    out_eval = jax.block_until_ready(positional_encoding(x, pe))
    assert jnp.allclose(out_eval, x + pe[:16], atol=1e-6), "PE eval mismatch"
    keep = jax.random.bernoulli(km, 0.9, x.shape)
    drop_mask = keep.astype(jnp.float32) / 0.9
    out_train = jax.block_until_ready(positional_encoding(x, pe, drop_mask))
    assert jnp.allclose(out_train, (x + pe[:16]) * drop_mask, atol=1e-6), "PE train mismatch"

    print("KERNEL_OK")
</pallas_src>

<mosaic_0001>
module attributes {stable_mosaic.version = 11 : i64} {
  func.func @kernel(%arg0: i32, %arg1: memref<8x2x32xf32, #tpu.memory_space<vmem>>, %arg2: memref<8x1x32xf32, #tpu.memory_space<vmem>>, %arg3: memref<8x2x32xf32, #tpu.memory_space<vmem>>) attributes {dimension_semantics = [#tpu.dimension_semantics<parallel>], iteration_bounds = array<i64: 1>, scalar_prefetch = 0 : i64, scratch_operands = 0 : i64, tpu.core_type = #tpu.core_type<tc>, window_params = [{transform_indices = @transform_0, window_bounds = array<i64: 8, 2, 32>}, {transform_indices = @transform_1, window_bounds = array<i64: 8, 1, 32>}, {transform_indices = @transform_2, window_bounds = array<i64: 8, 2, 32>}]} {
    %c8_i32 = arith.constant 8 : i32
    %0 = arith.muli %arg0, %c8_i32 : i32
    %1 = tpu.assume_multiple %0, 8 : i32
    %2 = arith.index_cast %1 : i32 to index
    %c0 = arith.constant 0 : index
    %c0_0 = arith.constant 0 : index
    %3 = vector.load %arg2[%2, %c0, %c0_0] : memref<8x1x32xf32, #tpu.memory_space<vmem>>, vector<8x1x32xf32>
    %c0_1 = arith.constant 0 : index
    %c0_2 = arith.constant 0 : index
    %c0_3 = arith.constant 0 : index
    %4 = vector.load %arg1[%c0_1, %c0_2, %c0_3] : memref<8x2x32xf32, #tpu.memory_space<vmem>>, vector<8x2x32xf32>
    %5 = vector.broadcast %3 : vector<8x1x32xf32> to vector<8x2x32xf32>
    %6 = arith.addf %4, %5 : vector<8x2x32xf32>
    %c0_4 = arith.constant 0 : index
    %c0_5 = arith.constant 0 : index
    %c0_6 = arith.constant 0 : index
    %7 = vector.load %arg3[%c0_4, %c0_5, %c0_6] : memref<8x2x32xf32, #tpu.memory_space<vmem>>, vector<8x2x32xf32>
    tpu.vector_store %arg3[%c0_4, %c0_5, %c0_6], %6 {strides = array<i32>} : memref<8x2x32xf32, #tpu.memory_space<vmem>>, vector<8x2x32xf32>,
    return
  }
  func.func @transform_0(%arg0: i32) -> (i32, i32, i32) {
    %c0_i32 = arith.constant 0 : i32
    %c0_i32_0 = arith.constant 0 : i32
    %c0_i32_1 = arith.constant 0 : i32
    return %arg0, %c0_i32, %c0_i32_0 : i32, i32, i32
  }
  func.func @transform_1(%arg0: i32) -> (i32, i32, i32) {
    %c0_i32 = arith.constant 0 : i32
    %c0_i32_0 = arith.constant 0 : i32
    %c0_i32_1 = arith.constant 0 : i32
    %c0_i32_2 = arith.constant 0 : i32
    return %c0_i32, %c0_i32_0, %c0_i32_1 : i32, i32, i32
  }
  func.func @transform_2(%arg0: i32) -> (i32, i32, i32) {
    %c0_i32 = arith.constant 0 : i32
    %c0_i32_0 = arith.constant 0 : i32
    %c0_i32_1 = arith.constant 0 : i32
    return %arg0, %c0_i32, %c0_i32_0 : i32, i32, i32
  }
}

module attributes {stable_mosaic.version = 11 : i64} {
  func.func @_linear_kernel(%arg0: i32, %arg1: memref<16x32xf32, #tpu.memory_space<vmem>>, %arg2: memref<32x32xf32, #tpu.memory_space<vmem>>, %arg3: memref<1x32xf32, #tpu.memory_space<vmem>>, %arg4: memref<16x32xf32, #tpu.memory_space<vmem>>) attributes {dimension_semantics = [#tpu.dimension_semantics<parallel>], iteration_bounds = array<i64: 1>, scalar_prefetch = 0 : i64, scratch_operands = 0 : i64, tpu.core_type = #tpu.core_type<tc>, window_params = [{transform_indices = @transform_0, window_bounds = array<i64: 16, 32>}, {pipeline_mode = #tpu.pipeline_mode<synchronous>, transform_indices = @transform_1, window_bounds = array<i64: 32, 32>}, {pipeline_mode = #tpu.pipeline_mode<synchronous>, transform_indices = @transform_2, window_bounds = array<i64: 1, 32>}, {transform_indices = @transform_3, window_bounds = array<i64: 16, 32>}]} {
    %c0 = arith.constant 0 : index
    %c0_0 = arith.constant 0 : index
    %0 = vector.load %arg1[%c0, %c0_0] : memref<16x32xf32, #tpu.memory_space<vmem>>, vector<16x32xf32>
    %c0_1 = arith.constant 0 : index
    %c0_2 = arith.constant 0 : index
    %1 = vector.load %arg2[%c0_1, %c0_2] : memref<32x32xf32, #tpu.memory_space<vmem>>, vector<32x32xf32>
    %cst = arith.constant dense<0.000000e+00> : vector<16x32xf32>
    %2 = tpu.matmul %0, %1, %cst {dimension_numbers = #tpu.dot_dimension_numbers<[1], [0], [0], [1], [0, 0, 1, 1], [], []>, precision = #tpu.contract_precision<fp32>} : vector<16x32xf32>, vector<32x32xf32>, vector<16x32xf32> -> vector<16x32xf32>
    %c0_3 = arith.constant 0 : index
    %c0_4 = arith.constant 0 : index
    %3 = vector.load %arg3[%c0_3, %c0_4] : memref<1x32xf32, #tpu.memory_space<vmem>>, vector<1x32xf32>
    %4 = vector.broadcast %3 : vector<1x32xf32> to vector<16x32xf32>
    %5 = arith.addf %2, %4 : vector<16x32xf32>
    %c0_5 = arith.constant 0 : index
    %c0_6 = arith.constant 0 : index
    %6 = vector.load %arg4[%c0_5, %c0_6] : memref<16x32xf32, #tpu.memory_space<vmem>>, vector<16x32xf32>
    tpu.vector_store %arg4[%c0_5, %c0_6], %5 {strides = array<i32>} : memref<16x32xf32, #tpu.memory_space<vmem>>, vector<16x32xf32>,
    return
  }
  func.func @transform_0(%arg0: i32) -> (i32, i32) {
    %c0_i32 = arith.constant 0 : i32
    %c0_i32_0 = arith.constant 0 : i32
    return %arg0, %c0_i32 : i32, i32
  }
  func.func @transform_1(%arg0: i32) -> (i32, i32) {
    %c0_i32 = arith.constant 0 : i32
    %c0_i32_0 = arith.constant 0 : i32
    %c0_i32_1 = arith.constant 0 : i32
    return %c0_i32, %c0_i32_0 : i32, i32
  }
  func.func @transform_2(%arg0: i32) -> (i32, i32) {
    %c0_i32 = arith.constant 0 : i32
    %c0_i32_0 = arith.constant 0 : i32
    %c0_i32_1 = arith.constant 0 : i32
    return %c0_i32, %c0_i32_0 : i32, i32
  }
  func.func @transform_3(%arg0: i32) -> (i32, i32) {
    %c0_i32 = arith.constant 0 : i32
    %c0_i32_0 = arith.constant 0 : i32
    return %arg0, %c0_i32 : i32, i32
  }
}

module attributes {stable_mosaic.version = 11 : i64} {
  func.func @kernel(%arg0: i32, %arg1: memref<12x2x32xf32, #tpu.memory_space<vmem>>, %arg2: memref<12x1x32xf32, #tpu.memory_space<vmem>>, %arg3: memref<12x2x32xf32, #tpu.memory_space<vmem>>) attributes {dimension_semantics = [#tpu.dimension_semantics<parallel>], iteration_bounds = array<i64: 1>, scalar_prefetch = 0 : i64, scratch_operands = 0 : i64, tpu.core_type = #tpu.core_type<tc>, window_params = [{transform_indices = @transform_0, window_bounds = array<i64: 12, 2, 32>}, {transform_indices = @transform_1, window_bounds = array<i64: 12, 1, 32>}, {transform_indices = @transform_2, window_bounds = array<i64: 12, 2, 32>}]} {
    %c12_i32 = arith.constant 12 : i32
    %0 = arith.muli %arg0, %c12_i32 : i32
    %1 = arith.index_cast %0 : i32 to index
    %c0 = arith.constant 0 : index
    %c0_0 = arith.constant 0 : index
    %2 = vector.load %arg2[%1, %c0, %c0_0] : memref<12x1x32xf32, #tpu.memory_space<vmem>>, vector<12x1x32xf32>
    %c0_1 = arith.constant 0 : index
    %c0_2 = arith.constant 0 : index
    %c0_3 = arith.constant 0 : index
    %3 = vector.load %arg1[%c0_1, %c0_2, %c0_3] : memref<12x2x32xf32, #tpu.memory_space<vmem>>, vector<12x2x32xf32>
    %4 = vector.broadcast %2 : vector<12x1x32xf32> to vector<12x2x32xf32>
    %5 = arith.addf %3, %4 : vector<12x2x32xf32>
    %c0_4 = arith.constant 0 : index
    %c0_5 = arith.constant 0 : index
    %c0_6 = arith.constant 0 : index
    %6 = vector.load %arg3[%c0_4, %c0_5, %c0_6] : memref<12x2x32xf32, #tpu.memory_space<vmem>>, vector<12x2x32xf32>
    tpu.vector_store %arg3[%c0_4, %c0_5, %c0_6], %5 {strides = array<i32>} : memref<12x2x32xf32, #tpu.memory_space<vmem>>, vector<12x2x32xf32>,
    return
  }
  func.func @transform_0(%arg0: i32) -> (i32, i32, i32) {
    %c0_i32 = arith.constant 0 : i32
    %c0_i32_0 = arith.constant 0 : i32
    %c0_i32_1 = arith.constant 0 : i32
    return %arg0, %c0_i32, %c0_i32_0 : i32, i32, i32
  }
  func.func @transform_1(%arg0: i32) -> (i32, i32, i32) {
    %c0_i32 = arith.constant 0 : i32
    %c0_i32_0 = arith.constant 0 : i32
    %c0_i32_1 = arith.constant 0 : i32
    %c0_i32_2 = arith.constant 0 : i32
    return %c0_i32, %c0_i32_0, %c0_i32_1 : i32, i32, i32
  }
  func.func @transform_2(%arg0: i32) -> (i32, i32, i32) {
    %c0_i32 = arith.constant 0 : i32
    %c0_i32_0 = arith.constant 0 : i32
    %c0_i32_1 = arith.constant 0 : i32
    return %arg0, %c0_i32, %c0_i32_0 : i32, i32, i32
  }
}

module attributes {stable_mosaic.version = 11 : i64} {
  func.func @_attention_kernel(%arg0: i32, %arg1: memref<1x8x8xf32, #tpu.memory_space<vmem>>, %arg2: memref<1x8x8xf32, #tpu.memory_space<vmem>>, %arg3: memref<1x8x8xf32, #tpu.memory_space<vmem>>, %arg4: memref<1x8x8xf32, #tpu.memory_space<vmem>>, %arg5: memref<1x8x8xf32, #tpu.memory_space<vmem>>) attributes {dimension_semantics = [#tpu.dimension_semantics<parallel>], iteration_bounds = array<i64: 8>, scalar_prefetch = 0 : i64, scratch_operands = 0 : i64, tpu.core_type = #tpu.core_type<tc>, window_params = [{transform_indices = @transform_0, window_bounds = array<i64: 1, 8, 8>}, {transform_indices = @transform_1, window_bounds = array<i64: 1, 8, 8>}, {transform_indices = @transform_2, window_bounds = array<i64: 1, 8, 8>}, {transform_indices = @transform_3, window_bounds = array<i64: 1, 8, 8>}, {transform_indices = @transform_4, window_bounds = array<i64: 1, 8, 8>}]} {
    %c0 = arith.constant 0 : index
    %c0_0 = arith.constant 0 : index
    %c0_1 = arith.constant 0 : index
    %0 = vector.load %arg1[%c0, %c0_0, %c0_1] : memref<1x8x8xf32, #tpu.memory_space<vmem>>, vector<1x8x8xf32>
    %1 = vector.shape_cast %0 : vector<1x8x8xf32> to vector<8x8xf32>
    %c0_2 = arith.constant 0 : index
    %c0_3 = arith.constant 0 : index
    %c0_4 = arith.constant 0 : index
    %2 = vector.load %arg2[%c0_2, %c0_3, %c0_4] : memref<1x8x8xf32, #tpu.memory_space<vmem>>, vector<1x8x8xf32>
    %3 = vector.shape_cast %2 : vector<1x8x8xf32> to vector<8x8xf32>
    %c0_5 = arith.constant 0 : index
    %c0_6 = arith.constant 0 : index
    %c0_7 = arith.constant 0 : index
    %4 = vector.load %arg3[%c0_5, %c0_6, %c0_7] : memref<1x8x8xf32, #tpu.memory_space<vmem>>, vector<1x8x8xf32>
    %5 = vector.shape_cast %4 : vector<1x8x8xf32> to vector<8x8xf32>
    %6 = tpu.transpose %3, [1, 0] : vector<8x8xf32> -> vector<8x8xf32>
    %cst = arith.constant dense<0.000000e+00> : vector<8x8xf32>
    %7 = tpu.matmul %1, %6, %cst {dimension_numbers = #tpu.dot_dimension_numbers<[1], [0], [0], [1], [0, 0, 1, 1], [], []>, precision = #tpu.contract_precision<fp32>} : vector<8x8xf32>, vector<8x8xf32>, vector<8x8xf32> -> vector<8x8xf32>
    %cst_8 = arith.constant 0.353553385 : f32
    %8 = vector.broadcast %cst_8 : f32 to vector<8x8xf32>
    %9 = arith.mulf %7, %8 : vector<8x8xf32>
    %c0_9 = arith.constant 0 : index
    %c0_10 = arith.constant 0 : index
    %c0_11 = arith.constant 0 : index
    %10 = vector.load %arg4[%c0_9, %c0_10, %c0_11] : memref<1x8x8xf32, #tpu.memory_space<vmem>>, vector<1x8x8xf32>
    %11 = vector.shape_cast %10 : vector<1x8x8xf32> to vector<8x8xf32>
    %12 = arith.addf %9, %11 : vector<8x8xf32>
    %cst_12 = arith.constant dense<0xFF800000> : vector<8xf32>
    %13 = vector.multi_reduction <maximumf>, %12, %cst_12 [1] : vector<8x8xf32> to vector<8xf32>
    %14 = vector.shape_cast %13 : vector<8xf32> to vector<8x1xf32>
    %15 = vector.broadcast %14 : vector<8x1xf32> to vector<8x8xf32>
    %16 = arith.subf %12, %15 : vector<8x8xf32>
    %17 = math.exp %16 : vector<8x8xf32>
    %cst_13 = arith.constant dense<0.000000e+00> : vector<8xf32>
    %18 = vector.multi_reduction <add>, %17, %cst_13 [1] : vector<8x8xf32> to vector<8xf32>
    %19 = vector.shape_cast %18 : vector<8xf32> to vector<8x1xf32>
    %20 = vector.broadcast %19 : vector<8x1xf32> to vector<8x8xf32>
    %21 = arith.divf %17, %20 : vector<8x8xf32>
    %cst_14 = arith.constant dense<0.000000e+00> : vector<8x8xf32>
    %22 = tpu.matmul %21, %5, %cst_14 {dimension_numbers = #tpu.dot_dimension_numbers<[1], [0], [0], [1], [0, 0, 1, 1], [], []>, precision = #tpu.contract_precision<fp32>} : vector<8x8xf32>, vector<8x8xf32>, vector<8x8xf32> -> vector<8x8xf32>
    %c0_15 = arith.constant 0 : index
    %c0_16 = arith.constant 0 : index
    %c0_17 = arith.constant 0 : index
    %23 = vector.load %arg5[%c0_15, %c0_16, %c0_17] : memref<1x8x8xf32, #tpu.memory_space<vmem>>, vector<1x8x8xf32>
    %24 = vector.shape_cast %23 : vector<1x8x8xf32> to vector<8x8xf32>
    %25 = vector.shape_cast %22 : vector<8x8xf32> to vector<1x8x8xf32>
    tpu.vector_store %arg5[%c0_15, %c0_16, %c0_17], %25 {strides = array<i32>} : memref<1x8x8xf32, #tpu.memory_space<vmem>>, vector<1x8x8xf32>,
    return
  }
  func.func @transform_0(%arg0: i32) -> (i32, i32, i32) {
    %c0_i32 = arith.constant 0 : i32
    %c0_i32_0 = arith.constant 0 : i32
    %c0_i32_1 = arith.constant 0 : i32
    return %arg0, %c0_i32, %c0_i32_0 : i32, i32, i32
  }
  func.func @transform_1(%arg0: i32) -> (i32, i32, i32) {
    %c0_i32 = arith.constant 0 : i32
    %c0_i32_0 = arith.constant 0 : i32
    %c0_i32_1 = arith.constant 0 : i32
    return %arg0, %c0_i32, %c0_i32_0 : i32, i32, i32
  }
  func.func @transform_2(%arg0: i32) -> (i32, i32, i32) {
    %c0_i32 = arith.constant 0 : i32
    %c0_i32_0 = arith.constant 0 : i32
    %c0_i32_1 = arith.constant 0 : i32
    return %arg0, %c0_i32, %c0_i32_0 : i32, i32, i32
  }
  func.func @transform_3(%arg0: i32) -> (i32, i32, i32) {
    %c0_i32 = arith.constant 0 : i32
    %c0_i32_0 = arith.constant 0 : i32
    %c0_i32_1 = arith.constant 0 : i32
    return %arg0, %c0_i32, %c0_i32_0 : i32, i32, i32
  }
  func.func @transform_4(%arg0: i32) -> (i32, i32, i32) {
    %c0_i32 = arith.constant 0 : i32
    %c0_i32_0 = arith.constant 0 : i32
    %c0_i32_1 = arith.constant 0 : i32
    return %arg0, %c0_i32, %c0_i32_0 : i32, i32, i32
  }
}

module attributes {stable_mosaic.version = 11 : i64} {
  func.func @_linear_kernel(%arg0: i32, %arg1: memref<24x32xf32, #tpu.memory_space<vmem>>, %arg2: memref<32x32xf32, #tpu.memory_space<vmem>>, %arg3: memref<1x32xf32, #tpu.memory_space<vmem>>, %arg4: memref<24x32xf32, #tpu.memory_space<vmem>>) attributes {dimension_semantics = [#tpu.dimension_semantics<parallel>], iteration_bounds = array<i64: 1>, scalar_prefetch = 0 : i64, scratch_operands = 0 : i64, tpu.core_type = #tpu.core_type<tc>, window_params = [{transform_indices = @transform_0, window_bounds = array<i64: 24, 32>}, {pipeline_mode = #tpu.pipeline_mode<synchronous>, transform_indices = @transform_1, window_bounds = array<i64: 32, 32>}, {pipeline_mode = #tpu.pipeline_mode<synchronous>, transform_indices = @transform_2, window_bounds = array<i64: 1, 32>}, {transform_indices = @transform_3, window_bounds = array<i64: 24, 32>}]} {
    %c0 = arith.constant 0 : index
    %c0_0 = arith.constant 0 : index
    %0 = vector.load %arg1[%c0, %c0_0] : memref<24x32xf32, #tpu.memory_space<vmem>>, vector<24x32xf32>
    %c0_1 = arith.constant 0 : index
    %c0_2 = arith.constant 0 : index
    %1 = vector.load %arg2[%c0_1, %c0_2] : memref<32x32xf32, #tpu.memory_space<vmem>>, vector<32x32xf32>
    %cst = arith.constant dense<0.000000e+00> : vector<24x32xf32>
    %2 = tpu.matmul %0, %1, %cst {dimension_numbers = #tpu.dot_dimension_numbers<[1], [0], [0], [1], [0, 0, 1, 1], [], []>, precision = #tpu.contract_precision<fp32>} : vector<24x32xf32>, vector<32x32xf32>, vector<24x32xf32> -> vector<24x32xf32>
    %c0_3 = arith.constant 0 : index
    %c0_4 = arith.constant 0 : index
    %3 = vector.load %arg3[%c0_3, %c0_4] : memref<1x32xf32, #tpu.memory_space<vmem>>, vector<1x32xf32>
    %4 = vector.broadcast %3 : vector<1x32xf32> to vector<24x32xf32>
    %5 = arith.addf %2, %4 : vector<24x32xf32>
    %c0_5 = arith.constant 0 : index
    %c0_6 = arith.constant 0 : index
    %6 = vector.load %arg4[%c0_5, %c0_6] : memref<24x32xf32, #tpu.memory_space<vmem>>, vector<24x32xf32>
    tpu.vector_store %arg4[%c0_5, %c0_6], %5 {strides = array<i32>} : memref<24x32xf32, #tpu.memory_space<vmem>>, vector<24x32xf32>,
    return
  }
  func.func @transform_0(%arg0: i32) -> (i32, i32) {
    %c0_i32 = arith.constant 0 : i32
    %c0_i32_0 = arith.constant 0 : i32
    return %arg0, %c0_i32 : i32, i32
  }
  func.func @transform_1(%arg0: i32) -> (i32, i32) {
    %c0_i32 = arith.constant 0 : i32
    %c0_i32_0 = arith.constant 0 : i32
    %c0_i32_1 = arith.constant 0 : i32
    return %c0_i32, %c0_i32_0 : i32, i32
  }
  func.func @transform_2(%arg0: i32) -> (i32, i32) {
    %c0_i32 = arith.constant 0 : i32
    %c0_i32_0 = arith.constant 0 : i32
    %c0_i32_1 = arith.constant 0 : i32
    return %c0_i32, %c0_i32_0 : i32, i32
  }
  func.func @transform_3(%arg0: i32) -> (i32, i32) {
    %c0_i32 = arith.constant 0 : i32
    %c0_i32_0 = arith.constant 0 : i32
    return %arg0, %c0_i32 : i32, i32
  }
}

module attributes {stable_mosaic.version = 11 : i64} {
  func.func @_add_ln_kernel(%arg0: i32, %arg1: memref<16x32xf32, #tpu.memory_space<vmem>>, %arg2: memref<16x32xf32, #tpu.memory_space<vmem>>, %arg3: memref<1x32xf32, #tpu.memory_space<vmem>>, %arg4: memref<1x32xf32, #tpu.memory_space<vmem>>, %arg5: memref<16x32xf32, #tpu.memory_space<vmem>>) attributes {dimension_semantics = [#tpu.dimension_semantics<parallel>], iteration_bounds = array<i64: 1>, scalar_prefetch = 0 : i64, scratch_operands = 0 : i64, tpu.core_type = #tpu.core_type<tc>, window_params = [{transform_indices = @transform_0, window_bounds = array<i64: 16, 32>}, {transform_indices = @transform_1, window_bounds = array<i64: 16, 32>}, {pipeline_mode = #tpu.pipeline_mode<synchronous>, transform_indices = @transform_2, window_bounds = array<i64: 1, 32>}, {pipeline_mode = #tpu.pipeline_mode<synchronous>, transform_indices = @transform_3, window_bounds = array<i64: 1, 32>}, {transform_indices = @transform_4, window_bounds = array<i64: 16, 32>}]} {
    %c0 = arith.constant 0 : index
    %c0_0 = arith.constant 0 : index
    %0 = vector.load %arg1[%c0, %c0_0] : memref<16x32xf32, #tpu.memory_space<vmem>>, vector<16x32xf32>
    %c0_1 = arith.constant 0 : index
    %c0_2 = arith.constant 0 : index
    %1 = vector.load %arg2[%c0_1, %c0_2] : memref<16x32xf32, #tpu.memory_space<vmem>>, vector<16x32xf32>
    %2 = arith.addf %0, %1 : vector<16x32xf32>
    %cst = arith.constant dense<0.000000e+00> : vector<16xf32>
    %3 = vector.multi_reduction <add>, %2, %cst [1] : vector<16x32xf32> to vector<16xf32>
    %4 = vector.shape_cast %3 : vector<16xf32> to vector<16x1xf32>
    %cst_3 = arith.constant 3.200000e+01 : f32
    %5 = vector.broadcast %cst_3 : f32 to vector<16x1xf32>
    %6 = arith.divf %4, %5 : vector<16x1xf32>
    %7 = vector.broadcast %6 : vector<16x1xf32> to vector<16x32xf32>
    %8 = arith.subf %2, %7 : vector<16x32xf32>
    %9 = arith.mulf %8, %8 : vector<16x32xf32>
    %cst_4 = arith.constant dense<0.000000e+00> : vector<16xf32>
    %10 = vector.multi_reduction <add>, %9, %cst_4 [1] : vector<16x32xf32> to vector<16xf32>
    %11 = vector.shape_cast %10 : vector<16xf32> to vector<16x1xf32>
    %cst_5 = arith.constant 3.200000e+01 : f32
    %12 = vector.broadcast %cst_5 : f32 to vector<16x1xf32>
    %13 = arith.divf %11, %12 : vector<16x1xf32>
    %14 = vector.broadcast %6 : vector<16x1xf32> to vector<16x32xf32>
    %15 = arith.subf %2, %14 : vector<16x32xf32>
    %cst_6 = arith.constant 9.99999974E-6 : f32
    %16 = vector.broadcast %cst_6 : f32 to vector<16x1xf32>
    %17 = arith.addf %13, %16 : vector<16x1xf32>
    %18 = math.rsqrt %17 : vector<16x1xf32>
    %19 = vector.broadcast %18 : vector<16x1xf32> to vector<16x32xf32>
    %20 = arith.mulf %15, %19 : vector<16x32xf32>
    %c0_7 = arith.constant 0 : index
    %c0_8 = arith.constant 0 : index
    %21 = vector.load %arg3[%c0_7, %c0_8] : memref<1x32xf32, #tpu.memory_space<vmem>>, vector<1x32xf32>
    %22 = vector.broadcast %21 : vector<1x32xf32> to vector<16x32xf32>
    %23 = arith.mulf %20, %22 : vector<16x32xf32>
    %c0_9 = arith.constant 0 : index
    %c0_10 = arith.constant 0 : index
    %24 = vector.load %arg4[%c0_9, %c0_10] : memref<1x32xf32, #tpu.memory_space<vmem>>, vector<1x32xf32>
    %25 = vector.broadcast %24 : vector<1x32xf32> to vector<16x32xf32>
    %26 = arith.addf %23, %25 : vector<16x32xf32>
    %c0_11 = arith.constant 0 : index
    %c0_12 = arith.constant 0 : index
    %27 = vector.load %arg5[%c0_11, %c0_12] : memref<16x32xf32, #tpu.memory_space<vmem>>, vector<16x32xf32>
    tpu.vector_store %arg5[%c0_11, %c0_12], %26 {strides = array<i32>} : memref<16x32xf32, #tpu.memory_space<vmem>>, vector<16x32xf32>,
    return
  }
  func.func @transform_0(%arg0: i32) -> (i32, i32) {
    %c0_i32 = arith.constant 0 : i32
    %c0_i32_0 = arith.constant 0 : i32
    return %arg0, %c0_i32 : i32, i32
  }
  func.func @transform_1(%arg0: i32) -> (i32, i32) {
    %c0_i32 = arith.constant 0 : i32
    %c0_i32_0 = arith.constant 0 : i32
    return %arg0, %c0_i32 : i32, i32
  }
  func.func @transform_2(%arg0: i32) -> (i32, i32) {
    %c0_i32 = arith.constant 0 : i32
    %c0_i32_0 = arith.constant 0 : i32
    %c0_i32_1 = arith.constant 0 : i32
    return %c0_i32, %c0_i32_0 : i32, i32
  }
  func.func @transform_3(%arg0: i32) -> (i32, i32) {
    %c0_i32 = arith.constant 0 : i32
    %c0_i32_0 = arith.constant 0 : i32
    %c0_i32_1 = arith.constant 0 : i32
    return %c0_i32, %c0_i32_0 : i32, i32
  }
  func.func @transform_4(%arg0: i32) -> (i32, i32) {
    %c0_i32 = arith.constant 0 : i32
    %c0_i32_0 = arith.constant 0 : i32
    return %arg0, %c0_i32 : i32, i32
  }
}

module attributes {stable_mosaic.version = 11 : i64} {
  func.func @_linear_kernel(%arg0: i32, %arg1: memref<24x32xf32, #tpu.memory_space<vmem>>, %arg2: memref<32x32xf32, #tpu.memory_space<vmem>>, %arg3: memref<1x32xf32, #tpu.memory_space<vmem>>, %arg4: memref<24x32xf32, #tpu.memory_space<vmem>>) attributes {dimension_semantics = [#tpu.dimension_semantics<parallel>], iteration_bounds = array<i64: 1>, scalar_prefetch = 0 : i64, scratch_operands = 0 : i64, tpu.core_type = #tpu.core_type<tc>, window_params = [{transform_indices = @transform_0, window_bounds = array<i64: 24, 32>}, {pipeline_mode = #tpu.pipeline_mode<synchronous>, transform_indices = @transform_1, window_bounds = array<i64: 32, 32>}, {pipeline_mode = #tpu.pipeline_mode<synchronous>, transform_indices = @transform_2, window_bounds = array<i64: 1, 32>}, {transform_indices = @transform_3, window_bounds = array<i64: 24, 32>}]} {
    %c0 = arith.constant 0 : index
    %c0_0 = arith.constant 0 : index
    %0 = vector.load %arg1[%c0, %c0_0] : memref<24x32xf32, #tpu.memory_space<vmem>>, vector<24x32xf32>
    %c0_1 = arith.constant 0 : index
    %c0_2 = arith.constant 0 : index
    %1 = vector.load %arg2[%c0_1, %c0_2] : memref<32x32xf32, #tpu.memory_space<vmem>>, vector<32x32xf32>
    %cst = arith.constant dense<0.000000e+00> : vector<24x32xf32>
    %2 = tpu.matmul %0, %1, %cst {dimension_numbers = #tpu.dot_dimension_numbers<[1], [0], [0], [1], [0, 0, 1, 1], [], []>, precision = #tpu.contract_precision<fp32>} : vector<24x32xf32>, vector<32x32xf32>, vector<24x32xf32> -> vector<24x32xf32>
    %c0_3 = arith.constant 0 : index
    %c0_4 = arith.constant 0 : index
    %3 = vector.load %arg3[%c0_3, %c0_4] : memref<1x32xf32, #tpu.memory_space<vmem>>, vector<1x32xf32>
    %4 = vector.broadcast %3 : vector<1x32xf32> to vector<24x32xf32>
    %5 = arith.addf %2, %4 : vector<24x32xf32>
    %c0_5 = arith.constant 0 : index
    %c0_6 = arith.constant 0 : index
    %6 = vector.load %arg4[%c0_5, %c0_6] : memref<24x32xf32, #tpu.memory_space<vmem>>, vector<24x32xf32>
    tpu.vector_store %arg4[%c0_5, %c0_6], %5 {strides = array<i32>} : memref<24x32xf32, #tpu.memory_space<vmem>>, vector<24x32xf32>,
    return
  }
  func.func @transform_0(%arg0: i32) -> (i32, i32) {
    %c0_i32 = arith.constant 0 : i32
    %c0_i32_0 = arith.constant 0 : i32
    return %arg0, %c0_i32 : i32, i32
  }
  func.func @transform_1(%arg0: i32) -> (i32, i32) {
    %c0_i32 = arith.constant 0 : i32
    %c0_i32_0 = arith.constant 0 : i32
    %c0_i32_1 = arith.constant 0 : i32
    return %c0_i32, %c0_i32_0 : i32, i32
  }
  func.func @transform_2(%arg0: i32) -> (i32, i32) {
    %c0_i32 = arith.constant 0 : i32
    %c0_i32_0 = arith.constant 0 : i32
    %c0_i32_1 = arith.constant 0 : i32
    return %c0_i32, %c0_i32_0 : i32, i32
  }
  func.func @transform_3(%arg0: i32) -> (i32, i32) {
    %c0_i32 = arith.constant 0 : i32
    %c0_i32_0 = arith.constant 0 : i32
    return %arg0, %c0_i32 : i32, i32
  }
}

module attributes {stable_mosaic.version = 11 : i64} {
  func.func @_attention_kernel(%arg0: i32, %arg1: memref<1x12x8xf32, #tpu.memory_space<vmem>>, %arg2: memref<1x12x8xf32, #tpu.memory_space<vmem>>, %arg3: memref<1x12x8xf32, #tpu.memory_space<vmem>>, %arg4: memref<1x12x12xf32, #tpu.memory_space<vmem>>, %arg5: memref<1x12x8xf32, #tpu.memory_space<vmem>>) attributes {dimension_semantics = [#tpu.dimension_semantics<parallel>], iteration_bounds = array<i64: 8>, scalar_prefetch = 0 : i64, scratch_operands = 0 : i64, tpu.core_type = #tpu.core_type<tc>, window_params = [{transform_indices = @transform_0, window_bounds = array<i64: 1, 12, 8>}, {transform_indices = @transform_1, window_bounds = array<i64: 1, 12, 8>}, {transform_indices = @transform_2, window_bounds = array<i64: 1, 12, 8>}, {transform_indices = @transform_3, window_bounds = array<i64: 1, 12, 12>}, {transform_indices = @transform_4, window_bounds = array<i64: 1, 12, 8>}]} {
    %c0 = arith.constant 0 : index
    %c0_0 = arith.constant 0 : index
    %c0_1 = arith.constant 0 : index
    %0 = vector.load %arg1[%c0, %c0_0, %c0_1] : memref<1x12x8xf32, #tpu.memory_space<vmem>>, vector<1x12x8xf32>
    %1 = vector.shape_cast %0 : vector<1x12x8xf32> to vector<12x8xf32>
    %c0_2 = arith.constant 0 : index
    %c0_3 = arith.constant 0 : index
    %c0_4 = arith.constant 0 : index
    %2 = vector.load %arg2[%c0_2, %c0_3, %c0_4] : memref<1x12x8xf32, #tpu.memory_space<vmem>>, vector<1x12x8xf32>
    %3 = vector.shape_cast %2 : vector<1x12x8xf32> to vector<12x8xf32>
    %c0_5 = arith.constant 0 : index
    %c0_6 = arith.constant 0 : index
    %c0_7 = arith.constant 0 : index
    %4 = vector.load %arg3[%c0_5, %c0_6, %c0_7] : memref<1x12x8xf32, #tpu.memory_space<vmem>>, vector<1x12x8xf32>
    %5 = vector.shape_cast %4 : vector<1x12x8xf32> to vector<12x8xf32>
    %6 = tpu.transpose %3, [1, 0] : vector<12x8xf32> -> vector<8x12xf32>
    %cst = arith.constant dense<0.000000e+00> : vector<12x12xf32>
    %7 = tpu.matmul %1, %6, %cst {dimension_numbers = #tpu.dot_dimension_numbers<[1], [0], [0], [1], [0, 0, 1, 1], [], []>, precision = #tpu.contract_precision<fp32>} : vector<12x8xf32>, vector<8x12xf32>, vector<12x12xf32> -> vector<12x12xf32>
    %cst_8 = arith.constant 0.353553385 : f32
    %8 = vector.broadcast %cst_8 : f32 to vector<12x12xf32>
    %9 = arith.mulf %7, %8 : vector<12x12xf32>
    %c0_9 = arith.constant 0 : index
    %c0_10 = arith.constant 0 : index
    %c0_11 = arith.constant 0 : index
    %10 = vector.load %arg4[%c0_9, %c0_10, %c0_11] : memref<1x12x12xf32, #tpu.memory_space<vmem>>, vector<1x12x12xf32>
    %11 = vector.shape_cast %10 : vector<1x12x12xf32> to vector<12x12xf32>
    %12 = arith.addf %9, %11 : vector<12x12xf32>
    %cst_12 = arith.constant dense<0xFF800000> : vector<12xf32>
    %13 = vector.multi_reduction <maximumf>, %12, %cst_12 [1] : vector<12x12xf32> to vector<12xf32>
    %14 = vector.shape_cast %13 : vector<12xf32> to vector<12x1xf32>
    %15 = vector.broadcast %14 : vector<12x1xf32> to vector<12x12xf32>
    %16 = arith.subf %12, %15 : vector<12x12xf32>
    %17 = math.exp %16 : vector<12x12xf32>
    %cst_13 = arith.constant dense<0.000000e+00> : vector<12xf32>
    %18 = vector.multi_reduction <add>, %17, %cst_13 [1] : vector<12x12xf32> to vector<12xf32>
    %19 = vector.shape_cast %18 : vector<12xf32> to vector<12x1xf32>
    %20 = vector.broadcast %19 : vector<12x1xf32> to vector<12x12xf32>
    %21 = arith.divf %17, %20 : vector<12x12xf32>
    %cst_14 = arith.constant dense<0.000000e+00> : vector<12x8xf32>
    %22 = tpu.matmul %21, %5, %cst_14 {dimension_numbers = #tpu.dot_dimension_numbers<[1], [0], [0], [1], [0, 0, 1, 1], [], []>, precision = #tpu.contract_precision<fp32>} : vector<12x12xf32>, vector<12x8xf32>, vector<12x8xf32> -> vector<12x8xf32>
    %c0_15 = arith.constant 0 : index
    %c0_16 = arith.constant 0 : index
    %c0_17 = arith.constant 0 : index
    %23 = vector.load %arg5[%c0_15, %c0_16, %c0_17] : memref<1x12x8xf32, #tpu.memory_space<vmem>>, vector<1x12x8xf32>
    %24 = vector.shape_cast %23 : vector<1x12x8xf32> to vector<12x8xf32>
    %25 = vector.shape_cast %22 : vector<12x8xf32> to vector<1x12x8xf32>
    tpu.vector_store %arg5[%c0_15, %c0_16, %c0_17], %25 {strides = array<i32>} : memref<1x12x8xf32, #tpu.memory_space<vmem>>, vector<1x12x8xf32>,
    return
  }
  func.func @transform_0(%arg0: i32) -> (i32, i32, i32) {
    %c0_i32 = arith.constant 0 : i32
    %c0_i32_0 = arith.constant 0 : i32
    %c0_i32_1 = arith.constant 0 : i32
    return %arg0, %c0_i32, %c0_i32_0 : i32, i32, i32
  }
  func.func @transform_1(%arg0: i32) -> (i32, i32, i32) {
    %c0_i32 = arith.constant 0 : i32
    %c0_i32_0 = arith.constant 0 : i32
    %c0_i32_1 = arith.constant 0 : i32
    return %arg0, %c0_i32, %c0_i32_0 : i32, i32, i32
  }
  func.func @transform_2(%arg0: i32) -> (i32, i32, i32) {
    %c0_i32 = arith.constant 0 : i32
    %c0_i32_0 = arith.constant 0 : i32
    %c0_i32_1 = arith.constant 0 : i32
    return %arg0, %c0_i32, %c0_i32_0 : i32, i32, i32
  }
  func.func @transform_3(%arg0: i32) -> (i32, i32, i32) {
    %c0_i32 = arith.constant 0 : i32
    %c0_i32_0 = arith.constant 0 : i32
    %c0_i32_1 = arith.constant 0 : i32
    return %arg0, %c0_i32, %c0_i32_0 : i32, i32, i32
  }
  func.func @transform_4(%arg0: i32) -> (i32, i32, i32) {
    %c0_i32 = arith.constant 0 : i32
    %c0_i32_0 = arith.constant 0 : i32
    %c0_i32_1 = arith.constant 0 : i32
    return %arg0, %c0_i32, %c0_i32_0 : i32, i32, i32
  }
}

module attributes {stable_mosaic.version = 11 : i64} {
  func.func @_add_ln_kernel(%arg0: i32, %arg1: memref<24x32xf32, #tpu.memory_space<vmem>>, %arg2: memref<24x32xf32, #tpu.memory_space<vmem>>, %arg3: memref<1x32xf32, #tpu.memory_space<vmem>>, %arg4: memref<1x32xf32, #tpu.memory_space<vmem>>, %arg5: memref<24x32xf32, #tpu.memory_space<vmem>>) attributes {dimension_semantics = [#tpu.dimension_semantics<parallel>], iteration_bounds = array<i64: 1>, scalar_prefetch = 0 : i64, scratch_operands = 0 : i64, tpu.core_type = #tpu.core_type<tc>, window_params = [{transform_indices = @transform_0, window_bounds = array<i64: 24, 32>}, {transform_indices = @transform_1, window_bounds = array<i64: 24, 32>}, {pipeline_mode = #tpu.pipeline_mode<synchronous>, transform_indices = @transform_2, window_bounds = array<i64: 1, 32>}, {pipeline_mode = #tpu.pipeline_mode<synchronous>, transform_indices = @transform_3, window_bounds = array<i64: 1, 32>}, {transform_indices = @transform_4, window_bounds = array<i64: 24, 32>}]} {
    %c0 = arith.constant 0 : index
    %c0_0 = arith.constant 0 : index
    %0 = vector.load %arg1[%c0, %c0_0] : memref<24x32xf32, #tpu.memory_space<vmem>>, vector<24x32xf32>
    %c0_1 = arith.constant 0 : index
    %c0_2 = arith.constant 0 : index
    %1 = vector.load %arg2[%c0_1, %c0_2] : memref<24x32xf32, #tpu.memory_space<vmem>>, vector<24x32xf32>
    %2 = arith.addf %0, %1 : vector<24x32xf32>
    %cst = arith.constant dense<0.000000e+00> : vector<24xf32>
    %3 = vector.multi_reduction <add>, %2, %cst [1] : vector<24x32xf32> to vector<24xf32>
    %4 = vector.shape_cast %3 : vector<24xf32> to vector<24x1xf32>
    %cst_3 = arith.constant 3.200000e+01 : f32
    %5 = vector.broadcast %cst_3 : f32 to vector<24x1xf32>
    %6 = arith.divf %4, %5 : vector<24x1xf32>
    %7 = vector.broadcast %6 : vector<24x1xf32> to vector<24x32xf32>
    %8 = arith.subf %2, %7 : vector<24x32xf32>
    %9 = arith.mulf %8, %8 : vector<24x32xf32>
    %cst_4 = arith.constant dense<0.000000e+00> : vector<24xf32>
    %10 = vector.multi_reduction <add>, %9, %cst_4 [1] : vector<24x32xf32> to vector<24xf32>
    %11 = vector.shape_cast %10 : vector<24xf32> to vector<24x1xf32>
    %cst_5 = arith.constant 3.200000e+01 : f32
    %12 = vector.broadcast %cst_5 : f32 to vector<24x1xf32>
    %13 = arith.divf %11, %12 : vector<24x1xf32>
    %14 = vector.broadcast %6 : vector<24x1xf32> to vector<24x32xf32>
    %15 = arith.subf %2, %14 : vector<24x32xf32>
    %cst_6 = arith.constant 9.99999974E-6 : f32
    %16 = vector.broadcast %cst_6 : f32 to vector<24x1xf32>
    %17 = arith.addf %13, %16 : vector<24x1xf32>
    %18 = math.rsqrt %17 : vector<24x1xf32>
    %19 = vector.broadcast %18 : vector<24x1xf32> to vector<24x32xf32>
    %20 = arith.mulf %15, %19 : vector<24x32xf32>
    %c0_7 = arith.constant 0 : index
    %c0_8 = arith.constant 0 : index
    %21 = vector.load %arg3[%c0_7, %c0_8] : memref<1x32xf32, #tpu.memory_space<vmem>>, vector<1x32xf32>
    %22 = vector.broadcast %21 : vector<1x32xf32> to vector<24x32xf32>
    %23 = arith.mulf %20, %22 : vector<24x32xf32>
    %c0_9 = arith.constant 0 : index
    %c0_10 = arith.constant 0 : index
    %24 = vector.load %arg4[%c0_9, %c0_10] : memref<1x32xf32, #tpu.memory_space<vmem>>, vector<1x32xf32>
    %25 = vector.broadcast %24 : vector<1x32xf32> to vector<24x32xf32>
    %26 = arith.addf %23, %25 : vector<24x32xf32>
    %c0_11 = arith.constant 0 : index
    %c0_12 = arith.constant 0 : index
    %27 = vector.load %arg5[%c0_11, %c0_12] : memref<24x32xf32, #tpu.memory_space<vmem>>, vector<24x32xf32>
    tpu.vector_store %arg5[%c0_11, %c0_12], %26 {strides = array<i32>} : memref<24x32xf32, #tpu.memory_space<vmem>>, vector<24x32xf32>,
    return
  }
  func.func @transform_0(%arg0: i32) -> (i32, i32) {
    %c0_i32 = arith.constant 0 : i32
    %c0_i32_0 = arith.constant 0 : i32
    return %arg0, %c0_i32 : i32, i32
  }
  func.func @transform_1(%arg0: i32) -> (i32, i32) {
    %c0_i32 = arith.constant 0 : i32
    %c0_i32_0 = arith.constant 0 : i32
    return %arg0, %c0_i32 : i32, i32
  }
  func.func @transform_2(%arg0: i32) -> (i32, i32) {
    %c0_i32 = arith.constant 0 : i32
    %c0_i32_0 = arith.constant 0 : i32
    %c0_i32_1 = arith.constant 0 : i32
    return %c0_i32, %c0_i32_0 : i32, i32
  }
  func.func @transform_3(%arg0: i32) -> (i32, i32) {
    %c0_i32 = arith.constant 0 : i32
    %c0_i32_0 = arith.constant 0 : i32
    %c0_i32_1 = arith.constant 0 : i32
    return %c0_i32, %c0_i32_0 : i32, i32
  }
  func.func @transform_4(%arg0: i32) -> (i32, i32) {
    %c0_i32 = arith.constant 0 : i32
    %c0_i32_0 = arith.constant 0 : i32
    return %arg0, %c0_i32 : i32, i32
  }
}

module attributes {stable_mosaic.version = 11 : i64} {
  func.func @_ffn_kernel(%arg0: i32, %arg1: memref<24x32xf32, #tpu.memory_space<vmem>>, %arg2: memref<32x64xf32, #tpu.memory_space<vmem>>, %arg3: memref<1x64xf32, #tpu.memory_space<vmem>>, %arg4: memref<64x32xf32, #tpu.memory_space<vmem>>, %arg5: memref<1x32xf32, #tpu.memory_space<vmem>>, %arg6: memref<24x32xf32, #tpu.memory_space<vmem>>) attributes {dimension_semantics = [#tpu.dimension_semantics<parallel>], iteration_bounds = array<i64: 1>, scalar_prefetch = 0 : i64, scratch_operands = 0 : i64, tpu.core_type = #tpu.core_type<tc>, window_params = [{transform_indices = @transform_0, window_bounds = array<i64: 24, 32>}, {pipeline_mode = #tpu.pipeline_mode<synchronous>, transform_indices = @transform_1, window_bounds = array<i64: 32, 64>}, {pipeline_mode = #tpu.pipeline_mode<synchronous>, transform_indices = @transform_2, window_bounds = array<i64: 1, 64>}, {pipeline_mode = #tpu.pipeline_mode<synchronous>, transform_indices = @transform_3, window_bounds = array<i64: 64, 32>}, {pipeline_mode = #tpu.pipeline_mode<synchronous>, transform_indices = @transform_4, window_bounds = array<i64: 1, 32>}, {transform_indices = @transform_5, window_bounds = array<i64: 24, 32>}]} {
    %c0 = arith.constant 0 : index
    %c0_0 = arith.constant 0 : index
    %0 = vector.load %arg1[%c0, %c0_0] : memref<24x32xf32, #tpu.memory_space<vmem>>, vector<24x32xf32>
    %c0_1 = arith.constant 0 : index
    %c0_2 = arith.constant 0 : index
    %1 = vector.load %arg2[%c0_1, %c0_2] : memref<32x64xf32, #tpu.memory_space<vmem>>, vector<32x64xf32>
    %cst = arith.constant dense<0.000000e+00> : vector<24x64xf32>
    %2 = tpu.matmul %0, %1, %cst {dimension_numbers = #tpu.dot_dimension_numbers<[1], [0], [0], [1], [0, 0, 1, 1], [], []>, precision = #tpu.contract_precision<fp32>} : vector<24x32xf32>, vector<32x64xf32>, vector<24x64xf32> -> vector<24x64xf32>
    %c0_3 = arith.constant 0 : index
    %c0_4 = arith.constant 0 : index
    %3 = vector.load %arg3[%c0_3, %c0_4] : memref<1x64xf32, #tpu.memory_space<vmem>>, vector<1x64xf32>
    %4 = vector.broadcast %3 : vector<1x64xf32> to vector<24x64xf32>
    %5 = arith.addf %2, %4 : vector<24x64xf32>
    %cst_5 = arith.constant 0.000000e+00 : f32
    %6 = vector.broadcast %cst_5 : f32 to vector<24x64xf32>
    %7 = arith.maximumf %5, %6 : vector<24x64xf32>
    %c0_6 = arith.constant 0 : index
    %c0_7 = arith.constant 0 : index
    %8 = vector.load %arg4[%c0_6, %c0_7] : memref<64x32xf32, #tpu.memory_space<vmem>>, vector<64x32xf32>
    %cst_8 = arith.constant dense<0.000000e+00> : vector<24x32xf32>
    %9 = tpu.matmul %7, %8, %cst_8 {dimension_numbers = #tpu.dot_dimension_numbers<[1], [0], [0], [1], [0, 0, 1, 1], [], []>, precision = #tpu.contract_precision<fp32>} : vector<24x64xf32>, vector<64x32xf32>, vector<24x32xf32> -> vector<24x32xf32>
    %c0_9 = arith.constant 0 : index
    %c0_10 = arith.constant 0 : index
    %10 = vector.load %arg5[%c0_9, %c0_10] : memref<1x32xf32, #tpu.memory_space<vmem>>, vector<1x32xf32>
    %11 = vector.broadcast %10 : vector<1x32xf32> to vector<24x32xf32>
    %12 = arith.addf %9, %11 : vector<24x32xf32>
    %c0_11 = arith.constant 0 : index
    %c0_12 = arith.constant 0 : index
    %13 = vector.load %arg6[%c0_11, %c0_12] : memref<24x32xf32, #tpu.memory_space<vmem>>, vector<24x32xf32>
    tpu.vector_store %arg6[%c0_11, %c0_12], %12 {strides = array<i32>} : memref<24x32xf32, #tpu.memory_space<vmem>>, vector<24x32xf32>,
    return
  }
  func.func @transform_0(%arg0: i32) -> (i32, i32) {
    %c0_i32 = arith.constant 0 : i32
    %c0_i32_0 = arith.constant 0 : i32
    return %arg0, %c0_i32 : i32, i32
  }
  func.func @transform_1(%arg0: i32) -> (i32, i32) {
    %c0_i32 = arith.constant 0 : i32
    %c0_i32_0 = arith.constant 0 : i32
    %c0_i32_1 = arith.constant 0 : i32
    return %c0_i32, %c0_i32_0 : i32, i32
  }
  func.func @transform_2(%arg0: i32) -> (i32, i32) {
    %c0_i32 = arith.constant 0 : i32
    %c0_i32_0 = arith.constant 0 : i32
    %c0_i32_1 = arith.constant 0 : i32
    return %c0_i32, %c0_i32_0 : i32, i32
  }
  func.func @transform_3(%arg0: i32) -> (i32, i32) {
    %c0_i32 = arith.constant 0 : i32
    %c0_i32_0 = arith.constant 0 : i32
    %c0_i32_1 = arith.constant 0 : i32
    return %c0_i32, %c0_i32_0 : i32, i32
  }
  func.func @transform_4(%arg0: i32) -> (i32, i32) {
    %c0_i32 = arith.constant 0 : i32
    %c0_i32_0 = arith.constant 0 : i32
    %c0_i32_1 = arith.constant 0 : i32
    return %c0_i32, %c0_i32_0 : i32, i32
  }
  func.func @transform_5(%arg0: i32) -> (i32, i32) {
    %c0_i32 = arith.constant 0 : i32
    %c0_i32_0 = arith.constant 0 : i32
    return %arg0, %c0_i32 : i32, i32
  }
}

module attributes {stable_mosaic.version = 11 : i64} {
  func.func @_attention_kernel(%arg0: i32, %arg1: memref<1x8x8xf32, #tpu.memory_space<vmem>>, %arg2: memref<1x12x8xf32, #tpu.memory_space<vmem>>, %arg3: memref<1x12x8xf32, #tpu.memory_space<vmem>>, %arg4: memref<1x8x12xf32, #tpu.memory_space<vmem>>, %arg5: memref<1x8x8xf32, #tpu.memory_space<vmem>>) attributes {dimension_semantics = [#tpu.dimension_semantics<parallel>], iteration_bounds = array<i64: 8>, scalar_prefetch = 0 : i64, scratch_operands = 0 : i64, tpu.core_type = #tpu.core_type<tc>, window_params = [{transform_indices = @transform_0, window_bounds = array<i64: 1, 8, 8>}, {transform_indices = @transform_1, window_bounds = array<i64: 1, 12, 8>}, {transform_indices = @transform_2, window_bounds = array<i64: 1, 12, 8>}, {transform_indices = @transform_3, window_bounds = array<i64: 1, 8, 12>}, {transform_indices = @transform_4, window_bounds = array<i64: 1, 8, 8>}]} {
    %c0 = arith.constant 0 : index
    %c0_0 = arith.constant 0 : index
    %c0_1 = arith.constant 0 : index
    %0 = vector.load %arg1[%c0, %c0_0, %c0_1] : memref<1x8x8xf32, #tpu.memory_space<vmem>>, vector<1x8x8xf32>
    %1 = vector.shape_cast %0 : vector<1x8x8xf32> to vector<8x8xf32>
    %c0_2 = arith.constant 0 : index
    %c0_3 = arith.constant 0 : index
    %c0_4 = arith.constant 0 : index
    %2 = vector.load %arg2[%c0_2, %c0_3, %c0_4] : memref<1x12x8xf32, #tpu.memory_space<vmem>>, vector<1x12x8xf32>
    %3 = vector.shape_cast %2 : vector<1x12x8xf32> to vector<12x8xf32>
    %c0_5 = arith.constant 0 : index
    %c0_6 = arith.constant 0 : index
    %c0_7 = arith.constant 0 : index
    %4 = vector.load %arg3[%c0_5, %c0_6, %c0_7] : memref<1x12x8xf32, #tpu.memory_space<vmem>>, vector<1x12x8xf32>
    %5 = vector.shape_cast %4 : vector<1x12x8xf32> to vector<12x8xf32>
    %6 = tpu.transpose %3, [1, 0] : vector<12x8xf32> -> vector<8x12xf32>
    %cst = arith.constant dense<0.000000e+00> : vector<8x12xf32>
    %7 = tpu.matmul %1, %6, %cst {dimension_numbers = #tpu.dot_dimension_numbers<[1], [0], [0], [1], [0, 0, 1, 1], [], []>, precision = #tpu.contract_precision<fp32>} : vector<8x8xf32>, vector<8x12xf32>, vector<8x12xf32> -> vector<8x12xf32>
    %cst_8 = arith.constant 0.353553385 : f32
    %8 = vector.broadcast %cst_8 : f32 to vector<8x12xf32>
    %9 = arith.mulf %7, %8 : vector<8x12xf32>
    %c0_9 = arith.constant 0 : index
    %c0_10 = arith.constant 0 : index
    %c0_11 = arith.constant 0 : index
    %10 = vector.load %arg4[%c0_9, %c0_10, %c0_11] : memref<1x8x12xf32, #tpu.memory_space<vmem>>, vector<1x8x12xf32>
    %11 = vector.shape_cast %10 : vector<1x8x12xf32> to vector<8x12xf32>
    %12 = arith.addf %9, %11 : vector<8x12xf32>
    %cst_12 = arith.constant dense<0xFF800000> : vector<8xf32>
    %13 = vector.multi_reduction <maximumf>, %12, %cst_12 [1] : vector<8x12xf32> to vector<8xf32>
    %14 = vector.shape_cast %13 : vector<8xf32> to vector<8x1xf32>
    %15 = vector.broadcast %14 : vector<8x1xf32> to vector<8x12xf32>
    %16 = arith.subf %12, %15 : vector<8x12xf32>
    %17 = math.exp %16 : vector<8x12xf32>
    %cst_13 = arith.constant dense<0.000000e+00> : vector<8xf32>
    %18 = vector.multi_reduction <add>, %17, %cst_13 [1] : vector<8x12xf32> to vector<8xf32>
    %19 = vector.shape_cast %18 : vector<8xf32> to vector<8x1xf32>
    %20 = vector.broadcast %19 : vector<8x1xf32> to vector<8x12xf32>
    %21 = arith.divf %17, %20 : vector<8x12xf32>
    %cst_14 = arith.constant dense<0.000000e+00> : vector<8x8xf32>
    %22 = tpu.matmul %21, %5, %cst_14 {dimension_numbers = #tpu.dot_dimension_numbers<[1], [0], [0], [1], [0, 0, 1, 1], [], []>, precision = #tpu.contract_precision<fp32>} : vector<8x12xf32>, vector<12x8xf32>, vector<8x8xf32> -> vector<8x8xf32>
    %c0_15 = arith.constant 0 : index
    %c0_16 = arith.constant 0 : index
    %c0_17 = arith.constant 0 : index
    %23 = vector.load %arg5[%c0_15, %c0_16, %c0_17] : memref<1x8x8xf32, #tpu.memory_space<vmem>>, vector<1x8x8xf32>
    %24 = vector.shape_cast %23 : vector<1x8x8xf32> to vector<8x8xf32>
    %25 = vector.shape_cast %22 : vector<8x8xf32> to vector<1x8x8xf32>
    tpu.vector_store %arg5[%c0_15, %c0_16, %c0_17], %25 {strides = array<i32>} : memref<1x8x8xf32, #tpu.memory_space<vmem>>, vector<1x8x8xf32>,
    return
  }
  func.func @transform_0(%arg0: i32) -> (i32, i32, i32) {
    %c0_i32 = arith.constant 0 : i32
    %c0_i32_0 = arith.constant 0 : i32
    %c0_i32_1 = arith.constant 0 : i32
    return %arg0, %c0_i32, %c0_i32_0 : i32, i32, i32
  }
  func.func @transform_1(%arg0: i32) -> (i32, i32, i32) {
    %c0_i32 = arith.constant 0 : i32
    %c0_i32_0 = arith.constant 0 : i32
    %c0_i32_1 = arith.constant 0 : i32
    return %arg0, %c0_i32, %c0_i32_0 : i32, i32, i32
  }
  func.func @transform_2(%arg0: i32) -> (i32, i32, i32) {
    %c0_i32 = arith.constant 0 : i32
    %c0_i32_0 = arith.constant 0 : i32
    %c0_i32_1 = arith.constant 0 : i32
    return %arg0, %c0_i32, %c0_i32_0 : i32, i32, i32
  }
  func.func @transform_3(%arg0: i32) -> (i32, i32, i32) {
    %c0_i32 = arith.constant 0 : i32
    %c0_i32_0 = arith.constant 0 : i32
    %c0_i32_1 = arith.constant 0 : i32
    return %arg0, %c0_i32, %c0_i32_0 : i32, i32, i32
  }
  func.func @transform_4(%arg0: i32) -> (i32, i32, i32) {
    %c0_i32 = arith.constant 0 : i32
    %c0_i32_0 = arith.constant 0 : i32
    %c0_i32_1 = arith.constant 0 : i32
    return %arg0, %c0_i32, %c0_i32_0 : i32, i32, i32
  }
}

module attributes {stable_mosaic.version = 11 : i64} {
  func.func @_add_ln_kernel(%arg0: i32, %arg1: memref<16x32xf32, #tpu.memory_space<vmem>>, %arg2: memref<16x32xf32, #tpu.memory_space<vmem>>, %arg3: memref<1x32xf32, #tpu.memory_space<vmem>>, %arg4: memref<1x32xf32, #tpu.memory_space<vmem>>, %arg5: memref<16x32xf32, #tpu.memory_space<vmem>>) attributes {dimension_semantics = [#tpu.dimension_semantics<parallel>], iteration_bounds = array<i64: 1>, scalar_prefetch = 0 : i64, scratch_operands = 0 : i64, tpu.core_type = #tpu.core_type<tc>, window_params = [{transform_indices = @transform_0, window_bounds = array<i64: 16, 32>}, {transform_indices = @transform_1, window_bounds = array<i64: 16, 32>}, {pipeline_mode = #tpu.pipeline_mode<synchronous>, transform_indices = @transform_2, window_bounds = array<i64: 1, 32>}, {pipeline_mode = #tpu.pipeline_mode<synchronous>, transform_indices = @transform_3, window_bounds = array<i64: 1, 32>}, {transform_indices = @transform_4, window_bounds = array<i64: 16, 32>}]} {
    %c0 = arith.constant 0 : index
    %c0_0 = arith.constant 0 : index
    %0 = vector.load %arg1[%c0, %c0_0] : memref<16x32xf32, #tpu.memory_space<vmem>>, vector<16x32xf32>
    %c0_1 = arith.constant 0 : index
    %c0_2 = arith.constant 0 : index
    %1 = vector.load %arg2[%c0_1, %c0_2] : memref<16x32xf32, #tpu.memory_space<vmem>>, vector<16x32xf32>
    %2 = arith.addf %0, %1 : vector<16x32xf32>
    %cst = arith.constant dense<0.000000e+00> : vector<16xf32>
    %3 = vector.multi_reduction <add>, %2, %cst [1] : vector<16x32xf32> to vector<16xf32>
    %4 = vector.shape_cast %3 : vector<16xf32> to vector<16x1xf32>
    %cst_3 = arith.constant 3.200000e+01 : f32
    %5 = vector.broadcast %cst_3 : f32 to vector<16x1xf32>
    %6 = arith.divf %4, %5 : vector<16x1xf32>
    %7 = vector.broadcast %6 : vector<16x1xf32> to vector<16x32xf32>
    %8 = arith.subf %2, %7 : vector<16x32xf32>
    %9 = arith.mulf %8, %8 : vector<16x32xf32>
    %cst_4 = arith.constant dense<0.000000e+00> : vector<16xf32>
    %10 = vector.multi_reduction <add>, %9, %cst_4 [1] : vector<16x32xf32> to vector<16xf32>
    %11 = vector.shape_cast %10 : vector<16xf32> to vector<16x1xf32>
    %cst_5 = arith.constant 3.200000e+01 : f32
    %12 = vector.broadcast %cst_5 : f32 to vector<16x1xf32>
    %13 = arith.divf %11, %12 : vector<16x1xf32>
    %14 = vector.broadcast %6 : vector<16x1xf32> to vector<16x32xf32>
    %15 = arith.subf %2, %14 : vector<16x32xf32>
    %cst_6 = arith.constant 9.99999974E-6 : f32
    %16 = vector.broadcast %cst_6 : f32 to vector<16x1xf32>
    %17 = arith.addf %13, %16 : vector<16x1xf32>
    %18 = math.rsqrt %17 : vector<16x1xf32>
    %19 = vector.broadcast %18 : vector<16x1xf32> to vector<16x32xf32>
    %20 = arith.mulf %15, %19 : vector<16x32xf32>
    %c0_7 = arith.constant 0 : index
    %c0_8 = arith.constant 0 : index
    %21 = vector.load %arg3[%c0_7, %c0_8] : memref<1x32xf32, #tpu.memory_space<vmem>>, vector<1x32xf32>
    %22 = vector.broadcast %21 : vector<1x32xf32> to vector<16x32xf32>
    %23 = arith.mulf %20, %22 : vector<16x32xf32>
    %c0_9 = arith.constant 0 : index
    %c0_10 = arith.constant 0 : index
    %24 = vector.load %arg4[%c0_9, %c0_10] : memref<1x32xf32, #tpu.memory_space<vmem>>, vector<1x32xf32>
    %25 = vector.broadcast %24 : vector<1x32xf32> to vector<16x32xf32>
    %26 = arith.addf %23, %25 : vector<16x32xf32>
    %c0_11 = arith.constant 0 : index
    %c0_12 = arith.constant 0 : index
    %27 = vector.load %arg5[%c0_11, %c0_12] : memref<16x32xf32, #tpu.memory_space<vmem>>, vector<16x32xf32>
    tpu.vector_store %arg5[%c0_11, %c0_12], %26 {strides = array<i32>} : memref<16x32xf32, #tpu.memory_space<vmem>>, vector<16x32xf32>,
    return
  }
  func.func @transform_0(%arg0: i32) -> (i32, i32) {
    %c0_i32 = arith.constant 0 : i32
    %c0_i32_0 = arith.constant 0 : i32
    return %arg0, %c0_i32 : i32, i32
  }
  func.func @transform_1(%arg0: i32) -> (i32, i32) {
    %c0_i32 = arith.constant 0 : i32
    %c0_i32_0 = arith.constant 0 : i32
    return %arg0, %c0_i32 : i32, i32
  }
  func.func @transform_2(%arg0: i32) -> (i32, i32) {
    %c0_i32 = arith.constant 0 : i32
    %c0_i32_0 = arith.constant 0 : i32
    %c0_i32_1 = arith.constant 0 : i32
    return %c0_i32, %c0_i32_0 : i32, i32
  }
  func.func @transform_3(%arg0: i32) -> (i32, i32) {
    %c0_i32 = arith.constant 0 : i32
    %c0_i32_0 = arith.constant 0 : i32
    %c0_i32_1 = arith.constant 0 : i32
    return %c0_i32, %c0_i32_0 : i32, i32
  }
  func.func @transform_4(%arg0: i32) -> (i32, i32) {
    %c0_i32 = arith.constant 0 : i32
    %c0_i32_0 = arith.constant 0 : i32
    return %arg0, %c0_i32 : i32, i32
  }
}

module attributes {stable_mosaic.version = 11 : i64} {
  func.func @_ffn_kernel(%arg0: i32, %arg1: memref<16x32xf32, #tpu.memory_space<vmem>>, %arg2: memref<32x64xf32, #tpu.memory_space<vmem>>, %arg3: memref<1x64xf32, #tpu.memory_space<vmem>>, %arg4: memref<64x32xf32, #tpu.memory_space<vmem>>, %arg5: memref<1x32xf32, #tpu.memory_space<vmem>>, %arg6: memref<16x32xf32, #tpu.memory_space<vmem>>) attributes {dimension_semantics = [#tpu.dimension_semantics<parallel>], iteration_bounds = array<i64: 1>, scalar_prefetch = 0 : i64, scratch_operands = 0 : i64, tpu.core_type = #tpu.core_type<tc>, window_params = [{transform_indices = @transform_0, window_bounds = array<i64: 16, 32>}, {pipeline_mode = #tpu.pipeline_mode<synchronous>, transform_indices = @transform_1, window_bounds = array<i64: 32, 64>}, {pipeline_mode = #tpu.pipeline_mode<synchronous>, transform_indices = @transform_2, window_bounds = array<i64: 1, 64>}, {pipeline_mode = #tpu.pipeline_mode<synchronous>, transform_indices = @transform_3, window_bounds = array<i64: 64, 32>}, {pipeline_mode = #tpu.pipeline_mode<synchronous>, transform_indices = @transform_4, window_bounds = array<i64: 1, 32>}, {transform_indices = @transform_5, window_bounds = array<i64: 16, 32>}]} {
    %c0 = arith.constant 0 : index
    %c0_0 = arith.constant 0 : index
    %0 = vector.load %arg1[%c0, %c0_0] : memref<16x32xf32, #tpu.memory_space<vmem>>, vector<16x32xf32>
    %c0_1 = arith.constant 0 : index
    %c0_2 = arith.constant 0 : index
    %1 = vector.load %arg2[%c0_1, %c0_2] : memref<32x64xf32, #tpu.memory_space<vmem>>, vector<32x64xf32>
    %cst = arith.constant dense<0.000000e+00> : vector<16x64xf32>
    %2 = tpu.matmul %0, %1, %cst {dimension_numbers = #tpu.dot_dimension_numbers<[1], [0], [0], [1], [0, 0, 1, 1], [], []>, precision = #tpu.contract_precision<fp32>} : vector<16x32xf32>, vector<32x64xf32>, vector<16x64xf32> -> vector<16x64xf32>
    %c0_3 = arith.constant 0 : index
    %c0_4 = arith.constant 0 : index
    %3 = vector.load %arg3[%c0_3, %c0_4] : memref<1x64xf32, #tpu.memory_space<vmem>>, vector<1x64xf32>
    %4 = vector.broadcast %3 : vector<1x64xf32> to vector<16x64xf32>
    %5 = arith.addf %2, %4 : vector<16x64xf32>
    %cst_5 = arith.constant 0.000000e+00 : f32
    %6 = vector.broadcast %cst_5 : f32 to vector<16x64xf32>
    %7 = arith.maximumf %5, %6 : vector<16x64xf32>
    %c0_6 = arith.constant 0 : index
    %c0_7 = arith.constant 0 : index
    %8 = vector.load %arg4[%c0_6, %c0_7] : memref<64x32xf32, #tpu.memory_space<vmem>>, vector<64x32xf32>
    %cst_8 = arith.constant dense<0.000000e+00> : vector<16x32xf32>
    %9 = tpu.matmul %7, %8, %cst_8 {dimension_numbers = #tpu.dot_dimension_numbers<[1], [0], [0], [1], [0, 0, 1, 1], [], []>, precision = #tpu.contract_precision<fp32>} : vector<16x64xf32>, vector<64x32xf32>, vector<16x32xf32> -> vector<16x32xf32>
    %c0_9 = arith.constant 0 : index
    %c0_10 = arith.constant 0 : index
    %10 = vector.load %arg5[%c0_9, %c0_10] : memref<1x32xf32, #tpu.memory_space<vmem>>, vector<1x32xf32>
    %11 = vector.broadcast %10 : vector<1x32xf32> to vector<16x32xf32>
    %12 = arith.addf %9, %11 : vector<16x32xf32>
    %c0_11 = arith.constant 0 : index
    %c0_12 = arith.constant 0 : index
    %13 = vector.load %arg6[%c0_11, %c0_12] : memref<16x32xf32, #tpu.memory_space<vmem>>, vector<16x32xf32>
    tpu.vector_store %arg6[%c0_11, %c0_12], %12 {strides = array<i32>} : memref<16x32xf32, #tpu.memory_space<vmem>>, vector<16x32xf32>,
    return
  }
  func.func @transform_0(%arg0: i32) -> (i32, i32) {
    %c0_i32 = arith.constant 0 : i32
    %c0_i32_0 = arith.constant 0 : i32
    return %arg0, %c0_i32 : i32, i32
  }
  func.func @transform_1(%arg0: i32) -> (i32, i32) {
    %c0_i32 = arith.constant 0 : i32
    %c0_i32_0 = arith.constant 0 : i32
    %c0_i32_1 = arith.constant 0 : i32
    return %c0_i32, %c0_i32_0 : i32, i32
  }
  func.func @transform_2(%arg0: i32) -> (i32, i32) {
    %c0_i32 = arith.constant 0 : i32
    %c0_i32_0 = arith.constant 0 : i32
    %c0_i32_1 = arith.constant 0 : i32
    return %c0_i32, %c0_i32_0 : i32, i32
  }
  func.func @transform_3(%arg0: i32) -> (i32, i32) {
    %c0_i32 = arith.constant 0 : i32
    %c0_i32_0 = arith.constant 0 : i32
    %c0_i32_1 = arith.constant 0 : i32
    return %c0_i32, %c0_i32_0 : i32, i32
  }
  func.func @transform_4(%arg0: i32) -> (i32, i32) {
    %c0_i32 = arith.constant 0 : i32
    %c0_i32_0 = arith.constant 0 : i32
    %c0_i32_1 = arith.constant 0 : i32
    return %c0_i32, %c0_i32_0 : i32, i32
  }
  func.func @transform_5(%arg0: i32) -> (i32, i32) {
    %c0_i32 = arith.constant 0 : i32
    %c0_i32_0 = arith.constant 0 : i32
    return %arg0, %c0_i32 : i32, i32
  }
}

module attributes {stable_mosaic.version = 11 : i64} {
  func.func @_add_ln_kernel(%arg0: i32, %arg1: memref<16x32xf32, #tpu.memory_space<vmem>>, %arg2: memref<16x32xf32, #tpu.memory_space<vmem>>, %arg3: memref<1x32xf32, #tpu.memory_space<vmem>>, %arg4: memref<1x32xf32, #tpu.memory_space<vmem>>, %arg5: memref<16x32xf32, #tpu.memory_space<vmem>>) attributes {dimension_semantics = [#tpu.dimension_semantics<parallel>], iteration_bounds = array<i64: 1>, scalar_prefetch = 0 : i64, scratch_operands = 0 : i64, tpu.core_type = #tpu.core_type<tc>, window_params = [{transform_indices = @transform_0, window_bounds = array<i64: 16, 32>}, {transform_indices = @transform_1, window_bounds = array<i64: 16, 32>}, {pipeline_mode = #tpu.pipeline_mode<synchronous>, transform_indices = @transform_2, window_bounds = array<i64: 1, 32>}, {pipeline_mode = #tpu.pipeline_mode<synchronous>, transform_indices = @transform_3, window_bounds = array<i64: 1, 32>}, {transform_indices = @transform_4, window_bounds = array<i64: 16, 32>}]} {
    %c0 = arith.constant 0 : index
    %c0_0 = arith.constant 0 : index
    %0 = vector.load %arg1[%c0, %c0_0] : memref<16x32xf32, #tpu.memory_space<vmem>>, vector<16x32xf32>
    %c0_1 = arith.constant 0 : index
    %c0_2 = arith.constant 0 : index
    %1 = vector.load %arg2[%c0_1, %c0_2] : memref<16x32xf32, #tpu.memory_space<vmem>>, vector<16x32xf32>
    %2 = arith.addf %0, %1 : vector<16x32xf32>
    %cst = arith.constant dense<0.000000e+00> : vector<16xf32>
    %3 = vector.multi_reduction <add>, %2, %cst [1] : vector<16x32xf32> to vector<16xf32>
    %4 = vector.shape_cast %3 : vector<16xf32> to vector<16x1xf32>
    %cst_3 = arith.constant 3.200000e+01 : f32
    %5 = vector.broadcast %cst_3 : f32 to vector<16x1xf32>
    %6 = arith.divf %4, %5 : vector<16x1xf32>
    %7 = vector.broadcast %6 : vector<16x1xf32> to vector<16x32xf32>
    %8 = arith.subf %2, %7 : vector<16x32xf32>
    %9 = arith.mulf %8, %8 : vector<16x32xf32>
    %cst_4 = arith.constant dense<0.000000e+00> : vector<16xf32>
    %10 = vector.multi_reduction <add>, %9, %cst_4 [1] : vector<16x32xf32> to vector<16xf32>
    %11 = vector.shape_cast %10 : vector<16xf32> to vector<16x1xf32>
    %cst_5 = arith.constant 3.200000e+01 : f32
    %12 = vector.broadcast %cst_5 : f32 to vector<16x1xf32>
    %13 = arith.divf %11, %12 : vector<16x1xf32>
    %14 = vector.broadcast %6 : vector<16x1xf32> to vector<16x32xf32>
    %15 = arith.subf %2, %14 : vector<16x32xf32>
    %cst_6 = arith.constant 9.99999974E-6 : f32
    %16 = vector.broadcast %cst_6 : f32 to vector<16x1xf32>
    %17 = arith.addf %13, %16 : vector<16x1xf32>
    %18 = math.rsqrt %17 : vector<16x1xf32>
    %19 = vector.broadcast %18 : vector<16x1xf32> to vector<16x32xf32>
    %20 = arith.mulf %15, %19 : vector<16x32xf32>
    %c0_7 = arith.constant 0 : index
    %c0_8 = arith.constant 0 : index
    %21 = vector.load %arg3[%c0_7, %c0_8] : memref<1x32xf32, #tpu.memory_space<vmem>>, vector<1x32xf32>
    %22 = vector.broadcast %21 : vector<1x32xf32> to vector<16x32xf32>
    %23 = arith.mulf %20, %22 : vector<16x32xf32>
    %c0_9 = arith.constant 0 : index
    %c0_10 = arith.constant 0 : index
    %24 = vector.load %arg4[%c0_9, %c0_10] : memref<1x32xf32, #tpu.memory_space<vmem>>, vector<1x32xf32>
    %25 = vector.broadcast %24 : vector<1x32xf32> to vector<16x32xf32>
    %26 = arith.addf %23, %25 : vector<16x32xf32>
    %c0_11 = arith.constant 0 : index
    %c0_12 = arith.constant 0 : index
    %27 = vector.load %arg5[%c0_11, %c0_12] : memref<16x32xf32, #tpu.memory_space<vmem>>, vector<16x32xf32>
    tpu.vector_store %arg5[%c0_11, %c0_12], %26 {strides = array<i32>} : memref<16x32xf32, #tpu.memory_space<vmem>>, vector<16x32xf32>,
    return
  }
  func.func @transform_0(%arg0: i32) -> (i32, i32) {
    %c0_i32 = arith.constant 0 : i32
    %c0_i32_0 = arith.constant 0 : i32
    return %arg0, %c0_i32 : i32, i32
  }
  func.func @transform_1(%arg0: i32) -> (i32, i32) {
    %c0_i32 = arith.constant 0 : i32
    %c0_i32_0 = arith.constant 0 : i32
    return %arg0, %c0_i32 : i32, i32
  }
  func.func @transform_2(%arg0: i32) -> (i32, i32) {
    %c0_i32 = arith.constant 0 : i32
    %c0_i32_0 = arith.constant 0 : i32
    %c0_i32_1 = arith.constant 0 : i32
    return %c0_i32, %c0_i32_0 : i32, i32
  }
  func.func @transform_3(%arg0: i32) -> (i32, i32) {
    %c0_i32 = arith.constant 0 : i32
    %c0_i32_0 = arith.constant 0 : i32
    %c0_i32_1 = arith.constant 0 : i32
    return %c0_i32, %c0_i32_0 : i32, i32
  }
  func.func @transform_4(%arg0: i32) -> (i32, i32) {
    %c0_i32 = arith.constant 0 : i32
    %c0_i32_0 = arith.constant 0 : i32
    return %arg0, %c0_i32 : i32, i32
  }
}

module attributes {stable_mosaic.version = 11 : i64} {
  func.func @_linear_kernel(%arg0: i32, %arg1: memref<16x32xf32, #tpu.memory_space<vmem>>, %arg2: memref<32x16xf32, #tpu.memory_space<vmem>>, %arg3: memref<1x16xf32, #tpu.memory_space<vmem>>, %arg4: memref<16x16xf32, #tpu.memory_space<vmem>>) attributes {dimension_semantics = [#tpu.dimension_semantics<parallel>], iteration_bounds = array<i64: 1>, scalar_prefetch = 0 : i64, scratch_operands = 0 : i64, tpu.core_type = #tpu.core_type<tc>, window_params = [{transform_indices = @transform_0, window_bounds = array<i64: 16, 32>}, {pipeline_mode = #tpu.pipeline_mode<synchronous>, transform_indices = @transform_1, window_bounds = array<i64: 32, 16>}, {pipeline_mode = #tpu.pipeline_mode<synchronous>, transform_indices = @transform_2, window_bounds = array<i64: 1, 16>}, {transform_indices = @transform_3, window_bounds = array<i64: 16, 16>}]} {
    %c0 = arith.constant 0 : index
    %c0_0 = arith.constant 0 : index
    %0 = vector.load %arg1[%c0, %c0_0] : memref<16x32xf32, #tpu.memory_space<vmem>>, vector<16x32xf32>
    %c0_1 = arith.constant 0 : index
    %c0_2 = arith.constant 0 : index
    %1 = vector.load %arg2[%c0_1, %c0_2] : memref<32x16xf32, #tpu.memory_space<vmem>>, vector<32x16xf32>
    %cst = arith.constant dense<0.000000e+00> : vector<16x16xf32>
    %2 = tpu.matmul %0, %1, %cst {dimension_numbers = #tpu.dot_dimension_numbers<[1], [0], [0], [1], [0, 0, 1, 1], [], []>, precision = #tpu.contract_precision<fp32>} : vector<16x32xf32>, vector<32x16xf32>, vector<16x16xf32> -> vector<16x16xf32>
    %c0_3 = arith.constant 0 : index
    %c0_4 = arith.constant 0 : index
    %3 = vector.load %arg3[%c0_3, %c0_4] : memref<1x16xf32, #tpu.memory_space<vmem>>, vector<1x16xf32>
    %4 = vector.broadcast %3 : vector<1x16xf32> to vector<16x16xf32>
    %5 = arith.addf %2, %4 : vector<16x16xf32>
    %c0_5 = arith.constant 0 : index
    %c0_6 = arith.constant 0 : index
    %6 = vector.load %arg4[%c0_5, %c0_6] : memref<16x16xf32, #tpu.memory_space<vmem>>, vector<16x16xf32>
    tpu.vector_store %arg4[%c0_5, %c0_6], %5 {strides = array<i32>} : memref<16x16xf32, #tpu.memory_space<vmem>>, vector<16x16xf32>,
    return
  }
  func.func @transform_0(%arg0: i32) -> (i32, i32) {
    %c0_i32 = arith.constant 0 : i32
    %c0_i32_0 = arith.constant 0 : i32
    return %arg0, %c0_i32 : i32, i32
  }
  func.func @transform_1(%arg0: i32) -> (i32, i32) {
    %c0_i32 = arith.constant 0 : i32
    %c0_i32_0 = arith.constant 0 : i32
    %c0_i32_1 = arith.constant 0 : i32
    return %c0_i32, %c0_i32_0 : i32, i32
  }
  func.func @transform_2(%arg0: i32) -> (i32, i32) {
    %c0_i32 = arith.constant 0 : i32
    %c0_i32_0 = arith.constant 0 : i32
    %c0_i32_1 = arith.constant 0 : i32
    return %c0_i32, %c0_i32_0 : i32, i32
  }
  func.func @transform_3(%arg0: i32) -> (i32, i32) {
    %c0_i32 = arith.constant 0 : i32
    %c0_i32_0 = arith.constant 0 : i32
    return %arg0, %c0_i32 : i32, i32
  }
}

</mosaic_0001>

<llo_original>
// kernel: transformer_forward.48
$region0: #{transformer_forward.48}
  #allocation0 [shape = 'u32[]', space=smem, size = 0x4, offset = 0x4, fixed_abs, tag = 'smem constant byte address 0x4 - core index']
  #allocation1 [shape = 'u32[144,128]{1,0:T(1,128)}', space=vmem, size = 0x12000, scoped, tag = 'internal scratch']
  %s0 = inlined_call_operand.vmem [shape: f32[8,2,32], index: 0, kind: input, shape index: {}]
  %s1 = inlined_call_operand.vmem [shape: f32[5000,1,32], index: 1, kind: input, shape index: {}]
  %s2 = inlined_call_operand.vmem [shape: f32[8,2,32], index: 2, kind: output, shape index: {}]
  %s3 = sld [smem:[#allocation0]]
  $region18: #{transformer_forward.48} parent=0
    _
  %s5 = ssub.s32 1, %s3
  %s6 = scalar_select 0, %s5, %s3
  // Predicated region
  $region2: #{transformer_forward.48} parent=0 // pred_check
    _
  $region3: #{transformer_forward.48} parent=0 // pred_check_branch
    %8 = sbr.rel (0) target = $region5
  $region4: #{transformer_forward.48} parent=0 // pred_region
    _
  $region5: #{transformer_forward.48} parent=0 // pred_fallthru
    _
  // Predicated region
  $region6: #{transformer_forward.48} parent=0 // pred_check
    _
  $region7: #{transformer_forward.48} parent=0 // pred_check_branch
    %10 = sbr.rel (0) target = $region9
  $region8: #{transformer_forward.48} parent=0 // pred_region
    _
  $region9: #{transformer_forward.48} parent=0 // pred_fallthru
    _
  %s11 = smul.u32 0, 8
  %s12 = scalar_lea.vmem %s1, %s11
  %v13 = vld [vmem:[%s12] sm:$0x1]
  %v14 = vld [vmem:[%s12 + $0x1] sm:$0x1]
  %v15 = vld [vmem:[%s12 + $0x2] sm:$0x1]
  %v16 = vld [vmem:[%s12 + $0x3] sm:$0x1]
  %v17 = vld [vmem:[%s12 + $0x4] sm:$0x1]
  %v18 = vld [vmem:[%s12 + $0x5] sm:$0x1]
  %v19 = vld [vmem:[%s12 + $0x6] sm:$0x1]
  %v20 = vld [vmem:[%s12 + $0x7] sm:$0x1]
  %v21 = vld [vmem:[%s0] sm:$0x3]
  %v22 = vld [vmem:[%s0 + $0x2] sm:$0x3]
  %v23 = vld [vmem:[%s0 + $0x4] sm:$0x3]
  %v24 = vld [vmem:[%s0 + $0x6] sm:$0x3]
  %v25 = vld [vmem:[%s0 + $0x8] sm:$0x3]
  %v26 = vld [vmem:[%s0 + $0xa] sm:$0x3]
  %v27 = vld [vmem:[%s0 + $0xc] sm:$0x3]
  %v28 = vld [vmem:[%s0 + $0xe] sm:$0x3]
  %v37 = vlaneseq
  %v38 = vshrl.u32 %v37, 7
  %v39 = vsub.s32 0, %v38
  %v40 = vrot.slane %v13, %v39
  %v41 = vlaneseq
  %v42 = vshrl.u32 %v41, 7
  %v43 = vsub.s32 0, %v42
  %v44 = vrot.slane %v14, %v43
  %v45 = vlaneseq
  %v46 = vshrl.u32 %v45, 7
  %v47 = vsub.s32 0, %v46
  %v48 = vrot.slane %v15, %v47
  %v49 = vlaneseq
  %v50 = vshrl.u32 %v49, 7
  %v51 = vsub.s32 0, %v50
  %v52 = vrot.slane %v16, %v51
  %v53 = vlaneseq
  %v54 = vshrl.u32 %v53, 7
  %v55 = vsub.s32 0, %v54
  %v56 = vrot.slane %v17, %v55
  %v57 = vlaneseq
  %v58 = vshrl.u32 %v57, 7
  %v59 = vsub.s32 0, %v58
  %v60 = vrot.slane %v18, %v59
  %v61 = vlaneseq
  %v62 = vshrl.u32 %v61, 7
  %v63 = vsub.s32 0, %v62
  %v64 = vrot.slane %v19, %v63
  %v65 = vlaneseq
  %v66 = vshrl.u32 %v65, 7
  %v67 = vsub.s32 0, %v66
  %v68 = vrot.slane %v20, %v67
  %v77 = vadd.f32 %v21, %v40
  %v78 = vadd.f32 %v22, %v44
  %v79 = vadd.f32 %v23, %v48
  %v80 = vadd.f32 %v24, %v52
  %v81 = vadd.f32 %v25, %v56
  %v82 = vadd.f32 %v26, %v60
  %v83 = vadd.f32 %v27, %v64
  %v84 = vadd.f32 %v28, %v68
  %vm85 = vcmask 254976
  %86 = vst.msk [vmem:[%s2] sm:$0x3] %vm85, %v77
  %87 = vst.msk [vmem:[%s2 + $0x2] sm:$0x3] %vm85, %v78
  %88 = vst.msk [vmem:[%s2 + $0x4] sm:$0x3] %vm85, %v79
  %89 = vst.msk [vmem:[%s2 + $0x6] sm:$0x3] %vm85, %v80
  %90 = vst.msk [vmem:[%s2 + $0x8] sm:$0x3] %vm85, %v81
  %91 = vst.msk [vmem:[%s2 + $0xa] sm:$0x3] %vm85, %v82
  %92 = vst.msk [vmem:[%s2 + $0xc] sm:$0x3] %vm85, %v83
  %93 = vst.msk [vmem:[%s2 + $0xe] sm:$0x3] %vm85, %v84
  // Predicated region
  $region10: #{transformer_forward.48} parent=0 // pred_check
    _
  $region11: #{transformer_forward.48} parent=0 // pred_check_branch
    %95 = sbr.rel (0) target = $region13
  $region12: #{transformer_forward.48} parent=0 // pred_region
    _
  $region13: #{transformer_forward.48} parent=0 // pred_fallthru
    _
  // Predicated region
  $region14: #{transformer_forward.48} parent=0 // pred_check
    _
  $region15: #{transformer_forward.48} parent=0 // pred_check_branch
    %97 = sbr.rel (0) target = $region17
  $region16: #{transformer_forward.48} parent=0 // pred_region
    _
  $region17: #{transformer_forward.48} parent=0 // pred_fallthru
    _

// kernel: transformer_forward.65
$region0: #{transformer_forward.65}
  #allocation0 [shape = 'u32[]', space=smem, size = 0x4, offset = 0x4, fixed_abs, tag = 'smem constant byte address 0x4 - core index']
  #allocation1 [shape = 'u32[144,128]{1,0:T(1,128)}', space=vmem, size = 0x12000, scoped, tag = 'internal scratch']
  %s0 = inlined_call_operand.vmem [shape: f32[16,32], index: 0, kind: input, shape index: {}]
  %s1 = inlined_call_operand.vmem [shape: f32[32,32], index: 1, kind: input, shape index: {}]
  %s2 = inlined_call_operand.vmem [shape: f32[1,32], index: 2, kind: input, shape index: {}]
  %s3 = inlined_call_operand.vmem [shape: f32[16,32], index: 3, kind: output, shape index: {}]
  %s4 = sld [smem:[#allocation0]]
  $region22: #{transformer_forward.65} parent=0
    _
  %s6 = ssub.s32 1, %s4
  %s7 = scalar_select 0, %s6, %s4
  // Predicated region
  $region2: #{transformer_forward.65} parent=0 // pred_check
    _
  $region3: #{transformer_forward.65} parent=0 // pred_check_branch
    %9 = sbr.rel (0) target = $region5
  $region4: #{transformer_forward.65} parent=0 // pred_region
    _
  $region5: #{transformer_forward.65} parent=0 // pred_fallthru
    _
  // Predicated region
  $region6: #{transformer_forward.65} parent=0 // pred_check
    _
  $region7: #{transformer_forward.65} parent=0 // pred_check_branch
    %11 = sbr.rel (0) target = $region9
  $region8: #{transformer_forward.65} parent=0 // pred_region
    _
  $region9: #{transformer_forward.65} parent=0 // pred_fallthru
    _
  // Predicated region
  $region10: #{transformer_forward.65} parent=0 // pred_check
    _
  $region11: #{transformer_forward.65} parent=0 // pred_check_branch
    %13 = sbr.rel (0) target = $region13
  $region12: #{transformer_forward.65} parent=0 // pred_region
    _
  $region13: #{transformer_forward.65} parent=0 // pred_fallthru
    _
  %v14 = vld [vmem:[%s0] sm:$0xff]
  %v15 = vld [vmem:[%s0 + $0x8] sm:$0xff]
  %v16 = vld [vmem:[%s1] sm:$0xff]
  %v17 = vld [vmem:[%s1 + $0x8] sm:$0xff]
  %v18 = vld [vmem:[%s1 + $0x10] sm:$0xff]
  %v19 = vld [vmem:[%s1 + $0x18] sm:$0xff]
  %v20 = vld [vmem:[%s2] sm:$0x1]
  %v22 = vlaneseq
  %v23 = vshrl.u32 %v22, 7
  %v24 = vsub.s32 0, %v23
  %v25 = vrot.slane %v20, %v24
  %vm27 = vcmask 261120
  %v29 = vsel %vm27, %v14, 0
  %v32 = vsel %vm27, %v15, 0
  %34 = vmatprep.subr.mxu0 0.0
  %v35 = vand.u32 %v16, 4294901760
  %36 = vmatpush1.msra.mxu0 %v35
  %37 = vmatprep.subr.mxu0 0.0
  %v38 = vand.u32 %v17, 4294901760
  %39 = vmatpush1.msra.mxu0 %v38
  %40 = vmatprep.subr.mxu0 0.0
  %v41 = vand.u32 %v18, 4294901760
  %42 = vmatpush1.msra.mxu0 %v41
  %43 = vmatprep.subr.mxu0 0.0
  %v44 = vand.u32 %v19, 4294901760
  %45 = vmatpush1.msra.mxu0 %v44
  %46 = vmatprep.subr.mxu0 0.0
  %47 = vmatpush1.msra.mxu0 0.0
  %48 = vmatprep.subr.mxu0 0.0
  %49 = vmatpush1.msra.mxu0 0.0
  %50 = vmatprep.subr.mxu0 0.0
  %51 = vmatpush1.msra.mxu0 0.0
  %52 = vmatprep.subr.mxu0 0.0
  %53 = vmatpush1.msra.mxu0 0.0
  %54 = vmatprep.subr.mxu0 0.0
  %55 = vmatpush1.msra.mxu0 0.0
  %56 = vmatprep.subr.mxu0 0.0
  %57 = vmatpush1.msra.mxu0 0.0
  %58 = vmatprep.subr.mxu0 0.0
  %59 = vmatpush1.msra.mxu0 0.0
  %60 = vmatprep.subr.mxu0 0.0
  %61 = vmatpush1.msra.mxu0 0.0
  %62 = vmatprep.subr.mxu0 0.0
  %63 = vmatpush1.msra.mxu0 0.0
  %64 = vmatprep.subr.mxu0 0.0
  %65 = vmatpush1.msra.mxu0 0.0
  %66 = vmatprep.subr.mxu0 0.0
  %67 = vmatpush1.msra.mxu0 0.0
  %68 = vmatprep.subr.mxu0 0.0
  %69 = vmatpush1.msra.mxu0 0.0
  %70 = vmatprep.subr.mxu0 0.0
  %71 = vmatpush1.msra.mxu0 0.0
  %72 = vmatprep.subr.mxu0 0.0
  %73 = vmatpush1.msra.mxu0 0.0
  %74 = vmatprep.subr.mxu0 0.0
  %75 = vmatpush1.msra.mxu0 0.0
  %76 = vmatprep.subr.mxu0 0.0
  %77 = vmatpush1.msra.mxu0 0.0
  %78 = vmatprep.subr.mxu0 0.0
  %79 = vmatpush1.msra.mxu0 0.0
  %80 = vmatprep.subr.mxu0 0.0
  %81 = vmatpush1.msra.mxu0 0.0
  %82 = vmatprep.subr.mxu0 0.0
  %83 = vmatpush1.msra.mxu0 0.0
  %84 = vmatprep.subr.mxu0 0.0
  %85 = vmatpush1.msra.mxu0 0.0
  %86 = vmatprep.subr.mxu0 0.0
  %87 = vmatpush1.msra.mxu0 0.0
  %88 = vmatprep.subr.mxu0 0.0
  %89 = vmatpush1.msra.mxu0 0.0
  %90 = vmatprep.subr.mxu0 0.0
  %91 = vmatpush1.msra.mxu0 0.0
  %92 = vmatprep.subr.mxu0 0.0
  %93 = vmatpush1.msra.mxu0 0.0
  %94 = vmatprep.subr.mxu0 0.0
  %95 = vmatpush1.msra.mxu0 0.0
  %96 = vmatprep.subr.mxu0 0.0
  %97 = vmatpush1.msra.mxu0 0.0
  %98 = vmatprep.subr.mxu0 0.0
  %99 = vmatpush1.msra.mxu0 0.0
  %100 = vmatprep.subr.mxu0 0.0
  %101 = vmatpush1.msra.mxu0 0.0
  %102 = vmatprep.mubr.f32.mxu0 0.0
  %v103 = vand.u32 %v29, 4294901760
  %v104 = vsub.f32 %v29, %v103
  %v105 = vand.u32 %v104, 4294901760
  %v106 = vsub.f32 %v104, %v105
  %v107 = vand.u32 %v106, 4294901760
  %108 = vmatmul.mubr.f32.gmra.mrb[0].mxu0 %v107
  %v109 = vpop.f32.mrb[0].mxu0
  %v110 = vadd.f32 %v25, %v109
  %v111 = vpop.f32.mrb[0].mxu0
  %112 = vmatprep.mubr.f32.mxu0 0.0
  %v113 = vand.u32 %v32, 4294901760
  %v114 = vsub.f32 %v32, %v113
  %v115 = vand.u32 %v114, 4294901760
  %v116 = vsub.f32 %v114, %v115
  %v117 = vand.u32 %v116, 4294901760
  %118 = vmatmul.mubr.f32.gmra.mrb[0].mxu0 %v117
  %v119 = vpop.f32.mrb[0].mxu0
  %v120 = vadd.f32 %v25, %v119
  %v121 = vpop.f32.mrb[0].mxu0
  %122 = vdwg.mxu0
  %123 = vmatprep.subr.mxu0 0.0
  %v124 = vand.u32 %v16, 4294901760
  %v125 = vsub.f32 %v16, %v124
  %v126 = vand.u32 %v125, 4294901760
  %v127 = vsub.f32 %v125, %v126
  %v128 = vand.u32 %v127, 4294901760
  %129 = vmatpush1.msra.mxu0 %v128
  %130 = vmatprep.subr.mxu0 0.0
  %v131 = vand.u32 %v17, 4294901760
  %v132 = vsub.f32 %v17, %v131
  %v133 = vand.u32 %v132, 4294901760
  %v134 = vsub.f32 %v132, %v133
  %v135 = vand.u32 %v134, 4294901760
  %136 = vmatpush1.msra.mxu0 %v135
  %137 = vmatprep.subr.mxu0 0.0
  %v138 = vand.u32 %v18, 4294901760
  %v139 = vsub.f32 %v18, %v138
  %v140 = vand.u32 %v139, 4294901760
  %v141 = vsub.f32 %v139, %v140
  %v142 = vand.u32 %v141, 4294901760
  %143 = vmatpush1.msra.mxu0 %v142
  %144 = vmatprep.subr.mxu0 0.0
  %v145 = vand.u32 %v19, 4294901760
  %v146 = vsub.f32 %v19, %v145
  %v147 = vand.u32 %v146, 4294901760
  %v148 = vsub.f32 %v146, %v147
  %v149 = vand.u32 %v148, 4294901760
  %150 = vmatpush1.msra.mxu0 %v149
  %151 = vmatprep.subr.mxu0 0.0
  %152 = vmatpush1.msra.mxu0 0.0
  %153 = vmatprep.subr.mxu0 0.0
  %154 = vmatpush1.msra.mxu0 0.0
  %155 = vmatprep.subr.mxu0 0.0
  %156 = vmatpush1.msra.mxu0 0.0
  %157 = vmatprep.subr.mxu0 0.0
  %158 = vmatpush1.msra.mxu0 0.0
  %159 = vmatprep.subr.mxu0 0.0
  %160 = vmatpush1.msra.mxu0 0.0
  %161 = vmatprep.subr.mxu0 0.0
  %162 = vmatpush1.msra.mxu0 0.0
  %163 = vmatprep.subr.mxu0 0.0
  %164 = vmatpush1.msra.mxu0 0.0
  %165 = vmatprep.subr.mxu0 0.0
  %166 = vmatpush1.msra.mxu0 0.0
  %167 = vmatprep.subr.mxu0 0.0
  %168 = vmatpush1.msra.mxu0 0.0
  %169 = vmatprep.subr.mxu0 0.0
  %170 = vmatpush1.msra.mxu0 0.0
  %171 = vmatprep.subr.mxu0 0.0
  %172 = vmatpush1.msra.mxu0 0.0
  %173 = vmatprep.subr.mxu0 0.0
  %174 = vmatpush1.msra.mxu0 0.0
  %175 = vmatprep.subr.mxu0 0.0
  %176 = vmatpush1.msra.mxu0 0.0
  %177 = vmatprep.subr.mxu0 0.0
  %178 = vmatpush1.msra.mxu0 0.0
  %179 = vmatprep.subr.mxu0 0.0
  %180 = vmatpush1.msra.mxu0 0.0
  %181 = vmatprep.subr.mxu0 0.0
  %182 = vmatpush1.msra.mxu0 0.0
  %183 = vmatprep.subr.mxu0 0.0
  %184 = vmatpush1.msra.mxu0 0.0
  %185 = vmatprep.subr.mxu0 0.0
  %186 = vmatpush1.msra.mxu0 0.0
  %187 = vmatprep.subr.mxu0 0.0
  %188 = vmatpush1.msra.mxu0 0.0
  %189 = vmatprep.subr.mxu0 0.0
  %190 = vmatpush1.msra.mxu0 0.0
  %191 = vmatprep.subr.mxu0 0.0
  %192 = vmatpush1.msra.mxu0 0.0
  %193 = vmatprep.subr.mxu0 0.0
  %194 = vmatpush1.msra.mxu0 0.0
  %195 = vmatprep.subr.mxu0 0.0
  %196 = vmatpush1.msra.mxu0 0.0
  %197 = vmatprep.subr.mxu0 0.0
  %198 = vmatpush1.msra.mxu0 0.0
  %199 = vmatprep.subr.mxu0 0.0
  %200 = vmatpush1.msra.mxu0 0.0
  %201 = vmatprep.subr.mxu0 0.0
  %202 = vmatpush1.msra.mxu0 0.0
  %203 = vmatprep.subr.mxu0 0.0
  %204 = vmatpush1.msra.mxu0 0.0
  %205 = vmatprep.subr.mxu0 0.0
  %206 = vmatpush1.msra.mxu0 0.0
  %207 = vmatprep.mubr.f32.mxu0 0.0
  %v208 = vand.u32 %v29, 4294901760
  %209 = vmatmul.mubr.f32.gmra.mrb[0].mxu0 %v208
  %v210 = vpop.f32.mrb[0].mxu0
  %v211 = vadd.f32 %v110, %v210
  %v212 = vpop.f32.mrb[0].mxu0
  %213 = vmatprep.mubr.f32.mxu0 0.0
  %v214 = vand.u32 %v32, 4294901760
  %215 = vmatmul.mubr.f32.gmra.mrb[0].mxu0 %v214
  %v216 = vpop.f32.mrb[0].mxu0
  %v217 = vadd.f32 %v120, %v216
  %v218 = vpop.f32.mrb[0].mxu0
  %219 = vdwg.mxu0
  %220 = vmatprep.subr.mxu0 0.0
  %v221 = vand.u32 %v16, 4294901760
  %v222 = vsub.f32 %v16, %v221
  %223 = vmatpush1.msra.mxu0 %v222
  %224 = vmatprep.subr.mxu0 0.0
  %v225 = vand.u32 %v17, 4294901760
  %v226 = vsub.f32 %v17, %v225
  %227 = vmatpush1.msra.mxu0 %v226
  %228 = vmatprep.subr.mxu0 0.0
  %v229 = vand.u32 %v18, 4294901760
  %v230 = vsub.f32 %v18, %v229
  %231 = vmatpush1.msra.mxu0 %v230
  %232 = vmatprep.subr.mxu0 0.0
  %v233 = vand.u32 %v19, 4294901760
  %v234 = vsub.f32 %v19, %v233
  %235 = vmatpush1.msra.mxu0 %v234
  %236 = vmatprep.subr.mxu0 0.0
  %237 = vmatpush1.msra.mxu0 0.0
  %238 = vmatprep.subr.mxu0 0.0
  %239 = vmatpush1.msra.mxu0 0.0
  %240 = vmatprep.subr.mxu0 0.0
  %241 = vmatpush1.msra.mxu0 0.0
  %242 = vmatprep.subr.mxu0 0.0
  %243 = vmatpush1.msra.mxu0 0.0
  %244 = vmatprep.subr.mxu0 0.0
  %245 = vmatpush1.msra.mxu0 0.0
  %246 = vmatprep.subr.mxu0 0.0
  %247 = vmatpush1.msra.mxu0 0.0
  %248 = vmatprep.subr.mxu0 0.0
  %249 = vmatpush1.msra.mxu0 0.0
  %250 = vmatprep.subr.mxu0 0.0
  %251 = vmatpush1.msra.mxu0 0.0
  %252 = vmatprep.subr.mxu0 0.0
  %253 = vmatpush1.msra.mxu0 0.0
  %254 = vmatprep.subr.mxu0 0.0
  %255 = vmatpush1.msra.mxu0 0.0
  %256 = vmatprep.subr.mxu0 0.0
  %257 = vmatpush1.msra.mxu0 0.0
  %258 = vmatprep.subr.mxu0 0.0
  %259 = vmatpush1.msra.mxu0 0.0
  %260 = vmatprep.subr.mxu0 0.0
  %261 = vmatpush1.msra.mxu0 0.0
  %262 = vmatprep.subr.mxu0 0.0
  %263 = vmatpush1.msra.mxu0 0.0
  %264 = vmatprep.subr.mxu0 0.0
  %265 = vmatpush1.msra.mxu0 0.0
  %266 = vmatprep.subr.mxu0 0.0
  %267 = vmatpush1.msra.mxu0 0.0
  %268 = vmatprep.subr.mxu0 0.0
  %269 = vmatpush1.msra.mxu0 0.0
  %270 = vmatprep.subr.mxu0 0.0
  %271 = vmatpush1.msra.mxu0 0.0
  %272 = vmatprep.subr.mxu0 0.0
  %273 = vmatpush1.msra.mxu0 0.0
  %274 = vmatprep.subr.mxu0 0.0
  %275 = vmatpush1.msra.mxu0 0.0
  %276 = vmatprep.subr.mxu0 0.0
  %277 = vmatpush1.msra.mxu0 0.0
  %278 = vmatprep.subr.mxu0 0.0
  %279 = vmatpush1.msra.mxu0 0.0
  %280 = vmatprep.subr.mxu0 0.0
  %281 = vmatpush1.msra.mxu0 0.0
  %282 = vmatprep.subr.mxu0 0.0
  %283 = vmatpush1.msra.mxu0 0.0
  %284 = vmatprep.subr.mxu0 0.0
  %285 = vmatpush1.msra.mxu0 0.0
  %286 = vmatprep.subr.mxu0 0.0
  %287 = vmatpush1.msra.mxu0 0.0
  %288 = vmatprep.subr.mxu0 0.0
  %289 = vmatpush1.msra.mxu0 0.0
  %290 = vmatprep.subr.mxu0 0.0
  %291 = vmatpush1.msra.mxu0 0.0
  %292 = vmatprep.mubr.f32.mxu0 0.0
  %v293 = vand.u32 %v29, 4294901760
  %v294 = vsub.f32 %v29, %v293
  %295 = vmatmul.mubr.f32.gmra.mrb[0].mxu0 %v294
  %v296 = vpop.f32.mrb[0].mxu0
  %v297 = vadd.f32 %v211, %v296
  %v298 = vpop.f32.mrb[0].mxu0
  %299 = vmatprep.mubr.f32.mxu0 0.0
  %v300 = vand.u32 %v32, 4294901760
  %v301 = vsub.f32 %v32, %v300
  %302 = vmatmul.mubr.f32.gmra.mrb[0].mxu0 %v301
  %v303 = vpop.f32.mrb[0].mxu0
  %v304 = vadd.f32 %v217, %v303
  %v305 = vpop.f32.mrb[0].mxu0
  %306 = vdwg.mxu0
  %307 = vmatprep.subr.mxu0 0.0
  %v308 = vand.u32 %v16, 4294901760
  %309 = vmatpush1.msra.mxu0 %v308
  %310 = vmatprep.subr.mxu0 0.0
  %v311 = vand.u32 %v17, 4294901760
  %312 = vmatpush1.msra.mxu0 %v311
  %313 = vmatprep.subr.mxu0 0.0
  %v314 = vand.u32 %v18, 4294901760
  %315 = vmatpush1.msra.mxu0 %v314
  %316 = vmatprep.subr.mxu0 0.0
  %v317 = vand.u32 %v19, 4294901760
  %318 = vmatpush1.msra.mxu0 %v317
  %319 = vmatprep.subr.mxu0 0.0
  %320 = vmatpush1.msra.mxu0 0.0
  %321 = vmatprep.subr.mxu0 0.0
  %322 = vmatpush1.msra.mxu0 0.0
  %323 = vmatprep.subr.mxu0 0.0
  %324 = vmatpush1.msra.mxu0 0.0
  %325 = vmatprep.subr.mxu0 0.0
  %326 = vmatpush1.msra.mxu0 0.0
  %327 = vmatprep.subr.mxu0 0.0
  %328 = vmatpush1.msra.mxu0 0.0
  %329 = vmatprep.subr.mxu0 0.0
  %330 = vmatpush1.msra.mxu0 0.0
  %331 = vmatprep.subr.mxu0 0.0
  %332 = vmatpush1.msra.mxu0 0.0
  %333 = vmatprep.subr.mxu0 0.0
  %334 = vmatpush1.msra.mxu0 0.0
  %335 = vmatprep.subr.mxu0 0.0
  %336 = vmatpush1.msra.mxu0 0.0
  %337 = vmatprep.subr.mxu0 0.0
  %338 = vmatpush1.msra.mxu0 0.0
  %339 = vmatprep.subr.mxu0 0.0
  %340 = vmatpush1.msra.mxu0 0.0
  %341 = vmatprep.subr.mxu0 0.0
  %342 = vmatpush1.msra.mxu0 0.0
  %343 = vmatprep.subr.mxu0 0.0
  %344 = vmatpush1.msra.mxu0 0.0
  %345 = vmatprep.subr.mxu0 0.0
  %346 = vmatpush1.msra.mxu0 0.0
  %347 = vmatprep.subr.mxu0 0.0
  %348 = vmatpush1.msra.mxu0 0.0
  %349 = vmatprep.subr.mxu0 0.0
  %350 = vmatpush1.msra.mxu0 0.0
  %351 = vmatprep.subr.mxu0 0.0
  %352 = vmatpush1.msra.mxu0 0.0
  %353 = vmatprep.subr.mxu0 0.0
  %354 = vmatpush1.msra.mxu0 0.0
  %355 = vmatprep.subr.mxu0 0.0
  %356 = vmatpush1.msra.mxu0 0.0
  %357 = vmatprep.subr.mxu0 0.0
  %358 = vmatpush1.msra.mxu0 0.0
  %359 = vmatprep.subr.mxu0 0.0
  %360 = vmatpush1.msra.mxu0 0.0
  %361 = vmatprep.subr.mxu0 0.0
  %362 = vmatpush1.msra.mxu0 0.0
  %363 = vmatprep.subr.mxu0 0.0
  %364 = vmatpush1.msra.mxu0 0.0
  %365 = vmatprep.subr.mxu0 0.0
  %366 = vmatpush1.msra.mxu0 0.0
  %367 = vmatprep.subr.mxu0 0.0
  %368 = vmatpush1.msra.mxu0 0.0
  %369 = vmatprep.subr.mxu0 0.0
  %370 = vmatpush1.msra.mxu0 0.0
  %371 = vmatprep.subr.mxu0 0.0
  %372 = vmatpush1.msra.mxu0 0.0
  %373 = vmatprep.subr.mxu0 0.0
  %374 = vmatpush1.msra.mxu0 0.0
  %375 = vmatprep.mubr.f32.mxu0 0.0
  %v376 = vand.u32 %v29, 4294901760
  %v377 = vsub.f32 %v29, %v376
  %v378 = vand.u32 %v377, 4294901760
  %379 = vmatmul.mubr.f32.gmra.mrb[0].mxu0 %v378
  %v380 = vpop.f32.mrb[0].mxu0
  %v381 = vadd.f32 %v297, %v380
  %v382 = vpop.f32.mrb[0].mxu0
  %383 = vmatprep.mubr.f32.mxu0 0.0
  %v384 = vand.u32 %v32, 4294901760
  %v385 = vsub.f32 %v32, %v384
  %v386 = vand.u32 %v385, 4294901760
  %387 = vmatmul.mubr.f32.gmra.mrb[0].mxu0 %v386
  %v388 = vpop.f32.mrb[0].mxu0
  %v389 = vadd.f32 %v304, %v388
  %v390 = vpop.f32.mrb[0].mxu0
  %391 = vdwg.mxu0
  %392 = vmatprep.subr.mxu0 0.0
  %v393 = vand.u32 %v16, 4294901760
  %v394 = vsub.f32 %v16, %v393
  %v395 = vand.u32 %v394, 4294901760
  %396 = vmatpush1.msra.mxu0 %v395
  %397 = vmatprep.subr.mxu0 0.0
  %v398 = vand.u32 %v17, 4294901760
  %v399 = vsub.f32 %v17, %v398
  %v400 = vand.u32 %v399, 4294901760
  %401 = vmatpush1.msra.mxu0 %v400
  %402 = vmatprep.subr.mxu0 0.0
  %v403 = vand.u32 %v18, 4294901760
  %v404 = vsub.f32 %v18, %v403
  %v405 = vand.u32 %v404, 4294901760
  %406 = vmatpush1.msra.mxu0 %v405
  %407 = vmatprep.subr.mxu0 0.0
  %v408 = vand.u32 %v19, 4294901760
  %v409 = vsub.f32 %v19, %v408
  %v410 = vand.u32 %v409, 4294901760
  %411 = vmatpush1.msra.mxu0 %v410
  %412 = vmatprep.subr.mxu0 0.0
  %413 = vmatpush1.msra.mxu0 0.0
  %414 = vmatprep.subr.mxu0 0.0
  %415 = vmatpush1.msra.mxu0 0.0
  %416 = vmatprep.subr.mxu0 0.0
  %417 = vmatpush1.msra.mxu0 0.0
  %418 = vmatprep.subr.mxu0 0.0
  %419 = vmatpush1.msra.mxu0 0.0
  %420 = vmatprep.subr.mxu0 0.0
  %421 = vmatpush1.msra.mxu0 0.0
  %422 = vmatprep.subr.mxu0 0.0
  %423 = vmatpush1.msra.mxu0 0.0
  %424 = vmatprep.subr.mxu0 0.0
  %425 = vmatpush1.msra.mxu0 0.0
  %426 = vmatprep.subr.mxu0 0.0
  %427 = vmatpush1.msra.mxu0 0.0
  %428 = vmatprep.subr.mxu0 0.0
  %429 = vmatpush1.msra.mxu0 0.0
  %430 = vmatprep.subr.mxu0 0.0
  %431 = vmatpush1.msra.mxu0 0.0
  %432 = vmatprep.subr.mxu0 0.0
  %433 = vmatpush1.msra.mxu0 0.0
  %434 = vmatprep.subr.mxu0 0.0
  %435 = vmatpush1.msra.mxu0 0.0
  %436 = vmatprep.subr.mxu0 0.0
  %437 = vmatpush1.msra.mxu0 0.0
  %438 = vmatprep.subr.mxu0 0.0
  %439 = vmatpush1.msra.mxu0 0.0
  %440 = vmatprep.subr.mxu0 0.0
  %441 = vmatpush1.msra.mxu0 0.0
  %442 = vmatprep.subr.mxu0 0.0
  %443 = vmatpush1.msra.mxu0 0.0
  %444 = vmatprep.subr.mxu0 0.0
  %445 = vmatpush1.msra.mxu0 0.0
  %446 = vmatprep.subr.mxu0 0.0
  %447 = vmatpush1.msra.mxu0 0.0
  %448 = vmatprep.subr.mxu0 0.0
  %449 = vmatpush1.msra.mxu0 0.0
  %450 = vmatprep.subr.mxu0 0.0
  %451 = vmatpush1.msra.mxu0 0.0
  %452 = vmatprep.subr.mxu0 0.0
  %453 = vmatpush1.msra.mxu0 0.0
  %454 = vmatprep.subr.mxu0 0.0
  %455 = vmatpush1.msra.mxu0 0.0
  %456 = vmatprep.subr.mxu0 0.0
  %457 = vmatpush1.msra.mxu0 0.0
  %458 = vmatprep.subr.mxu0 0.0
  %459 = vmatpush1.msra.mxu0 0.0
  %460 = vmatprep.subr.mxu0 0.0
  %461 = vmatpush1.msra.mxu0 0.0
  %462 = vmatprep.subr.mxu0 0.0
  %463 = vmatpush1.msra.mxu0 0.0
  %464 = vmatprep.subr.mxu0 0.0
  %465 = vmatpush1.msra.mxu0 0.0
  %466 = vmatprep.subr.mxu0 0.0
  %467 = vmatpush1.msra.mxu0 0.0
  %468 = vmatprep.mubr.f32.mxu0 0.0
  %v469 = vand.u32 %v29, 4294901760
  %470 = vmatmul.mubr.f32.gmra.mrb[0].mxu0 %v469
  %v471 = vpop.f32.mrb[0].mxu0
  %v472 = vadd.f32 %v381, %v471
  %v473 = vpop.f32.mrb[0].mxu0
  %474 = vmatprep.mubr.f32.mxu0 0.0
  %v475 = vand.u32 %v32, 4294901760
  %476 = vmatmul.mubr.f32.gmra.mrb[0].mxu0 %v475
  %v477 = vpop.f32.mrb[0].mxu0
  %v478 = vadd.f32 %v389, %v477
  %v479 = vpop.f32.mrb[0].mxu0
  %480 = vdwg.mxu0
  %481 = vmatprep.subr.mxu0 0.0
  %v482 = vand.u32 %v16, 4294901760
  %483 = vmatpush1.msra.mxu0 %v482
  %484 = vmatprep.subr.mxu0 0.0
  %v485 = vand.u32 %v17, 4294901760
  %486 = vmatpush1.msra.mxu0 %v485
  %487 = vmatprep.subr.mxu0 0.0
  %v488 = vand.u32 %v18, 4294901760
  %489 = vmatpush1.msra.mxu0 %v488
  %490 = vmatprep.subr.mxu0 0.0
  %v491 = vand.u32 %v19, 4294901760
  %492 = vmatpush1.msra.mxu0 %v491
  %493 = vmatprep.subr.mxu0 0.0
  %494 = vmatpush1.msra.mxu0 0.0
  %495 = vmatprep.subr.mxu0 0.0
  %496 = vmatpush1.msra.mxu0 0.0
  %497 = vmatprep.subr.mxu0 0.0
  %498 = vmatpush1.msra.mxu0 0.0
  %499 = vmatprep.subr.mxu0 0.0
  %500 = vmatpush1.msra.mxu0 0.0
  %501 = vmatprep.subr.mxu0 0.0
  %502 = vmatpush1.msra.mxu0 0.0
  %503 = vmatprep.subr.mxu0 0.0
  %504 = vmatpush1.msra.mxu0 0.0
  %505 = vmatprep.subr.mxu0 0.0
  %506 = vmatpush1.msra.mxu0 0.0
  %507 = vmatprep.subr.mxu0 0.0
  %508 = vmatpush1.msra.mxu0 0.0
  %509 = vmatprep.subr.mxu0 0.0
  %510 = vmatpush1.msra.mxu0 0.0
  %511 = vmatprep.subr.mxu0 0.0
  %512 = vmatpush1.msra.mxu0 0.0
  %513 = vmatprep.subr.mxu0 0.0
  %514 = vmatpush1.msra.mxu0 0.0
  %515 = vmatprep.subr.mxu0 0.0
  %516 = vmatpush1.msra.mxu0 0.0
  %517 = vmatprep.subr.mxu0 0.0
  %518 = vmatpush1.msra.mxu0 0.0
  %519 = vmatprep.subr.mxu0 0.0
  %520 = vmatpush1.msra.mxu0 0.0
  %521 = vmatprep.subr.mxu0 0.0
  %522 = vmatpush1.msra.mxu0 0.0
  %523 = vmatprep.subr.mxu0 0.0
  %524 = vmatpush1.msra.mxu0 0.0
  %525 = vmatprep.subr.mxu0 0.0
  %526 = vmatpush1.msra.mxu0 0.0
  %527 = vmatprep.subr.mxu0 0.0
  %528 = vmatpush1.msra.mxu0 0.0
  %529 = vmatprep.subr.mxu0 0.0
  %530 = vmatpush1.msra.mxu0 0.0
  %531 = vmatprep.subr.mxu0 0.0
  %532 = vmatpush1.msra.mxu0 0.0
  %533 = vmatprep.subr.mxu0 0.0
  %534 = vmatpush1.msra.mxu0 0.0
  %535 = vmatprep.subr.mxu0 0.0
  %536 = vmatpush1.msra.mxu0 0.0
  %537 = vmatprep.subr.mxu0 0.0
  %538 = vmatpush1.msra.mxu0 0.0
  %539 = vmatprep.subr.mxu0 0.0
  %540 = vmatpush1.msra.mxu0 0.0
  %541 = vmatprep.subr.mxu0 0.0
  %542 = vmatpush1.msra.mxu0 0.0
  %543 = vmatprep.subr.mxu0 0.0
  %544 = vmatpush1.msra.mxu0 0.0
  %545 = vmatprep.subr.mxu0 0.0
  %546 = vmatpush1.msra.mxu0 0.0
  %547 = vmatprep.subr.mxu0 0.0
  %548 = vmatpush1.msra.mxu0 0.0
  %549 = vmatprep.mubr.f32.mxu0 0.0
  %v550 = vand.u32 %v29, 4294901760
  %551 = vmatmul.mubr.f32.gmra.mrb[0].mxu0 %v550
  %v552 = vpop.f32.mrb[0].mxu0
  %v553 = vadd.f32 %v472, %v552
  %v554 = vpop.f32.mrb[0].mxu0
  %555 = vmatprep.mubr.f32.mxu0 0.0
  %v556 = vand.u32 %v32, 4294901760
  %557 = vmatmul.mubr.f32.gmra.mrb[0].mxu0 %v556
  %v558 = vpop.f32.mrb[0].mxu0
  %v559 = vadd.f32 %v478, %v558
  %v560 = vpop.f32.mrb[0].mxu0
  %561 = vdwg.mxu0
  %562 = vst.msk [vmem:[%s3] sm:$0xff] %vm27, %v553
  %563 = vst.msk [vmem:[%s3 + $0x8] sm:$0xff] %vm27, %v559
  // Predicated region
  $region14: #{transformer_forward.65} parent=0 // pred_check
    _
  $region15: #{transformer_forward.65} parent=0 // pred_check_branch
    %565 = sbr.rel (0) target = $region17
  $region16: #{transformer_forward.65} parent=0 // pred_region
    _
  $region17: #{transformer_forward.65} parent=0 // pred_fallthru
    _
  // Predicated region
  $region18: #{transformer_forward.65} parent=0 // pred_check
    _
  $region19: #{transformer_forward.65} parent=0 // pred_check_branch
    %567 = sbr.rel (0) target = $region21
  $region20: #{transformer_forward.65} parent=0 // pred_region
    _
  $region21: #{transformer_forward.65} parent=0 // pred_fallthru
    _

// kernel: transformer_forward.47
$region0: #{transformer_forward.47}
  #allocation0 [shape = 'u32[]', space=smem, size = 0x4, offset = 0x4, fixed_abs, tag = 'smem constant byte address 0x4 - core index']
  #allocation1 [shape = 'u32[144,128]{1,0:T(1,128)}', space=vmem, size = 0x12000, scoped, tag = 'internal scratch']
  %s0 = inlined_call_operand.vmem [shape: f32[12,2,32], index: 0, kind: input, shape index: {}]
  %s1 = inlined_call_operand.vmem [shape: f32[5000,1,32], index: 1, kind: input, shape index: {}]
  %s2 = inlined_call_operand.vmem [shape: f32[12,2,32], index: 2, kind: output, shape index: {}]
  %s3 = sld [smem:[#allocation0]]
  $region18: #{transformer_forward.47} parent=0
    _
  %s5 = ssub.s32 1, %s3
  %s6 = scalar_select 0, %s5, %s3
  // Predicated region
  $region2: #{transformer_forward.47} parent=0 // pred_check
    _
  $region3: #{transformer_forward.47} parent=0 // pred_check_branch
    %8 = sbr.rel (0) target = $region5
  $region4: #{transformer_forward.47} parent=0 // pred_region
    _
  $region5: #{transformer_forward.47} parent=0 // pred_fallthru
    _
  // Predicated region
  $region6: #{transformer_forward.47} parent=0 // pred_check
    _
  $region7: #{transformer_forward.47} parent=0 // pred_check_branch
    %10 = sbr.rel (0) target = $region9
  $region8: #{transformer_forward.47} parent=0 // pred_region
    _
  $region9: #{transformer_forward.47} parent=0 // pred_fallthru
    _
  %s11 = smul.u32 0, 12
  %s12 = scalar_lea.vmem %s1, %s11
  %v13 = vld [vmem:[%s12] sm:$0x1]
  %v14 = vld [vmem:[%s12 + $0x1] sm:$0x1]
  %v15 = vld [vmem:[%s12 + $0x2] sm:$0x1]
  %v16 = vld [vmem:[%s12 + $0x3] sm:$0x1]
  %v17 = vld [vmem:[%s12 + $0x4] sm:$0x1]
  %v18 = vld [vmem:[%s12 + $0x5] sm:$0x1]
  %v19 = vld [vmem:[%s12 + $0x6] sm:$0x1]
  %v20 = vld [vmem:[%s12 + $0x7] sm:$0x1]
  %v21 = vld [vmem:[%s12 + $0x8] sm:$0x1]
  %v22 = vld [vmem:[%s12 + $0x9] sm:$0x1]
  %v23 = vld [vmem:[%s12 + $0xa] sm:$0x1]
  %v24 = vld [vmem:[%s12 + $0xb] sm:$0x1]
  %v25 = vld [vmem:[%s0] sm:$0x3]
  %v26 = vld [vmem:[%s0 + $0x2] sm:$0x3]
  %v27 = vld [vmem:[%s0 + $0x4] sm:$0x3]
  %v28 = vld [vmem:[%s0 + $0x6] sm:$0x3]
  %v29 = vld [vmem:[%s0 + $0x8] sm:$0x3]
  %v30 = vld [vmem:[%s0 + $0xa] sm:$0x3]
  %v31 = vld [vmem:[%s0 + $0xc] sm:$0x3]
  %v32 = vld [vmem:[%s0 + $0xe] sm:$0x3]
  %v33 = vld [vmem:[%s0 + $0x10] sm:$0x3]
  %v34 = vld [vmem:[%s0 + $0x12] sm:$0x3]
  %v35 = vld [vmem:[%s0 + $0x14] sm:$0x3]
  %v36 = vld [vmem:[%s0 + $0x16] sm:$0x3]
  %v49 = vlaneseq
  %v50 = vshrl.u32 %v49, 7
  %v51 = vsub.s32 0, %v50
  %v52 = vrot.slane %v13, %v51
  %v53 = vlaneseq
  %v54 = vshrl.u32 %v53, 7
  %v55 = vsub.s32 0, %v54
  %v56 = vrot.slane %v14, %v55
  %v57 = vlaneseq
  %v58 = vshrl.u32 %v57, 7
  %v59 = vsub.s32 0, %v58
  %v60 = vrot.slane %v15, %v59
  %v61 = vlaneseq
  %v62 = vshrl.u32 %v61, 7
  %v63 = vsub.s32 0, %v62
  %v64 = vrot.slane %v16, %v63
  %v65 = vlaneseq
  %v66 = vshrl.u32 %v65, 7
  %v67 = vsub.s32 0, %v66
  %v68 = vrot.slane %v17, %v67
  %v69 = vlaneseq
  %v70 = vshrl.u32 %v69, 7
  %v71 = vsub.s32 0, %v70
  %v72 = vrot.slane %v18, %v71
  %v73 = vlaneseq
  %v74 = vshrl.u32 %v73, 7
  %v75 = vsub.s32 0, %v74
  %v76 = vrot.slane %v19, %v75
  %v77 = vlaneseq
  %v78 = vshrl.u32 %v77, 7
  %v79 = vsub.s32 0, %v78
  %v80 = vrot.slane %v20, %v79
  %v81 = vlaneseq
  %v82 = vshrl.u32 %v81, 7
  %v83 = vsub.s32 0, %v82
  %v84 = vrot.slane %v21, %v83
  %v85 = vlaneseq
  %v86 = vshrl.u32 %v85, 7
  %v87 = vsub.s32 0, %v86
  %v88 = vrot.slane %v22, %v87
  %v89 = vlaneseq
  %v90 = vshrl.u32 %v89, 7
  %v91 = vsub.s32 0, %v90
  %v92 = vrot.slane %v23, %v91
  %v93 = vlaneseq
  %v94 = vshrl.u32 %v93, 7
  %v95 = vsub.s32 0, %v94
  %v96 = vrot.slane %v24, %v95
  %v109 = vadd.f32 %v25, %v52
  %v110 = vadd.f32 %v26, %v56
  %v111 = vadd.f32 %v27, %v60
  %v112 = vadd.f32 %v28, %v64
  %v113 = vadd.f32 %v29, %v68
  %v114 = vadd.f32 %v30, %v72
  %v115 = vadd.f32 %v31, %v76
  %v116 = vadd.f32 %v32, %v80
  %v117 = vadd.f32 %v33, %v84
  %v118 = vadd.f32 %v34, %v88
  %v119 = vadd.f32 %v35, %v92
  %v120 = vadd.f32 %v36, %v96
  %vm121 = vcmask 254976
  %122 = vst.msk [vmem:[%s2] sm:$0x3] %vm121, %v109
  %123 = vst.msk [vmem:[%s2 + $0x2] sm:$0x3] %vm121, %v110
  %124 = vst.msk [vmem:[%s2 + $0x4] sm:$0x3] %vm121, %v111
  %125 = vst.msk [vmem:[%s2 + $0x6] sm:$0x3] %vm121, %v112
  %126 = vst.msk [vmem:[%s2 + $0x8] sm:$0x3] %vm121, %v113
  %127 = vst.msk [vmem:[%s2 + $0xa] sm:$0x3] %vm121, %v114
  %128 = vst.msk [vmem:[%s2 + $0xc] sm:$0x3] %vm121, %v115
  %129 = vst.msk [vmem:[%s2 + $0xe] sm:$0x3] %vm121, %v116
  %130 = vst.msk [vmem:[%s2 + $0x10] sm:$0x3] %vm121, %v117
  %131 = vst.msk [vmem:[%s2 + $0x12] sm:$0x3] %vm121, %v118
  %132 = vst.msk [vmem:[%s2 + $0x14] sm:$0x3] %vm121, %v119
  %133 = vst.msk [vmem:[%s2 + $0x16] sm:$0x3] %vm121, %v120
  // Predicated region
  $region10: #{transformer_forward.47} parent=0 // pred_check
    _
  $region11: #{transformer_forward.47} parent=0 // pred_check_branch
    %135 = sbr.rel (0) target = $region13
  $region12: #{transformer_forward.47} parent=0 // pred_region
    _
  $region13: #{transformer_forward.47} parent=0 // pred_fallthru
    _
  // Predicated region
  $region14: #{transformer_forward.47} parent=0 // pred_check
    _
  $region15: #{transformer_forward.47} parent=0 // pred_check_branch
    %137 = sbr.rel (0) target = $region17
  $region16: #{transformer_forward.47} parent=0 // pred_region
    _
  $region17: #{transformer_forward.47} parent=0 // pred_fallthru
    _

// kernel: transformer_forward.49
$region0: #{transformer_forward.49}
  #allocation0 [shape = 'u32[]', space=smem, size = 0x4, offset = 0x4, fixed_abs, tag = 'smem constant byte address 0x4 - core index']
  #allocation1 [shape = 'u32[144,128]{1,0:T(1,128)}', space=vmem, size = 0x12000, scoped, tag = 'internal scratch']
  %s0 = inlined_call_operand.vmem [shape: f32[24,32], index: 0, kind: input, shape index: {}]
  %s1 = inlined_call_operand.vmem [shape: f32[32,32], index: 1, kind: input, shape index: {}]
  %s2 = inlined_call_operand.vmem [shape: f32[1,32], index: 2, kind: input, shape index: {}]
  %s3 = inlined_call_operand.vmem [shape: f32[24,32], index: 3, kind: output, shape index: {}]
  %s4 = sld [smem:[#allocation0]]
  $region22: #{transformer_forward.49} parent=0
    _
  %s6 = ssub.s32 1, %s4
  %s7 = scalar_select 0, %s6, %s4
  // Predicated region
  $region2: #{transformer_forward.49} parent=0 // pred_check
    _
  $region3: #{transformer_forward.49} parent=0 // pred_check_branch
    %9 = sbr.rel (0) target = $region5
  $region4: #{transformer_forward.49} parent=0 // pred_region
    _
  $region5: #{transformer_forward.49} parent=0 // pred_fallthru
    _
  // Predicated region
  $region6: #{transformer_forward.49} parent=0 // pred_check
    _
  $region7: #{transformer_forward.49} parent=0 // pred_check_branch
    %11 = sbr.rel (0) target = $region9
  $region8: #{transformer_forward.49} parent=0 // pred_region
    _
  $region9: #{transformer_forward.49} parent=0 // pred_fallthru
    _
  // Predicated region
  $region10: #{transformer_forward.49} parent=0 // pred_check
    _
  $region11: #{transformer_forward.49} parent=0 // pred_check_branch
    %13 = sbr.rel (0) target = $region13
  $region12: #{transformer_forward.49} parent=0 // pred_region
    _
  $region13: #{transformer_forward.49} parent=0 // pred_fallthru
    _
  %v14 = vld [vmem:[%s0] sm:$0xff]
  %v15 = vld [vmem:[%s0 + $0x8] sm:$0xff]
  %v16 = vld [vmem:[%s0 + $0x10] sm:$0xff]
  %v17 = vld [vmem:[%s1] sm:$0xff]
  %v18 = vld [vmem:[%s1 + $0x8] sm:$0xff]
  %v19 = vld [vmem:[%s1 + $0x10] sm:$0xff]
  %v20 = vld [vmem:[%s1 + $0x18] sm:$0xff]
  %v21 = vld [vmem:[%s2] sm:$0x1]
  %v23 = vlaneseq
  %v24 = vshrl.u32 %v23, 7
  %v25 = vsub.s32 0, %v24
  %v26 = vrot.slane %v21, %v25
  %vm28 = vcmask 261120
  %v30 = vsel %vm28, %v14, 0
  %v33 = vsel %vm28, %v15, 0
  %v36 = vsel %vm28, %v16, 0
  %38 = vmatprep.subr.mxu0 0.0
  %v39 = vand.u32 %v17, 4294901760
  %40 = vmatpush1.msra.mxu0 %v39
  %41 = vmatprep.subr.mxu0 0.0
  %v42 = vand.u32 %v18, 4294901760
  %43 = vmatpush1.msra.mxu0 %v42
  %44 = vmatprep.subr.mxu0 0.0
  %v45 = vand.u32 %v19, 4294901760
  %46 = vmatpush1.msra.mxu0 %v45
  %47 = vmatprep.subr.mxu0 0.0
  %v48 = vand.u32 %v20, 4294901760
  %49 = vmatpush1.msra.mxu0 %v48
  %50 = vmatprep.subr.mxu0 0.0
  %51 = vmatpush1.msra.mxu0 0.0
  %52 = vmatprep.subr.mxu0 0.0
  %53 = vmatpush1.msra.mxu0 0.0
  %54 = vmatprep.subr.mxu0 0.0
  %55 = vmatpush1.msra.mxu0 0.0
  %56 = vmatprep.subr.mxu0 0.0
  %57 = vmatpush1.msra.mxu0 0.0
  %58 = vmatprep.subr.mxu0 0.0
  %59 = vmatpush1.msra.mxu0 0.0
  %60 = vmatprep.subr.mxu0 0.0
  %61 = vmatpush1.msra.mxu0 0.0
  %62 = vmatprep.subr.mxu0 0.0
  %63 = vmatpush1.msra.mxu0 0.0
  %64 = vmatprep.subr.mxu0 0.0
  %65 = vmatpush1.msra.mxu0 0.0
  %66 = vmatprep.subr.mxu0 0.0
  %67 = vmatpush1.msra.mxu0 0.0
  %68 = vmatprep.subr.mxu0 0.0
  %69 = vmatpush1.msra.mxu0 0.0
  %70 = vmatprep.subr.mxu0 0.0
  %71 = vmatpush1.msra.mxu0 0.0
  %72 = vmatprep.subr.mxu0 0.0
  %73 = vmatpush1.msra.mxu0 0.0
  %74 = vmatprep.subr.mxu0 0.0
  %75 = vmatpush1.msra.mxu0 0.0
  %76 = vmatprep.subr.mxu0 0.0
  %77 = vmatpush1.msra.mxu0 0.0
  %78 = vmatprep.subr.mxu0 0.0
  %79 = vmatpush1.msra.mxu0 0.0
  %80 = vmatprep.subr.mxu0 0.0
  %81 = vmatpush1.msra.mxu0 0.0
  %82 = vmatprep.subr.mxu0 0.0
  %83 = vmatpush1.msra.mxu0 0.0
  %84 = vmatprep.subr.mxu0 0.0
  %85 = vmatpush1.msra.mxu0 0.0
  %86 = vmatprep.subr.mxu0 0.0
  %87 = vmatpush1.msra.mxu0 0.0
  %88 = vmatprep.subr.mxu0 0.0
  %89 = vmatpush1.msra.mxu0 0.0
  %90 = vmatprep.subr.mxu0 0.0
  %91 = vmatpush1.msra.mxu0 0.0
  %92 = vmatprep.subr.mxu0 0.0
  %93 = vmatpush1.msra.mxu0 0.0
  %94 = vmatprep.subr.mxu0 0.0
  %95 = vmatpush1.msra.mxu0 0.0
  %96 = vmatprep.subr.mxu0 0.0
  %97 = vmatpush1.msra.mxu0 0.0
  %98 = vmatprep.subr.mxu0 0.0
  %99 = vmatpush1.msra.mxu0 0.0
  %100 = vmatprep.subr.mxu0 0.0
  %101 = vmatpush1.msra.mxu0 0.0
  %102 = vmatprep.subr.mxu0 0.0
  %103 = vmatpush1.msra.mxu0 0.0
  %104 = vmatprep.subr.mxu0 0.0
  %105 = vmatpush1.msra.mxu0 0.0
  %106 = vmatprep.mubr.f32.mxu0 0.0
  %v107 = vand.u32 %v30, 4294901760
  %v108 = vsub.f32 %v30, %v107
  %v109 = vand.u32 %v108, 4294901760
  %v110 = vsub.f32 %v108, %v109
  %v111 = vand.u32 %v110, 4294901760
  %112 = vmatmul.mubr.f32.gmra.mrb[0].mxu0 %v111
  %v113 = vpop.f32.mrb[0].mxu0
  %v114 = vadd.f32 %v26, %v113
  %v115 = vpop.f32.mrb[0].mxu0
  %116 = vmatprep.mubr.f32.mxu0 0.0
  %v117 = vand.u32 %v33, 4294901760
  %v118 = vsub.f32 %v33, %v117
  %v119 = vand.u32 %v118, 4294901760
  %v120 = vsub.f32 %v118, %v119
  %v121 = vand.u32 %v120, 4294901760
  %122 = vmatmul.mubr.f32.gmra.mrb[0].mxu0 %v121
  %v123 = vpop.f32.mrb[0].mxu0
  %v124 = vadd.f32 %v26, %v123
  %v125 = vpop.f32.mrb[0].mxu0
  %126 = vmatprep.mubr.f32.mxu0 0.0
  %v127 = vand.u32 %v36, 4294901760
  %v128 = vsub.f32 %v36, %v127
  %v129 = vand.u32 %v128, 4294901760
  %v130 = vsub.f32 %v128, %v129
  %v131 = vand.u32 %v130, 4294901760
  %132 = vmatmul.mubr.f32.gmra.mrb[0].mxu0 %v131
  %v133 = vpop.f32.mrb[0].mxu0
  %v134 = vadd.f32 %v26, %v133
  %v135 = vpop.f32.mrb[0].mxu0
  %136 = vdwg.mxu0
  %137 = vmatprep.subr.mxu0 0.0
  %v138 = vand.u32 %v17, 4294901760
  %v139 = vsub.f32 %v17, %v138
  %v140 = vand.u32 %v139, 4294901760
  %v141 = vsub.f32 %v139, %v140
  %v142 = vand.u32 %v141, 4294901760
  %143 = vmatpush1.msra.mxu0 %v142
  %144 = vmatprep.subr.mxu0 0.0
  %v145 = vand.u32 %v18, 4294901760
  %v146 = vsub.f32 %v18, %v145
  %v147 = vand.u32 %v146, 4294901760
  %v148 = vsub.f32 %v146, %v147
  %v149 = vand.u32 %v148, 4294901760
  %150 = vmatpush1.msra.mxu0 %v149
  %151 = vmatprep.subr.mxu0 0.0
  %v152 = vand.u32 %v19, 4294901760
  %v153 = vsub.f32 %v19, %v152
  %v154 = vand.u32 %v153, 4294901760
  %v155 = vsub.f32 %v153, %v154
  %v156 = vand.u32 %v155, 4294901760
  %157 = vmatpush1.msra.mxu0 %v156
  %158 = vmatprep.subr.mxu0 0.0
  %v159 = vand.u32 %v20, 4294901760
  %v160 = vsub.f32 %v20, %v159
  %v161 = vand.u32 %v160, 4294901760
  %v162 = vsub.f32 %v160, %v161
  %v163 = vand.u32 %v162, 4294901760
  %164 = vmatpush1.msra.mxu0 %v163
  %165 = vmatprep.subr.mxu0 0.0
  %166 = vmatpush1.msra.mxu0 0.0
  %167 = vmatprep.subr.mxu0 0.0
  %168 = vmatpush1.msra.mxu0 0.0
  %169 = vmatprep.subr.mxu0 0.0
  %170 = vmatpush1.msra.mxu0 0.0
  %171 = vmatprep.subr.mxu0 0.0
  %172 = vmatpush1.msra.mxu0 0.0
  %173 = vmatprep.subr.mxu0 0.0
  %174 = vmatpush1.msra.mxu0 0.0
  %175 = vmatprep.subr.mxu0 0.0
  %176 = vmatpush1.msra.mxu0 0.0
  %177 = vmatprep.subr.mxu0 0.0
  %178 = vmatpush1.msra.mxu0 0.0
  %179 = vmatprep.subr.mxu0 0.0
  %180 = vmatpush1.msra.mxu0 0.0
  %181 = vmatprep.subr.mxu0 0.0
  %182 = vmatpush1.msra.mxu0 0.0
  %183 = vmatprep.subr.mxu0 0.0
  %184 = vmatpush1.msra.mxu0 0.0
  %185 = vmatprep.subr.mxu0 0.0
  %186 = vmatpush1.msra.mxu0 0.0
  %187 = vmatprep.subr.mxu0 0.0
  %188 = vmatpush1.msra.mxu0 0.0
  %189 = vmatprep.subr.mxu0 0.0
  %190 = vmatpush1.msra.mxu0 0.0
  %191 = vmatprep.subr.mxu0 0.0
  %192 = vmatpush1.msra.mxu0 0.0
  %193 = vmatprep.subr.mxu0 0.0
  %194 = vmatpush1.msra.mxu0 0.0
  %195 = vmatprep.subr.mxu0 0.0
  %196 = vmatpush1.msra.mxu0 0.0
  %197 = vmatprep.subr.mxu0 0.0
  %198 = vmatpush1.msra.mxu0 0.0
  %199 = vmatprep.subr.mxu0 0.0
  %200 = vmatpush1.msra.mxu0 0.0
  %201 = vmatprep.subr.mxu0 0.0
  %202 = vmatpush1.msra.mxu0 0.0
  %203 = vmatprep.subr.mxu0 0.0
  %204 = vmatpush1.msra.mxu0 0.0
  %205 = vmatprep.subr.mxu0 0.0
  %206 = vmatpush1.msra.mxu0 0.0
  %207 = vmatprep.subr.mxu0 0.0
  %208 = vmatpush1.msra.mxu0 0.0
  %209 = vmatprep.subr.mxu0 0.0
  %210 = vmatpush1.msra.mxu0 0.0
  %211 = vmatprep.subr.mxu0 0.0
  %212 = vmatpush1.msra.mxu0 0.0
  %213 = vmatprep.subr.mxu0 0.0
  %214 = vmatpush1.msra.mxu0 0.0
  %215 = vmatprep.subr.mxu0 0.0
  %216 = vmatpush1.msra.mxu0 0.0
  %217 = vmatprep.subr.mxu0 0.0
  %218 = vmatpush1.msra.mxu0 0.0
  %219 = vmatprep.subr.mxu0 0.0
  %220 = vmatpush1.msra.mxu0 0.0
  %221 = vmatprep.mubr.f32.mxu0 0.0
  %v222 = vand.u32 %v30, 4294901760
  %223 = vmatmul.mubr.f32.gmra.mrb[0].mxu0 %v222
  %v224 = vpop.f32.mrb[0].mxu0
  %v225 = vadd.f32 %v114, %v224
  %v226 = vpop.f32.mrb[0].mxu0
  %227 = vmatprep.mubr.f32.mxu0 0.0
  %v228 = vand.u32 %v33, 4294901760
  %229 = vmatmul.mubr.f32.gmra.mrb[0].mxu0 %v228
  %v230 = vpop.f32.mrb[0].mxu0
  %v231 = vadd.f32 %v124, %v230
  %v232 = vpop.f32.mrb[0].mxu0
  %233 = vmatprep.mubr.f32.mxu0 0.0
  %v234 = vand.u32 %v36, 4294901760
  %235 = vmatmul.mubr.f32.gmra.mrb[0].mxu0 %v234
  %v236 = vpop.f32.mrb[0].mxu0
  %v237 = vadd.f32 %v134, %v236
  %v238 = vpop.f32.mrb[0].mxu0
  %239 = vdwg.mxu0
  %240 = vmatprep.subr.mxu0 0.0
  %v241 = vand.u32 %v17, 4294901760
  %v242 = vsub.f32 %v17, %v241
  %243 = vmatpush1.msra.mxu0 %v242
  %244 = vmatprep.subr.mxu0 0.0
  %v245 = vand.u32 %v18, 4294901760
  %v246 = vsub.f32 %v18, %v245
  %247 = vmatpush1.msra.mxu0 %v246
  %248 = vmatprep.subr.mxu0 0.0
  %v249 = vand.u32 %v19, 4294901760
  %v250 = vsub.f32 %v19, %v249
  %251 = vmatpush1.msra.mxu0 %v250
  %252 = vmatprep.subr.mxu0 0.0
  %v253 = vand.u32 %v20, 4294901760
  %v254 = vsub.f32 %v20, %v253
  %255 = vmatpush1.msra.mxu0 %v254
  %256 = vmatprep.subr.mxu0 0.0
  %257 = vmatpush1.msra.mxu0 0.0
  %258 = vmatprep.subr.mxu0 0.0
  %259 = vmatpush1.msra.mxu0 0.0
  %260 = vmatprep.subr.mxu0 0.0
  %261 = vmatpush1.msra.mxu0 0.0
  %262 = vmatprep.subr.mxu0 0.0
  %263 = vmatpush1.msra.mxu0 0.0
  %264 = vmatprep.subr.mxu0 0.0
  %265 = vmatpush1.msra.mxu0 0.0
  %266 = vmatprep.subr.mxu0 0.0
  %267 = vmatpush1.msra.mxu0 0.0
  %268 = vmatprep.subr.mxu0 0.0
  %269 = vmatpush1.msra.mxu0 0.0
  %270 = vmatprep.subr.mxu0 0.0
  %271 = vmatpush1.msra.mxu0 0.0
  %272 = vmatprep.subr.mxu0 0.0
  %273 = vmatpush1.msra.mxu0 0.0
  %274 = vmatprep.subr.mxu0 0.0
  %275 = vmatpush1.msra.mxu0 0.0
  %276 = vmatprep.subr.mxu0 0.0
  %277 = vmatpush1.msra.mxu0 0.0
  %278 = vmatprep.subr.mxu0 0.0
  %279 = vmatpush1.msra.mxu0 0.0
  %280 = vmatprep.subr.mxu0 0.0
  %281 = vmatpush1.msra.mxu0 0.0
  %282 = vmatprep.subr.mxu0 0.0
  %283 = vmatpush1.msra.mxu0 0.0
  %284 = vmatprep.subr.mxu0 0.0
  %285 = vmatpush1.msra.mxu0 0.0
  %286 = vmatprep.subr.mxu0 0.0
  %287 = vmatpush1.msra.mxu0 0.0
  %288 = vmatprep.subr.mxu0 0.0
  %289 = vmatpush1.msra.mxu0 0.0
  %290 = vmatprep.subr.mxu0 0.0
  %291 = vmatpush1.msra.mxu0 0.0
  %292 = vmatprep.subr.mxu0 0.0
  %293 = vmatpush1.msra.mxu0 0.0
  %294 = vmatprep.subr.mxu0 0.0
  %295 = vmatpush1.msra.mxu0 0.0
  %296 = vmatprep.subr.mxu0 0.0
  %297 = vmatpush1.msra.mxu0 0.0
  %298 = vmatprep.subr.mxu0 0.0
  %299 = vmatpush1.msra.mxu0 0.0
  %300 = vmatprep.subr.mxu0 0.0
  %301 = vmatpush1.msra.mxu0 0.0
  %302 = vmatprep.subr.mxu0 0.0
  %303 = vmatpush1.msra.mxu0 0.0
  %304 = vmatprep.subr.mxu0 0.0
  %305 = vmatpush1.msra.mxu0 0.0
  %306 = vmatprep.subr.mxu0 0.0
  %307 = vmatpush1.msra.mxu0 0.0
  %308 = vmatprep.subr.mxu0 0.0
  %309 = vmatpush1.msra.mxu0 0.0
  %310 = vmatprep.subr.mxu0 0.0
  %311 = vmatpush1.msra.mxu0 0.0
  %312 = vmatprep.mubr.f32.mxu0 0.0
  %v313 = vand.u32 %v30, 4294901760
  %v314 = vsub.f32 %v30, %v313
  %315 = vmatmul.mubr.f32.gmra.mrb[0].mxu0 %v314
  %v316 = vpop.f32.mrb[0].mxu0
  %v317 = vadd.f32 %v225, %v316
  %v318 = vpop.f32.mrb[0].mxu0
  %319 = vmatprep.mubr.f32.mxu0 0.0
  %v320 = vand.u32 %v33, 4294901760
  %v321 = vsub.f32 %v33, %v320
  %322 = vmatmul.mubr.f32.gmra.mrb[0].mxu0 %v321
  %v323 = vpop.f32.mrb[0].mxu0
  %v324 = vadd.f32 %v231, %v323
  %v325 = vpop.f32.mrb[0].mxu0
  %326 = vmatprep.mubr.f32.mxu0 0.0
  %v327 = vand.u32 %v36, 4294901760
  %v328 = vsub.f32 %v36, %v327
  %329 = vmatmul.mubr.f32.gmra.mrb[0].mxu0 %v328
  %v330 = vpop.f32.mrb[0].mxu0
  %v331 = vadd.f32 %v237, %v330
  %v332 = vpop.f32.mrb[0].mxu0
  %333 = vdwg.mxu0
  %334 = vmatprep.subr.mxu0 0.0
  %v335 = vand.u32 %v17, 4294901760
  %336 = vmatpush1.msra.mxu0 %v335
  %337 = vmatprep.subr.mxu0 0.0
  %v338 = vand.u32 %v18, 4294901760
  %339 = vmatpush1.msra.mxu0 %v338
  %340 = vmatprep.subr.mxu0 0.0
  %v341 = vand.u32 %v19, 4294901760
  %342 = vmatpush1.msra.mxu0 %v341
  %343 = vmatprep.subr.mxu0 0.0
  %v344 = vand.u32 %v20, 4294901760
  %345 = vmatpush1.msra.mxu0 %v344
  %346 = vmatprep.subr.mxu0 0.0
  %347 = vmatpush1.msra.mxu0 0.0
  %348 = vmatprep.subr.mxu0 0.0
  %349 = vmatpush1.msra.mxu0 0.0
  %350 = vmatprep.subr.mxu0 0.0
  %351 = vmatpush1.msra.mxu0 0.0
  %352 = vmatprep.subr.mxu0 0.0
  %353 = vmatpush1.msra.mxu0 0.0
  %354 = vmatprep.subr.mxu0 0.0
  %355 = vmatpush1.msra.mxu0 0.0
  %356 = vmatprep.subr.mxu0 0.0
  %357 = vmatpush1.msra.mxu0 0.0
  %358 = vmatprep.subr.mxu0 0.0
  %359 = vmatpush1.msra.mxu0 0.0
  %360 = vmatprep.subr.mxu0 0.0
  %361 = vmatpush1.msra.mxu0 0.0
  %362 = vmatprep.subr.mxu0 0.0
  %363 = vmatpush1.msra.mxu0 0.0
  %364 = vmatprep.subr.mxu0 0.0
  %365 = vmatpush1.msra.mxu0 0.0
  %366 = vmatprep.subr.mxu0 0.0
  %367 = vmatpush1.msra.mxu0 0.0
  %368 = vmatprep.subr.mxu0 0.0
  %369 = vmatpush1.msra.mxu0 0.0
  %370 = vmatprep.subr.mxu0 0.0
  %371 = vmatpush1.msra.mxu0 0.0
  %372 = vmatprep.subr.mxu0 0.0
  %373 = vmatpush1.msra.mxu0 0.0
  %374 = vmatprep.subr.mxu0 0.0
  %375 = vmatpush1.msra.mxu0 0.0
  %376 = vmatprep.subr.mxu0 0.0
  %377 = vmatpush1.msra.mxu0 0.0
  %378 = vmatprep.subr.mxu0 0.0
  %379 = vmatpush1.msra.mxu0 0.0
  %380 = vmatprep.subr.mxu0 0.0
  %381 = vmatpush1.msra.mxu0 0.0
  %382 = vmatprep.subr.mxu0 0.0
  %383 = vmatpush1.msra.mxu0 0.0
  %384 = vmatprep.subr.mxu0 0.0
  %385 = vmatpush1.msra.mxu0 0.0
  %386 = vmatprep.subr.mxu0 0.0
  %387 = vmatpush1.msra.mxu0 0.0
  %388 = vmatprep.subr.mxu0 0.0
  %389 = vmatpush1.msra.mxu0 0.0
  %390 = vmatprep.subr.mxu0 0.0
  %391 = vmatpush1.msra.mxu0 0.0
  %392 = vmatprep.subr.mxu0 0.0
  %393 = vmatpush1.msra.mxu0 0.0
  %394 = vmatprep.subr.mxu0 0.0
  %395 = vmatpush1.msra.mxu0 0.0
  %396 = vmatprep.subr.mxu0 0.0
  %397 = vmatpush1.msra.mxu0 0.0
  %398 = vmatprep.subr.mxu0 0.0
  %399 = vmatpush1.msra.mxu0 0.0
  %400 = vmatprep.subr.mxu0 0.0
  %401 = vmatpush1.msra.mxu0 0.0
  %402 = vmatprep.mubr.f32.mxu0 0.0
  %v403 = vand.u32 %v30, 4294901760
  %v404 = vsub.f32 %v30, %v403
  %v405 = vand.u32 %v404, 4294901760
  %406 = vmatmul.mubr.f32.gmra.mrb[0].mxu0 %v405
  %v407 = vpop.f32.mrb[0].mxu0
  %v408 = vadd.f32 %v317, %v407
  %v409 = vpop.f32.mrb[0].mxu0
  %410 = vmatprep.mubr.f32.mxu0 0.0
  %v411 = vand.u32 %v33, 4294901760
  %v412 = vsub.f32 %v33, %v411
  %v413 = vand.u32 %v412, 4294901760
  %414 = vmatmul.mubr.f32.gmra.mrb[0].mxu0 %v413
  %v415 = vpop.f32.mrb[0].mxu0
  %v416 = vadd.f32 %v324, %v415
  %v417 = vpop.f32.mrb[0].mxu0
  %418 = vmatprep.mubr.f32.mxu0 0.0
  %v419 = vand.u32 %v36, 4294901760
  %v420 = vsub.f32 %v36, %v419
  %v421 = vand.u32 %v420, 4294901760
  %422 = vmatmul.mubr.f32.gmra.mrb[0].mxu0 %v421
  %v423 = vpop.f32.mrb[0].mxu0
  %v424 = vadd.f32 %v331, %v423
  %v425 = vpop.f32.mrb[0].mxu0
  %426 = vdwg.mxu0
  %427 = vmatprep.subr.mxu0 0.0
  %v428 = vand.u32 %v17, 4294901760
  %v429 = vsub.f32 %v17, %v428
  %v430 = vand.u32 %v429, 4294901760
  %431 = vmatpush1.msra.mxu0 %v430
  %432 = vmatprep.subr.mxu0 0.0
  %v433 = vand.u32 %v18, 4294901760
  %v434 = vsub.f32 %v18, %v433
  %v435 = vand.u32 %v434, 4294901760
  %436 = vmatpush1.msra.mxu0 %v435
  %437 = vmatprep.subr.mxu0 0.0
  %v438 = vand.u32 %v19, 4294901760
  %v439 = vsub.f32 %v19, %v438
  %v440 = vand.u32 %v439, 4294901760
  %441 = vmatpush1.msra.mxu0 %v440
  %442 = vmatprep.subr.mxu0 0.0
  %v443 = vand.u32 %v20, 4294901760
  %v444 = vsub.f32 %v20, %v443
  %v445 = vand.u32 %v444, 4294901760
  %446 = vmatpush1.msra.mxu0 %v445
  %447 = vmatprep.subr.mxu0 0.0
  %448 = vmatpush1.msra.mxu0 0.0
  %449 = vmatprep.subr.mxu0 0.0
  %450 = vmatpush1.msra.mxu0 0.0
  %451 = vmatprep.subr.mxu0 0.0
  %452 = vmatpush1.msra.mxu0 0.0
  %453 = vmatprep.subr.mxu0 0.0
  %454 = vmatpush1.msra.mxu0 0.0
  %455 = vmatprep.subr.mxu0 0.0
  %456 = vmatpush1.msra.mxu0 0.0
  %457 = vmatprep.subr.mxu0 0.0
  %458 = vmatpush1.msra.mxu0 0.0
  %459 = vmatprep.subr.mxu0 0.0
  %460 = vmatpush1.msra.mxu0 0.0
  %461 = vmatprep.subr.mxu0 0.0
  %462 = vmatpush1.msra.mxu0 0.0
  %463 = vmatprep.subr.mxu0 0.0
  %464 = vmatpush1.msra.mxu0 0.0
  %465 = vmatprep.subr.mxu0 0.0
  %466 = vmatpush1.msra.mxu0 0.0
  %467 = vmatprep.subr.mxu0 0.0
  %468 = vmatpush1.msra.mxu0 0.0
  %469 = vmatprep.subr.mxu0 0.0
  %470 = vmatpush1.msra.mxu0 0.0
  %471 = vmatprep.subr.mxu0 0.0
  %472 = vmatpush1.msra.mxu0 0.0
  %473 = vmatprep.subr.mxu0 0.0
  %474 = vmatpush1.msra.mxu0 0.0
  %475 = vmatprep.subr.mxu0 0.0
  %476 = vmatpush1.msra.mxu0 0.0
  %477 = vmatprep.subr.mxu0 0.0
  %478 = vmatpush1.msra.mxu0 0.0
  %479 = vmatprep.subr.mxu0 0.0
  %480 = vmatpush1.msra.mxu0 0.0
  %481 = vmatprep.subr.mxu0 0.0
  %482 = vmatpush1.msra.mxu0 0.0
  %483 = vmatprep.subr.mxu0 0.0
  %484 = vmatpush1.msra.mxu0 0.0
  %485 = vmatprep.subr.mxu0 0.0
  %486 = vmatpush1.msra.mxu0 0.0
  %487 = vmatprep.subr.mxu0 0.0
  %488 = vmatpush1.msra.mxu0 0.0
  %489 = vmatprep.subr.mxu0 0.0
  %490 = vmatpush1.msra.mxu0 0.0
  %491 = vmatprep.subr.mxu0 0.0
  %492 = vmatpush1.msra.mxu0 0.0
  %493 = vmatprep.subr.mxu0 0.0
  %494 = vmatpush1.msra.mxu0 0.0
  %495 = vmatprep.subr.mxu0 0.0
  %496 = vmatpush1.msra.mxu0 0.0
  %497 = vmatprep.subr.mxu0 0.0
  %498 = vmatpush1.msra.mxu0 0.0
  %499 = vmatprep.subr.mxu0 0.0
  %500 = vmatpush1.msra.mxu0 0.0
  %501 = vmatprep.subr.mxu0 0.0
  %502 = vmatpush1.msra.mxu0 0.0
  %503 = vmatprep.mubr.f32.mxu0 0.0
  %v504 = vand.u32 %v30, 4294901760
  %505 = vmatmul.mubr.f32.gmra.mrb[0].mxu0 %v504
  %v506 = vpop.f32.mrb[0].mxu0
  %v507 = vadd.f32 %v408, %v506
  %v508 = vpop.f32.mrb[0].mxu0
  %509 = vmatprep.mubr.f32.mxu0 0.0
  %v510 = vand.u32 %v33, 4294901760
  %511 = vmatmul.mubr.f32.gmra.mrb[0].mxu0 %v510
  %v512 = vpop.f32.mrb[0].mxu0
  %v513 = vadd.f32 %v416, %v512
  %v514 = vpop.f32.mrb[0].mxu0
  %515 = vmatprep.mubr.f32.mxu0 0.0
  %v516 = vand.u32 %v36, 4294901760
  %517 = vmatmul.mubr.f32.gmra.mrb[0].mxu0 %v516
  %v518 = vpop.f32.mrb[0].mxu0
  %v519 = vadd.f32 %v424, %v518
  %v520 = vpop.f32.mrb[0].mxu0
  %521 = vdwg.mxu0
  %522 = vmatprep.subr.mxu0 0.0
  %v523 = vand.u32 %v17, 4294901760
  %524 = vmatpush1.msra.mxu0 %v523
  %525 = vmatprep.subr.mxu0 0.0
  %v526 = vand.u32 %v18, 4294901760
  %527 = vmatpush1.msra.mxu0 %v526
  %528 = vmatprep.subr.mxu0 0.0
  %v529 = vand.u32 %v19, 4294901760
  %530 = vmatpush1.msra.mxu0 %v529
  %531 = vmatprep.subr.mxu0 0.0
  %v532 = vand.u32 %v20, 4294901760
  %533 = vmatpush1.msra.mxu0 %v532
  %534 = vmatprep.subr.mxu0 0.0
  %535 = vmatpush1.msra.mxu0 0.0
  %536 = vmatprep.subr.mxu0 0.0
  %537 = vmatpush1.msra.mxu0 0.0
  %538 = vmatprep.subr.mxu0 0.0
  %539 = vmatpush1.msra.mxu0 0.0
  %540 = vmatprep.subr.mxu0 0.0
  %541 = vmatpush1.msra.mxu0 0.0
  %542 = vmatprep.subr.mxu0 0.0
  %543 = vmatpush1.msra.mxu0 0.0
  %544 = vmatprep.subr.mxu0 0.0
  %545 = vmatpush1.msra.mxu0 0.0
  %546 = vmatprep.subr.mxu0 0.0
  %547 = vmatpush1.msra.mxu0 0.0
  %548 = vmatprep.subr.mxu0 0.0
  %549 = vmatpush1.msra.mxu0 0.0
  %550 = vmatprep.subr.mxu0 0.0
  %551 = vmatpush1.msra.mxu0 0.0
  %552 = vmatprep.subr.mxu0 0.0
  %553 = vmatpush1.msra.mxu0 0.0
  %554 = vmatprep.subr.mxu0 0.0
  %555 = vmatpush1.msra.mxu0 0.0
  %556 = vmatprep.subr.mxu0 0.0
  %557 = vmatpush1.msra.mxu0 0.0
  %558 = vmatprep.subr.mxu0 0.0
  %559 = vmatpush1.msra.mxu0 0.0
  %560 = vmatprep.subr.mxu0 0.0
  %561 = vmatpush1.msra.mxu0 0.0
  %562 = vmatprep.subr.mxu0 0.0
  %563 = vmatpush1.msra.mxu0 0.0
  %564 = vmatprep.subr.mxu0 0.0
  %565 = vmatpush1.msra.mxu0 0.0
  %566 = vmatprep.subr.mxu0 0.0
  %567 = vmatpush1.msra.mxu0 0.0
  %568 = vmatprep.subr.mxu0 0.0
  %569 = vmatpush1.msra.mxu0 0.0
  %570 = vmatprep.subr.mxu0 0.0
  %571 = vmatpush1.msra.mxu0 0.0
  %572 = vmatprep.subr.mxu0 0.0
  %573 = vmatpush1.msra.mxu0 0.0
  %574 = vmatprep.subr.mxu0 0.0
  %575 = vmatpush1.msra.mxu0 0.0
  %576 = vmatprep.subr.mxu0 0.0
  %577 = vmatpush1.msra.mxu0 0.0
  %578 = vmatprep.subr.mxu0 0.0
  %579 = vmatpush1.msra.mxu0 0.0
  %580 = vmatprep.subr.mxu0 0.0
  %581 = vmatpush1.msra.mxu0 0.0
  %582 = vmatprep.subr.mxu0 0.0
  %583 = vmatpush1.msra.mxu0 0.0
  %584 = vmatprep.subr.mxu0 0.0
  %585 = vmatpush1.msra.mxu0 0.0
  %586 = vmatprep.subr.mxu0 0.0
  %587 = vmatpush1.msra.mxu0 0.0
  %588 = vmatprep.subr.mxu0 0.0
  %589 = vmatpush1.msra.mxu0 0.0
  %590 = vmatprep.mubr.f32.mxu0 0.0
  %v591 = vand.u32 %v30, 4294901760
  %592 = vmatmul.mubr.f32.gmra.mrb[0].mxu0 %v591
  %v593 = vpop.f32.mrb[0].mxu0
  %v594 = vadd.f32 %v507, %v593
  %v595 = vpop.f32.mrb[0].mxu0
  %596 = vmatprep.mubr.f32.mxu0 0.0
  %v597 = vand.u32 %v33, 4294901760
  %598 = vmatmul.mubr.f32.gmra.mrb[0].mxu0 %v597
  %v599 = vpop.f32.mrb[0].mxu0
  %v600 = vadd.f32 %v513, %v599
  %v601 = vpop.f32.mrb[0].mxu0
  %602 = vmatprep.mubr.f32.mxu0 0.0
  %v603 = vand.u32 %v36, 4294901760
  %604 = vmatmul.mubr.f32.gmra.mrb[0].mxu0 %v603
  %v605 = vpop.f32.mrb[0].mxu0
  %v606 = vadd.f32 %v519, %v605
  %v607 = vpop.f32.mrb[0].mxu0
  %608 = vdwg.mxu0
  %609 = vst.msk [vmem:[%s3] sm:$0xff] %vm28, %v594
  %610 = vst.msk [vmem:[%s3 + $0x8] sm:$0xff] %vm28, %v600
  %611 = vst.msk [vmem:[%s3 + $0x10] sm:$0xff] %vm28, %v606
  // Predicated region
  $region14: #{transformer_forward.49} parent=0 // pred_check
    _
  $region15: #{transformer_forward.49} parent=0 // pred_check_branch
    %613 = sbr.rel (0) target = $region17
  $region16: #{transformer_forward.49} parent=0 // pred_region
    _
  $region17: #{transformer_forward.49} parent=0 // pred_fallthru
    _
  // Predicated region
  $region18: #{transformer_forward.49} parent=0 // pred_check
    _
  $region19: #{transformer_forward.49} parent=0 // pred_check_branch
    %615 = sbr.rel (0) target = $region21
  $region20: #{transformer_forward.49} parent=0 // pred_region
    _
  $region21: #{transformer_forward.49} parent=0 // pred_fallthru
    _

// kernel: transformer_forward.70
$region0: #{transformer_forward.70}
  #allocation0 [shape = 'u32[]', space=smem, size = 0x4, offset = 0x4, fixed_abs, tag = 'smem constant byte address 0x4 - core index']
  #allocation1 [shape = 'u32[144,128]{1,0:T(1,128)}', space=vmem, size = 0x12000, scoped, tag = 'internal scratch']
  %s0 = inlined_call_operand.vmem [shape: f32[16,32], index: 0, kind: input, shape index: {}]
  %s1 = inlined_call_operand.vmem [shape: f32[16,32], index: 1, kind: input, shape index: {}]
  %s2 = inlined_call_operand.vmem [shape: f32[1,32], index: 2, kind: input, shape index: {}]
  %s3 = inlined_call_operand.vmem [shape: f32[1,32], index: 3, kind: input, shape index: {}]
  %s4 = inlined_call_operand.vmem [shape: f32[16,32], index: 4, kind: output, shape index: {}]
  %s5 = sld [smem:[#allocation0]]
  $region26: #{transformer_forward.70} parent=0
    _
  %s7 = ssub.s32 1, %s5
  %s8 = scalar_select 0, %s7, %s5
  // Predicated region
  $region2: #{transformer_forward.70} parent=0 // pred_check
    _
  $region3: #{transformer_forward.70} parent=0 // pred_check_branch
    %10 = sbr.rel (0) target = $region5
  $region4: #{transformer_forward.70} parent=0 // pred_region
    _
  $region5: #{transformer_forward.70} parent=0 // pred_fallthru
    _
  // Predicated region
  $region6: #{transformer_forward.70} parent=0 // pred_check
    _
  $region7: #{transformer_forward.70} parent=0 // pred_check_branch
    %12 = sbr.rel (0) target = $region9
  $region8: #{transformer_forward.70} parent=0 // pred_region
    _
  $region9: #{transformer_forward.70} parent=0 // pred_fallthru
    _
  // Predicated region
  $region10: #{transformer_forward.70} parent=0 // pred_check
    _
  $region11: #{transformer_forward.70} parent=0 // pred_check_branch
    %14 = sbr.rel (0) target = $region13
  $region12: #{transformer_forward.70} parent=0 // pred_region
    _
  $region13: #{transformer_forward.70} parent=0 // pred_fallthru
    _
  // Predicated region
  $region14: #{transformer_forward.70} parent=0 // pred_check
    _
  $region15: #{transformer_forward.70} parent=0 // pred_check_branch
    %16 = sbr.rel (0) target = $region17
  $region16: #{transformer_forward.70} parent=0 // pred_region
    _
  $region17: #{transformer_forward.70} parent=0 // pred_fallthru
    _
  %v17 = vld [vmem:[%s0] sm:$0xff]
  %v18 = vld [vmem:[%s0 + $0x8] sm:$0xff]
  %v19 = vld [vmem:[%s1] sm:$0xff]
  %v20 = vld [vmem:[%s1 + $0x8] sm:$0xff]
  %v21 = vadd.f32 %v17, %v19
  %v22 = vadd.f32 %v18, %v20
  %vm23 = vcmask 261120
  %v24 = vsel %vm23, %v21, 0.0
  %25 = vadd.xlane.f32.xlu0 %v24
  %v26 = vpop.xlane.xlu0 %25
  %v27 = vsel %vm23, %v22, 0.0
  %28 = vadd.xlane.f32.xlu0 %v27
  %v29 = vpop.xlane.xlu0 %28
  %v30 = vrcp.pop 32.0
  %v31 = vmul.f32 %v26, %v30
  %v32 = vmul.f32 %v29, %v30
  %v33 = vsub.f32 %v21, %v31
  %v34 = vsub.f32 %v22, %v32
  %v35 = vmul.f32 %v33, %v33
  %v36 = vmul.f32 %v34, %v34
  %v37 = vsel %vm23, %v35, 0.0
  %38 = vadd.xlane.f32.xlu0 %v37
  %v39 = vpop.xlane.xlu0 %38
  %v40 = vsel %vm23, %v36, 0.0
  %41 = vadd.xlane.f32.xlu0 %v40
  %v42 = vpop.xlane.xlu0 %41
  %v43 = vmul.f32 %v39, %v30
  %v44 = vmul.f32 %v42, %v30
  %v45 = vadd.f32 %v43, 1e-05
  %v46 = vadd.f32 %v44, 1e-05
  %v47 = vrsqrt.pop %v45
  %v48 = vrsqrt.pop %v46
  %v49 = vmul.f32 %v33, %v47
  %v50 = vmul.f32 %v34, %v48
  %v51 = vld [vmem:[%s2] sm:$0x1]
  %v53 = vlaneseq
  %v54 = vshrl.u32 %v53, 7
  %v55 = vsub.s32 0, %v54
  %v56 = vrot.slane %v51, %v55
  %v58 = vmul.f32 %v49, %v56
  %v59 = vmul.f32 %v50, %v56
  %v60 = vld [vmem:[%s3] sm:$0x1]
  %v62 = vlaneseq
  %v63 = vshrl.u32 %v62, 7
  %v64 = vsub.s32 0, %v63
  %v65 = vrot.slane %v60, %v64
  %v67 = vadd.f32 %v58, %v65
  %v68 = vadd.f32 %v59, %v65
  %69 = vst.msk [vmem:[%s4] sm:$0xff] %vm23, %v67
  %70 = vst.msk [vmem:[%s4 + $0x8] sm:$0xff] %vm23, %v68
  // Predicated region
  $region18: #{transformer_forward.70} parent=0 // pred_check
    _
  $region19: #{transformer_forward.70} parent=0 // pred_check_branch
    %72 = sbr.rel (0) target = $region21
  $region20: #{transformer_forward.70} parent=0 // pred_region
    _
  $region21: #{transformer_forward.70} parent=0 // pred_fallthru
    _
  // Predicated region
  $region22: #{transformer_forward.70} parent=0 // pred_check
    _
  $region23: #{transformer_forward.70} parent=0 // pred_check_branch
    %74 = sbr.rel (0) target = $region25
  $region24: #{transformer_forward.70} parent=0 // pred_region
    _
  $region25: #{transformer_forward.70} parent=0 // pred_fallthru
    _

// kernel: transformer_forward.68
$region0: #{transformer_forward.68}
  #allocation0 [shape = 'u32[]', space=smem, size = 0x4, offset = 0x4, fixed_abs, tag = 'smem constant byte address 0x4 - core index']
  #allocation1 [shape = 'u32[144,128]{1,0:T(1,128)}', space=vmem, size = 0x12000, scoped, tag = 'internal scratch']
  %s0 = inlined_call_operand.vmem [shape: f32[8,8,8], index: 0, kind: input, shape index: {}]
  %s1 = inlined_call_operand.vmem [shape: f32[8,8,8], index: 1, kind: input, shape index: {}]
  %s2 = inlined_call_operand.vmem [shape: f32[8,8,8], index: 2, kind: input, shape index: {}]
  %s3 = inlined_call_operand.vmem [shape: f32[8,8,8], index: 3, kind: input, shape index: {}]
  %s4 = inlined_call_operand.vmem [shape: f32[8,8,8], index: 4, kind: output, shape index: {}]
  %s5 = sld [smem:[#allocation0]]
  $region49: #{transformer_forward.68} parent=0
    _
  %s7 = ssub.s32 1, %s5
  %s8 = scalar_select 0, %s7, %s5
  loop: start=0, step=1, limit=10
  $region2: #{transformer_forward.68} parent=0 // loop_pre_header
    _
  $region3: #{transformer_forward.68} parent=0 // loop_header
    %s10 = sphi 0, %s14
    %p11 = scmp.ge.s32.totalorder %s10, 10
    %s20 = sphi 0, %s22
    %s23 = sphi 0, %s20
    %s24 = sphi 0, %s23
    %s40 = sphi 0, %s24
    %s46 = sphi 0, %s48
    %s49 = sphi 0, %s46
    %s50 = sphi 0, %s49
    %s66 = sphi 0, %s50
    %s72 = sphi 0, %s74
    %s75 = sphi 0, %s72
    %s76 = sphi 0, %s75
    %s92 = sphi 0, %s76
    %s98 = sphi 0, %s100
    %s101 = sphi 0, %s98
    %s102 = sphi 0, %s101
    %s118 = sphi 0, %s102
    %s124 = sphi 0, %s126
    %s127 = sphi 0, %s124
    %s128 = sphi 0, %s127
    %s144 = sphi 0, %s128
  $region4: #{transformer_forward.68} parent=0 // loop_header_branch
    %13 = sbr.rel (%p11) target = $region8
  $region5: #{transformer_forward.68} parent=0 // loop_body
    %s15 = ssub.s32 %s10, 1
    %s16 = ssub.s32 %s10, 2
    %s17 = sadd.s32 %s10, 1
    %s18 = ssub.s32 %s10, %s17
    %p19 = scmp.eq.s32.totalorder %s18, 0
    %s21 = sadd.s32 %s20, 1
    %s22 = scalar_select %p19, %s20, %s21
    %p25 = pneg %p19
    %p26 = scmp.eq.s32.totalorder %s10, 7
    %p27 = por %p25, %p26
    %p28 = scmp.ne.s32.totalorder %s20, %s23
    %p29 = scmp.eq.s32.totalorder %s10, 0
    %p30 = por %p28, %p29
    %p31 = scmp.ne.s32.totalorder %s20, %s23
    %p32 = scmp.eq.s32.totalorder %s15, 7
    %p33 = por %p31, %p32
    %p34 = scmp.ne.s32.totalorder %s23, %s24
    %p35 = scmp.eq.s32.totalorder %s15, 0
    %p36 = por %p34, %p35
    %p37 = scmp.ne.s32.totalorder %s23, %s24
    %p38 = scmp.eq.s32.totalorder %s16, 7
    %p39 = por %p37, %p38
    %p41 = scmp.ne.s32.totalorder %s24, %s40
    %p42 = scmp.eq.s32.totalorder %s16, 0
    %p43 = por %p41, %p42
    %s44 = ssub.s32 %s10, %s17
    %p45 = scmp.eq.s32.totalorder %s44, 0
    %s47 = sadd.s32 %s46, 1
    %s48 = scalar_select %p45, %s46, %s47
    %p51 = pneg %p45
    %p52 = scmp.eq.s32.totalorder %s10, 7
    %p53 = por %p51, %p52
    %p54 = scmp.ne.s32.totalorder %s46, %s49
    %p55 = scmp.eq.s32.totalorder %s10, 0
    %p56 = por %p54, %p55
    %p57 = scmp.ne.s32.totalorder %s46, %s49
    %p58 = scmp.eq.s32.totalorder %s15, 7
    %p59 = por %p57, %p58
    %p60 = scmp.ne.s32.totalorder %s49, %s50
    %p61 = scmp.eq.s32.totalorder %s15, 0
    %p62 = por %p60, %p61
    %p63 = scmp.ne.s32.totalorder %s49, %s50
    %p64 = scmp.eq.s32.totalorder %s16, 7
    %p65 = por %p63, %p64
    %p67 = scmp.ne.s32.totalorder %s50, %s66
    %p68 = scmp.eq.s32.totalorder %s16, 0
    %p69 = por %p67, %p68
    %s70 = ssub.s32 %s10, %s17
    %p71 = scmp.eq.s32.totalorder %s70, 0
    %s73 = sadd.s32 %s72, 1
    %s74 = scalar_select %p71, %s72, %s73
    %p77 = pneg %p71
    %p78 = scmp.eq.s32.totalorder %s10, 7
    %p79 = por %p77, %p78
    %p80 = scmp.ne.s32.totalorder %s72, %s75
    %p81 = scmp.eq.s32.totalorder %s10, 0
    %p82 = por %p80, %p81
    %p83 = scmp.ne.s32.totalorder %s72, %s75
    %p84 = scmp.eq.s32.totalorder %s15, 7
    %p85 = por %p83, %p84
    %p86 = scmp.ne.s32.totalorder %s75, %s76
    %p87 = scmp.eq.s32.totalorder %s15, 0
    %p88 = por %p86, %p87
    %p89 = scmp.ne.s32.totalorder %s75, %s76
    %p90 = scmp.eq.s32.totalorder %s16, 7
    %p91 = por %p89, %p90
    %p93 = scmp.ne.s32.totalorder %s76, %s92
    %p94 = scmp.eq.s32.totalorder %s16, 0
    %p95 = por %p93, %p94
    %s96 = ssub.s32 %s10, %s17
    %p97 = scmp.eq.s32.totalorder %s96, 0
    %s99 = sadd.s32 %s98, 1
    %s100 = scalar_select %p97, %s98, %s99
    %p103 = pneg %p97
    %p104 = scmp.eq.s32.totalorder %s10, 7
    %p105 = por %p103, %p104
    %p106 = scmp.ne.s32.totalorder %s98, %s101
    %p107 = scmp.eq.s32.totalorder %s10, 0
    %p108 = por %p106, %p107
    %p109 = scmp.ne.s32.totalorder %s98, %s101
    %p110 = scmp.eq.s32.totalorder %s15, 7
    %p111 = por %p109, %p110
    %p112 = scmp.ne.s32.totalorder %s101, %s102
    %p113 = scmp.eq.s32.totalorder %s15, 0
    %p114 = por %p112, %p113
    %p115 = scmp.ne.s32.totalorder %s101, %s102
    %p116 = scmp.eq.s32.totalorder %s16, 7
    %p117 = por %p115, %p116
    %p119 = scmp.ne.s32.totalorder %s102, %s118
    %p120 = scmp.eq.s32.totalorder %s16, 0
    %p121 = por %p119, %p120
    %s122 = ssub.s32 %s10, %s17
    %p123 = scmp.eq.s32.totalorder %s122, 0
    %s125 = sadd.s32 %s124, 1
    %s126 = scalar_select %p123, %s124, %s125
    %p129 = pneg %p123
    %p130 = scmp.eq.s32.totalorder %s10, 7
    %p131 = por %p129, %p130
    %p132 = scmp.ne.s32.totalorder %s124, %s127
    %p133 = scmp.eq.s32.totalorder %s10, 0
    %p134 = por %p132, %p133
    %p135 = scmp.ne.s32.totalorder %s124, %s127
    %p136 = scmp.eq.s32.totalorder %s15, 7
    %p137 = por %p135, %p136
    %p138 = scmp.ne.s32.totalorder %s127, %s128
    %p139 = scmp.eq.s32.totalorder %s15, 0
    %p140 = por %p138, %p139
    %p141 = scmp.ne.s32.totalorder %s127, %s128
    %p142 = scmp.eq.s32.totalorder %s16, 7
    %p143 = por %p141, %p142
    %p145 = scmp.ne.s32.totalorder %s128, %s144
    %p146 = scmp.eq.s32.totalorder %s16, 0
    %p147 = por %p145, %p146
    %p148 = scmp.le.s32.totalorder 1, %s10
    %p149 = scmp.lt.s32.totalorder %s10, 9
    %p150 = pnand %p148, %p149
    %p151 = pneg %p150
    // Predicated region
    $region9: #{transformer_forward.68} parent=5 // pred_check
      _
    $region10: #{transformer_forward.68} parent=5 // pred_check_branch
      %153 = sbr.rel (%p150) target = $region12
    $region11: #{transformer_forward.68} parent=5 // pred_region
      %s154 = ssub.s32 %s10, 1
    $region12: #{transformer_forward.68} parent=5 // pred_fallthru
      _
    %p155 = scmp.lt.s32.totalorder %s10, 8
    // Predicated region
    $region13: #{transformer_forward.68} parent=5 // pred_check
      %p156 = pneg %p155
    $region14: #{transformer_forward.68} parent=5 // pred_check_branch
      %158 = sbr.rel (%p156) target = $region16
    $region15: #{transformer_forward.68} parent=5 // pred_region
      // Predicated region
      $region17: #{transformer_forward.68} parent=15 // pred_check
        %p159 = pneg %p30
      $region18: #{transformer_forward.68} parent=15 // pred_check_branch
        %161 = sbr.rel (%p159) target = $region20
      $region19: #{transformer_forward.68} parent=15 // pred_region
        %p162 = scmp.lt.s32.totalorder %s10, 7
        %s163 = scalar_select %p162, %s10, 7
        %s164 = smul.addr %s163, 8
        %s165 = scalar_lea.vmem %s0, %s164
      $region20: #{transformer_forward.68} parent=15 // pred_fallthru
        _
      // Predicated region
      $region21: #{transformer_forward.68} parent=15 // pred_check
        %p166 = pneg %p56
      $region22: #{transformer_forward.68} parent=15 // pred_check_branch
        %168 = sbr.rel (%p166) target = $region24
      $region23: #{transformer_forward.68} parent=15 // pred_region
        %p169 = scmp.lt.s32.totalorder %s10, 7
        %s170 = scalar_select %p169, %s10, 7
        %s171 = smul.addr %s170, 8
        %s172 = scalar_lea.vmem %s1, %s171
      $region24: #{transformer_forward.68} parent=15 // pred_fallthru
        _
      // Predicated region
      $region25: #{transformer_forward.68} parent=15 // pred_check
        %p173 = pneg %p82
      $region26: #{transformer_forward.68} parent=15 // pred_check_branch
        %175 = sbr.rel (%p173) target = $region28
      $region27: #{transformer_forward.68} parent=15 // pred_region
        %p176 = scmp.lt.s32.totalorder %s10, 7
        %s177 = scalar_select %p176, %s10, 7
        %s178 = smul.addr %s177, 8
        %s179 = scalar_lea.vmem %s2, %s178
      $region28: #{transformer_forward.68} parent=15 // pred_fallthru
        _
      // Predicated region
      $region29: #{transformer_forward.68} parent=15 // pred_check
        %p180 = pneg %p108
      $region30: #{transformer_forward.68} parent=15 // pred_check_branch
        %182 = sbr.rel (%p180) target = $region32
      $region31: #{transformer_forward.68} parent=15 // pred_region
        %p183 = scmp.lt.s32.totalorder %s10, 7
        %s184 = scalar_select %p183, %s10, 7
        %s185 = smul.addr %s184, 8
        %s186 = scalar_lea.vmem %s3, %s185
      $region32: #{transformer_forward.68} parent=15 // pred_fallthru
        _
    $region16: #{transformer_forward.68} parent=5 // pred_fallthru
      _
    %p187 = scmp.le.s32.totalorder 1, %s10
    %p188 = scmp.lt.s32.totalorder %s10, 9
    %p189 = pnand %p187, %p188
    %p190 = pneg %p189
    // Predicated region
    $region33: #{transformer_forward.68} parent=5 // pred_check
      _
    $region34: #{transformer_forward.68} parent=5 // pred_check_branch
      %192 = sbr.rel (%p189) target = $region36
    $region35: #{transformer_forward.68} parent=5 // pred_region
      %s193 = ssub.s32 %s10, 1
      %p194 = scmp.lt.s32.totalorder %s15, 7
      %s195 = scalar_select %p194, %s15, 7
      %s196 = smul.addr %s195, 8
      %s197 = scalar_lea.vmem %s0, %s196
      %p198 = pneg %p36
      %p199 = pneg %p33
      %p200 = scmp.lt.s32.totalorder %s15, 7
      %s201 = scalar_select %p200, %s15, 7
      %s202 = smul.addr %s201, 8
      %s203 = scalar_lea.vmem %s1, %s202
      %p204 = pneg %p62
      %p205 = pneg %p59
      %p206 = scmp.lt.s32.totalorder %s15, 7
      %s207 = scalar_select %p206, %s15, 7
      %s208 = smul.addr %s207, 8
      %s209 = scalar_lea.vmem %s2, %s208
      %p210 = pneg %p88
      %p211 = pneg %p85
      %p212 = scmp.lt.s32.totalorder %s15, 7
      %s213 = scalar_select %p212, %s15, 7
      %s214 = smul.addr %s213, 8
      %s215 = scalar_lea.vmem %s3, %s214
      %p216 = pneg %p114
      %p217 = pneg %p111
      %p218 = pneg %p140
      %p219 = pneg %p137
      %p220 = scmp.lt.s32.totalorder %s15, 7
      %s221 = scalar_select %p220, %s15, 7
      %s222 = smul.addr %s221, 8
      %s223 = scalar_lea.vmem %s4, %s222
      %p224 = scmp.lt.s32.totalorder %s15, 7
      %s225 = scalar_select %p224, %s15, 7
      %s226 = smul.addr %s225, 8
      %s227 = scalar_lea.vmem %s0, %s226
      %p228 = scmp.lt.s32.totalorder %s15, 7
      %s229 = scalar_select %p228, %s15, 7
      %s230 = smul.addr %s229, 8
      %s231 = scalar_lea.vmem %s1, %s230
      %p232 = scmp.lt.s32.totalorder %s15, 7
      %s233 = scalar_select %p232, %s15, 7
      %s234 = smul.addr %s233, 8
      %s235 = scalar_lea.vmem %s2, %s234
      %p236 = scmp.lt.s32.totalorder %s15, 7
      %s237 = scalar_select %p236, %s15, 7
      %s238 = smul.addr %s237, 8
      %s239 = scalar_lea.vmem %s3, %s238
      %p240 = scmp.lt.s32.totalorder %s15, 7
      %s241 = scalar_select %p240, %s15, 7
      %s242 = smul.addr %s241, 8
      %s243 = scalar_lea.vmem %s4, %s242
      %v244 = vld [vmem:[%s227] sm:$0xff]
      %v245 = vld [vmem:[%s231] sm:$0xff]
      %v246 = vld [vmem:[%s235] sm:$0xff]
      %vm247 = vcmask 64512
      %v249 = vsel %vm247, %v244, 0
      %v252 = vsel %vm247, %v245, 0
      %254 = vmatprep.subr.mxu0 0.0
      %v255 = vand.u32 %v252, 4294901760
      %256 = vmatpush1.xpose.msra.mxu0 %v255
      %257 = vmatprep.subr.mxu0 0.0
      %258 = vmatpush1.xpose.msra.mxu0 0.0
      %259 = vmatprep.subr.mxu0 0.0
      %260 = vmatpush1.xpose.msra.mxu0 0.0
      %261 = vmatprep.subr.mxu0 0.0
      %262 = vmatpush1.xpose.msra.mxu0 0.0
      %263 = vmatprep.subr.mxu0 0.0
      %264 = vmatpush1.xpose.msra.mxu0 0.0
      %265 = vmatprep.subr.mxu0 0.0
      %266 = vmatpush1.xpose.msra.mxu0 0.0
      %267 = vmatprep.subr.mxu0 0.0
      %268 = vmatpush1.xpose.msra.mxu0 0.0
      %269 = vmatprep.subr.mxu0 0.0
      %270 = vmatpush1.xpose.msra.mxu0 0.0
      %271 = vmatprep.subr.mxu0 0.0
      %272 = vmatpush1.xpose.msra.mxu0 0.0
      %273 = vmatprep.subr.mxu0 0.0
      %274 = vmatpush1.xpose.msra.mxu0 0.0
      %275 = vmatprep.subr.mxu0 0.0
      %276 = vmatpush1.xpose.msra.mxu0 0.0
      %277 = vmatprep.subr.mxu0 0.0
      %278 = vmatpush1.xpose.msra.mxu0 0.0
      %279 = vmatprep.subr.mxu0 0.0
      %280 = vmatpush1.xpose.msra.mxu0 0.0
      %281 = vmatprep.subr.mxu0 0.0
      %282 = vmatpush1.xpose.msra.mxu0 0.0
      %283 = vmatprep.subr.mxu0 0.0
      %284 = vmatpush1.xpose.msra.mxu0 0.0
      %285 = vmatprep.subr.mxu0 0.0
      %286 = vmatpush1.xpose.msra.mxu0 0.0
      %287 = vmatprep.subr.mxu0 0.0
      %288 = vmatpush1.xpose.msra.mxu0 0.0
      %289 = vmatprep.subr.mxu0 0.0
      %290 = vmatpush1.xpose.msra.mxu0 0.0
      %291 = vmatprep.subr.mxu0 0.0
      %292 = vmatpush1.xpose.msra.mxu0 0.0
      %293 = vmatprep.subr.mxu0 0.0
      %294 = vmatpush1.xpose.msra.mxu0 0.0
      %295 = vmatprep.subr.mxu0 0.0
      %296 = vmatpush1.xpose.msra.mxu0 0.0
      %297 = vmatprep.subr.mxu0 0.0
      %298 = vmatpush1.xpose.msra.mxu0 0.0
      %299 = vmatprep.subr.mxu0 0.0
      %300 = vmatpush1.xpose.msra.mxu0 0.0
      %301 = vmatprep.subr.mxu0 0.0
      %302 = vmatpush1.xpose.msra.mxu0 0.0
      %303 = vmatprep.subr.mxu0 0.0
      %304 = vmatpush1.xpose.msra.mxu0 0.0
      %305 = vmatprep.subr.mxu0 0.0
      %306 = vmatpush1.xpose.msra.mxu0 0.0
      %307 = vmatprep.subr.mxu0 0.0
      %308 = vmatpush1.xpose.msra.mxu0 0.0
      %309 = vmatprep.subr.mxu0 0.0
      %310 = vmatpush1.xpose.msra.mxu0 0.0
      %311 = vmatprep.subr.mxu0 0.0
      %312 = vmatpush1.xpose.msra.mxu0 0.0
      %313 = vmatprep.subr.mxu0 0.0
      %314 = vmatpush1.xpose.msra.mxu0 0.0
      %315 = vmatprep.subr.mxu0 0.0
      %316 = vmatpush1.xpose.msra.mxu0 0.0
      %317 = vmatprep.subr.mxu0 0.0
      %318 = vmatpush1.xpose.msra.mxu0 0.0
      %319 = vmatprep.mubr.f32.mxu0 0.0
      %v320 = vand.u32 %v249, 4294901760
      %v321 = vsub.f32 %v249, %v320
      %v322 = vand.u32 %v321, 4294901760
      %v323 = vsub.f32 %v321, %v322
      %v324 = vand.u32 %v323, 4294901760
      %325 = vmatmul.mubr.f32.gmra.mrb[0].mxu0 %v324
      %v326 = vpop.f32.mrb[0].mxu0
      %v327 = vadd.f32 0.0, %v326
      %v328 = vpop.f32.mrb[0].mxu0
      %329 = vdwg.mxu0
      %330 = vmatprep.subr.mxu0 0.0
      %v331 = vand.u32 %v252, 4294901760
      %v332 = vsub.f32 %v252, %v331
      %v333 = vand.u32 %v332, 4294901760
      %v334 = vsub.f32 %v332, %v333
      %v335 = vand.u32 %v334, 4294901760
      %336 = vmatpush1.xpose.msra.mxu0 %v335
      %337 = vmatprep.subr.mxu0 0.0
      %338 = vmatpush1.xpose.msra.mxu0 0.0
      %339 = vmatprep.subr.mxu0 0.0
      %340 = vmatpush1.xpose.msra.mxu0 0.0
      %341 = vmatprep.subr.mxu0 0.0
      %342 = vmatpush1.xpose.msra.mxu0 0.0
      %343 = vmatprep.subr.mxu0 0.0
      %344 = vmatpush1.xpose.msra.mxu0 0.0
      %345 = vmatprep.subr.mxu0 0.0
      %346 = vmatpush1.xpose.msra.mxu0 0.0
      %347 = vmatprep.subr.mxu0 0.0
      %348 = vmatpush1.xpose.msra.mxu0 0.0
      %349 = vmatprep.subr.mxu0 0.0
      %350 = vmatpush1.xpose.msra.mxu0 0.0
      %351 = vmatprep.subr.mxu0 0.0
      %352 = vmatpush1.xpose.msra.mxu0 0.0
      %353 = vmatprep.subr.mxu0 0.0
      %354 = vmatpush1.xpose.msra.mxu0 0.0
      %355 = vmatprep.subr.mxu0 0.0
      %356 = vmatpush1.xpose.msra.mxu0 0.0
      %357 = vmatprep.subr.mxu0 0.0
      %358 = vmatpush1.xpose.msra.mxu0 0.0
      %359 = vmatprep.subr.mxu0 0.0
      %360 = vmatpush1.xpose.msra.mxu0 0.0
      %361 = vmatprep.subr.mxu0 0.0
      %362 = vmatpush1.xpose.msra.mxu0 0.0
      %363 = vmatprep.subr.mxu0 0.0
      %364 = vmatpush1.xpose.msra.mxu0 0.0
      %365 = vmatprep.subr.mxu0 0.0
      %366 = vmatpush1.xpose.msra.mxu0 0.0
      %367 = vmatprep.subr.mxu0 0.0
      %368 = vmatpush1.xpose.msra.mxu0 0.0
      %369 = vmatprep.subr.mxu0 0.0
      %370 = vmatpush1.xpose.msra.mxu0 0.0
      %371 = vmatprep.subr.mxu0 0.0
      %372 = vmatpush1.xpose.msra.mxu0 0.0
      %373 = vmatprep.subr.mxu0 0.0
      %374 = vmatpush1.xpose.msra.mxu0 0.0
      %375 = vmatprep.subr.mxu0 0.0
      %376 = vmatpush1.xpose.msra.mxu0 0.0
      %377 = vmatprep.subr.mxu0 0.0
      %378 = vmatpush1.xpose.msra.mxu0 0.0
      %379 = vmatprep.subr.mxu0 0.0
      %380 = vmatpush1.xpose.msra.mxu0 0.0
      %381 = vmatprep.subr.mxu0 0.0
      %382 = vmatpush1.xpose.msra.mxu0 0.0
      %383 = vmatprep.subr.mxu0 0.0
      %384 = vmatpush1.xpose.msra.mxu0 0.0
      %385 = vmatprep.subr.mxu0 0.0
      %386 = vmatpush1.xpose.msra.mxu0 0.0
      %387 = vmatprep.subr.mxu0 0.0
      %388 = vmatpush1.xpose.msra.mxu0 0.0
      %389 = vmatprep.subr.mxu0 0.0
      %390 = vmatpush1.xpose.msra.mxu0 0.0
      %391 = vmatprep.subr.mxu0 0.0
      %392 = vmatpush1.xpose.msra.mxu0 0.0
      %393 = vmatprep.subr.mxu0 0.0
      %394 = vmatpush1.xpose.msra.mxu0 0.0
      %395 = vmatprep.subr.mxu0 0.0
      %396 = vmatpush1.xpose.msra.mxu0 0.0
      %397 = vmatprep.subr.mxu0 0.0
      %398 = vmatpush1.xpose.msra.mxu0 0.0
      %399 = vmatprep.mubr.f32.mxu0 0.0
      %v400 = vand.u32 %v249, 4294901760
      %401 = vmatmul.mubr.f32.gmra.mrb[0].mxu0 %v400
      %v402 = vpop.f32.mrb[0].mxu0
      %v403 = vadd.f32 %v327, %v402
      %v404 = vpop.f32.mrb[0].mxu0
      %405 = vdwg.mxu0
      %406 = vmatprep.subr.mxu0 0.0
      %v407 = vand.u32 %v252, 4294901760
      %v408 = vsub.f32 %v252, %v407
      %409 = vmatpush1.xpose.msra.mxu0 %v408
      %410 = vmatprep.subr.mxu0 0.0
      %411 = vmatpush1.xpose.msra.mxu0 0.0
      %412 = vmatprep.subr.mxu0 0.0
      %413 = vmatpush1.xpose.msra.mxu0 0.0
      %414 = vmatprep.subr.mxu0 0.0
      %415 = vmatpush1.xpose.msra.mxu0 0.0
      %416 = vmatprep.subr.mxu0 0.0
      %417 = vmatpush1.xpose.msra.mxu0 0.0
      %418 = vmatprep.subr.mxu0 0.0
      %419 = vmatpush1.xpose.msra.mxu0 0.0
      %420 = vmatprep.subr.mxu0 0.0
      %421 = vmatpush1.xpose.msra.mxu0 0.0
      %422 = vmatprep.subr.mxu0 0.0
      %423 = vmatpush1.xpose.msra.mxu0 0.0
      %424 = vmatprep.subr.mxu0 0.0
      %425 = vmatpush1.xpose.msra.mxu0 0.0
      %426 = vmatprep.subr.mxu0 0.0
      %427 = vmatpush1.xpose.msra.mxu0 0.0
      %428 = vmatprep.subr.mxu0 0.0
      %429 = vmatpush1.xpose.msra.mxu0 0.0
      %430 = vmatprep.subr.mxu0 0.0
      %431 = vmatpush1.xpose.msra.mxu0 0.0
      %432 = vmatprep.subr.mxu0 0.0
      %433 = vmatpush1.xpose.msra.mxu0 0.0
      %434 = vmatprep.subr.mxu0 0.0
      %435 = vmatpush1.xpose.msra.mxu0 0.0
      %436 = vmatprep.subr.mxu0 0.0
      %437 = vmatpush1.xpose.msra.mxu0 0.0
      %438 = vmatprep.subr.mxu0 0.0
      %439 = vmatpush1.xpose.msra.mxu0 0.0
      %440 = vmatprep.subr.mxu0 0.0
      %441 = vmatpush1.xpose.msra.mxu0 0.0
      %442 = vmatprep.subr.mxu0 0.0
      %443 = vmatpush1.xpose.msra.mxu0 0.0
      %444 = vmatprep.subr.mxu0 0.0
      %445 = vmatpush1.xpose.msra.mxu0 0.0
      %446 = vmatprep.subr.mxu0 0.0
      %447 = vmatpush1.xpose.msra.mxu0 0.0
      %448 = vmatprep.subr.mxu0 0.0
      %449 = vmatpush1.xpose.msra.mxu0 0.0
      %450 = vmatprep.subr.mxu0 0.0
      %451 = vmatpush1.xpose.msra.mxu0 0.0
      %452 = vmatprep.subr.mxu0 0.0
      %453 = vmatpush1.xpose.msra.mxu0 0.0
      %454 = vmatprep.subr.mxu0 0.0
      %455 = vmatpush1.xpose.msra.mxu0 0.0
      %456 = vmatprep.subr.mxu0 0.0
      %457 = vmatpush1.xpose.msra.mxu0 0.0
      %458 = vmatprep.subr.mxu0 0.0
      %459 = vmatpush1.xpose.msra.mxu0 0.0
      %460 = vmatprep.subr.mxu0 0.0
      %461 = vmatpush1.xpose.msra.mxu0 0.0
      %462 = vmatprep.subr.mxu0 0.0
      %463 = vmatpush1.xpose.msra.mxu0 0.0
      %464 = vmatprep.subr.mxu0 0.0
      %465 = vmatpush1.xpose.msra.mxu0 0.0
      %466 = vmatprep.subr.mxu0 0.0
      %467 = vmatpush1.xpose.msra.mxu0 0.0
      %468 = vmatprep.subr.mxu0 0.0
      %469 = vmatpush1.xpose.msra.mxu0 0.0
      %470 = vmatprep.subr.mxu0 0.0
      %471 = vmatpush1.xpose.msra.mxu0 0.0
      %472 = vmatprep.mubr.f32.mxu0 0.0
      %v473 = vand.u32 %v249, 4294901760
      %v474 = vsub.f32 %v249, %v473
      %475 = vmatmul.mubr.f32.gmra.mrb[0].mxu0 %v474
      %v476 = vpop.f32.mrb[0].mxu0
      %v477 = vadd.f32 %v403, %v476
      %v478 = vpop.f32.mrb[0].mxu0
      %479 = vdwg.mxu0
      %480 = vmatprep.subr.mxu0 0.0
      %v481 = vand.u32 %v252, 4294901760
      %482 = vmatpush1.xpose.msra.mxu0 %v481
      %483 = vmatprep.subr.mxu0 0.0
      %484 = vmatpush1.xpose.msra.mxu0 0.0
      %485 = vmatprep.subr.mxu0 0.0
      %486 = vmatpush1.xpose.msra.mxu0 0.0
      %487 = vmatprep.subr.mxu0 0.0
      %488 = vmatpush1.xpose.msra.mxu0 0.0
      %489 = vmatprep.subr.mxu0 0.0
      %490 = vmatpush1.xpose.msra.mxu0 0.0
      %491 = vmatprep.subr.mxu0 0.0
      %492 = vmatpush1.xpose.msra.mxu0 0.0
      %493 = vmatprep.subr.mxu0 0.0
      %494 = vmatpush1.xpose.msra.mxu0 0.0
      %495 = vmatprep.subr.mxu0 0.0
      %496 = vmatpush1.xpose.msra.mxu0 0.0
      %497 = vmatprep.subr.mxu0 0.0
      %498 = vmatpush1.xpose.msra.mxu0 0.0
      %499 = vmatprep.subr.mxu0 0.0
      %500 = vmatpush1.xpose.msra.mxu0 0.0
      %501 = vmatprep.subr.mxu0 0.0
      %502 = vmatpush1.xpose.msra.mxu0 0.0
      %503 = vmatprep.subr.mxu0 0.0
      %504 = vmatpush1.xpose.msra.mxu0 0.0
      %505 = vmatprep.subr.mxu0 0.0
      %506 = vmatpush1.xpose.msra.mxu0 0.0
      %507 = vmatprep.subr.mxu0 0.0
      %508 = vmatpush1.xpose.msra.mxu0 0.0
      %509 = vmatprep.subr.mxu0 0.0
      %510 = vmatpush1.xpose.msra.mxu0 0.0
      %511 = vmatprep.subr.mxu0 0.0
      %512 = vmatpush1.xpose.msra.mxu0 0.0
      %513 = vmatprep.subr.mxu0 0.0
      %514 = vmatpush1.xpose.msra.mxu0 0.0
      %515 = vmatprep.subr.mxu0 0.0
      %516 = vmatpush1.xpose.msra.mxu0 0.0
      %517 = vmatprep.subr.mxu0 0.0
      %518 = vmatpush1.xpose.msra.mxu0 0.0
      %519 = vmatprep.subr.mxu0 0.0
      %520 = vmatpush1.xpose.msra.mxu0 0.0
      %521 = vmatprep.subr.mxu0 0.0
      %522 = vmatpush1.xpose.msra.mxu0 0.0
      %523 = vmatprep.subr.mxu0 0.0
      %524 = vmatpush1.xpose.msra.mxu0 0.0
      %525 = vmatprep.subr.mxu0 0.0
      %526 = vmatpush1.xpose.msra.mxu0 0.0
      %527 = vmatprep.subr.mxu0 0.0
      %528 = vmatpush1.xpose.msra.mxu0 0.0
      %529 = vmatprep.subr.mxu0 0.0
      %530 = vmatpush1.xpose.msra.mxu0 0.0
      %531 = vmatprep.subr.mxu0 0.0
      %532 = vmatpush1.xpose.msra.mxu0 0.0
      %533 = vmatprep.subr.mxu0 0.0
      %534 = vmatpush1.xpose.msra.mxu0 0.0
      %535 = vmatprep.subr.mxu0 0.0
      %536 = vmatpush1.xpose.msra.mxu0 0.0
      %537 = vmatprep.subr.mxu0 0.0
      %538 = vmatpush1.xpose.msra.mxu0 0.0
      %539 = vmatprep.subr.mxu0 0.0
      %540 = vmatpush1.xpose.msra.mxu0 0.0
      %541 = vmatprep.subr.mxu0 0.0
      %542 = vmatpush1.xpose.msra.mxu0 0.0
      %543 = vmatprep.subr.mxu0 0.0
      %544 = vmatpush1.xpose.msra.mxu0 0.0
      %545 = vmatprep.mubr.f32.mxu0 0.0
      %v546 = vand.u32 %v249, 4294901760
      %v547 = vsub.f32 %v249, %v546
      %v548 = vand.u32 %v547, 4294901760
      %549 = vmatmul.mubr.f32.gmra.mrb[0].mxu0 %v548
      %v550 = vpop.f32.mrb[0].mxu0
      %v551 = vadd.f32 %v477, %v550
      %v552 = vpop.f32.mrb[0].mxu0
      %553 = vdwg.mxu0
      %554 = vmatprep.subr.mxu0 0.0
      %v555 = vand.u32 %v252, 4294901760
      %v556 = vsub.f32 %v252, %v555
      %v557 = vand.u32 %v556, 4294901760
      %558 = vmatpush1.xpose.msra.mxu0 %v557
      %559 = vmatprep.subr.mxu0 0.0
      %560 = vmatpush1.xpose.msra.mxu0 0.0
      %561 = vmatprep.subr.mxu0 0.0
      %562 = vmatpush1.xpose.msra.mxu0 0.0
      %563 = vmatprep.subr.mxu0 0.0
      %564 = vmatpush1.xpose.msra.mxu0 0.0
      %565 = vmatprep.subr.mxu0 0.0
      %566 = vmatpush1.xpose.msra.mxu0 0.0
      %567 = vmatprep.subr.mxu0 0.0
      %568 = vmatpush1.xpose.msra.mxu0 0.0
      %569 = vmatprep.subr.mxu0 0.0
      %570 = vmatpush1.xpose.msra.mxu0 0.0
      %571 = vmatprep.subr.mxu0 0.0
      %572 = vmatpush1.xpose.msra.mxu0 0.0
      %573 = vmatprep.subr.mxu0 0.0
      %574 = vmatpush1.xpose.msra.mxu0 0.0
      %575 = vmatprep.subr.mxu0 0.0
      %576 = vmatpush1.xpose.msra.mxu0 0.0
      %577 = vmatprep.subr.mxu0 0.0
      %578 = vmatpush1.xpose.msra.mxu0 0.0
      %579 = vmatprep.subr.mxu0 0.0
      %580 = vmatpush1.xpose.msra.mxu0 0.0
      %581 = vmatprep.subr.mxu0 0.0
      %582 = vmatpush1.xpose.msra.mxu0 0.0
      %583 = vmatprep.subr.mxu0 0.0
      %584 = vmatpush1.xpose.msra.mxu0 0.0
      %585 = vmatprep.subr.mxu0 0.0
      %586 = vmatpush1.xpose.msra.mxu0 0.0
      %587 = vmatprep.subr.mxu0 0.0
      %588 = vmatpush1.xpose.msra.mxu0 0.0
      %589 = vmatprep.subr.mxu0 0.0
      %590 = vmatpush1.xpose.msra.mxu0 0.0
      %591 = vmatprep.subr.mxu0 0.0
      %592 = vmatpush1.xpose.msra.mxu0 0.0
      %593 = vmatprep.subr.mxu0 0.0
      %594 = vmatpush1.xpose.msra.mxu0 0.0
      %595 = vmatprep.subr.mxu0 0.0
      %596 = vmatpush1.xpose.msra.mxu0 0.0
      %597 = vmatprep.subr.mxu0 0.0
      %598 = vmatpush1.xpose.msra.mxu0 0.0
      %599 = vmatprep.subr.mxu0 0.0
      %600 = vmatpush1.xpose.msra.mxu0 0.0
      %601 = vmatprep.subr.mxu0 0.0
      %602 = vmatpush1.xpose.msra.mxu0 0.0
      %603 = vmatprep.subr.mxu0 0.0
      %604 = vmatpush1.xpose.msra.mxu0 0.0
      %605 = vmatprep.subr.mxu0 0.0
      %606 = vmatpush1.xpose.msra.mxu0 0.0
      %607 = vmatprep.subr.mxu0 0.0
      %608 = vmatpush1.xpose.msra.mxu0 0.0
      %609 = vmatprep.subr.mxu0 0.0
      %610 = vmatpush1.xpose.msra.mxu0 0.0
      %611 = vmatprep.subr.mxu0 0.0
      %612 = vmatpush1.xpose.msra.mxu0 0.0
      %613 = vmatprep.subr.mxu0 0.0
      %614 = vmatpush1.xpose.msra.mxu0 0.0
      %615 = vmatprep.subr.mxu0 0.0
      %616 = vmatpush1.xpose.msra.mxu0 0.0
      %617 = vmatprep.subr.mxu0 0.0
      %618 = vmatpush1.xpose.msra.mxu0 0.0
      %619 = vmatprep.subr.mxu0 0.0
      %620 = vmatpush1.xpose.msra.mxu0 0.0
      %621 = vmatprep.mubr.f32.mxu0 0.0
      %v622 = vand.u32 %v249, 4294901760
      %623 = vmatmul.mubr.f32.gmra.mrb[0].mxu0 %v622
      %v624 = vpop.f32.mrb[0].mxu0
      %v625 = vadd.f32 %v551, %v624
      %v626 = vpop.f32.mrb[0].mxu0
      %627 = vdwg.mxu0
      %628 = vmatprep.subr.mxu0 0.0
      %v629 = vand.u32 %v252, 4294901760
      %630 = vmatpush1.xpose.msra.mxu0 %v629
      %631 = vmatprep.subr.mxu0 0.0
      %632 = vmatpush1.xpose.msra.mxu0 0.0
      %633 = vmatprep.subr.mxu0 0.0
      %634 = vmatpush1.xpose.msra.mxu0 0.0
      %635 = vmatprep.subr.mxu0 0.0
      %636 = vmatpush1.xpose.msra.mxu0 0.0
      %637 = vmatprep.subr.mxu0 0.0
      %638 = vmatpush1.xpose.msra.mxu0 0.0
      %639 = vmatprep.subr.mxu0 0.0
      %640 = vmatpush1.xpose.msra.mxu0 0.0
      %641 = vmatprep.subr.mxu0 0.0
      %642 = vmatpush1.xpose.msra.mxu0 0.0
      %643 = vmatprep.subr.mxu0 0.0
      %644 = vmatpush1.xpose.msra.mxu0 0.0
      %645 = vmatprep.subr.mxu0 0.0
      %646 = vmatpush1.xpose.msra.mxu0 0.0
      %647 = vmatprep.subr.mxu0 0.0
      %648 = vmatpush1.xpose.msra.mxu0 0.0
      %649 = vmatprep.subr.mxu0 0.0
      %650 = vmatpush1.xpose.msra.mxu0 0.0
      %651 = vmatprep.subr.mxu0 0.0
      %652 = vmatpush1.xpose.msra.mxu0 0.0
      %653 = vmatprep.subr.mxu0 0.0
      %654 = vmatpush1.xpose.msra.mxu0 0.0
      %655 = vmatprep.subr.mxu0 0.0
      %656 = vmatpush1.xpose.msra.mxu0 0.0
      %657 = vmatprep.subr.mxu0 0.0
      %658 = vmatpush1.xpose.msra.mxu0 0.0
      %659 = vmatprep.subr.mxu0 0.0
      %660 = vmatpush1.xpose.msra.mxu0 0.0
      %661 = vmatprep.subr.mxu0 0.0
      %662 = vmatpush1.xpose.msra.mxu0 0.0
      %663 = vmatprep.subr.mxu0 0.0
      %664 = vmatpush1.xpose.msra.mxu0 0.0
      %665 = vmatprep.subr.mxu0 0.0
      %666 = vmatpush1.xpose.msra.mxu0 0.0
      %667 = vmatprep.subr.mxu0 0.0
      %668 = vmatpush1.xpose.msra.mxu0 0.0
      %669 = vmatprep.subr.mxu0 0.0
      %670 = vmatpush1.xpose.msra.mxu0 0.0
      %671 = vmatprep.subr.mxu0 0.0
      %672 = vmatpush1.xpose.msra.mxu0 0.0
      %673 = vmatprep.subr.mxu0 0.0
      %674 = vmatpush1.xpose.msra.mxu0 0.0
      %675 = vmatprep.subr.mxu0 0.0
      %676 = vmatpush1.xpose.msra.mxu0 0.0
      %677 = vmatprep.subr.mxu0 0.0
      %678 = vmatpush1.xpose.msra.mxu0 0.0
      %679 = vmatprep.subr.mxu0 0.0
      %680 = vmatpush1.xpose.msra.mxu0 0.0
      %681 = vmatprep.subr.mxu0 0.0
      %682 = vmatpush1.xpose.msra.mxu0 0.0
      %683 = vmatprep.subr.mxu0 0.0
      %684 = vmatpush1.xpose.msra.mxu0 0.0
      %685 = vmatprep.subr.mxu0 0.0
      %686 = vmatpush1.xpose.msra.mxu0 0.0
      %687 = vmatprep.subr.mxu0 0.0
      %688 = vmatpush1.xpose.msra.mxu0 0.0
      %689 = vmatprep.subr.mxu0 0.0
      %690 = vmatpush1.xpose.msra.mxu0 0.0
      %691 = vmatprep.subr.mxu0 0.0
      %692 = vmatpush1.xpose.msra.mxu0 0.0
      %693 = vmatprep.mubr.f32.mxu0 0.0
      %v694 = vand.u32 %v249, 4294901760
      %695 = vmatmul.mubr.f32.gmra.mrb[0].mxu0 %v694
      %v696 = vpop.f32.mrb[0].mxu0
      %v697 = vadd.f32 %v625, %v696
      %v698 = vpop.f32.mrb[0].mxu0
      %699 = vdwg.mxu0
      %v700 = vmul.f32 %v697, 0.35355338
      %v701 = vld [vmem:[%s239] sm:$0xff]
      %v702 = vadd.f32 %v700, %v701
      %v703 = vsel %vm247, %v702, -inf
      %704 = vmax.xlane.f32.xlu0 %v703
      %v705 = vpop.xlane.xlu0 %704
      %v706 = vsub.f32 %v702, %v705
      %v707 = vmul.f32 %v706, 1.442695
      %v708 = vpow.pop %v707
      %v709 = vsel %vm247, %v708, 0.0
      %710 = vadd.xlane.f32.xlu0 %v709
      %v711 = vpop.xlane.xlu0 %710
      %v712 = vrcp.pop %v711
      %v713 = vmul.f32 %v708, %v712
      %v715 = vsel %vm247, %v713, 0
      %717 = vmatprep.subr.mxu0 0.0
      %v718 = vand.u32 %v246, 4294901760
      %719 = vmatpush1.msra.mxu0 %v718
      %720 = vmatprep.subr.mxu0 0.0
      %721 = vmatpush1.msra.mxu0 0.0
      %722 = vmatprep.subr.mxu0 0.0
      %723 = vmatpush1.msra.mxu0 0.0
      %724 = vmatprep.subr.mxu0 0.0
      %725 = vmatpush1.msra.mxu0 0.0
      %726 = vmatprep.subr.mxu0 0.0
      %727 = vmatpush1.msra.mxu0 0.0
      %728 = vmatprep.subr.mxu0 0.0
      %729 = vmatpush1.msra.mxu0 0.0
      %730 = vmatprep.subr.mxu0 0.0
      %731 = vmatpush1.msra.mxu0 0.0
      %732 = vmatprep.subr.mxu0 0.0
      %733 = vmatpush1.msra.mxu0 0.0
      %734 = vmatprep.subr.mxu0 0.0
      %735 = vmatpush1.msra.mxu0 0.0
      %736 = vmatprep.subr.mxu0 0.0
      %737 = vmatpush1.msra.mxu0 0.0
      %738 = vmatprep.subr.mxu0 0.0
      %739 = vmatpush1.msra.mxu0 0.0
      %740 = vmatprep.subr.mxu0 0.0
      %741 = vmatpush1.msra.mxu0 0.0
      %742 = vmatprep.subr.mxu0 0.0
      %743 = vmatpush1.msra.mxu0 0.0
      %744 = vmatprep.subr.mxu0 0.0
      %745 = vmatpush1.msra.mxu0 0.0
      %746 = vmatprep.subr.mxu0 0.0
      %747 = vmatpush1.msra.mxu0 0.0
      %748 = vmatprep.subr.mxu0 0.0
      %749 = vmatpush1.msra.mxu0 0.0
      %750 = vmatprep.subr.mxu0 0.0
      %751 = vmatpush1.msra.mxu0 0.0
      %752 = vmatprep.subr.mxu0 0.0
      %753 = vmatpush1.msra.mxu0 0.0
      %754 = vmatprep.subr.mxu0 0.0
      %755 = vmatpush1.msra.mxu0 0.0
      %756 = vmatprep.subr.mxu0 0.0
      %757 = vmatpush1.msra.mxu0 0.0
      %758 = vmatprep.subr.mxu0 0.0
      %759 = vmatpush1.msra.mxu0 0.0
      %760 = vmatprep.subr.mxu0 0.0
      %761 = vmatpush1.msra.mxu0 0.0
      %762 = vmatprep.subr.mxu0 0.0
      %763 = vmatpush1.msra.mxu0 0.0
      %764 = vmatprep.subr.mxu0 0.0
      %765 = vmatpush1.msra.mxu0 0.0
      %766 = vmatprep.subr.mxu0 0.0
      %767 = vmatpush1.msra.mxu0 0.0
      %768 = vmatprep.subr.mxu0 0.0
      %769 = vmatpush1.msra.mxu0 0.0
      %770 = vmatprep.subr.mxu0 0.0
      %771 = vmatpush1.msra.mxu0 0.0
      %772 = vmatprep.subr.mxu0 0.0
      %773 = vmatpush1.msra.mxu0 0.0
      %774 = vmatprep.subr.mxu0 0.0
      %775 = vmatpush1.msra.mxu0 0.0
      %776 = vmatprep.subr.mxu0 0.0
      %777 = vmatpush1.msra.mxu0 0.0
      %778 = vmatprep.subr.mxu0 0.0
      %779 = vmatpush1.msra.mxu0 0.0
      %780 = vmatprep.subr.mxu0 0.0
      %781 = vmatpush1.msra.mxu0 0.0
      %782 = vmatprep.mubr.f32.mxu0 0.0
      %v783 = vand.u32 %v715, 4294901760
      %v784 = vsub.f32 %v715, %v783
      %v785 = vand.u32 %v784, 4294901760
      %v786 = vsub.f32 %v784, %v785
      %v787 = vand.u32 %v786, 4294901760
      %788 = vmatmul.mubr.f32.gmra.mrb[0].mxu0 %v787
      %v789 = vpop.f32.mrb[0].mxu0
      %v790 = vadd.f32 0.0, %v789
      %v791 = vpop.f32.mrb[0].mxu0
      %792 = vdwg.mxu0
      %793 = vmatprep.subr.mxu0 0.0
      %v794 = vand.u32 %v246, 4294901760
      %v795 = vsub.f32 %v246, %v794
      %v796 = vand.u32 %v795, 4294901760
      %v797 = vsub.f32 %v795, %v796
      %v798 = vand.u32 %v797, 4294901760
      %799 = vmatpush1.msra.mxu0 %v798
      %800 = vmatprep.subr.mxu0 0.0
      %801 = vmatpush1.msra.mxu0 0.0
      %802 = vmatprep.subr.mxu0 0.0
      %803 = vmatpush1.msra.mxu0 0.0
      %804 = vmatprep.subr.mxu0 0.0
      %805 = vmatpush1.msra.mxu0 0.0
      %806 = vmatprep.subr.mxu0 0.0
      %807 = vmatpush1.msra.mxu0 0.0
      %808 = vmatprep.subr.mxu0 0.0
      %809 = vmatpush1.msra.mxu0 0.0
      %810 = vmatprep.subr.mxu0 0.0
      %811 = vmatpush1.msra.mxu0 0.0
      %812 = vmatprep.subr.mxu0 0.0
      %813 = vmatpush1.msra.mxu0 0.0
      %814 = vmatprep.subr.mxu0 0.0
      %815 = vmatpush1.msra.mxu0 0.0
      %816 = vmatprep.subr.mxu0 0.0
      %817 = vmatpush1.msra.mxu0 0.0
      %818 = vmatprep.subr.mxu0 0.0
      %819 = vmatpush1.msra.mxu0 0.0
      %820 = vmatprep.subr.mxu0 0.0
      %821 = vmatpush1.msra.mxu0 0.0
      %822 = vmatprep.subr.mxu0 0.0
      %823 = vmatpush1.msra.mxu0 0.0
      %824 = vmatprep.subr.mxu0 0.0
      %825 = vmatpush1.msra.mxu0 0.0
      %826 = vmatprep.subr.mxu0 0.0
      %827 = vmatpush1.msra.mxu0 0.0
      %828 = vmatprep.subr.mxu0 0.0
      %829 = vmatpush1.msra.mxu0 0.0
      %830 = vmatprep.subr.mxu0 0.0
      %831 = vmatpush1.msra.mxu0 0.0
      %832 = vmatprep.subr.mxu0 0.0
      %833 = vmatpush1.msra.mxu0 0.0
      %834 = vmatprep.subr.mxu0 0.0
      %835 = vmatpush1.msra.mxu0 0.0
      %836 = vmatprep.subr.mxu0 0.0
      %837 = vmatpush1.msra.mxu0 0.0
      %838 = vmatprep.subr.mxu0 0.0
      %839 = vmatpush1.msra.mxu0 0.0
      %840 = vmatprep.subr.mxu0 0.0
      %841 = vmatpush1.msra.mxu0 0.0
      %842 = vmatprep.subr.mxu0 0.0
      %843 = vmatpush1.msra.mxu0 0.0
      %844 = vmatprep.subr.mxu0 0.0
      %845 = vmatpush1.msra.mxu0 0.0
      %846 = vmatprep.subr.mxu0 0.0
      %847 = vmatpush1.msra.mxu0 0.0
      %848 = vmatprep.subr.mxu0 0.0
      %849 = vmatpush1.msra.mxu0 0.0
      %850 = vmatprep.subr.mxu0 0.0
      %851 = vmatpush1.msra.mxu0 0.0
      %852 = vmatprep.subr.mxu0 0.0
      %853 = vmatpush1.msra.mxu0 0.0
      %854 = vmatprep.subr.mxu0 0.0
      %855 = vmatpush1.msra.mxu0 0.0
      %856 = vmatprep.subr.mxu0 0.0
      %857 = vmatpush1.msra.mxu0 0.0
      %858 = vmatprep.subr.mxu0 0.0
      %859 = vmatpush1.msra.mxu0 0.0
      %860 = vmatprep.subr.mxu0 0.0
      %861 = vmatpush1.msra.mxu0 0.0
      %862 = vmatprep.mubr.f32.mxu0 0.0
      %v863 = vand.u32 %v715, 4294901760
      %864 = vmatmul.mubr.f32.gmra.mrb[0].mxu0 %v863
      %v865 = vpop.f32.mrb[0].mxu0
      %v866 = vadd.f32 %v790, %v865
      %v867 = vpop.f32.mrb[0].mxu0
      %868 = vdwg.mxu0
      %869 = vmatprep.subr.mxu0 0.0
      %v870 = vand.u32 %v246, 4294901760
      %v871 = vsub.f32 %v246, %v870
      %872 = vmatpush1.msra.mxu0 %v871
      %873 = vmatprep.subr.mxu0 0.0
      %874 = vmatpush1.msra.mxu0 0.0
      %875 = vmatprep.subr.mxu0 0.0
      %876 = vmatpush1.msra.mxu0 0.0
      %877 = vmatprep.subr.mxu0 0.0
      %878 = vmatpush1.msra.mxu0 0.0
      %879 = vmatprep.subr.mxu0 0.0
      %880 = vmatpush1.msra.mxu0 0.0
      %881 = vmatprep.subr.mxu0 0.0
      %882 = vmatpush1.msra.mxu0 0.0
      %883 = vmatprep.subr.mxu0 0.0
      %884 = vmatpush1.msra.mxu0 0.0
      %885 = vmatprep.subr.mxu0 0.0
      %886 = vmatpush1.msra.mxu0 0.0
      %887 = vmatprep.subr.mxu0 0.0
      %888 = vmatpush1.msra.mxu0 0.0
      %889 = vmatprep.subr.mxu0 0.0
      %890 = vmatpush1.msra.mxu0 0.0
      %891 = vmatprep.subr.mxu0 0.0
      %892 = vmatpush1.msra.mxu0 0.0
      %893 = vmatprep.subr.mxu0 0.0
      %894 = vmatpush1.msra.mxu0 0.0
      %895 = vmatprep.subr.mxu0 0.0
      %896 = vmatpush1.msra.mxu0 0.0
      %897 = vmatprep.subr.mxu0 0.0
      %898 = vmatpush1.msra.mxu0 0.0
      %899 = vmatprep.subr.mxu0 0.0
      %900 = vmatpush1.msra.mxu0 0.0
      %901 = vmatprep.subr.mxu0 0.0
      %902 = vmatpush1.msra.mxu0 0.0
      %903 = vmatprep.subr.mxu0 0.0
      %904 = vmatpush1.msra.mxu0 0.0
      %905 = vmatprep.subr.mxu0 0.0
      %906 = vmatpush1.msra.mxu0 0.0
      %907 = vmatprep.subr.mxu0 0.0
      %908 = vmatpush1.msra.mxu0 0.0
      %909 = vmatprep.subr.mxu0 0.0
      %910 = vmatpush1.msra.mxu0 0.0
      %911 = vmatprep.subr.mxu0 0.0
      %912 = vmatpush1.msra.mxu0 0.0
      %913 = vmatprep.subr.mxu0 0.0
      %914 = vmatpush1.msra.mxu0 0.0
      %915 = vmatprep.subr.mxu0 0.0
      %916 = vmatpush1.msra.mxu0 0.0
      %917 = vmatprep.subr.mxu0 0.0
      %918 = vmatpush1.msra.mxu0 0.0
      %919 = vmatprep.subr.mxu0 0.0
      %920 = vmatpush1.msra.mxu0 0.0
      %921 = vmatprep.subr.mxu0 0.0
      %922 = vmatpush1.msra.mxu0 0.0
      %923 = vmatprep.subr.mxu0 0.0
      %924 = vmatpush1.msra.mxu0 0.0
      %925 = vmatprep.subr.mxu0 0.0
      %926 = vmatpush1.msra.mxu0 0.0
      %927 = vmatprep.subr.mxu0 0.0
      %928 = vmatpush1.msra.mxu0 0.0
      %929 = vmatprep.subr.mxu0 0.0
      %930 = vmatpush1.msra.mxu0 0.0
      %931 = vmatprep.subr.mxu0 0.0
      %932 = vmatpush1.msra.mxu0 0.0
      %933 = vmatprep.subr.mxu0 0.0
      %934 = vmatpush1.msra.mxu0 0.0
      %935 = vmatprep.mubr.f32.mxu0 0.0
      %v936 = vand.u32 %v715, 4294901760
      %v937 = vsub.f32 %v715, %v936
      %938 = vmatmul.mubr.f32.gmra.mrb[0].mxu0 %v937
      %v939 = vpop.f32.mrb[0].mxu0
      %v940 = vadd.f32 %v866, %v939
      %v941 = vpop.f32.mrb[0].mxu0
      %942 = vdwg.mxu0
      %943 = vmatprep.subr.mxu0 0.0
      %v944 = vand.u32 %v246, 4294901760
      %945 = vmatpush1.msra.mxu0 %v944
      %946 = vmatprep.subr.mxu0 0.0
      %947 = vmatpush1.msra.mxu0 0.0
      %948 = vmatprep.subr.mxu0 0.0
      %949 = vmatpush1.msra.mxu0 0.0
      %950 = vmatprep.subr.mxu0 0.0
      %951 = vmatpush1.msra.mxu0 0.0
      %952 = vmatprep.subr.mxu0 0.0
      %953 = vmatpush1.msra.mxu0 0.0
      %954 = vmatprep.subr.mxu0 0.0
      %955 = vmatpush1.msra.mxu0 0.0
      %956 = vmatprep.subr.mxu0 0.0
      %957 = vmatpush1.msra.mxu0 0.0
      %958 = vmatprep.subr.mxu0 0.0
      %959 = vmatpush1.msra.mxu0 0.0
      %960 = vmatprep.subr.mxu0 0.0
      %961 = vmatpush1.msra.mxu0 0.0
      %962 = vmatprep.subr.mxu0 0.0
      %963 = vmatpush1.msra.mxu0 0.0
      %964 = vmatprep.subr.mxu0 0.0
      %965 = vmatpush1.msra.mxu0 0.0
      %966 = vmatprep.subr.mxu0 0.0
      %967 = vmatpush1.msra.mxu0 0.0
      %968 = vmatprep.subr.mxu0 0.0
      %969 = vmatpush1.msra.mxu0 0.0
      %970 = vmatprep.subr.mxu0 0.0
      %971 = vmatpush1.msra.mxu0 0.0
      %972 = vmatprep.subr.mxu0 0.0
      %973 = vmatpush1.msra.mxu0 0.0
      %974 = vmatprep.subr.mxu0 0.0
      %975 = vmatpush1.msra.mxu0 0.0
      %976 = vmatprep.subr.mxu0 0.0
      %977 = vmatpush1.msra.mxu0 0.0
      %978 = vmatprep.subr.mxu0 0.0
      %979 = vmatpush1.msra.mxu0 0.0
      %980 = vmatprep.subr.mxu0 0.0
      %981 = vmatpush1.msra.mxu0 0.0
      %982 = vmatprep.subr.mxu0 0.0
      %983 = vmatpush1.msra.mxu0 0.0
      %984 = vmatprep.subr.mxu0 0.0
      %985 = vmatpush1.msra.mxu0 0.0
      %986 = vmatprep.subr.mxu0 0.0
      %987 = vmatpush1.msra.mxu0 0.0
      %988 = vmatprep.subr.mxu0 0.0
      %989 = vmatpush1.msra.mxu0 0.0
      %990 = vmatprep.subr.mxu0 0.0
      %991 = vmatpush1.msra.mxu0 0.0
      %992 = vmatprep.subr.mxu0 0.0
      %993 = vmatpush1.msra.mxu0 0.0
      %994 = vmatprep.subr.mxu0 0.0
      %995 = vmatpush1.msra.mxu0 0.0
      %996 = vmatprep.subr.mxu0 0.0
      %997 = vmatpush1.msra.mxu0 0.0
      %998 = vmatprep.subr.mxu0 0.0
      %999 = vmatpush1.msra.mxu0 0.0
      %1000 = vmatprep.subr.mxu0 0.0
      %1001 = vmatpush1.msra.mxu0 0.0
      %1002 = vmatprep.subr.mxu0 0.0
      %1003 = vmatpush1.msra.mxu0 0.0
      %1004 = vmatprep.subr.mxu0 0.0
      %1005 = vmatpush1.msra.mxu0 0.0
      %1006 = vmatprep.subr.mxu0 0.0
      %1007 = vmatpush1.msra.mxu0 0.0
      %1008 = vmatprep.mubr.f32.mxu0 0.0
      %v1009 = vand.u32 %v715, 4294901760
      %v1010 = vsub.f32 %v715, %v1009
      %v1011 = vand.u32 %v1010, 4294901760
      %1012 = vmatmul.mubr.f32.gmra.mrb[0].mxu0 %v1011
      %v1013 = vpop.f32.mrb[0].mxu0
      %v1014 = vadd.f32 %v940, %v1013
      %v1015 = vpop.f32.mrb[0].mxu0
      %1016 = vdwg.mxu0
      %1017 = vmatprep.subr.mxu0 0.0
      %v1018 = vand.u32 %v246, 4294901760
      %v1019 = vsub.f32 %v246, %v1018
      %v1020 = vand.u32 %v1019, 4294901760
      %1021 = vmatpush1.msra.mxu0 %v1020
      %1022 = vmatprep.subr.mxu0 0.0
      %1023 = vmatpush1.msra.mxu0 0.0
      %1024 = vmatprep.subr.mxu0 0.0
      %1025 = vmatpush1.msra.mxu0 0.0
      %1026 = vmatprep.subr.mxu0 0.0
      %1027 = vmatpush1.msra.mxu0 0.0
      %1028 = vmatprep.subr.mxu0 0.0
      %1029 = vmatpush1.msra.mxu0 0.0
      %1030 = vmatprep.subr.mxu0 0.0
      %1031 = vmatpush1.msra.mxu0 0.0
      %1032 = vmatprep.subr.mxu0 0.0
      %1033 = vmatpush1.msra.mxu0 0.0
      %1034 = vmatprep.subr.mxu0 0.0
      %1035 = vmatpush1.msra.mxu0 0.0
      %1036 = vmatprep.subr.mxu0 0.0
      %1037 = vmatpush1.msra.mxu0 0.0
      %1038 = vmatprep.subr.mxu0 0.0
      %1039 = vmatpush1.msra.mxu0 0.0
      %1040 = vmatprep.subr.mxu0 0.0
      %1041 = vmatpush1.msra.mxu0 0.0
      %1042 = vmatprep.subr.mxu0 0.0
      %1043 = vmatpush1.msra.mxu0 0.0
      %1044 = vmatprep.subr.mxu0 0.0
      %1045 = vmatpush1.msra.mxu0 0.0
      %1046 = vmatprep.subr.mxu0 0.0
      %1047 = vmatpush1.msra.mxu0 0.0
      %1048 = vmatprep.subr.mxu0 0.0
      %1049 = vmatpush1.msra.mxu0 0.0
      %1050 = vmatprep.subr.mxu0 0.0
      %1051 = vmatpush1.msra.mxu0 0.0
      %1052 = vmatprep.subr.mxu0 0.0
      %1053 = vmatpush1.msra.mxu0 0.0
      %1054 = vmatprep.subr.mxu0 0.0
      %1055 = vmatpush1.msra.mxu0 0.0
      %1056 = vmatprep.subr.mxu0 0.0
      %1057 = vmatpush1.msra.mxu0 0.0
      %1058 = vmatprep.subr.mxu0 0.0
      %1059 = vmatpush1.msra.mxu0 0.0
      %1060 = vmatprep.subr.mxu0 0.0
      %1061 = vmatpush1.msra.mxu0 0.0
      %1062 = vmatprep.subr.mxu0 0.0
      %1063 = vmatpush1.msra.mxu0 0.0
      %1064 = vmatprep.subr.mxu0 0.0
      %1065 = vmatpush1.msra.mxu0 0.0
      %1066 = vmatprep.subr.mxu0 0.0
      %1067 = vmatpush1.msra.mxu0 0.0
      %1068 = vmatprep.subr.mxu0 0.0
      %1069 = vmatpush1.msra.mxu0 0.0
      %1070 = vmatprep.subr.mxu0 0.0
      %1071 = vmatpush1.msra.mxu0 0.0
      %1072 = vmatprep.subr.mxu0 0.0
      %1073 = vmatpush1.msra.mxu0 0.0
      %1074 = vmatprep.subr.mxu0 0.0
      %1075 = vmatpush1.msra.mxu0 0.0
      %1076 = vmatprep.subr.mxu0 0.0
      %1077 = vmatpush1.msra.mxu0 0.0
      %1078 = vmatprep.subr.mxu0 0.0
      %1079 = vmatpush1.msra.mxu0 0.0
      %1080 = vmatprep.subr.mxu0 0.0
      %1081 = vmatpush1.msra.mxu0 0.0
      %1082 = vmatprep.subr.mxu0 0.0
      %1083 = vmatpush1.msra.mxu0 0.0
      %1084 = vmatprep.mubr.f32.mxu0 0.0
      %v1085 = vand.u32 %v715, 4294901760
      %1086 = vmatmul.mubr.f32.gmra.mrb[0].mxu0 %v1085
      %v1087 = vpop.f32.mrb[0].mxu0
      %v1088 = vadd.f32 %v1014, %v1087
      %v1089 = vpop.f32.mrb[0].mxu0
      %1090 = vdwg.mxu0
      %1091 = vmatprep.subr.mxu0 0.0
      %v1092 = vand.u32 %v246, 4294901760
      %1093 = vmatpush1.msra.mxu0 %v1092
      %1094 = vmatprep.subr.mxu0 0.0
      %1095 = vmatpush1.msra.mxu0 0.0
      %1096 = vmatprep.subr.mxu0 0.0
      %1097 = vmatpush1.msra.mxu0 0.0
      %1098 = vmatprep.subr.mxu0 0.0
      %1099 = vmatpush1.msra.mxu0 0.0
      %1100 = vmatprep.subr.mxu0 0.0
      %1101 = vmatpush1.msra.mxu0 0.0
      %1102 = vmatprep.subr.mxu0 0.0
      %1103 = vmatpush1.msra.mxu0 0.0
      %1104 = vmatprep.subr.mxu0 0.0
      %1105 = vmatpush1.msra.mxu0 0.0
      %1106 = vmatprep.subr.mxu0 0.0
      %1107 = vmatpush1.msra.mxu0 0.0
      %1108 = vmatprep.subr.mxu0 0.0
      %1109 = vmatpush1.msra.mxu0 0.0
      %1110 = vmatprep.subr.mxu0 0.0
      %1111 = vmatpush1.msra.mxu0 0.0
      %1112 = vmatprep.subr.mxu0 0.0
      %1113 = vmatpush1.msra.mxu0 0.0
      %1114 = vmatprep.subr.mxu0 0.0
      %1115 = vmatpush1.msra.mxu0 0.0
      %1116 = vmatprep.subr.mxu0 0.0
      %1117 = vmatpush1.msra.mxu0 0.0
      %1118 = vmatprep.subr.mxu0 0.0
      %1119 = vmatpush1.msra.mxu0 0.0
      %1120 = vmatprep.subr.mxu0 0.0
      %1121 = vmatpush1.msra.mxu0 0.0
      %1122 = vmatprep.subr.mxu0 0.0
      %1123 = vmatpush1.msra.mxu0 0.0
      %1124 = vmatprep.subr.mxu0 0.0
      %1125 = vmatpush1.msra.mxu0 0.0
      %1126 = vmatprep.subr.mxu0 0.0
      %1127 = vmatpush1.msra.mxu0 0.0
      %1128 = vmatprep.subr.mxu0 0.0
      %1129 = vmatpush1.msra.mxu0 0.0
      %1130 = vmatprep.subr.mxu0 0.0
      %1131 = vmatpush1.msra.mxu0 0.0
      %1132 = vmatprep.subr.mxu0 0.0
      %1133 = vmatpush1.msra.mxu0 0.0
      %1134 = vmatprep.subr.mxu0 0.0
      %1135 = vmatpush1.msra.mxu0 0.0
      %1136 = vmatprep.subr.mxu0 0.0
      %1137 = vmatpush1.msra.mxu0 0.0
      %1138 = vmatprep.subr.mxu0 0.0
      %1139 = vmatpush1.msra.mxu0 0.0
      %1140 = vmatprep.subr.mxu0 0.0
      %1141 = vmatpush1.msra.mxu0 0.0
      %1142 = vmatprep.subr.mxu0 0.0
      %1143 = vmatpush1.msra.mxu0 0.0
      %1144 = vmatprep.subr.mxu0 0.0
      %1145 = vmatpush1.msra.mxu0 0.0
      %1146 = vmatprep.subr.mxu0 0.0
      %1147 = vmatpush1.msra.mxu0 0.0
      %1148 = vmatprep.subr.mxu0 0.0
      %1149 = vmatpush1.msra.mxu0 0.0
      %1150 = vmatprep.subr.mxu0 0.0
      %1151 = vmatpush1.msra.mxu0 0.0
      %1152 = vmatprep.subr.mxu0 0.0
      %1153 = vmatpush1.msra.mxu0 0.0
      %1154 = vmatprep.subr.mxu0 0.0
      %1155 = vmatpush1.msra.mxu0 0.0
      %1156 = vmatprep.mubr.f32.mxu0 0.0
      %v1157 = vand.u32 %v715, 4294901760
      %1158 = vmatmul.mubr.f32.gmra.mrb[0].mxu0 %v1157
      %v1159 = vpop.f32.mrb[0].mxu0
      %v1160 = vadd.f32 %v1088, %v1159
      %v1161 = vpop.f32.mrb[0].mxu0
      %1162 = vdwg.mxu0
      %1163 = vst.msk [vmem:[%s243] sm:$0xff] %vm247, %v1160
      %p1164 = scmp.lt.s32.totalorder %s15, 7
      %s1165 = scalar_select %p1164, %s15, 7
      %s1166 = smul.addr %s1165, 8
      %s1167 = scalar_lea.vmem %s4, %s1166
      // Predicated region
      $region37: #{transformer_forward.68} parent=35 // pred_check
        %p1168 = pneg %p137
      $region38: #{transformer_forward.68} parent=35 // pred_check_branch
        %1170 = sbr.rel (%p1168) target = $region40
      $region39: #{transformer_forward.68} parent=35 // pred_region
        _
      $region40: #{transformer_forward.68} parent=35 // pred_fallthru
        _
    $region36: #{transformer_forward.68} parent=5 // pred_fallthru
      _
    %p1171 = scmp.le.s32.totalorder 2, %s10
    // Predicated region
    $region41: #{transformer_forward.68} parent=5 // pred_check
      %p1172 = pneg %p1171
    $region42: #{transformer_forward.68} parent=5 // pred_check_branch
      %1174 = sbr.rel (%p1172) target = $region44
    $region43: #{transformer_forward.68} parent=5 // pred_region
      %s1175 = ssub.s32 %s10, 2
      // Predicated region
      $region45: #{transformer_forward.68} parent=43 // pred_check
        %p1176 = pneg %p143
      $region46: #{transformer_forward.68} parent=43 // pred_check_branch
        %1178 = sbr.rel (%p1176) target = $region48
      $region47: #{transformer_forward.68} parent=43 // pred_region
        %p1179 = scmp.lt.s32.totalorder %s16, 7
        %s1180 = scalar_select %p1179, %s16, 7
        %s1181 = smul.addr %s1180, 8
        %s1182 = scalar_lea.vmem %s4, %s1181
      $region48: #{transformer_forward.68} parent=43 // pred_fallthru
        _
    $region44: #{transformer_forward.68} parent=5 // pred_fallthru
      _
  $region6: #{transformer_forward.68} parent=0 // loop_footer
    %s14 = sadd.s32 1, %s10
  $region7: #{transformer_forward.68} parent=0 // loop_footer_branch
    %9 = sbr.rel target = $region3
  $region8: #{transformer_forward.68} parent=0 // loop_exit
    _

// kernel: transformer_forward.50
$region0: #{transformer_forward.50}
  #allocation0 [shape = 'u32[]', space=smem, size = 0x4, offset = 0x4, fixed_abs, tag = 'smem constant byte address 0x4 - core index']
  #allocation1 [shape = 'u32[144,128]{1,0:T(1,128)}', space=vmem, size = 0x12000, scoped, tag = 'internal scratch']
  %s0 = inlined_call_operand.vmem [shape: f32[24,32], index: 0, kind: input, shape index: {}]
  %s1 = inlined_call_operand.vmem [shape: f32[32,32], index: 1, kind: input, shape index: {}]
  %s2 = inlined_call_operand.hbm [shape: f32[1,32], index: 2, kind: input, shape index: {}]
  %s3 = inlined_call_operand.vmem [shape: f32[24,32], index: 3, kind: output, shape index: {}]
  %s4 = sld [smem:[#allocation0]]
  $region26: #{transformer_forward.50} parent=0
    _
  %s6 = ssub.s32 1, %s4
  %s7 = scalar_select 0, %s6, %s4
  $region1: #{transformer_forward.50} parent=0
    #allocation2 [shape = 'u8[512]{0}', space=vmem, size = 0x400, scoped, tag = 'input window, operand 2, single buffered']
    #allocation3 [shape = 's32[1]{0}', space=sflag, size = 0x4, scoped, tag = 'scoped memory for transformer_forward.50']
    %8 = vsyncpa [#allocation3], 0
    // Predicated region
    $region2: #{transformer_forward.50} parent=1 // pred_check
      _
    $region3: #{transformer_forward.50} parent=1 // pred_check_branch
      %10 = sbr.rel (0) target = $region5
    $region4: #{transformer_forward.50} parent=1 // pred_region
      _
    $region5: #{transformer_forward.50} parent=1 // pred_fallthru
      _
    // Predicated region
    $region6: #{transformer_forward.50} parent=1 // pred_check
      _
    $region7: #{transformer_forward.50} parent=1 // pred_check_branch
      %12 = sbr.rel (0) target = $region9
    $region8: #{transformer_forward.50} parent=1 // pred_region
      _
    $region9: #{transformer_forward.50} parent=1 // pred_fallthru
      _
    // Predicated region
    $region10: #{transformer_forward.50} parent=1 // pred_check
      _
    $region11: #{transformer_forward.50} parent=1 // pred_check_branch
      %14 = sbr.rel (0) target = $region13
    $region12: #{transformer_forward.50} parent=1 // pred_region
      %s16 = ssub.s32 16, 16
      %17 = vsyncadd [#allocation3], %s16
      %s19 = sshll.u32 [#allocation2], 4
      %s20 = int_to_ptr.vmem [resolvable:$true] %s19
      %22 = dma.hbm_to_vmem [thread:$0]  %s2, 16, %s20, [#allocation3]
    $region13: #{transformer_forward.50} parent=1 // pred_fallthru
      _
    // Predicated region
    $region14: #{transformer_forward.50} parent=1 // pred_check
      _
    $region15: #{transformer_forward.50} parent=1 // pred_check_branch
      %24 = sbr.rel (0) target = $region17
    $region16: #{transformer_forward.50} parent=1 // pred_region
      %25 = dma.done [#allocation3], 16
    $region17: #{transformer_forward.50} parent=1 // pred_fallthru
      _
    %v26 = vld [vmem:[%s0] sm:$0xff]
    %v27 = vld [vmem:[%s0 + $0x8] sm:$0xff]
    %v28 = vld [vmem:[%s0 + $0x10] sm:$0xff]
    %v29 = vld [vmem:[%s1] sm:$0xff]
    %v30 = vld [vmem:[%s1 + $0x8] sm:$0xff]
    %v31 = vld [vmem:[%s1 + $0x10] sm:$0xff]
    %v32 = vld [vmem:[%s1 + $0x18] sm:$0xff]
    %v33 = vld [vmem:[#allocation2] sm:$0x1]
    %v35 = vlaneseq
    %v36 = vshrl.u32 %v35, 7
    %v37 = vsub.s32 0, %v36
    %v38 = vrot.slane %v33, %v37
    %vm40 = vcmask 261120
    %v42 = vsel %vm40, %v26, 0
    %v45 = vsel %vm40, %v27, 0
    %v48 = vsel %vm40, %v28, 0
    %50 = vmatprep.subr.mxu0 0.0
    %v51 = vand.u32 %v29, 4294901760
    %52 = vmatpush1.msra.mxu0 %v51
    %53 = vmatprep.subr.mxu0 0.0
    %v54 = vand.u32 %v30, 4294901760
    %55 = vmatpush1.msra.mxu0 %v54
    %56 = vmatprep.subr.mxu0 0.0
    %v57 = vand.u32 %v31, 4294901760
    %58 = vmatpush1.msra.mxu0 %v57
    %59 = vmatprep.subr.mxu0 0.0
    %v60 = vand.u32 %v32, 4294901760
    %61 = vmatpush1.msra.mxu0 %v60
    %62 = vmatprep.subr.mxu0 0.0
    %63 = vmatpush1.msra.mxu0 0.0
    %64 = vmatprep.subr.mxu0 0.0
    %65 = vmatpush1.msra.mxu0 0.0
    %66 = vmatprep.subr.mxu0 0.0
    %67 = vmatpush1.msra.mxu0 0.0
    %68 = vmatprep.subr.mxu0 0.0
    %69 = vmatpush1.msra.mxu0 0.0
    %70 = vmatprep.subr.mxu0 0.0
    %71 = vmatpush1.msra.mxu0 0.0
    %72 = vmatprep.subr.mxu0 0.0
    %73 = vmatpush1.msra.mxu0 0.0
    %74 = vmatprep.subr.mxu0 0.0
    %75 = vmatpush1.msra.mxu0 0.0
    %76 = vmatprep.subr.mxu0 0.0
    %77 = vmatpush1.msra.mxu0 0.0
    %78 = vmatprep.subr.mxu0 0.0
    %79 = vmatpush1.msra.mxu0 0.0
    %80 = vmatprep.subr.mxu0 0.0
    %81 = vmatpush1.msra.mxu0 0.0
    %82 = vmatprep.subr.mxu0 0.0
    %83 = vmatpush1.msra.mxu0 0.0
    %84 = vmatprep.subr.mxu0 0.0
    %85 = vmatpush1.msra.mxu0 0.0
    %86 = vmatprep.subr.mxu0 0.0
    %87 = vmatpush1.msra.mxu0 0.0
    %88 = vmatprep.subr.mxu0 0.0
    %89 = vmatpush1.msra.mxu0 0.0
    %90 = vmatprep.subr.mxu0 0.0
    %91 = vmatpush1.msra.mxu0 0.0
    %92 = vmatprep.subr.mxu0 0.0
    %93 = vmatpush1.msra.mxu0 0.0
    %94 = vmatprep.subr.mxu0 0.0
    %95 = vmatpush1.msra.mxu0 0.0
    %96 = vmatprep.subr.mxu0 0.0
    %97 = vmatpush1.msra.mxu0 0.0
    %98 = vmatprep.subr.mxu0 0.0
    %99 = vmatpush1.msra.mxu0 0.0
    %100 = vmatprep.subr.mxu0 0.0
    %101 = vmatpush1.msra.mxu0 0.0
    %102 = vmatprep.subr.mxu0 0.0
    %103 = vmatpush1.msra.mxu0 0.0
    %104 = vmatprep.subr.mxu0 0.0
    %105 = vmatpush1.msra.mxu0 0.0
    %106 = vmatprep.subr.mxu0 0.0
    %107 = vmatpush1.msra.mxu0 0.0
    %108 = vmatprep.subr.mxu0 0.0
    %109 = vmatpush1.msra.mxu0 0.0
    %110 = vmatprep.subr.mxu0 0.0
    %111 = vmatpush1.msra.mxu0 0.0
    %112 = vmatprep.subr.mxu0 0.0
    %113 = vmatpush1.msra.mxu0 0.0
    %114 = vmatprep.subr.mxu0 0.0
    %115 = vmatpush1.msra.mxu0 0.0
    %116 = vmatprep.subr.mxu0 0.0
    %117 = vmatpush1.msra.mxu0 0.0
    %118 = vmatprep.mubr.f32.mxu0 0.0
    %v119 = vand.u32 %v42, 4294901760
    %v120 = vsub.f32 %v42, %v119
    %v121 = vand.u32 %v120, 4294901760
    %v122 = vsub.f32 %v120, %v121
    %v123 = vand.u32 %v122, 4294901760
    %124 = vmatmul.mubr.f32.gmra.mrb[0].mxu0 %v123
    %v125 = vpop.f32.mrb[0].mxu0
    %v126 = vadd.f32 %v38, %v125
    %v127 = vpop.f32.mrb[0].mxu0
    %128 = vmatprep.mubr.f32.mxu0 0.0
    %v129 = vand.u32 %v45, 4294901760
    %v130 = vsub.f32 %v45, %v129
    %v131 = vand.u32 %v130, 4294901760
    %v132 = vsub.f32 %v130, %v131
    %v133 = vand.u32 %v132, 4294901760
    %134 = vmatmul.mubr.f32.gmra.mrb[0].mxu0 %v133
    %v135 = vpop.f32.mrb[0].mxu0
    %v136 = vadd.f32 %v38, %v135
    %v137 = vpop.f32.mrb[0].mxu0
    %138 = vmatprep.mubr.f32.mxu0 0.0
    %v139 = vand.u32 %v48, 4294901760
    %v140 = vsub.f32 %v48, %v139
    %v141 = vand.u32 %v140, 4294901760
    %v142 = vsub.f32 %v140, %v141
    %v143 = vand.u32 %v142, 4294901760
    %144 = vmatmul.mubr.f32.gmra.mrb[0].mxu0 %v143
    %v145 = vpop.f32.mrb[0].mxu0
    %v146 = vadd.f32 %v38, %v145
    %v147 = vpop.f32.mrb[0].mxu0
    %148 = vdwg.mxu0
    %149 = vmatprep.subr.mxu0 0.0
    %v150 = vand.u32 %v29, 4294901760
    %v151 = vsub.f32 %v29, %v150
    %v152 = vand.u32 %v151, 4294901760
    %v153 = vsub.f32 %v151, %v152
    %v154 = vand.u32 %v153, 4294901760
    %155 = vmatpush1.msra.mxu0 %v154
    %156 = vmatprep.subr.mxu0 0.0
    %v157 = vand.u32 %v30, 4294901760
    %v158 = vsub.f32 %v30, %v157
    %v159 = vand.u32 %v158, 4294901760
    %v160 = vsub.f32 %v158, %v159
    %v161 = vand.u32 %v160, 4294901760
    %162 = vmatpush1.msra.mxu0 %v161
    %163 = vmatprep.subr.mxu0 0.0
    %v164 = vand.u32 %v31, 4294901760
    %v165 = vsub.f32 %v31, %v164
    %v166 = vand.u32 %v165, 4294901760
    %v167 = vsub.f32 %v165, %v166
    %v168 = vand.u32 %v167, 4294901760
    %169 = vmatpush1.msra.mxu0 %v168
    %170 = vmatprep.subr.mxu0 0.0
    %v171 = vand.u32 %v32, 4294901760
    %v172 = vsub.f32 %v32, %v171
    %v173 = vand.u32 %v172, 4294901760
    %v174 = vsub.f32 %v172, %v173
    %v175 = vand.u32 %v174, 4294901760
    %176 = vmatpush1.msra.mxu0 %v175
    %177 = vmatprep.subr.mxu0 0.0
    %178 = vmatpush1.msra.mxu0 0.0
    %179 = vmatprep.subr.mxu0 0.0
    %180 = vmatpush1.msra.mxu0 0.0
    %181 = vmatprep.subr.mxu0 0.0
    %182 = vmatpush1.msra.mxu0 0.0
    %183 = vmatprep.subr.mxu0 0.0
    %184 = vmatpush1.msra.mxu0 0.0
    %185 = vmatprep.subr.mxu0 0.0
    %186 = vmatpush1.msra.mxu0 0.0
    %187 = vmatprep.subr.mxu0 0.0
    %188 = vmatpush1.msra.mxu0 0.0
    %189 = vmatprep.subr.mxu0 0.0
    %190 = vmatpush1.msra.mxu0 0.0
    %191 = vmatprep.subr.mxu0 0.0
    %192 = vmatpush1.msra.mxu0 0.0
    %193 = vmatprep.subr.mxu0 0.0
    %194 = vmatpush1.msra.mxu0 0.0
    %195 = vmatprep.subr.mxu0 0.0
    %196 = vmatpush1.msra.mxu0 0.0
    %197 = vmatprep.subr.mxu0 0.0
    %198 = vmatpush1.msra.mxu0 0.0
    %199 = vmatprep.subr.mxu0 0.0
    %200 = vmatpush1.msra.mxu0 0.0
    %201 = vmatprep.subr.mxu0 0.0
    %202 = vmatpush1.msra.mxu0 0.0
    %203 = vmatprep.subr.mxu0 0.0
    %204 = vmatpush1.msra.mxu0 0.0
    %205 = vmatprep.subr.mxu0 0.0
    %206 = vmatpush1.msra.mxu0 0.0
    %207 = vmatprep.subr.mxu0 0.0
    %208 = vmatpush1.msra.mxu0 0.0
    %209 = vmatprep.subr.mxu0 0.0
    %210 = vmatpush1.msra.mxu0 0.0
    %211 = vmatprep.subr.mxu0 0.0
    %212 = vmatpush1.msra.mxu0 0.0
    %213 = vmatprep.subr.mxu0 0.0
    %214 = vmatpush1.msra.mxu0 0.0
    %215 = vmatprep.subr.mxu0 0.0
    %216 = vmatpush1.msra.mxu0 0.0
    %217 = vmatprep.subr.mxu0 0.0
    %218 = vmatpush1.msra.mxu0 0.0
    %219 = vmatprep.subr.mxu0 0.0
    %220 = vmatpush1.msra.mxu0 0.0
    %221 = vmatprep.subr.mxu0 0.0
    %222 = vmatpush1.msra.mxu0 0.0
    %223 = vmatprep.subr.mxu0 0.0
    %224 = vmatpush1.msra.mxu0 0.0
    %225 = vmatprep.subr.mxu0 0.0
    %226 = vmatpush1.msra.mxu0 0.0
    %227 = vmatprep.subr.mxu0 0.0
    %228 = vmatpush1.msra.mxu0 0.0
    %229 = vmatprep.subr.mxu0 0.0
    %230 = vmatpush1.msra.mxu0 0.0
    %231 = vmatprep.subr.mxu0 0.0
    %232 = vmatpush1.msra.mxu0 0.0
    %233 = vmatprep.mubr.f32.mxu0 0.0
    %v234 = vand.u32 %v42, 4294901760
    %235 = vmatmul.mubr.f32.gmra.mrb[0].mxu0 %v234
    %v236 = vpop.f32.mrb[0].mxu0
    %v237 = vadd.f32 %v126, %v236
    %v238 = vpop.f32.mrb[0].mxu0
    %239 = vmatprep.mubr.f32.mxu0 0.0
    %v240 = vand.u32 %v45, 4294901760
    %241 = vmatmul.mubr.f32.gmra.mrb[0].mxu0 %v240
    %v242 = vpop.f32.mrb[0].mxu0
    %v243 = vadd.f32 %v136, %v242
    %v244 = vpop.f32.mrb[0].mxu0
    %245 = vmatprep.mubr.f32.mxu0 0.0
    %v246 = vand.u32 %v48, 4294901760
    %247 = vmatmul.mubr.f32.gmra.mrb[0].mxu0 %v246
    %v248 = vpop.f32.mrb[0].mxu0
    %v249 = vadd.f32 %v146, %v248
    %v250 = vpop.f32.mrb[0].mxu0
    %251 = vdwg.mxu0
    %252 = vmatprep.subr.mxu0 0.0
    %v253 = vand.u32 %v29, 4294901760
    %v254 = vsub.f32 %v29, %v253
    %255 = vmatpush1.msra.mxu0 %v254
    %256 = vmatprep.subr.mxu0 0.0
    %v257 = vand.u32 %v30, 4294901760
    %v258 = vsub.f32 %v30, %v257
    %259 = vmatpush1.msra.mxu0 %v258
    %260 = vmatprep.subr.mxu0 0.0
    %v261 = vand.u32 %v31, 4294901760
    %v262 = vsub.f32 %v31, %v261
    %263 = vmatpush1.msra.mxu0 %v262
    %264 = vmatprep.subr.mxu0 0.0
    %v265 = vand.u32 %v32, 4294901760
    %v266 = vsub.f32 %v32, %v265
    %267 = vmatpush1.msra.mxu0 %v266
    %268 = vmatprep.subr.mxu0 0.0
    %269 = vmatpush1.msra.mxu0 0.0
    %270 = vmatprep.subr.mxu0 0.0
    %271 = vmatpush1.msra.mxu0 0.0
    %272 = vmatprep.subr.mxu0 0.0
    %273 = vmatpush1.msra.mxu0 0.0
    %274 = vmatprep.subr.mxu0 0.0
    %275 = vmatpush1.msra.mxu0 0.0
    %276 = vmatprep.subr.mxu0 0.0
    %277 = vmatpush1.msra.mxu0 0.0
    %278 = vmatprep.subr.mxu0 0.0
    %279 = vmatpush1.msra.mxu0 0.0
    %280 = vmatprep.subr.mxu0 0.0
    %281 = vmatpush1.msra.mxu0 0.0
    %282 = vmatprep.subr.mxu0 0.0
    %283 = vmatpush1.msra.mxu0 0.0
    %284 = vmatprep.subr.mxu0 0.0
    %285 = vmatpush1.msra.mxu0 0.0
    %286 = vmatprep.subr.mxu0 0.0
    %287 = vmatpush1.msra.mxu0 0.0
    %288 = vmatprep.subr.mxu0 0.0
    %289 = vmatpush1.msra.mxu0 0.0
    %290 = vmatprep.subr.mxu0 0.0
    %291 = vmatpush1.msra.mxu0 0.0
    %292 = vmatprep.subr.mxu0 0.0
    %293 = vmatpush1.msra.mxu0 0.0
    %294 = vmatprep.subr.mxu0 0.0
    %295 = vmatpush1.msra.mxu0 0.0
    %296 = vmatprep.subr.mxu0 0.0
    %297 = vmatpush1.msra.mxu0 0.0
    %298 = vmatprep.subr.mxu0 0.0
    %299 = vmatpush1.msra.mxu0 0.0
    %300 = vmatprep.subr.mxu0 0.0
    %301 = vmatpush1.msra.mxu0 0.0
    %302 = vmatprep.subr.mxu0 0.0
    %303 = vmatpush1.msra.mxu0 0.0
    %304 = vmatprep.subr.mxu0 0.0
    %305 = vmatpush1.msra.mxu0 0.0
    %306 = vmatprep.subr.mxu0 0.0
    %307 = vmatpush1.msra.mxu0 0.0
    %308 = vmatprep.subr.mxu0 0.0
    %309 = vmatpush1.msra.mxu0 0.0
    %310 = vmatprep.subr.mxu0 0.0
    %311 = vmatpush1.msra.mxu0 0.0
    %312 = vmatprep.subr.mxu0 0.0
    %313 = vmatpush1.msra.mxu0 0.0
    %314 = vmatprep.subr.mxu0 0.0
    %315 = vmatpush1.msra.mxu0 0.0
    %316 = vmatprep.subr.mxu0 0.0
    %317 = vmatpush1.msra.mxu0 0.0
    %318 = vmatprep.subr.mxu0 0.0
    %319 = vmatpush1.msra.mxu0 0.0
    %320 = vmatprep.subr.mxu0 0.0
    %321 = vmatpush1.msra.mxu0 0.0
    %322 = vmatprep.subr.mxu0 0.0
    %323 = vmatpush1.msra.mxu0 0.0
    %324 = vmatprep.mubr.f32.mxu0 0.0
    %v325 = vand.u32 %v42, 4294901760
    %v326 = vsub.f32 %v42, %v325
    %327 = vmatmul.mubr.f32.gmra.mrb[0].mxu0 %v326
    %v328 = vpop.f32.mrb[0].mxu0
    %v329 = vadd.f32 %v237, %v328
    %v330 = vpop.f32.mrb[0].mxu0
    %331 = vmatprep.mubr.f32.mxu0 0.0
    %v332 = vand.u32 %v45, 4294901760
    %v333 = vsub.f32 %v45, %v332
    %334 = vmatmul.mubr.f32.gmra.mrb[0].mxu0 %v333
    %v335 = vpop.f32.mrb[0].mxu0
    %v336 = vadd.f32 %v243, %v335
    %v337 = vpop.f32.mrb[0].mxu0
    %338 = vmatprep.mubr.f32.mxu0 0.0
    %v339 = vand.u32 %v48, 4294901760
    %v340 = vsub.f32 %v48, %v339
    %341 = vmatmul.mubr.f32.gmra.mrb[0].mxu0 %v340
    %v342 = vpop.f32.mrb[0].mxu0
    %v343 = vadd.f32 %v249, %v342
    %v344 = vpop.f32.mrb[0].mxu0
    %345 = vdwg.mxu0
    %346 = vmatprep.subr.mxu0 0.0
    %v347 = vand.u32 %v29, 4294901760
    %348 = vmatpush1.msra.mxu0 %v347
    %349 = vmatprep.subr.mxu0 0.0
    %v350 = vand.u32 %v30, 4294901760
    %351 = vmatpush1.msra.mxu0 %v350
    %352 = vmatprep.subr.mxu0 0.0
    %v353 = vand.u32 %v31, 4294901760
    %354 = vmatpush1.msra.mxu0 %v353
    %355 = vmatprep.subr.mxu0 0.0
    %v356 = vand.u32 %v32, 4294901760
    %357 = vmatpush1.msra.mxu0 %v356
    %358 = vmatprep.subr.mxu0 0.0
    %359 = vmatpush1.msra.mxu0 0.0
    %360 = vmatprep.subr.mxu0 0.0
    %361 = vmatpush1.msra.mxu0 0.0
    %362 = vmatprep.subr.mxu0 0.0
    %363 = vmatpush1.msra.mxu0 0.0
    %364 = vmatprep.subr.mxu0 0.0
    %365 = vmatpush1.msra.mxu0 0.0
    %366 = vmatprep.subr.mxu0 0.0
    %367 = vmatpush1.msra.mxu0 0.0
    %368 = vmatprep.subr.mxu0 0.0
    %369 = vmatpush1.msra.mxu0 0.0
    %370 = vmatprep.subr.mxu0 0.0
    %371 = vmatpush1.msra.mxu0 0.0
    %372 = vmatprep.subr.mxu0 0.0
    %373 = vmatpush1.msra.mxu0 0.0
    %374 = vmatprep.subr.mxu0 0.0
    %375 = vmatpush1.msra.mxu0 0.0
    %376 = vmatprep.subr.mxu0 0.0
    %377 = vmatpush1.msra.mxu0 0.0
    %378 = vmatprep.subr.mxu0 0.0
    %379 = vmatpush1.msra.mxu0 0.0
    %380 = vmatprep.subr.mxu0 0.0
    %381 = vmatpush1.msra.mxu0 0.0
    %382 = vmatprep.subr.mxu0 0.0
    %383 = vmatpush1.msra.mxu0 0.0
    %384 = vmatprep.subr.mxu0 0.0
    %385 = vmatpush1.msra.mxu0 0.0
    %386 = vmatprep.subr.mxu0 0.0
    %387 = vmatpush1.msra.mxu0 0.0
    %388 = vmatprep.subr.mxu0 0.0
    %389 = vmatpush1.msra.mxu0 0.0
    %390 = vmatprep.subr.mxu0 0.0
    %391 = vmatpush1.msra.mxu0 0.0
    %392 = vmatprep.subr.mxu0 0.0
    %393 = vmatpush1.msra.mxu0 0.0
    %394 = vmatprep.subr.mxu0 0.0
    %395 = vmatpush1.msra.mxu0 0.0
    %396 = vmatprep.subr.mxu0 0.0
    %397 = vmatpush1.msra.mxu0 0.0
    %398 = vmatprep.subr.mxu0 0.0
    %399 = vmatpush1.msra.mxu0 0.0
    %400 = vmatprep.subr.mxu0 0.0
    %401 = vmatpush1.msra.mxu0 0.0
    %402 = vmatprep.subr.mxu0 0.0
    %403 = vmatpush1.msra.mxu0 0.0
    %404 = vmatprep.subr.mxu0 0.0
    %405 = vmatpush1.msra.mxu0 0.0
    %406 = vmatprep.subr.mxu0 0.0
    %407 = vmatpush1.msra.mxu0 0.0
    %408 = vmatprep.subr.mxu0 0.0
    %409 = vmatpush1.msra.mxu0 0.0
    %410 = vmatprep.subr.mxu0 0.0
    %411 = vmatpush1.msra.mxu0 0.0
    %412 = vmatprep.subr.mxu0 0.0
    %413 = vmatpush1.msra.mxu0 0.0
    %414 = vmatprep.mubr.f32.mxu0 0.0
    %v415 = vand.u32 %v42, 4294901760
    %v416 = vsub.f32 %v42, %v415
    %v417 = vand.u32 %v416, 4294901760
    %418 = vmatmul.mubr.f32.gmra.mrb[0].mxu0 %v417
    %v419 = vpop.f32.mrb[0].mxu0
    %v420 = vadd.f32 %v329, %v419
    %v421 = vpop.f32.mrb[0].mxu0
    %422 = vmatprep.mubr.f32.mxu0 0.0
    %v423 = vand.u32 %v45, 4294901760
    %v424 = vsub.f32 %v45, %v423
    %v425 = vand.u32 %v424, 4294901760
    %426 = vmatmul.mubr.f32.gmra.mrb[0].mxu0 %v425
    %v427 = vpop.f32.mrb[0].mxu0
    %v428 = vadd.f32 %v336, %v427
    %v429 = vpop.f32.mrb[0].mxu0
    %430 = vmatprep.mubr.f32.mxu0 0.0
    %v431 = vand.u32 %v48, 4294901760
    %v432 = vsub.f32 %v48, %v431
    %v433 = vand.u32 %v432, 4294901760
    %434 = vmatmul.mubr.f32.gmra.mrb[0].mxu0 %v433
    %v435 = vpop.f32.mrb[0].mxu0
    %v436 = vadd.f32 %v343, %v435
    %v437 = vpop.f32.mrb[0].mxu0
    %438 = vdwg.mxu0
    %439 = vmatprep.subr.mxu0 0.0
    %v440 = vand.u32 %v29, 4294901760
    %v441 = vsub.f32 %v29, %v440
    %v442 = vand.u32 %v441, 4294901760
    %443 = vmatpush1.msra.mxu0 %v442
    %444 = vmatprep.subr.mxu0 0.0
    %v445 = vand.u32 %v30, 4294901760
    %v446 = vsub.f32 %v30, %v445
    %v447 = vand.u32 %v446, 4294901760
    %448 = vmatpush1.msra.mxu0 %v447
    %449 = vmatprep.subr.mxu0 0.0
    %v450 = vand.u32 %v31, 4294901760
    %v451 = vsub.f32 %v31, %v450
    %v452 = vand.u32 %v451, 4294901760
    %453 = vmatpush1.msra.mxu0 %v452
    %454 = vmatprep.subr.mxu0 0.0
    %v455 = vand.u32 %v32, 4294901760
    %v456 = vsub.f32 %v32, %v455
    %v457 = vand.u32 %v456, 4294901760
    %458 = vmatpush1.msra.mxu0 %v457
    %459 = vmatprep.subr.mxu0 0.0
    %460 = vmatpush1.msra.mxu0 0.0
    %461 = vmatprep.subr.mxu0 0.0
    %462 = vmatpush1.msra.mxu0 0.0
    %463 = vmatprep.subr.mxu0 0.0
    %464 = vmatpush1.msra.mxu0 0.0
    %465 = vmatprep.subr.mxu0 0.0
    %466 = vmatpush1.msra.mxu0 0.0
    %467 = vmatprep.subr.mxu0 0.0
    %468 = vmatpush1.msra.mxu0 0.0
    %469 = vmatprep.subr.mxu0 0.0
    %470 = vmatpush1.msra.mxu0 0.0
    %471 = vmatprep.subr.mxu0 0.0
    %472 = vmatpush1.msra.mxu0 0.0
    %473 = vmatprep.subr.mxu0 0.0
    %474 = vmatpush1.msra.mxu0 0.0
    %475 = vmatprep.subr.mxu0 0.0
    %476 = vmatpush1.msra.mxu0 0.0
    %477 = vmatprep.subr.mxu0 0.0
    %478 = vmatpush1.msra.mxu0 0.0
    %479 = vmatprep.subr.mxu0 0.0
    %480 = vmatpush1.msra.mxu0 0.0
    %481 = vmatprep.subr.mxu0 0.0
    %482 = vmatpush1.msra.mxu0 0.0
    %483 = vmatprep.subr.mxu0 0.0
    %484 = vmatpush1.msra.mxu0 0.0
    %485 = vmatprep.subr.mxu0 0.0
    %486 = vmatpush1.msra.mxu0 0.0
    %487 = vmatprep.subr.mxu0 0.0
    %488 = vmatpush1.msra.mxu0 0.0
    %489 = vmatprep.subr.mxu0 0.0
    %490 = vmatpush1.msra.mxu0 0.0
    %491 = vmatprep.subr.mxu0 0.0
    %492 = vmatpush1.msra.mxu0 0.0
    %493 = vmatprep.subr.mxu0 0.0
    %494 = vmatpush1.msra.mxu0 0.0
    %495 = vmatprep.subr.mxu0 0.0
    %496 = vmatpush1.msra.mxu0 0.0
    %497 = vmatprep.subr.mxu0 0.0
    %498 = vmatpush1.msra.mxu0 0.0
    %499 = vmatprep.subr.mxu0 0.0
    %500 = vmatpush1.msra.mxu0 0.0
    %501 = vmatprep.subr.mxu0 0.0
    %502 = vmatpush1.msra.mxu0 0.0
    %503 = vmatprep.subr.mxu0 0.0
    %504 = vmatpush1.msra.mxu0 0.0
    %505 = vmatprep.subr.mxu0 0.0
    %506 = vmatpush1.msra.mxu0 0.0
    %507 = vmatprep.subr.mxu0 0.0
    %508 = vmatpush1.msra.mxu0 0.0
    %509 = vmatprep.subr.mxu0 0.0
    %510 = vmatpush1.msra.mxu0 0.0
    %511 = vmatprep.subr.mxu0 0.0
    %512 = vmatpush1.msra.mxu0 0.0
    %513 = vmatprep.subr.mxu0 0.0
    %514 = vmatpush1.msra.mxu0 0.0
    %515 = vmatprep.mubr.f32.mxu0 0.0
    %v516 = vand.u32 %v42, 4294901760
    %517 = vmatmul.mubr.f32.gmra.mrb[0].mxu0 %v516
    %v518 = vpop.f32.mrb[0].mxu0
    %v519 = vadd.f32 %v420, %v518
    %v520 = vpop.f32.mrb[0].mxu0
    %521 = vmatprep.mubr.f32.mxu0 0.0
    %v522 = vand.u32 %v45, 4294901760
    %523 = vmatmul.mubr.f32.gmra.mrb[0].mxu0 %v522
    %v524 = vpop.f32.mrb[0].mxu0
    %v525 = vadd.f32 %v428, %v524
    %v526 = vpop.f32.mrb[0].mxu0
    %527 = vmatprep.mubr.f32.mxu0 0.0
    %v528 = vand.u32 %v48, 4294901760
    %529 = vmatmul.mubr.f32.gmra.mrb[0].mxu0 %v528
    %v530 = vpop.f32.mrb[0].mxu0
    %v531 = vadd.f32 %v436, %v530
    %v532 = vpop.f32.mrb[0].mxu0
    %533 = vdwg.mxu0
    %534 = vmatprep.subr.mxu0 0.0
    %v535 = vand.u32 %v29, 4294901760
    %536 = vmatpush1.msra.mxu0 %v535
    %537 = vmatprep.subr.mxu0 0.0
    %v538 = vand.u32 %v30, 4294901760
    %539 = vmatpush1.msra.mxu0 %v538
    %540 = vmatprep.subr.mxu0 0.0
    %v541 = vand.u32 %v31, 4294901760
    %542 = vmatpush1.msra.mxu0 %v541
    %543 = vmatprep.subr.mxu0 0.0
    %v544 = vand.u32 %v32, 4294901760
    %545 = vmatpush1.msra.mxu0 %v544
    %546 = vmatprep.subr.mxu0 0.0
    %547 = vmatpush1.msra.mxu0 0.0
    %548 = vmatprep.subr.mxu0 0.0
    %549 = vmatpush1.msra.mxu0 0.0
    %550 = vmatprep.subr.mxu0 0.0
    %551 = vmatpush1.msra.mxu0 0.0
    %552 = vmatprep.subr.mxu0 0.0
    %553 = vmatpush1.msra.mxu0 0.0
    %554 = vmatprep.subr.mxu0 0.0
    %555 = vmatpush1.msra.mxu0 0.0
    %556 = vmatprep.subr.mxu0 0.0
    %557 = vmatpush1.msra.mxu0 0.0
    %558 = vmatprep.subr.mxu0 0.0
    %559 = vmatpush1.msra.mxu0 0.0
    %560 = vmatprep.subr.mxu0 0.0
    %561 = vmatpush1.msra.mxu0 0.0
    %562 = vmatprep.subr.mxu0 0.0
    %563 = vmatpush1.msra.mxu0 0.0
    %564 = vmatprep.subr.mxu0 0.0
    %565 = vmatpush1.msra.mxu0 0.0
    %566 = vmatprep.subr.mxu0 0.0
    %567 = vmatpush1.msra.mxu0 0.0
    %568 = vmatprep.subr.mxu0 0.0
    %569 = vmatpush1.msra.mxu0 0.0
    %570 = vmatprep.subr.mxu0 0.0
    %571 = vmatpush1.msra.mxu0 0.0
    %572 = vmatprep.subr.mxu0 0.0
    %573 = vmatpush1.msra.mxu0 0.0
    %574 = vmatprep.subr.mxu0 0.0
    %575 = vmatpush1.msra.mxu0 0.0
    %576 = vmatprep.subr.mxu0 0.0
    %577 = vmatpush1.msra.mxu0 0.0
    %578 = vmatprep.subr.mxu0 0.0
    %579 = vmatpush1.msra.mxu0 0.0
    %580 = vmatprep.subr.mxu0 0.0
    %581 = vmatpush1.msra.mxu0 0.0
    %582 = vmatprep.subr.mxu0 0.0
    %583 = vmatpush1.msra.mxu0 0.0
    %584 = vmatprep.subr.mxu0 0.0
    %585 = vmatpush1.msra.mxu0 0.0
    %586 = vmatprep.subr.mxu0 0.0
    %587 = vmatpush1.msra.mxu0 0.0
    %588 = vmatprep.subr.mxu0 0.0
    %589 = vmatpush1.msra.mxu0 0.0
    %590 = vmatprep.subr.mxu0 0.0
    %591 = vmatpush1.msra.mxu0 0.0
    %592 = vmatprep.subr.mxu0 0.0
    %593 = vmatpush1.msra.mxu0 0.0
    %594 = vmatprep.subr.mxu0 0.0
    %595 = vmatpush1.msra.mxu0 0.0
    %596 = vmatprep.subr.mxu0 0.0
    %597 = vmatpush1.msra.mxu0 0.0
    %598 = vmatprep.subr.mxu0 0.0
    %599 = vmatpush1.msra.mxu0 0.0
    %600 = vmatprep.subr.mxu0 0.0
    %601 = vmatpush1.msra.mxu0 0.0
    %602 = vmatprep.mubr.f32.mxu0 0.0
    %v603 = vand.u32 %v42, 4294901760
    %604 = vmatmul.mubr.f32.gmra.mrb[0].mxu0 %v603
    %v605 = vpop.f32.mrb[0].mxu0
    %v606 = vadd.f32 %v519, %v605
    %v607 = vpop.f32.mrb[0].mxu0
    %608 = vmatprep.mubr.f32.mxu0 0.0
    %v609 = vand.u32 %v45, 4294901760
    %610 = vmatmul.mubr.f32.gmra.mrb[0].mxu0 %v609
    %v611 = vpop.f32.mrb[0].mxu0
    %v612 = vadd.f32 %v525, %v611
    %v613 = vpop.f32.mrb[0].mxu0
    %614 = vmatprep.mubr.f32.mxu0 0.0
    %v615 = vand.u32 %v48, 4294901760
    %616 = vmatmul.mubr.f32.gmra.mrb[0].mxu0 %v615
    %v617 = vpop.f32.mrb[0].mxu0
    %v618 = vadd.f32 %v531, %v617
    %v619 = vpop.f32.mrb[0].mxu0
    %620 = vdwg.mxu0
    %621 = vst.msk [vmem:[%s3] sm:$0xff] %vm40, %v606
    %622 = vst.msk [vmem:[%s3 + $0x8] sm:$0xff] %vm40, %v612
    %623 = vst.msk [vmem:[%s3 + $0x10] sm:$0xff] %vm40, %v618
    // Predicated region
    $region18: #{transformer_forward.50} parent=1 // pred_check
      _
    $region19: #{transformer_forward.50} parent=1 // pred_check_branch
      %625 = sbr.rel (0) target = $region21
    $region20: #{transformer_forward.50} parent=1 // pred_region
      _
    $region21: #{transformer_forward.50} parent=1 // pred_fallthru
      _
    // Predicated region
    $region22: #{transformer_forward.50} parent=1 // pred_check
      _
    $region23: #{transformer_forward.50} parent=1 // pred_check_branch
      %627 = sbr.rel (0) target = $region25
    $region24: #{transformer_forward.50} parent=1 // pred_region
      _
    $region25: #{transformer_forward.50} parent=1 // pred_fallthru
      _
    %628 = vsyncpa [#allocation3], 1

// kernel: transformer_forward.54
$region0: #{transformer_forward.54}
  #allocation0 [shape = 'u32[]', space=smem, size = 0x4, offset = 0x4, fixed_abs, tag = 'smem constant byte address 0x4 - core index']
  #allocation1 [shape = 'u32[144,128]{1,0:T(1,128)}', space=vmem, size = 0x12000, scoped, tag = 'internal scratch']
  %s0 = inlined_call_operand.vmem [shape: f32[24,32], index: 0, kind: input, shape index: {}]
  %s1 = inlined_call_operand.vmem [shape: f32[24,32], index: 1, kind: input, shape index: {}]
  %s2 = inlined_call_operand.vmem [shape: f32[1,32], index: 2, kind: input, shape index: {}]
  %s3 = inlined_call_operand.vmem [shape: f32[1,32], index: 3, kind: input, shape index: {}]
  %s4 = inlined_call_operand.vmem [shape: f32[24,32], index: 4, kind: output, shape index: {}]
  %s5 = sld [smem:[#allocation0]]
  $region26: #{transformer_forward.54} parent=0
    _
  %s7 = ssub.s32 1, %s5
  %s8 = scalar_select 0, %s7, %s5
  // Predicated region
  $region2: #{transformer_forward.54} parent=0 // pred_check
    _
  $region3: #{transformer_forward.54} parent=0 // pred_check_branch
    %10 = sbr.rel (0) target = $region5
  $region4: #{transformer_forward.54} parent=0 // pred_region
    _
  $region5: #{transformer_forward.54} parent=0 // pred_fallthru
    _
  // Predicated region
  $region6: #{transformer_forward.54} parent=0 // pred_check
    _
  $region7: #{transformer_forward.54} parent=0 // pred_check_branch
    %12 = sbr.rel (0) target = $region9
  $region8: #{transformer_forward.54} parent=0 // pred_region
    _
  $region9: #{transformer_forward.54} parent=0 // pred_fallthru
    _
  // Predicated region
  $region10: #{transformer_forward.54} parent=0 // pred_check
    _
  $region11: #{transformer_forward.54} parent=0 // pred_check_branch
    %14 = sbr.rel (0) target = $region13
  $region12: #{transformer_forward.54} parent=0 // pred_region
    _
  $region13: #{transformer_forward.54} parent=0 // pred_fallthru
    _
  // Predicated region
  $region14: #{transformer_forward.54} parent=0 // pred_check
    _
  $region15: #{transformer_forward.54} parent=0 // pred_check_branch
    %16 = sbr.rel (0) target = $region17
  $region16: #{transformer_forward.54} parent=0 // pred_region
    _
  $region17: #{transformer_forward.54} parent=0 // pred_fallthru
    _
  %v17 = vld [vmem:[%s0] sm:$0xff]
  %v18 = vld [vmem:[%s0 + $0x8] sm:$0xff]
  %v19 = vld [vmem:[%s0 + $0x10] sm:$0xff]
  %v20 = vld [vmem:[%s1] sm:$0xff]
  %v21 = vld [vmem:[%s1 + $0x8] sm:$0xff]
  %v22 = vld [vmem:[%s1 + $0x10] sm:$0xff]
  %v23 = vadd.f32 %v17, %v20
  %v24 = vadd.f32 %v18, %v21
  %v25 = vadd.f32 %v19, %v22
  %vm26 = vcmask 261120
  %v27 = vsel %vm26, %v23, 0.0
  %28 = vadd.xlane.f32.xlu0 %v27
  %v29 = vpop.xlane.xlu0 %28
  %v30 = vsel %vm26, %v24, 0.0
  %31 = vadd.xlane.f32.xlu0 %v30
  %v32 = vpop.xlane.xlu0 %31
  %v33 = vsel %vm26, %v25, 0.0
  %34 = vadd.xlane.f32.xlu0 %v33
  %v35 = vpop.xlane.xlu0 %34
  %v36 = vrcp.pop 32.0
  %v37 = vmul.f32 %v29, %v36
  %v38 = vmul.f32 %v32, %v36
  %v39 = vmul.f32 %v35, %v36
  %v40 = vsub.f32 %v23, %v37
  %v41 = vsub.f32 %v24, %v38
  %v42 = vsub.f32 %v25, %v39
  %v43 = vmul.f32 %v40, %v40
  %v44 = vmul.f32 %v41, %v41
  %v45 = vmul.f32 %v42, %v42
  %v46 = vsel %vm26, %v43, 0.0
  %47 = vadd.xlane.f32.xlu0 %v46
  %v48 = vpop.xlane.xlu0 %47
  %v49 = vsel %vm26, %v44, 0.0
  %50 = vadd.xlane.f32.xlu0 %v49
  %v51 = vpop.xlane.xlu0 %50
  %v52 = vsel %vm26, %v45, 0.0
  %53 = vadd.xlane.f32.xlu0 %v52
  %v54 = vpop.xlane.xlu0 %53
  %v55 = vmul.f32 %v48, %v36
  %v56 = vmul.f32 %v51, %v36
  %v57 = vmul.f32 %v54, %v36
  %v58 = vadd.f32 %v55, 1e-05
  %v59 = vadd.f32 %v56, 1e-05
  %v60 = vadd.f32 %v57, 1e-05
  %v61 = vrsqrt.pop %v58
  %v62 = vrsqrt.pop %v59
  %v63 = vrsqrt.pop %v60
  %v64 = vmul.f32 %v40, %v61
  %v65 = vmul.f32 %v41, %v62
  %v66 = vmul.f32 %v42, %v63
  %v67 = vld [vmem:[%s2] sm:$0x1]
  %v69 = vlaneseq
  %v70 = vshrl.u32 %v69, 7
  %v71 = vsub.s32 0, %v70
  %v72 = vrot.slane %v67, %v71
  %v74 = vmul.f32 %v64, %v72
  %v75 = vmul.f32 %v65, %v72
  %v76 = vmul.f32 %v66, %v72
  %v77 = vld [vmem:[%s3] sm:$0x1]
  %v79 = vlaneseq
  %v80 = vshrl.u32 %v79, 7
  %v81 = vsub.s32 0, %v80
  %v82 = vrot.slane %v77, %v81
  %v84 = vadd.f32 %v74, %v82
  %v85 = vadd.f32 %v75, %v82
  %v86 = vadd.f32 %v76, %v82
  %87 = vst.msk [vmem:[%s4] sm:$0xff] %vm26, %v84
  %88 = vst.msk [vmem:[%s4 + $0x8] sm:$0xff] %vm26, %v85
  %89 = vst.msk [vmem:[%s4 + $0x10] sm:$0xff] %vm26, %v86
  // Predicated region
  $region18: #{transformer_forward.54} parent=0 // pred_check
    _
  $region19: #{transformer_forward.54} parent=0 // pred_check_branch
    %91 = sbr.rel (0) target = $region21
  $region20: #{transformer_forward.54} parent=0 // pred_region
    _
  $region21: #{transformer_forward.54} parent=0 // pred_fallthru
    _
  // Predicated region
  $region22: #{transformer_forward.54} parent=0 // pred_check
    _
  $region23: #{transformer_forward.54} parent=0 // pred_check_branch
    %93 = sbr.rel (0) target = $region25
  $region24: #{transformer_forward.54} parent=0 // pred_region
    _
  $region25: #{transformer_forward.54} parent=0 // pred_fallthru
    _

// kernel: transformer_forward.52
$region0: #{transformer_forward.52}
  #allocation0 [shape = 'u32[]', space=smem, size = 0x4, offset = 0x4, fixed_abs, tag = 'smem constant byte address 0x4 - core index']
  #allocation1 [shape = 'u32[144,128]{1,0:T(1,128)}', space=vmem, size = 0x12000, scoped, tag = 'internal scratch']
  %s0 = inlined_call_operand.vmem [shape: f32[8,12,8], index: 0, kind: input, shape index: {}]
  %s1 = inlined_call_operand.vmem [shape: f32[8,12,8], index: 1, kind: input, shape index: {}]
  %s2 = inlined_call_operand.vmem [shape: f32[8,12,8], index: 2, kind: input, shape index: {}]
  %s3 = inlined_call_operand.vmem [shape: f32[8,12,12], index: 3, kind: input, shape index: {}]
  %s4 = inlined_call_operand.vmem [shape: f32[8,12,8], index: 4, kind: output, shape index: {}]
  %s5 = sld [smem:[#allocation0]]
  $region49: #{transformer_forward.52} parent=0
    _
  %s7 = ssub.s32 1, %s5
  %s8 = scalar_select 0, %s7, %s5
  loop: start=0, step=1, limit=10
  $region2: #{transformer_forward.52} parent=0 // loop_pre_header
    _
  $region3: #{transformer_forward.52} parent=0 // loop_header
    %s10 = sphi 0, %s14
    %p11 = scmp.ge.s32.totalorder %s10, 10
    %s20 = sphi 0, %s22
    %s23 = sphi 0, %s20
    %s24 = sphi 0, %s23
    %s40 = sphi 0, %s24
    %s46 = sphi 0, %s48
    %s49 = sphi 0, %s46
    %s50 = sphi 0, %s49
    %s66 = sphi 0, %s50
    %s72 = sphi 0, %s74
    %s75 = sphi 0, %s72
    %s76 = sphi 0, %s75
    %s92 = sphi 0, %s76
    %s98 = sphi 0, %s100
    %s101 = sphi 0, %s98
    %s102 = sphi 0, %s101
    %s118 = sphi 0, %s102
    %s124 = sphi 0, %s126
    %s127 = sphi 0, %s124
    %s128 = sphi 0, %s127
    %s144 = sphi 0, %s128
  $region4: #{transformer_forward.52} parent=0 // loop_header_branch
    %13 = sbr.rel (%p11) target = $region8
  $region5: #{transformer_forward.52} parent=0 // loop_body
    %s15 = ssub.s32 %s10, 1
    %s16 = ssub.s32 %s10, 2
    %s17 = sadd.s32 %s10, 1
    %s18 = ssub.s32 %s10, %s17
    %p19 = scmp.eq.s32.totalorder %s18, 0
    %s21 = sadd.s32 %s20, 1
    %s22 = scalar_select %p19, %s20, %s21
    %p25 = pneg %p19
    %p26 = scmp.eq.s32.totalorder %s10, 7
    %p27 = por %p25, %p26
    %p28 = scmp.ne.s32.totalorder %s20, %s23
    %p29 = scmp.eq.s32.totalorder %s10, 0
    %p30 = por %p28, %p29
    %p31 = scmp.ne.s32.totalorder %s20, %s23
    %p32 = scmp.eq.s32.totalorder %s15, 7
    %p33 = por %p31, %p32
    %p34 = scmp.ne.s32.totalorder %s23, %s24
    %p35 = scmp.eq.s32.totalorder %s15, 0
    %p36 = por %p34, %p35
    %p37 = scmp.ne.s32.totalorder %s23, %s24
    %p38 = scmp.eq.s32.totalorder %s16, 7
    %p39 = por %p37, %p38
    %p41 = scmp.ne.s32.totalorder %s24, %s40
    %p42 = scmp.eq.s32.totalorder %s16, 0
    %p43 = por %p41, %p42
    %s44 = ssub.s32 %s10, %s17
    %p45 = scmp.eq.s32.totalorder %s44, 0
    %s47 = sadd.s32 %s46, 1
    %s48 = scalar_select %p45, %s46, %s47
    %p51 = pneg %p45
    %p52 = scmp.eq.s32.totalorder %s10, 7
    %p53 = por %p51, %p52
    %p54 = scmp.ne.s32.totalorder %s46, %s49
    %p55 = scmp.eq.s32.totalorder %s10, 0
    %p56 = por %p54, %p55
    %p57 = scmp.ne.s32.totalorder %s46, %s49
    %p58 = scmp.eq.s32.totalorder %s15, 7
    %p59 = por %p57, %p58
    %p60 = scmp.ne.s32.totalorder %s49, %s50
    %p61 = scmp.eq.s32.totalorder %s15, 0
    %p62 = por %p60, %p61
    %p63 = scmp.ne.s32.totalorder %s49, %s50
    %p64 = scmp.eq.s32.totalorder %s16, 7
    %p65 = por %p63, %p64
    %p67 = scmp.ne.s32.totalorder %s50, %s66
    %p68 = scmp.eq.s32.totalorder %s16, 0
    %p69 = por %p67, %p68
    %s70 = ssub.s32 %s10, %s17
    %p71 = scmp.eq.s32.totalorder %s70, 0
    %s73 = sadd.s32 %s72, 1
    %s74 = scalar_select %p71, %s72, %s73
    %p77 = pneg %p71
    %p78 = scmp.eq.s32.totalorder %s10, 7
    %p79 = por %p77, %p78
    %p80 = scmp.ne.s32.totalorder %s72, %s75
    %p81 = scmp.eq.s32.totalorder %s10, 0
    %p82 = por %p80, %p81
    %p83 = scmp.ne.s32.totalorder %s72, %s75
    %p84 = scmp.eq.s32.totalorder %s15, 7
    %p85 = por %p83, %p84
    %p86 = scmp.ne.s32.totalorder %s75, %s76
    %p87 = scmp.eq.s32.totalorder %s15, 0
    %p88 = por %p86, %p87
    %p89 = scmp.ne.s32.totalorder %s75, %s76
    %p90 = scmp.eq.s32.totalorder %s16, 7
    %p91 = por %p89, %p90
    %p93 = scmp.ne.s32.totalorder %s76, %s92
    %p94 = scmp.eq.s32.totalorder %s16, 0
    %p95 = por %p93, %p94
    %s96 = ssub.s32 %s10, %s17
    %p97 = scmp.eq.s32.totalorder %s96, 0
    %s99 = sadd.s32 %s98, 1
    %s100 = scalar_select %p97, %s98, %s99
    %p103 = pneg %p97
    %p104 = scmp.eq.s32.totalorder %s10, 7
    %p105 = por %p103, %p104
    %p106 = scmp.ne.s32.totalorder %s98, %s101
    %p107 = scmp.eq.s32.totalorder %s10, 0
    %p108 = por %p106, %p107
    %p109 = scmp.ne.s32.totalorder %s98, %s101
    %p110 = scmp.eq.s32.totalorder %s15, 7
    %p111 = por %p109, %p110
    %p112 = scmp.ne.s32.totalorder %s101, %s102
    %p113 = scmp.eq.s32.totalorder %s15, 0
    %p114 = por %p112, %p113
    %p115 = scmp.ne.s32.totalorder %s101, %s102
    %p116 = scmp.eq.s32.totalorder %s16, 7
    %p117 = por %p115, %p116
    %p119 = scmp.ne.s32.totalorder %s102, %s118
    %p120 = scmp.eq.s32.totalorder %s16, 0
    %p121 = por %p119, %p120
    %s122 = ssub.s32 %s10, %s17
    %p123 = scmp.eq.s32.totalorder %s122, 0
    %s125 = sadd.s32 %s124, 1
    %s126 = scalar_select %p123, %s124, %s125
    %p129 = pneg %p123
    %p130 = scmp.eq.s32.totalorder %s10, 7
    %p131 = por %p129, %p130
    %p132 = scmp.ne.s32.totalorder %s124, %s127
    %p133 = scmp.eq.s32.totalorder %s10, 0
    %p134 = por %p132, %p133
    %p135 = scmp.ne.s32.totalorder %s124, %s127
    %p136 = scmp.eq.s32.totalorder %s15, 7
    %p137 = por %p135, %p136
    %p138 = scmp.ne.s32.totalorder %s127, %s128
    %p139 = scmp.eq.s32.totalorder %s15, 0
    %p140 = por %p138, %p139
    %p141 = scmp.ne.s32.totalorder %s127, %s128
    %p142 = scmp.eq.s32.totalorder %s16, 7
    %p143 = por %p141, %p142
    %p145 = scmp.ne.s32.totalorder %s128, %s144
    %p146 = scmp.eq.s32.totalorder %s16, 0
    %p147 = por %p145, %p146
    %p148 = scmp.le.s32.totalorder 1, %s10
    %p149 = scmp.lt.s32.totalorder %s10, 9
    %p150 = pnand %p148, %p149
    %p151 = pneg %p150
    // Predicated region
    $region9: #{transformer_forward.52} parent=5 // pred_check
      _
    $region10: #{transformer_forward.52} parent=5 // pred_check_branch
      %153 = sbr.rel (%p150) target = $region12
    $region11: #{transformer_forward.52} parent=5 // pred_region
      %s154 = ssub.s32 %s10, 1
    $region12: #{transformer_forward.52} parent=5 // pred_fallthru
      _
    %p155 = scmp.lt.s32.totalorder %s10, 8
    // Predicated region
    $region13: #{transformer_forward.52} parent=5 // pred_check
      %p156 = pneg %p155
    $region14: #{transformer_forward.52} parent=5 // pred_check_branch
      %158 = sbr.rel (%p156) target = $region16
    $region15: #{transformer_forward.52} parent=5 // pred_region
      // Predicated region
      $region17: #{transformer_forward.52} parent=15 // pred_check
        %p159 = pneg %p30
      $region18: #{transformer_forward.52} parent=15 // pred_check_branch
        %161 = sbr.rel (%p159) target = $region20
      $region19: #{transformer_forward.52} parent=15 // pred_region
        %p162 = scmp.lt.s32.totalorder %s10, 7
        %s163 = scalar_select %p162, %s10, 7
        %s164 = smul.addr %s163, 2
        %s165 = smul.addr %s164, 8
        %s166 = scalar_lea.vmem %s0, %s165
      $region20: #{transformer_forward.52} parent=15 // pred_fallthru
        _
      // Predicated region
      $region21: #{transformer_forward.52} parent=15 // pred_check
        %p167 = pneg %p56
      $region22: #{transformer_forward.52} parent=15 // pred_check_branch
        %169 = sbr.rel (%p167) target = $region24
      $region23: #{transformer_forward.52} parent=15 // pred_region
        %p170 = scmp.lt.s32.totalorder %s10, 7
        %s171 = scalar_select %p170, %s10, 7
        %s172 = smul.addr %s171, 2
        %s173 = smul.addr %s172, 8
        %s174 = scalar_lea.vmem %s1, %s173
      $region24: #{transformer_forward.52} parent=15 // pred_fallthru
        _
      // Predicated region
      $region25: #{transformer_forward.52} parent=15 // pred_check
        %p175 = pneg %p82
      $region26: #{transformer_forward.52} parent=15 // pred_check_branch
        %177 = sbr.rel (%p175) target = $region28
      $region27: #{transformer_forward.52} parent=15 // pred_region
        %p178 = scmp.lt.s32.totalorder %s10, 7
        %s179 = scalar_select %p178, %s10, 7
        %s180 = smul.addr %s179, 2
        %s181 = smul.addr %s180, 8
        %s182 = scalar_lea.vmem %s2, %s181
      $region28: #{transformer_forward.52} parent=15 // pred_fallthru
        _
      // Predicated region
      $region29: #{transformer_forward.52} parent=15 // pred_check
        %p183 = pneg %p108
      $region30: #{transformer_forward.52} parent=15 // pred_check_branch
        %185 = sbr.rel (%p183) target = $region32
      $region31: #{transformer_forward.52} parent=15 // pred_region
        %p186 = scmp.lt.s32.totalorder %s10, 7
        %s187 = scalar_select %p186, %s10, 7
        %s188 = smul.addr %s187, 2
        %s189 = smul.addr %s188, 8
        %s190 = scalar_lea.vmem %s3, %s189
      $region32: #{transformer_forward.52} parent=15 // pred_fallthru
        _
    $region16: #{transformer_forward.52} parent=5 // pred_fallthru
      _
    %p191 = scmp.le.s32.totalorder 1, %s10
    %p192 = scmp.lt.s32.totalorder %s10, 9
    %p193 = pnand %p191, %p192
    %p194 = pneg %p193
    // Predicated region
    $region33: #{transformer_forward.52} parent=5 // pred_check
      _
    $region34: #{transformer_forward.52} parent=5 // pred_check_branch
      %196 = sbr.rel (%p193) target = $region36
    $region35: #{transformer_forward.52} parent=5 // pred_region
      %s197 = ssub.s32 %s10, 1
      %p198 = scmp.lt.s32.totalorder %s15, 7
      %s199 = scalar_select %p198, %s15, 7
      %s200 = smul.addr %s199, 2
      %s201 = smul.addr %s200, 8
      %s202 = scalar_lea.vmem %s0, %s201
      %p203 = pneg %p36
      %p204 = pneg %p33
      %p205 = scmp.lt.s32.totalorder %s15, 7
      %s206 = scalar_select %p205, %s15, 7
      %s207 = smul.addr %s206, 2
      %s208 = smul.addr %s207, 8
      %s209 = scalar_lea.vmem %s1, %s208
      %p210 = pneg %p62
      %p211 = pneg %p59
      %p212 = scmp.lt.s32.totalorder %s15, 7
      %s213 = scalar_select %p212, %s15, 7
      %s214 = smul.addr %s213, 2
      %s215 = smul.addr %s214, 8
      %s216 = scalar_lea.vmem %s2, %s215
      %p217 = pneg %p88
      %p218 = pneg %p85
      %p219 = scmp.lt.s32.totalorder %s15, 7
      %s220 = scalar_select %p219, %s15, 7
      %s221 = smul.addr %s220, 2
      %s222 = smul.addr %s221, 8
      %s223 = scalar_lea.vmem %s3, %s222
      %p224 = pneg %p114
      %p225 = pneg %p111
      %p226 = pneg %p140
      %p227 = pneg %p137
      %p228 = scmp.lt.s32.totalorder %s15, 7
      %s229 = scalar_select %p228, %s15, 7
      %s230 = smul.addr %s229, 2
      %s231 = smul.addr %s230, 8
      %s232 = scalar_lea.vmem %s4, %s231
      %p233 = scmp.lt.s32.totalorder %s15, 7
      %s234 = scalar_select %p233, %s15, 7
      %s235 = smul.addr %s234, 2
      %s236 = smul.addr %s235, 8
      %s237 = scalar_lea.vmem %s0, %s236
      %p238 = scmp.lt.s32.totalorder %s15, 7
      %s239 = scalar_select %p238, %s15, 7
      %s240 = smul.addr %s239, 2
      %s241 = smul.addr %s240, 8
      %s242 = scalar_lea.vmem %s1, %s241
      %p243 = scmp.lt.s32.totalorder %s15, 7
      %s244 = scalar_select %p243, %s15, 7
      %s245 = smul.addr %s244, 2
      %s246 = smul.addr %s245, 8
      %s247 = scalar_lea.vmem %s2, %s246
      %p248 = scmp.lt.s32.totalorder %s15, 7
      %s249 = scalar_select %p248, %s15, 7
      %s250 = smul.addr %s249, 2
      %s251 = smul.addr %s250, 8
      %s252 = scalar_lea.vmem %s3, %s251
      %p253 = scmp.lt.s32.totalorder %s15, 7
      %s254 = scalar_select %p253, %s15, 7
      %s255 = smul.addr %s254, 2
      %s256 = smul.addr %s255, 8
      %s257 = scalar_lea.vmem %s4, %s256
      %v258 = vld [vmem:[%s237] sm:$0xff]
      %v259 = vld [vmem:[%s237 + $0x8] sm:$0xf]
      %v260 = vld [vmem:[%s242] sm:$0xff]
      %v261 = vld [vmem:[%s242 + $0x8] sm:$0xf]
      %v262 = vld [vmem:[%s247] sm:$0xff]
      %v263 = vld [vmem:[%s247 + $0x8] sm:$0xf]
      %vm264 = vcmask 64512
      %v266 = vsel %vm264, %v258, 0
      %v269 = vsel %vm264, %v259, 0
      %v272 = vsel %vm264, %v260, 0
      %v275 = vsel %vm264, %v261, 0
      %277 = vmatprep.subr.mxu0 0.0
      %v278 = vand.u32 %v272, 4294901760
      %279 = vmatpush1.xpose.msra.mxu0 %v278
      %280 = vmatprep.subr.mxu0 0.0
      %v281 = vand.u32 %v275, 4294901760
      %282 = vmatpush1.xpose.msra.mxu0 %v281
      %283 = vmatprep.subr.mxu0 0.0
      %284 = vmatpush1.xpose.msra.mxu0 0.0
      %285 = vmatprep.subr.mxu0 0.0
      %286 = vmatpush1.xpose.msra.mxu0 0.0
      %287 = vmatprep.subr.mxu0 0.0
      %288 = vmatpush1.xpose.msra.mxu0 0.0
      %289 = vmatprep.subr.mxu0 0.0
      %290 = vmatpush1.xpose.msra.mxu0 0.0
      %291 = vmatprep.subr.mxu0 0.0
      %292 = vmatpush1.xpose.msra.mxu0 0.0
      %293 = vmatprep.subr.mxu0 0.0
      %294 = vmatpush1.xpose.msra.mxu0 0.0
      %295 = vmatprep.subr.mxu0 0.0
      %296 = vmatpush1.xpose.msra.mxu0 0.0
      %297 = vmatprep.subr.mxu0 0.0
      %298 = vmatpush1.xpose.msra.mxu0 0.0
      %299 = vmatprep.subr.mxu0 0.0
      %300 = vmatpush1.xpose.msra.mxu0 0.0
      %301 = vmatprep.subr.mxu0 0.0
      %302 = vmatpush1.xpose.msra.mxu0 0.0
      %303 = vmatprep.subr.mxu0 0.0
      %304 = vmatpush1.xpose.msra.mxu0 0.0
      %305 = vmatprep.subr.mxu0 0.0
      %306 = vmatpush1.xpose.msra.mxu0 0.0
      %307 = vmatprep.subr.mxu0 0.0
      %308 = vmatpush1.xpose.msra.mxu0 0.0
      %309 = vmatprep.subr.mxu0 0.0
      %310 = vmatpush1.xpose.msra.mxu0 0.0
      %311 = vmatprep.subr.mxu0 0.0
      %312 = vmatpush1.xpose.msra.mxu0 0.0
      %313 = vmatprep.subr.mxu0 0.0
      %314 = vmatpush1.xpose.msra.mxu0 0.0
      %315 = vmatprep.subr.mxu0 0.0
      %316 = vmatpush1.xpose.msra.mxu0 0.0
      %317 = vmatprep.subr.mxu0 0.0
      %318 = vmatpush1.xpose.msra.mxu0 0.0
      %319 = vmatprep.subr.mxu0 0.0
      %320 = vmatpush1.xpose.msra.mxu0 0.0
      %321 = vmatprep.subr.mxu0 0.0
      %322 = vmatpush1.xpose.msra.mxu0 0.0
      %323 = vmatprep.subr.mxu0 0.0
      %324 = vmatpush1.xpose.msra.mxu0 0.0
      %325 = vmatprep.subr.mxu0 0.0
      %326 = vmatpush1.xpose.msra.mxu0 0.0
      %327 = vmatprep.subr.mxu0 0.0
      %328 = vmatpush1.xpose.msra.mxu0 0.0
      %329 = vmatprep.subr.mxu0 0.0
      %330 = vmatpush1.xpose.msra.mxu0 0.0
      %331 = vmatprep.subr.mxu0 0.0
      %332 = vmatpush1.xpose.msra.mxu0 0.0
      %333 = vmatprep.subr.mxu0 0.0
      %334 = vmatpush1.xpose.msra.mxu0 0.0
      %335 = vmatprep.subr.mxu0 0.0
      %336 = vmatpush1.xpose.msra.mxu0 0.0
      %337 = vmatprep.subr.mxu0 0.0
      %338 = vmatpush1.xpose.msra.mxu0 0.0
      %339 = vmatprep.subr.mxu0 0.0
      %340 = vmatpush1.xpose.msra.mxu0 0.0
      %341 = vmatprep.subr.mxu0 0.0
      %342 = vmatpush1.xpose.msra.mxu0 0.0
      %343 = vmatprep.mubr.f32.mxu0 0.0
      %v344 = vand.u32 %v266, 4294901760
      %v345 = vsub.f32 %v266, %v344
      %v346 = vand.u32 %v345, 4294901760
      %v347 = vsub.f32 %v345, %v346
      %v348 = vand.u32 %v347, 4294901760
      %349 = vmatmul.mubr.f32.gmra.mrb[0].mxu0 %v348
      %v350 = vpop.f32.mrb[0].mxu0
      %v351 = vadd.f32 0.0, %v350
      %v352 = vpop.f32.mrb[0].mxu0
      %353 = vmatprep.mubr.f32.mxu0 0.0
      %v354 = vand.u32 %v269, 4294901760
      %v355 = vsub.f32 %v269, %v354
      %v356 = vand.u32 %v355, 4294901760
      %v357 = vsub.f32 %v355, %v356
      %v358 = vand.u32 %v357, 4294901760
      %359 = vmatmul.mubr.f32.gmra.mrb[0].mxu0 %v358
      %v360 = vpop.f32.mrb[0].mxu0
      %v361 = vadd.f32 0.0, %v360
      %v362 = vpop.f32.mrb[0].mxu0
      %363 = vdwg.mxu0
      %364 = vmatprep.subr.mxu0 0.0
      %v365 = vand.u32 %v272, 4294901760
      %v366 = vsub.f32 %v272, %v365
      %v367 = vand.u32 %v366, 4294901760
      %v368 = vsub.f32 %v366, %v367
      %v369 = vand.u32 %v368, 4294901760
      %370 = vmatpush1.xpose.msra.mxu0 %v369
      %371 = vmatprep.subr.mxu0 0.0
      %v372 = vand.u32 %v275, 4294901760
      %v373 = vsub.f32 %v275, %v372
      %v374 = vand.u32 %v373, 4294901760
      %v375 = vsub.f32 %v373, %v374
      %v376 = vand.u32 %v375, 4294901760
      %377 = vmatpush1.xpose.msra.mxu0 %v376
      %378 = vmatprep.subr.mxu0 0.0
      %379 = vmatpush1.xpose.msra.mxu0 0.0
      %380 = vmatprep.subr.mxu0 0.0
      %381 = vmatpush1.xpose.msra.mxu0 0.0
      %382 = vmatprep.subr.mxu0 0.0
      %383 = vmatpush1.xpose.msra.mxu0 0.0
      %384 = vmatprep.subr.mxu0 0.0
      %385 = vmatpush1.xpose.msra.mxu0 0.0
      %386 = vmatprep.subr.mxu0 0.0
      %387 = vmatpush1.xpose.msra.mxu0 0.0
      %388 = vmatprep.subr.mxu0 0.0
      %389 = vmatpush1.xpose.msra.mxu0 0.0
      %390 = vmatprep.subr.mxu0 0.0
      %391 = vmatpush1.xpose.msra.mxu0 0.0
      %392 = vmatprep.subr.mxu0 0.0
      %393 = vmatpush1.xpose.msra.mxu0 0.0
      %394 = vmatprep.subr.mxu0 0.0
      %395 = vmatpush1.xpose.msra.mxu0 0.0
      %396 = vmatprep.subr.mxu0 0.0
      %397 = vmatpush1.xpose.msra.mxu0 0.0
      %398 = vmatprep.subr.mxu0 0.0
      %399 = vmatpush1.xpose.msra.mxu0 0.0
      %400 = vmatprep.subr.mxu0 0.0
      %401 = vmatpush1.xpose.msra.mxu0 0.0
      %402 = vmatprep.subr.mxu0 0.0
      %403 = vmatpush1.xpose.msra.mxu0 0.0
      %404 = vmatprep.subr.mxu0 0.0
      %405 = vmatpush1.xpose.msra.mxu0 0.0
      %406 = vmatprep.subr.mxu0 0.0
      %407 = vmatpush1.xpose.msra.mxu0 0.0
      %408 = vmatprep.subr.mxu0 0.0
      %409 = vmatpush1.xpose.msra.mxu0 0.0
      %410 = vmatprep.subr.mxu0 0.0
      %411 = vmatpush1.xpose.msra.mxu0 0.0
      %412 = vmatprep.subr.mxu0 0.0
      %413 = vmatpush1.xpose.msra.mxu0 0.0
      %414 = vmatprep.subr.mxu0 0.0
      %415 = vmatpush1.xpose.msra.mxu0 0.0
      %416 = vmatprep.subr.mxu0 0.0
      %417 = vmatpush1.xpose.msra.mxu0 0.0
      %418 = vmatprep.subr.mxu0 0.0
      %419 = vmatpush1.xpose.msra.mxu0 0.0
      %420 = vmatprep.subr.mxu0 0.0
      %421 = vmatpush1.xpose.msra.mxu0 0.0
      %422 = vmatprep.subr.mxu0 0.0
      %423 = vmatpush1.xpose.msra.mxu0 0.0
      %424 = vmatprep.subr.mxu0 0.0
      %425 = vmatpush1.xpose.msra.mxu0 0.0
      %426 = vmatprep.subr.mxu0 0.0
      %427 = vmatpush1.xpose.msra.mxu0 0.0
      %428 = vmatprep.subr.mxu0 0.0
      %429 = vmatpush1.xpose.msra.mxu0 0.0
      %430 = vmatprep.subr.mxu0 0.0
      %431 = vmatpush1.xpose.msra.mxu0 0.0
      %432 = vmatprep.subr.mxu0 0.0
      %433 = vmatpush1.xpose.msra.mxu0 0.0
      %434 = vmatprep.subr.mxu0 0.0
      %435 = vmatpush1.xpose.msra.mxu0 0.0
      %436 = vmatprep.subr.mxu0 0.0
      %437 = vmatpush1.xpose.msra.mxu0 0.0
      %438 = vmatprep.mubr.f32.mxu0 0.0
      %v439 = vand.u32 %v266, 4294901760
      %440 = vmatmul.mubr.f32.gmra.mrb[0].mxu0 %v439
      %v441 = vpop.f32.mrb[0].mxu0
      %v442 = vadd.f32 %v351, %v441
      %v443 = vpop.f32.mrb[0].mxu0
      %444 = vmatprep.mubr.f32.mxu0 0.0
      %v445 = vand.u32 %v269, 4294901760
      %446 = vmatmul.mubr.f32.gmra.mrb[0].mxu0 %v445
      %v447 = vpop.f32.mrb[0].mxu0
      %v448 = vadd.f32 %v361, %v447
      %v449 = vpop.f32.mrb[0].mxu0
      %450 = vdwg.mxu0
      %451 = vmatprep.subr.mxu0 0.0
      %v452 = vand.u32 %v272, 4294901760
      %v453 = vsub.f32 %v272, %v452
      %454 = vmatpush1.xpose.msra.mxu0 %v453
      %455 = vmatprep.subr.mxu0 0.0
      %v456 = vand.u32 %v275, 4294901760
      %v457 = vsub.f32 %v275, %v456
      %458 = vmatpush1.xpose.msra.mxu0 %v457
      %459 = vmatprep.subr.mxu0 0.0
      %460 = vmatpush1.xpose.msra.mxu0 0.0
      %461 = vmatprep.subr.mxu0 0.0
      %462 = vmatpush1.xpose.msra.mxu0 0.0
      %463 = vmatprep.subr.mxu0 0.0
      %464 = vmatpush1.xpose.msra.mxu0 0.0
      %465 = vmatprep.subr.mxu0 0.0
      %466 = vmatpush1.xpose.msra.mxu0 0.0
      %467 = vmatprep.subr.mxu0 0.0
      %468 = vmatpush1.xpose.msra.mxu0 0.0
      %469 = vmatprep.subr.mxu0 0.0
      %470 = vmatpush1.xpose.msra.mxu0 0.0
      %471 = vmatprep.subr.mxu0 0.0
      %472 = vmatpush1.xpose.msra.mxu0 0.0
      %473 = vmatprep.subr.mxu0 0.0
      %474 = vmatpush1.xpose.msra.mxu0 0.0
      %475 = vmatprep.subr.mxu0 0.0
      %476 = vmatpush1.xpose.msra.mxu0 0.0
      %477 = vmatprep.subr.mxu0 0.0
      %478 = vmatpush1.xpose.msra.mxu0 0.0
      %479 = vmatprep.subr.mxu0 0.0
      %480 = vmatpush1.xpose.msra.mxu0 0.0
      %481 = vmatprep.subr.mxu0 0.0
      %482 = vmatpush1.xpose.msra.mxu0 0.0
      %483 = vmatprep.subr.mxu0 0.0
      %484 = vmatpush1.xpose.msra.mxu0 0.0
      %485 = vmatprep.subr.mxu0 0.0
      %486 = vmatpush1.xpose.msra.mxu0 0.0
      %487 = vmatprep.subr.mxu0 0.0
      %488 = vmatpush1.xpose.msra.mxu0 0.0
      %489 = vmatprep.subr.mxu0 0.0
      %490 = vmatpush1.xpose.msra.mxu0 0.0
      %491 = vmatprep.subr.mxu0 0.0
      %492 = vmatpush1.xpose.msra.mxu0 0.0
      %493 = vmatprep.subr.mxu0 0.0
      %494 = vmatpush1.xpose.msra.mxu0 0.0
      %495 = vmatprep.subr.mxu0 0.0
      %496 = vmatpush1.xpose.msra.mxu0 0.0
      %497 = vmatprep.subr.mxu0 0.0
      %498 = vmatpush1.xpose.msra.mxu0 0.0
      %499 = vmatprep.subr.mxu0 0.0
      %500 = vmatpush1.xpose.msra.mxu0 0.0
      %501 = vmatprep.subr.mxu0 0.0
      %502 = vmatpush1.xpose.msra.mxu0 0.0
      %503 = vmatprep.subr.mxu0 0.0
      %504 = vmatpush1.xpose.msra.mxu0 0.0
      %505 = vmatprep.subr.mxu0 0.0
      %506 = vmatpush1.xpose.msra.mxu0 0.0
      %507 = vmatprep.subr.mxu0 0.0
      %508 = vmatpush1.xpose.msra.mxu0 0.0
      %509 = vmatprep.subr.mxu0 0.0
      %510 = vmatpush1.xpose.msra.mxu0 0.0
      %511 = vmatprep.subr.mxu0 0.0
      %512 = vmatpush1.xpose.msra.mxu0 0.0
      %513 = vmatprep.subr.mxu0 0.0
      %514 = vmatpush1.xpose.msra.mxu0 0.0
      %515 = vmatprep.subr.mxu0 0.0
      %516 = vmatpush1.xpose.msra.mxu0 0.0
      %517 = vmatprep.subr.mxu0 0.0
      %518 = vmatpush1.xpose.msra.mxu0 0.0
      %519 = vmatprep.mubr.f32.mxu0 0.0
      %v520 = vand.u32 %v266, 4294901760
      %v521 = vsub.f32 %v266, %v520
      %522 = vmatmul.mubr.f32.gmra.mrb[0].mxu0 %v521
      %v523 = vpop.f32.mrb[0].mxu0
      %v524 = vadd.f32 %v442, %v523
      %v525 = vpop.f32.mrb[0].mxu0
      %526 = vmatprep.mubr.f32.mxu0 0.0
      %v527 = vand.u32 %v269, 4294901760
      %v528 = vsub.f32 %v269, %v527
      %529 = vmatmul.mubr.f32.gmra.mrb[0].mxu0 %v528
      %v530 = vpop.f32.mrb[0].mxu0
      %v531 = vadd.f32 %v448, %v530
      %v532 = vpop.f32.mrb[0].mxu0
      %533 = vdwg.mxu0
      %534 = vmatprep.subr.mxu0 0.0
      %v535 = vand.u32 %v272, 4294901760
      %536 = vmatpush1.xpose.msra.mxu0 %v535
      %537 = vmatprep.subr.mxu0 0.0
      %v538 = vand.u32 %v275, 4294901760
      %539 = vmatpush1.xpose.msra.mxu0 %v538
      %540 = vmatprep.subr.mxu0 0.0
      %541 = vmatpush1.xpose.msra.mxu0 0.0
      %542 = vmatprep.subr.mxu0 0.0
      %543 = vmatpush1.xpose.msra.mxu0 0.0
      %544 = vmatprep.subr.mxu0 0.0
      %545 = vmatpush1.xpose.msra.mxu0 0.0
      %546 = vmatprep.subr.mxu0 0.0
      %547 = vmatpush1.xpose.msra.mxu0 0.0
      %548 = vmatprep.subr.mxu0 0.0
      %549 = vmatpush1.xpose.msra.mxu0 0.0
      %550 = vmatprep.subr.mxu0 0.0
      %551 = vmatpush1.xpose.msra.mxu0 0.0
      %552 = vmatprep.subr.mxu0 0.0
      %553 = vmatpush1.xpose.msra.mxu0 0.0
      %554 = vmatprep.subr.mxu0 0.0
      %555 = vmatpush1.xpose.msra.mxu0 0.0
      %556 = vmatprep.subr.mxu0 0.0
      %557 = vmatpush1.xpose.msra.mxu0 0.0
      %558 = vmatprep.subr.mxu0 0.0
      %559 = vmatpush1.xpose.msra.mxu0 0.0
      %560 = vmatprep.subr.mxu0 0.0
      %561 = vmatpush1.xpose.msra.mxu0 0.0
      %562 = vmatprep.subr.mxu0 0.0
      %563 = vmatpush1.xpose.msra.mxu0 0.0
      %564 = vmatprep.subr.mxu0 0.0
      %565 = vmatpush1.xpose.msra.mxu0 0.0
      %566 = vmatprep.subr.mxu0 0.0
      %567 = vmatpush1.xpose.msra.mxu0 0.0
      %568 = vmatprep.subr.mxu0 0.0
      %569 = vmatpush1.xpose.msra.mxu0 0.0
      %570 = vmatprep.subr.mxu0 0.0
      %571 = vmatpush1.xpose.msra.mxu0 0.0
      %572 = vmatprep.subr.mxu0 0.0
      %573 = vmatpush1.xpose.msra.mxu0 0.0
      %574 = vmatprep.subr.mxu0 0.0
      %575 = vmatpush1.xpose.msra.mxu0 0.0
      %576 = vmatprep.subr.mxu0 0.0
      %577 = vmatpush1.xpose.msra.mxu0 0.0
      %578 = vmatprep.subr.mxu0 0.0
      %579 = vmatpush1.xpose.msra.mxu0 0.0
      %580 = vmatprep.subr.mxu0 0.0
      %581 = vmatpush1.xpose.msra.mxu0 0.0
      %582 = vmatprep.subr.mxu0 0.0
      %583 = vmatpush1.xpose.msra.mxu0 0.0
      %584 = vmatprep.subr.mxu0 0.0
      %585 = vmatpush1.xpose.msra.mxu0 0.0
      %586 = vmatprep.subr.mxu0 0.0
      %587 = vmatpush1.xpose.msra.mxu0 0.0
      %588 = vmatprep.subr.mxu0 0.0
      %589 = vmatpush1.xpose.msra.mxu0 0.0
      %590 = vmatprep.subr.mxu0 0.0
      %591 = vmatpush1.xpose.msra.mxu0 0.0
      %592 = vmatprep.subr.mxu0 0.0
      %593 = vmatpush1.xpose.msra.mxu0 0.0
      %594 = vmatprep.subr.mxu0 0.0
      %595 = vmatpush1.xpose.msra.mxu0 0.0
      %596 = vmatprep.subr.mxu0 0.0
      %597 = vmatpush1.xpose.msra.mxu0 0.0
      %598 = vmatprep.subr.mxu0 0.0
      %599 = vmatpush1.xpose.msra.mxu0 0.0
      %600 = vmatprep.mubr.f32.mxu0 0.0
      %v601 = vand.u32 %v266, 4294901760
      %v602 = vsub.f32 %v266, %v601
      %v603 = vand.u32 %v602, 4294901760
      %604 = vmatmul.mubr.f32.gmra.mrb[0].mxu0 %v603
      %v605 = vpop.f32.mrb[0].mxu0
      %v606 = vadd.f32 %v524, %v605
      %v607 = vpop.f32.mrb[0].mxu0
      %608 = vmatprep.mubr.f32.mxu0 0.0
      %v609 = vand.u32 %v269, 4294901760
      %v610 = vsub.f32 %v269, %v609
      %v611 = vand.u32 %v610, 4294901760
      %612 = vmatmul.mubr.f32.gmra.mrb[0].mxu0 %v611
      %v613 = vpop.f32.mrb[0].mxu0
      %v614 = vadd.f32 %v531, %v613
      %v615 = vpop.f32.mrb[0].mxu0
      %616 = vdwg.mxu0
      %617 = vmatprep.subr.mxu0 0.0
      %v618 = vand.u32 %v272, 4294901760
      %v619 = vsub.f32 %v272, %v618
      %v620 = vand.u32 %v619, 4294901760
      %621 = vmatpush1.xpose.msra.mxu0 %v620
      %622 = vmatprep.subr.mxu0 0.0
      %v623 = vand.u32 %v275, 4294901760
      %v624 = vsub.f32 %v275, %v623
      %v625 = vand.u32 %v624, 4294901760
      %626 = vmatpush1.xpose.msra.mxu0 %v625
      %627 = vmatprep.subr.mxu0 0.0
      %628 = vmatpush1.xpose.msra.mxu0 0.0
      %629 = vmatprep.subr.mxu0 0.0
      %630 = vmatpush1.xpose.msra.mxu0 0.0
      %631 = vmatprep.subr.mxu0 0.0
      %632 = vmatpush1.xpose.msra.mxu0 0.0
      %633 = vmatprep.subr.mxu0 0.0
      %634 = vmatpush1.xpose.msra.mxu0 0.0
      %635 = vmatprep.subr.mxu0 0.0
      %636 = vmatpush1.xpose.msra.mxu0 0.0
      %637 = vmatprep.subr.mxu0 0.0
      %638 = vmatpush1.xpose.msra.mxu0 0.0
      %639 = vmatprep.subr.mxu0 0.0
      %640 = vmatpush1.xpose.msra.mxu0 0.0
      %641 = vmatprep.subr.mxu0 0.0
      %642 = vmatpush1.xpose.msra.mxu0 0.0
      %643 = vmatprep.subr.mxu0 0.0
      %644 = vmatpush1.xpose.msra.mxu0 0.0
      %645 = vmatprep.subr.mxu0 0.0
      %646 = vmatpush1.xpose.msra.mxu0 0.0
      %647 = vmatprep.subr.mxu0 0.0
      %648 = vmatpush1.xpose.msra.mxu0 0.0
      %649 = vmatprep.subr.mxu0 0.0
      %650 = vmatpush1.xpose.msra.mxu0 0.0
      %651 = vmatprep.subr.mxu0 0.0
      %652 = vmatpush1.xpose.msra.mxu0 0.0
      %653 = vmatprep.subr.mxu0 0.0
      %654 = vmatpush1.xpose.msra.mxu0 0.0
      %655 = vmatprep.subr.mxu0 0.0
      %656 = vmatpush1.xpose.msra.mxu0 0.0
      %657 = vmatprep.subr.mxu0 0.0
      %658 = vmatpush1.xpose.msra.mxu0 0.0
      %659 = vmatprep.subr.mxu0 0.0
      %660 = vmatpush1.xpose.msra.mxu0 0.0
      %661 = vmatprep.subr.mxu0 0.0
      %662 = vmatpush1.xpose.msra.mxu0 0.0
      %663 = vmatprep.subr.mxu0 0.0
      %664 = vmatpush1.xpose.msra.mxu0 0.0
      %665 = vmatprep.subr.mxu0 0.0
      %666 = vmatpush1.xpose.msra.mxu0 0.0
      %667 = vmatprep.subr.mxu0 0.0
      %668 = vmatpush1.xpose.msra.mxu0 0.0
      %669 = vmatprep.subr.mxu0 0.0
      %670 = vmatpush1.xpose.msra.mxu0 0.0
      %671 = vmatprep.subr.mxu0 0.0
      %672 = vmatpush1.xpose.msra.mxu0 0.0
      %673 = vmatprep.subr.mxu0 0.0
      %674 = vmatpush1.xpose.msra.mxu0 0.0
      %675 = vmatprep.subr.mxu0 0.0
      %676 = vmatpush1.xpose.msra.mxu0 0.0
      %677 = vmatprep.subr.mxu0 0.0
      %678 = vmatpush1.xpose.msra.mxu0 0.0
      %679 = vmatprep.subr.mxu0 0.0
      %680 = vmatpush1.xpose.msra.mxu0 0.0
      %681 = vmatprep.subr.mxu0 0.0
      %682 = vmatpush1.xpose.msra.mxu0 0.0
      %683 = vmatprep.subr.mxu0 0.0
      %684 = vmatpush1.xpose.msra.mxu0 0.0
      %685 = vmatprep.subr.mxu0 0.0
      %686 = vmatpush1.xpose.msra.mxu0 0.0
      %687 = vmatprep.mubr.f32.mxu0 0.0
      %v688 = vand.u32 %v266, 4294901760
      %689 = vmatmul.mubr.f32.gmra.mrb[0].mxu0 %v688
      %v690 = vpop.f32.mrb[0].mxu0
      %v691 = vadd.f32 %v606, %v690
      %v692 = vpop.f32.mrb[0].mxu0
      %693 = vmatprep.mubr.f32.mxu0 0.0
      %v694 = vand.u32 %v269, 4294901760
      %695 = vmatmul.mubr.f32.gmra.mrb[0].mxu0 %v694
      %v696 = vpop.f32.mrb[0].mxu0
      %v697 = vadd.f32 %v614, %v696
      %v698 = vpop.f32.mrb[0].mxu0
      %699 = vdwg.mxu0
      %700 = vmatprep.subr.mxu0 0.0
      %v701 = vand.u32 %v272, 4294901760
      %702 = vmatpush1.xpose.msra.mxu0 %v701
      %703 = vmatprep.subr.mxu0 0.0
      %v704 = vand.u32 %v275, 4294901760
      %705 = vmatpush1.xpose.msra.mxu0 %v704
      %706 = vmatprep.subr.mxu0 0.0
      %707 = vmatpush1.xpose.msra.mxu0 0.0
      %708 = vmatprep.subr.mxu0 0.0
      %709 = vmatpush1.xpose.msra.mxu0 0.0
      %710 = vmatprep.subr.mxu0 0.0
      %711 = vmatpush1.xpose.msra.mxu0 0.0
      %712 = vmatprep.subr.mxu0 0.0
      %713 = vmatpush1.xpose.msra.mxu0 0.0
      %714 = vmatprep.subr.mxu0 0.0
      %715 = vmatpush1.xpose.msra.mxu0 0.0
      %716 = vmatprep.subr.mxu0 0.0
      %717 = vmatpush1.xpose.msra.mxu0 0.0
      %718 = vmatprep.subr.mxu0 0.0
      %719 = vmatpush1.xpose.msra.mxu0 0.0
      %720 = vmatprep.subr.mxu0 0.0
      %721 = vmatpush1.xpose.msra.mxu0 0.0
      %722 = vmatprep.subr.mxu0 0.0
      %723 = vmatpush1.xpose.msra.mxu0 0.0
      %724 = vmatprep.subr.mxu0 0.0
      %725 = vmatpush1.xpose.msra.mxu0 0.0
      %726 = vmatprep.subr.mxu0 0.0
      %727 = vmatpush1.xpose.msra.mxu0 0.0
      %728 = vmatprep.subr.mxu0 0.0
      %729 = vmatpush1.xpose.msra.mxu0 0.0
      %730 = vmatprep.subr.mxu0 0.0
      %731 = vmatpush1.xpose.msra.mxu0 0.0
      %732 = vmatprep.subr.mxu0 0.0
      %733 = vmatpush1.xpose.msra.mxu0 0.0
      %734 = vmatprep.subr.mxu0 0.0
      %735 = vmatpush1.xpose.msra.mxu0 0.0
      %736 = vmatprep.subr.mxu0 0.0
      %737 = vmatpush1.xpose.msra.mxu0 0.0
      %738 = vmatprep.subr.mxu0 0.0
      %739 = vmatpush1.xpose.msra.mxu0 0.0
      %740 = vmatprep.subr.mxu0 0.0
      %741 = vmatpush1.xpose.msra.mxu0 0.0
      %742 = vmatprep.subr.mxu0 0.0
      %743 = vmatpush1.xpose.msra.mxu0 0.0
      %744 = vmatprep.subr.mxu0 0.0
      %745 = vmatpush1.xpose.msra.mxu0 0.0
      %746 = vmatprep.subr.mxu0 0.0
      %747 = vmatpush1.xpose.msra.mxu0 0.0
      %748 = vmatprep.subr.mxu0 0.0
      %749 = vmatpush1.xpose.msra.mxu0 0.0
      %750 = vmatprep.subr.mxu0 0.0
      %751 = vmatpush1.xpose.msra.mxu0 0.0
      %752 = vmatprep.subr.mxu0 0.0
      %753 = vmatpush1.xpose.msra.mxu0 0.0
      %754 = vmatprep.subr.mxu0 0.0
      %755 = vmatpush1.xpose.msra.mxu0 0.0
      %756 = vmatprep.subr.mxu0 0.0
      %757 = vmatpush1.xpose.msra.mxu0 0.0
      %758 = vmatprep.subr.mxu0 0.0
      %759 = vmatpush1.xpose.msra.mxu0 0.0
      %760 = vmatprep.subr.mxu0 0.0
      %761 = vmatpush1.xpose.msra.mxu0 0.0
      %762 = vmatprep.subr.mxu0 0.0
      %763 = vmatpush1.xpose.msra.mxu0 0.0
      %764 = vmatprep.subr.mxu0 0.0
      %765 = vmatpush1.xpose.msra.mxu0 0.0
      %766 = vmatprep.mubr.f32.mxu0 0.0
      %v767 = vand.u32 %v266, 4294901760
      %768 = vmatmul.mubr.f32.gmra.mrb[0].mxu0 %v767
      %v769 = vpop.f32.mrb[0].mxu0
      %v770 = vadd.f32 %v691, %v769
      %v771 = vpop.f32.mrb[0].mxu0
      %772 = vmatprep.mubr.f32.mxu0 0.0
      %v773 = vand.u32 %v269, 4294901760
      %774 = vmatmul.mubr.f32.gmra.mrb[0].mxu0 %v773
      %v775 = vpop.f32.mrb[0].mxu0
      %v776 = vadd.f32 %v697, %v775
      %v777 = vpop.f32.mrb[0].mxu0
      %778 = vdwg.mxu0
      %v779 = vmul.f32 %v770, 0.35355338
      %v780 = vmul.f32 %v776, 0.35355338
      %v781 = vld [vmem:[%s252] sm:$0xff]
      %v782 = vld [vmem:[%s252 + $0x8] sm:$0xf]
      %v783 = vadd.f32 %v779, %v781
      %v784 = vadd.f32 %v780, %v782
      %vm785 = vcmask 97280
      %v786 = vsel %vm785, %v783, -inf
      %787 = vmax.xlane.f32.xlu0 %v786
      %v788 = vpop.xlane.xlu0 %787
      %vm789 = vcmask 93184
      %v790 = vsel %vm789, %v784, -inf
      %791 = vmax.xlane.f32.xlu0 %v790
      %v792 = vpop.xlane.xlu0 %791
      %v793 = vsub.f32 %v783, %v788
      %v794 = vsub.f32 %v784, %v792
      %v795 = vmul.f32 %v793, 1.442695
      %v796 = vpow.pop %v795
      %v797 = vmul.f32 %v794, 1.442695
      %v798 = vpow.pop %v797
      %v799 = vsel %vm785, %v796, 0.0
      %800 = vadd.xlane.f32.xlu0 %v799
      %v801 = vpop.xlane.xlu0 %800
      %v802 = vsel %vm789, %v798, 0.0
      %803 = vadd.xlane.f32.xlu0 %v802
      %v804 = vpop.xlane.xlu0 %803
      %v805 = vrcp.pop %v801
      %v806 = vmul.f32 %v796, %v805
      %v807 = vrcp.pop %v804
      %v808 = vmul.f32 %v798, %v807
      %v810 = vsel %vm785, %v806, 0
      %v813 = vsel %vm785, %v808, 0
      %vm815 = vcmask 1043456
      %v817 = vsel %vm815, %v263, 0
      %819 = vmatprep.subr.mxu0 0.0
      %v820 = vand.u32 %v262, 4294901760
      %821 = vmatpush1.msra.mxu0 %v820
      %822 = vmatprep.subr.mxu0 0.0
      %v823 = vand.u32 %v817, 4294901760
      %824 = vmatpush1.msra.mxu0 %v823
      %825 = vmatprep.subr.mxu0 0.0
      %826 = vmatpush1.msra.mxu0 0.0
      %827 = vmatprep.subr.mxu0 0.0
      %828 = vmatpush1.msra.mxu0 0.0
      %829 = vmatprep.subr.mxu0 0.0
      %830 = vmatpush1.msra.mxu0 0.0
      %831 = vmatprep.subr.mxu0 0.0
      %832 = vmatpush1.msra.mxu0 0.0
      %833 = vmatprep.subr.mxu0 0.0
      %834 = vmatpush1.msra.mxu0 0.0
      %835 = vmatprep.subr.mxu0 0.0
      %836 = vmatpush1.msra.mxu0 0.0
      %837 = vmatprep.subr.mxu0 0.0
      %838 = vmatpush1.msra.mxu0 0.0
      %839 = vmatprep.subr.mxu0 0.0
      %840 = vmatpush1.msra.mxu0 0.0
      %841 = vmatprep.subr.mxu0 0.0
      %842 = vmatpush1.msra.mxu0 0.0
      %843 = vmatprep.subr.mxu0 0.0
      %844 = vmatpush1.msra.mxu0 0.0
      %845 = vmatprep.subr.mxu0 0.0
      %846 = vmatpush1.msra.mxu0 0.0
      %847 = vmatprep.subr.mxu0 0.0
      %848 = vmatpush1.msra.mxu0 0.0
      %849 = vmatprep.subr.mxu0 0.0
      %850 = vmatpush1.msra.mxu0 0.0
      %851 = vmatprep.subr.mxu0 0.0
      %852 = vmatpush1.msra.mxu0 0.0
      %853 = vmatprep.subr.mxu0 0.0
      %854 = vmatpush1.msra.mxu0 0.0
      %855 = vmatprep.subr.mxu0 0.0
      %856 = vmatpush1.msra.mxu0 0.0
      %857 = vmatprep.subr.mxu0 0.0
      %858 = vmatpush1.msra.mxu0 0.0
      %859 = vmatprep.subr.mxu0 0.0
      %860 = vmatpush1.msra.mxu0 0.0
      %861 = vmatprep.subr.mxu0 0.0
      %862 = vmatpush1.msra.mxu0 0.0
      %863 = vmatprep.subr.mxu0 0.0
      %864 = vmatpush1.msra.mxu0 0.0
      %865 = vmatprep.subr.mxu0 0.0
      %866 = vmatpush1.msra.mxu0 0.0
      %867 = vmatprep.subr.mxu0 0.0
      %868 = vmatpush1.msra.mxu0 0.0
      %869 = vmatprep.subr.mxu0 0.0
      %870 = vmatpush1.msra.mxu0 0.0
      %871 = vmatprep.subr.mxu0 0.0
      %872 = vmatpush1.msra.mxu0 0.0
      %873 = vmatprep.subr.mxu0 0.0
      %874 = vmatpush1.msra.mxu0 0.0
      %875 = vmatprep.subr.mxu0 0.0
      %876 = vmatpush1.msra.mxu0 0.0
      %877 = vmatprep.subr.mxu0 0.0
      %878 = vmatpush1.msra.mxu0 0.0
      %879 = vmatprep.subr.mxu0 0.0
      %880 = vmatpush1.msra.mxu0 0.0
      %881 = vmatprep.subr.mxu0 0.0
      %882 = vmatpush1.msra.mxu0 0.0
      %883 = vmatprep.subr.mxu0 0.0
      %884 = vmatpush1.msra.mxu0 0.0
      %885 = vmatprep.mubr.f32.mxu0 0.0
      %v886 = vand.u32 %v810, 4294901760
      %v887 = vsub.f32 %v810, %v886
      %v888 = vand.u32 %v887, 4294901760
      %v889 = vsub.f32 %v887, %v888
      %v890 = vand.u32 %v889, 4294901760
      %891 = vmatmul.mubr.f32.gmra.mrb[0].mxu0 %v890
      %v892 = vpop.f32.mrb[0].mxu0
      %v893 = vadd.f32 0.0, %v892
      %v894 = vpop.f32.mrb[0].mxu0
      %895 = vmatprep.mubr.f32.mxu0 0.0
      %v896 = vand.u32 %v813, 4294901760
      %v897 = vsub.f32 %v813, %v896
      %v898 = vand.u32 %v897, 4294901760
      %v899 = vsub.f32 %v897, %v898
      %v900 = vand.u32 %v899, 4294901760
      %901 = vmatmul.mubr.f32.gmra.mrb[0].mxu0 %v900
      %v902 = vpop.f32.mrb[0].mxu0
      %v903 = vadd.f32 0.0, %v902
      %v904 = vpop.f32.mrb[0].mxu0
      %905 = vdwg.mxu0
      %906 = vmatprep.subr.mxu0 0.0
      %v907 = vand.u32 %v262, 4294901760
      %v908 = vsub.f32 %v262, %v907
      %v909 = vand.u32 %v908, 4294901760
      %v910 = vsub.f32 %v908, %v909
      %v911 = vand.u32 %v910, 4294901760
      %912 = vmatpush1.msra.mxu0 %v911
      %913 = vmatprep.subr.mxu0 0.0
      %v914 = vand.u32 %v817, 4294901760
      %v915 = vsub.f32 %v817, %v914
      %v916 = vand.u32 %v915, 4294901760
      %v917 = vsub.f32 %v915, %v916
      %v918 = vand.u32 %v917, 4294901760
      %919 = vmatpush1.msra.mxu0 %v918
      %920 = vmatprep.subr.mxu0 0.0
      %921 = vmatpush1.msra.mxu0 0.0
      %922 = vmatprep.subr.mxu0 0.0
      %923 = vmatpush1.msra.mxu0 0.0
      %924 = vmatprep.subr.mxu0 0.0
      %925 = vmatpush1.msra.mxu0 0.0
      %926 = vmatprep.subr.mxu0 0.0
      %927 = vmatpush1.msra.mxu0 0.0
      %928 = vmatprep.subr.mxu0 0.0
      %929 = vmatpush1.msra.mxu0 0.0
      %930 = vmatprep.subr.mxu0 0.0
      %931 = vmatpush1.msra.mxu0 0.0
      %932 = vmatprep.subr.mxu0 0.0
      %933 = vmatpush1.msra.mxu0 0.0
      %934 = vmatprep.subr.mxu0 0.0
      %935 = vmatpush1.msra.mxu0 0.0
      %936 = vmatprep.subr.mxu0 0.0
      %937 = vmatpush1.msra.mxu0 0.0
      %938 = vmatprep.subr.mxu0 0.0
      %939 = vmatpush1.msra.mxu0 0.0
      %940 = vmatprep.subr.mxu0 0.0
      %941 = vmatpush1.msra.mxu0 0.0
      %942 = vmatprep.subr.mxu0 0.0
      %943 = vmatpush1.msra.mxu0 0.0
      %944 = vmatprep.subr.mxu0 0.0
      %945 = vmatpush1.msra.mxu0 0.0
      %946 = vmatprep.subr.mxu0 0.0
      %947 = vmatpush1.msra.mxu0 0.0
      %948 = vmatprep.subr.mxu0 0.0
      %949 = vmatpush1.msra.mxu0 0.0
      %950 = vmatprep.subr.mxu0 0.0
      %951 = vmatpush1.msra.mxu0 0.0
      %952 = vmatprep.subr.mxu0 0.0
      %953 = vmatpush1.msra.mxu0 0.0
      %954 = vmatprep.subr.mxu0 0.0
      %955 = vmatpush1.msra.mxu0 0.0
      %956 = vmatprep.subr.mxu0 0.0
      %957 = vmatpush1.msra.mxu0 0.0
      %958 = vmatprep.subr.mxu0 0.0
      %959 = vmatpush1.msra.mxu0 0.0
      %960 = vmatprep.subr.mxu0 0.0
      %961 = vmatpush1.msra.mxu0 0.0
      %962 = vmatprep.subr.mxu0 0.0
      %963 = vmatpush1.msra.mxu0 0.0
      %964 = vmatprep.subr.mxu0 0.0
      %965 = vmatpush1.msra.mxu0 0.0
      %966 = vmatprep.subr.mxu0 0.0
      %967 = vmatpush1.msra.mxu0 0.0
      %968 = vmatprep.subr.mxu0 0.0
      %969 = vmatpush1.msra.mxu0 0.0
      %970 = vmatprep.subr.mxu0 0.0
      %971 = vmatpush1.msra.mxu0 0.0
      %972 = vmatprep.subr.mxu0 0.0
      %973 = vmatpush1.msra.mxu0 0.0
      %974 = vmatprep.subr.mxu0 0.0
      %975 = vmatpush1.msra.mxu0 0.0
      %976 = vmatprep.subr.mxu0 0.0
      %977 = vmatpush1.msra.mxu0 0.0
      %978 = vmatprep.subr.mxu0 0.0
      %979 = vmatpush1.msra.mxu0 0.0
      %980 = vmatprep.mubr.f32.mxu0 0.0
      %v981 = vand.u32 %v810, 4294901760
      %982 = vmatmul.mubr.f32.gmra.mrb[0].mxu0 %v981
      %v983 = vpop.f32.mrb[0].mxu0
      %v984 = vadd.f32 %v893, %v983
      %v985 = vpop.f32.mrb[0].mxu0
      %986 = vmatprep.mubr.f32.mxu0 0.0
      %v987 = vand.u32 %v813, 4294901760
      %988 = vmatmul.mubr.f32.gmra.mrb[0].mxu0 %v987
      %v989 = vpop.f32.mrb[0].mxu0
      %v990 = vadd.f32 %v903, %v989
      %v991 = vpop.f32.mrb[0].mxu0
      %992 = vdwg.mxu0
      %993 = vmatprep.subr.mxu0 0.0
      %v994 = vand.u32 %v262, 4294901760
      %v995 = vsub.f32 %v262, %v994
      %996 = vmatpush1.msra.mxu0 %v995
      %997 = vmatprep.subr.mxu0 0.0
      %v998 = vand.u32 %v817, 4294901760
      %v999 = vsub.f32 %v817, %v998
      %1000 = vmatpush1.msra.mxu0 %v999
      %1001 = vmatprep.subr.mxu0 0.0
      %1002 = vmatpush1.msra.mxu0 0.0
      %1003 = vmatprep.subr.mxu0 0.0
      %1004 = vmatpush1.msra.mxu0 0.0
      %1005 = vmatprep.subr.mxu0 0.0
      %1006 = vmatpush1.msra.mxu0 0.0
      %1007 = vmatprep.subr.mxu0 0.0
      %1008 = vmatpush1.msra.mxu0 0.0
      %1009 = vmatprep.subr.mxu0 0.0
      %1010 = vmatpush1.msra.mxu0 0.0
      %1011 = vmatprep.subr.mxu0 0.0
      %1012 = vmatpush1.msra.mxu0 0.0
      %1013 = vmatprep.subr.mxu0 0.0
      %1014 = vmatpush1.msra.mxu0 0.0
      %1015 = vmatprep.subr.mxu0 0.0
      %1016 = vmatpush1.msra.mxu0 0.0
      %1017 = vmatprep.subr.mxu0 0.0
      %1018 = vmatpush1.msra.mxu0 0.0
      %1019 = vmatprep.subr.mxu0 0.0
      %1020 = vmatpush1.msra.mxu0 0.0
      %1021 = vmatprep.subr.mxu0 0.0
      %1022 = vmatpush1.msra.mxu0 0.0
      %1023 = vmatprep.subr.mxu0 0.0
      %1024 = vmatpush1.msra.mxu0 0.0
      %1025 = vmatprep.subr.mxu0 0.0
      %1026 = vmatpush1.msra.mxu0 0.0
      %1027 = vmatprep.subr.mxu0 0.0
      %1028 = vmatpush1.msra.mxu0 0.0
      %1029 = vmatprep.subr.mxu0 0.0
      %1030 = vmatpush1.msra.mxu0 0.0
      %1031 = vmatprep.subr.mxu0 0.0
      %1032 = vmatpush1.msra.mxu0 0.0
      %1033 = vmatprep.subr.mxu0 0.0
      %1034 = vmatpush1.msra.mxu0 0.0
      %1035 = vmatprep.subr.mxu0 0.0
      %1036 = vmatpush1.msra.mxu0 0.0
      %1037 = vmatprep.subr.mxu0 0.0
      %1038 = vmatpush1.msra.mxu0 0.0
      %1039 = vmatprep.subr.mxu0 0.0
      %1040 = vmatpush1.msra.mxu0 0.0
      %1041 = vmatprep.subr.mxu0 0.0
      %1042 = vmatpush1.msra.mxu0 0.0
      %1043 = vmatprep.subr.mxu0 0.0
      %1044 = vmatpush1.msra.mxu0 0.0
      %1045 = vmatprep.subr.mxu0 0.0
      %1046 = vmatpush1.msra.mxu0 0.0
      %1047 = vmatprep.subr.mxu0 0.0
      %1048 = vmatpush1.msra.mxu0 0.0
      %1049 = vmatprep.subr.mxu0 0.0
      %1050 = vmatpush1.msra.mxu0 0.0
      %1051 = vmatprep.subr.mxu0 0.0
      %1052 = vmatpush1.msra.mxu0 0.0
      %1053 = vmatprep.subr.mxu0 0.0
      %1054 = vmatpush1.msra.mxu0 0.0
      %1055 = vmatprep.subr.mxu0 0.0
      %1056 = vmatpush1.msra.mxu0 0.0
      %1057 = vmatprep.subr.mxu0 0.0
      %1058 = vmatpush1.msra.mxu0 0.0
      %1059 = vmatprep.subr.mxu0 0.0
      %1060 = vmatpush1.msra.mxu0 0.0
      %1061 = vmatprep.mubr.f32.mxu0 0.0
      %v1062 = vand.u32 %v810, 4294901760
      %v1063 = vsub.f32 %v810, %v1062
      %1064 = vmatmul.mubr.f32.gmra.mrb[0].mxu0 %v1063
      %v1065 = vpop.f32.mrb[0].mxu0
      %v1066 = vadd.f32 %v984, %v1065
      %v1067 = vpop.f32.mrb[0].mxu0
      %1068 = vmatprep.mubr.f32.mxu0 0.0
      %v1069 = vand.u32 %v813, 4294901760
      %v1070 = vsub.f32 %v813, %v1069
      %1071 = vmatmul.mubr.f32.gmra.mrb[0].mxu0 %v1070
      %v1072 = vpop.f32.mrb[0].mxu0
      %v1073 = vadd.f32 %v990, %v1072
      %v1074 = vpop.f32.mrb[0].mxu0
      %1075 = vdwg.mxu0
      %1076 = vmatprep.subr.mxu0 0.0
      %v1077 = vand.u32 %v262, 4294901760
      %1078 = vmatpush1.msra.mxu0 %v1077
      %1079 = vmatprep.subr.mxu0 0.0
      %v1080 = vand.u32 %v817, 4294901760
      %1081 = vmatpush1.msra.mxu0 %v1080
      %1082 = vmatprep.subr.mxu0 0.0
      %1083 = vmatpush1.msra.mxu0 0.0
      %1084 = vmatprep.subr.mxu0 0.0
      %1085 = vmatpush1.msra.mxu0 0.0
      %1086 = vmatprep.subr.mxu0 0.0
      %1087 = vmatpush1.msra.mxu0 0.0
      %1088 = vmatprep.subr.mxu0 0.0
      %1089 = vmatpush1.msra.mxu0 0.0
      %1090 = vmatprep.subr.mxu0 0.0
      %1091 = vmatpush1.msra.mxu0 0.0
      %1092 = vmatprep.subr.mxu0 0.0
      %1093 = vmatpush1.msra.mxu0 0.0
      %1094 = vmatprep.subr.mxu0 0.0
      %1095 = vmatpush1.msra.mxu0 0.0
      %1096 = vmatprep.subr.mxu0 0.0
      %1097 = vmatpush1.msra.mxu0 0.0
      %1098 = vmatprep.subr.mxu0 0.0
      %1099 = vmatpush1.msra.mxu0 0.0
      %1100 = vmatprep.subr.mxu0 0.0
      %1101 = vmatpush1.msra.mxu0 0.0
      %1102 = vmatprep.subr.mxu0 0.0
      %1103 = vmatpush1.msra.mxu0 0.0
      %1104 = vmatprep.subr.mxu0 0.0
      %1105 = vmatpush1.msra.mxu0 0.0
      %1106 = vmatprep.subr.mxu0 0.0
      %1107 = vmatpush1.msra.mxu0 0.0
      %1108 = vmatprep.subr.mxu0 0.0
      %1109 = vmatpush1.msra.mxu0 0.0
      %1110 = vmatprep.subr.mxu0 0.0
      %1111 = vmatpush1.msra.mxu0 0.0
      %1112 = vmatprep.subr.mxu0 0.0
      %1113 = vmatpush1.msra.mxu0 0.0
      %1114 = vmatprep.subr.mxu0 0.0
      %1115 = vmatpush1.msra.mxu0 0.0
      %1116 = vmatprep.subr.mxu0 0.0
      %1117 = vmatpush1.msra.mxu0 0.0
      %1118 = vmatprep.subr.mxu0 0.0
      %1119 = vmatpush1.msra.mxu0 0.0
      %1120 = vmatprep.subr.mxu0 0.0
      %1121 = vmatpush1.msra.mxu0 0.0
      %1122 = vmatprep.subr.mxu0 0.0
      %1123 = vmatpush1.msra.mxu0 0.0
      %1124 = vmatprep.subr.mxu0 0.0
      %1125 = vmatpush1.msra.mxu0 0.0
      %1126 = vmatprep.subr.mxu0 0.0
      %1127 = vmatpush1.msra.mxu0 0.0
      %1128 = vmatprep.subr.mxu0 0.0
      %1129 = vmatpush1.msra.mxu0 0.0
      %1130 = vmatprep.subr.mxu0 0.0
      %1131 = vmatpush1.msra.mxu0 0.0
      %1132 = vmatprep.subr.mxu0 0.0
      %1133 = vmatpush1.msra.mxu0 0.0
      %1134 = vmatprep.subr.mxu0 0.0
      %1135 = vmatpush1.msra.mxu0 0.0
      %1136 = vmatprep.subr.mxu0 0.0
      %1137 = vmatpush1.msra.mxu0 0.0
      %1138 = vmatprep.subr.mxu0 0.0
      %1139 = vmatpush1.msra.mxu0 0.0
      %1140 = vmatprep.subr.mxu0 0.0
      %1141 = vmatpush1.msra.mxu0 0.0
      %1142 = vmatprep.mubr.f32.mxu0 0.0
      %v1143 = vand.u32 %v810, 4294901760
      %v1144 = vsub.f32 %v810, %v1143
      %v1145 = vand.u32 %v1144, 4294901760
      %1146 = vmatmul.mubr.f32.gmra.mrb[0].mxu0 %v1145
      %v1147 = vpop.f32.mrb[0].mxu0
      %v1148 = vadd.f32 %v1066, %v1147
      %v1149 = vpop.f32.mrb[0].mxu0
      %1150 = vmatprep.mubr.f32.mxu0 0.0
      %v1151 = vand.u32 %v813, 4294901760
      %v1152 = vsub.f32 %v813, %v1151
      %v1153 = vand.u32 %v1152, 4294901760
      %1154 = vmatmul.mubr.f32.gmra.mrb[0].mxu0 %v1153
      %v1155 = vpop.f32.mrb[0].mxu0
      %v1156 = vadd.f32 %v1073, %v1155
      %v1157 = vpop.f32.mrb[0].mxu0
      %1158 = vdwg.mxu0
      %1159 = vmatprep.subr.mxu0 0.0
      %v1160 = vand.u32 %v262, 4294901760
      %v1161 = vsub.f32 %v262, %v1160
      %v1162 = vand.u32 %v1161, 4294901760
      %1163 = vmatpush1.msra.mxu0 %v1162
      %1164 = vmatprep.subr.mxu0 0.0
      %v1165 = vand.u32 %v817, 4294901760
      %v1166 = vsub.f32 %v817, %v1165
      %v1167 = vand.u32 %v1166, 4294901760
      %1168 = vmatpush1.msra.mxu0 %v1167
      %1169 = vmatprep.subr.mxu0 0.0
      %1170 = vmatpush1.msra.mxu0 0.0
      %1171 = vmatprep.subr.mxu0 0.0
      %1172 = vmatpush1.msra.mxu0 0.0
      %1173 = vmatprep.subr.mxu0 0.0
      %1174 = vmatpush1.msra.mxu0 0.0
      %1175 = vmatprep.subr.mxu0 0.0
      %1176 = vmatpush1.msra.mxu0 0.0
      %1177 = vmatprep.subr.mxu0 0.0
      %1178 = vmatpush1.msra.mxu0 0.0
      %1179 = vmatprep.subr.mxu0 0.0
      %1180 = vmatpush1.msra.mxu0 0.0
      %1181 = vmatprep.subr.mxu0 0.0
      %1182 = vmatpush1.msra.mxu0 0.0
      %1183 = vmatprep.subr.mxu0 0.0
      %1184 = vmatpush1.msra.mxu0 0.0
      %1185 = vmatprep.subr.mxu0 0.0
      %1186 = vmatpush1.msra.mxu0 0.0
      %1187 = vmatprep.subr.mxu0 0.0
      %1188 = vmatpush1.msra.mxu0 0.0
      %1189 = vmatprep.subr.mxu0 0.0
      %1190 = vmatpush1.msra.mxu0 0.0
      %1191 = vmatprep.subr.mxu0 0.0
      %1192 = vmatpush1.msra.mxu0 0.0
      %1193 = vmatprep.subr.mxu0 0.0
      %1194 = vmatpush1.msra.mxu0 0.0
      %1195 = vmatprep.subr.mxu0 0.0
      %1196 = vmatpush1.msra.mxu0 0.0
      %1197 = vmatprep.subr.mxu0 0.0
      %1198 = vmatpush1.msra.mxu0 0.0
      %1199 = vmatprep.subr.mxu0 0.0
      %1200 = vmatpush1.msra.mxu0 0.0
      %1201 = vmatprep.subr.mxu0 0.0
      %1202 = vmatpush1.msra.mxu0 0.0
      %1203 = vmatprep.subr.mxu0 0.0
      %1204 = vmatpush1.msra.mxu0 0.0
      %1205 = vmatprep.subr.mxu0 0.0
      %1206 = vmatpush1.msra.mxu0 0.0
      %1207 = vmatprep.subr.mxu0 0.0
      %1208 = vmatpush1.msra.mxu0 0.0
      %1209 = vmatprep.subr.mxu0 0.0
      %1210 = vmatpush1.msra.mxu0 0.0
      %1211 = vmatprep.subr.mxu0 0.0
      %1212 = vmatpush1.msra.mxu0 0.0
      %1213 = vmatprep.subr.mxu0 0.0
      %1214 = vmatpush1.msra.mxu0 0.0
      %1215 = vmatprep.subr.mxu0 0.0
      %1216 = vmatpush1.msra.mxu0 0.0
      %1217 = vmatprep.subr.mxu0 0.0
      %1218 = vmatpush1.msra.mxu0 0.0
      %1219 = vmatprep.subr.mxu0 0.0
      %1220 = vmatpush1.msra.mxu0 0.0
      %1221 = vmatprep.subr.mxu0 0.0
      %1222 = vmatpush1.msra.mxu0 0.0
      %1223 = vmatprep.subr.mxu0 0.0
      %1224 = vmatpush1.msra.mxu0 0.0
      %1225 = vmatprep.subr.mxu0 0.0
      %1226 = vmatpush1.msra.mxu0 0.0
      %1227 = vmatprep.subr.mxu0 0.0
      %1228 = vmatpush1.msra.mxu0 0.0
      %1229 = vmatprep.mubr.f32.mxu0 0.0
      %v1230 = vand.u32 %v810, 4294901760
      %1231 = vmatmul.mubr.f32.gmra.mrb[0].mxu0 %v1230
      %v1232 = vpop.f32.mrb[0].mxu0
      %v1233 = vadd.f32 %v1148, %v1232
      %v1234 = vpop.f32.mrb[0].mxu0
      %1235 = vmatprep.mubr.f32.mxu0 0.0
      %v1236 = vand.u32 %v813, 4294901760
      %1237 = vmatmul.mubr.f32.gmra.mrb[0].mxu0 %v1236
      %v1238 = vpop.f32.mrb[0].mxu0
      %v1239 = vadd.f32 %v1156, %v1238
      %v1240 = vpop.f32.mrb[0].mxu0
      %1241 = vdwg.mxu0
      %1242 = vmatprep.subr.mxu0 0.0
      %v1243 = vand.u32 %v262, 4294901760
      %1244 = vmatpush1.msra.mxu0 %v1243
      %1245 = vmatprep.subr.mxu0 0.0
      %v1246 = vand.u32 %v817, 4294901760
      %1247 = vmatpush1.msra.mxu0 %v1246
      %1248 = vmatprep.subr.mxu0 0.0
      %1249 = vmatpush1.msra.mxu0 0.0
      %1250 = vmatprep.subr.mxu0 0.0
      %1251 = vmatpush1.msra.mxu0 0.0
      %1252 = vmatprep.subr.mxu0 0.0
      %1253 = vmatpush1.msra.mxu0 0.0
      %1254 = vmatprep.subr.mxu0 0.0
      %1255 = vmatpush1.msra.mxu0 0.0
      %1256 = vmatprep.subr.mxu0 0.0
      %1257 = vmatpush1.msra.mxu0 0.0
      %1258 = vmatprep.subr.mxu0 0.0
      %1259 = vmatpush1.msra.mxu0 0.0
      %1260 = vmatprep.subr.mxu0 0.0
      %1261 = vmatpush1.msra.mxu0 0.0
      %1262 = vmatprep.subr.mxu0 0.0
      %1263 = vmatpush1.msra.mxu0 0.0
      %1264 = vmatprep.subr.mxu0 0.0
      %1265 = vmatpush1.msra.mxu0 0.0
      %1266 = vmatprep.subr.mxu0 0.0
      %1267 = vmatpush1.msra.mxu0 0.0
      %1268 = vmatprep.subr.mxu0 0.0
      %1269 = vmatpush1.msra.mxu0 0.0
      %1270 = vmatprep.subr.mxu0 0.0
      %1271 = vmatpush1.msra.mxu0 0.0
      %1272 = vmatprep.subr.mxu0 0.0
      %1273 = vmatpush1.msra.mxu0 0.0
      %1274 = vmatprep.subr.mxu0 0.0
      %1275 = vmatpush1.msra.mxu0 0.0
      %1276 = vmatprep.subr.mxu0 0.0
      %1277 = vmatpush1.msra.mxu0 0.0
      %1278 = vmatprep.subr.mxu0 0.0
      %1279 = vmatpush1.msra.mxu0 0.0
      %1280 = vmatprep.subr.mxu0 0.0
      %1281 = vmatpush1.msra.mxu0 0.0
      %1282 = vmatprep.subr.mxu0 0.0
      %1283 = vmatpush1.msra.mxu0 0.0
      %1284 = vmatprep.subr.mxu0 0.0
      %1285 = vmatpush1.msra.mxu0 0.0
      %1286 = vmatprep.subr.mxu0 0.0
      %1287 = vmatpush1.msra.mxu0 0.0
      %1288 = vmatprep.subr.mxu0 0.0
      %1289 = vmatpush1.msra.mxu0 0.0
      %1290 = vmatprep.subr.mxu0 0.0
      %1291 = vmatpush1.msra.mxu0 0.0
      %1292 = vmatprep.subr.mxu0 0.0
      %1293 = vmatpush1.msra.mxu0 0.0
      %1294 = vmatprep.subr.mxu0 0.0
      %1295 = vmatpush1.msra.mxu0 0.0
      %1296 = vmatprep.subr.mxu0 0.0
      %1297 = vmatpush1.msra.mxu0 0.0
      %1298 = vmatprep.subr.mxu0 0.0
      %1299 = vmatpush1.msra.mxu0 0.0
      %1300 = vmatprep.subr.mxu0 0.0
      %1301 = vmatpush1.msra.mxu0 0.0
      %1302 = vmatprep.subr.mxu0 0.0
      %1303 = vmatpush1.msra.mxu0 0.0
      %1304 = vmatprep.subr.mxu0 0.0
      %1305 = vmatpush1.msra.mxu0 0.0
      %1306 = vmatprep.subr.mxu0 0.0
      %1307 = vmatpush1.msra.mxu0 0.0
      %1308 = vmatprep.mubr.f32.mxu0 0.0
      %v1309 = vand.u32 %v810, 4294901760
      %1310 = vmatmul.mubr.f32.gmra.mrb[0].mxu0 %v1309
      %v1311 = vpop.f32.mrb[0].mxu0
      %v1312 = vadd.f32 %v1233, %v1311
      %v1313 = vpop.f32.mrb[0].mxu0
      %1314 = vmatprep.mubr.f32.mxu0 0.0
      %v1315 = vand.u32 %v813, 4294901760
      %1316 = vmatmul.mubr.f32.gmra.mrb[0].mxu0 %v1315
      %v1317 = vpop.f32.mrb[0].mxu0
      %v1318 = vadd.f32 %v1239, %v1317
      %v1319 = vpop.f32.mrb[0].mxu0
      %1320 = vdwg.mxu0
      %1321 = vst.msk [vmem:[%s257] sm:$0xff] %vm264, %v1312
      %vm1322 = vcmask 60416
      %1323 = vst.msk [vmem:[%s257 + $0x8] sm:$0xf] %vm1322, %v1318
      %p1324 = scmp.lt.s32.totalorder %s15, 7
      %s1325 = scalar_select %p1324, %s15, 7
      %s1326 = smul.addr %s1325, 2
      %s1327 = smul.addr %s1326, 8
      %s1328 = scalar_lea.vmem %s4, %s1327
      // Predicated region
      $region37: #{transformer_forward.52} parent=35 // pred_check
        %p1329 = pneg %p137
      $region38: #{transformer_forward.52} parent=35 // pred_check_branch
        %1331 = sbr.rel (%p1329) target = $region40
      $region39: #{transformer_forward.52} parent=35 // pred_region
        _
      $region40: #{transformer_forward.52} parent=35 // pred_fallthru
        _
    $region36: #{transformer_forward.52} parent=5 // pred_fallthru
      _
    %p1332 = scmp.le.s32.totalorder 2, %s10
    // Predicated region
    $region41: #{transformer_forward.52} parent=5 // pred_check
      %p1333 = pneg %p1332
    $region42: #{transformer_forward.52} parent=5 // pred_check_branch
      %1335 = sbr.rel (%p1333) target = $region44
    $region43: #{transformer_forward.52} parent=5 // pred_region
      %s1336 = ssub.s32 %s10, 2
      // Predicated region
      $region45: #{transformer_forward.52} parent=43 // pred_check
        %p1337 = pneg %p143
      $region46: #{transformer_forward.52} parent=43 // pred_check_branch
        %1339 = sbr.rel (%p1337) target = $region48
      $region47: #{transformer_forward.52} parent=43 // pred_region
        %p1340 = scmp.lt.s32.totalorder %s16, 7
        %s1341 = scalar_select %p1340, %s16, 7
        %s1342 = smul.addr %s1341, 2
        %s1343 = smul.addr %s1342, 8
        %s1344 = scalar_lea.vmem %s4, %s1343
      $region48: #{transformer_forward.52} parent=43 // pred_fallthru
        _
    $region44: #{transformer_forward.52} parent=5 // pred_fallthru
      _
  $region6: #{transformer_forward.52} parent=0 // loop_footer
    %s14 = sadd.s32 1, %s10
  $region7: #{transformer_forward.52} parent=0 // loop_footer_branch
    %9 = sbr.rel target = $region3
  $region8: #{transformer_forward.52} parent=0 // loop_exit
    _

// kernel: transformer_forward.55
$region0: #{transformer_forward.55}
  #allocation0 [shape = 'u32[]', space=smem, size = 0x4, offset = 0x4, fixed_abs, tag = 'smem constant byte address 0x4 - core index']
  #allocation1 [shape = 'u32[144,128]{1,0:T(1,128)}', space=vmem, size = 0x12000, scoped, tag = 'internal scratch']
  %s0 = inlined_call_operand.vmem [shape: f32[24,32], index: 0, kind: input, shape index: {}]
  %s1 = inlined_call_operand.vmem [shape: f32[32,64], index: 1, kind: input, shape index: {}]
  %s2 = inlined_call_operand.vmem [shape: f32[1,64], index: 2, kind: input, shape index: {}]
  %s3 = inlined_call_operand.vmem [shape: f32[64,32], index: 3, kind: input, shape index: {}]
  %s4 = inlined_call_operand.vmem [shape: f32[1,32], index: 4, kind: input, shape index: {}]
  %s5 = inlined_call_operand.vmem [shape: f32[24,32], index: 5, kind: output, shape index: {}]
  %s6 = sld [smem:[#allocation0]]
  $region30: #{transformer_forward.55} parent=0
    _
  %s8 = ssub.s32 1, %s6
  %s9 = scalar_select 0, %s8, %s6
  // Predicated region
  $region2: #{transformer_forward.55} parent=0 // pred_check
    _
  $region3: #{transformer_forward.55} parent=0 // pred_check_branch
    %11 = sbr.rel (0) target = $region5
  $region4: #{transformer_forward.55} parent=0 // pred_region
    _
  $region5: #{transformer_forward.55} parent=0 // pred_fallthru
    _
  // Predicated region
  $region6: #{transformer_forward.55} parent=0 // pred_check
    _
  $region7: #{transformer_forward.55} parent=0 // pred_check_branch
    %13 = sbr.rel (0) target = $region9
  $region8: #{transformer_forward.55} parent=0 // pred_region
    _
  $region9: #{transformer_forward.55} parent=0 // pred_fallthru
    _
  // Predicated region
  $region10: #{transformer_forward.55} parent=0 // pred_check
    _
  $region11: #{transformer_forward.55} parent=0 // pred_check_branch
    %15 = sbr.rel (0) target = $region13
  $region12: #{transformer_forward.55} parent=0 // pred_region
    _
  $region13: #{transformer_forward.55} parent=0 // pred_fallthru
    _
  // Predicated region
  $region14: #{transformer_forward.55} parent=0 // pred_check
    _
  $region15: #{transformer_forward.55} parent=0 // pred_check_branch
    %17 = sbr.rel (0) target = $region17
  $region16: #{transformer_forward.55} parent=0 // pred_region
    _
  $region17: #{transformer_forward.55} parent=0 // pred_fallthru
    _
  // Predicated region
  $region18: #{transformer_forward.55} parent=0 // pred_check
    _
  $region19: #{transformer_forward.55} parent=0 // pred_check_branch
    %19 = sbr.rel (0) target = $region21
  $region20: #{transformer_forward.55} parent=0 // pred_region
    _
  $region21: #{transformer_forward.55} parent=0 // pred_fallthru
    _
  %v20 = vld [vmem:[%s0] sm:$0xff]
  %v21 = vld [vmem:[%s0 + $0x8] sm:$0xff]
  %v22 = vld [vmem:[%s0 + $0x10] sm:$0xff]
  %v23 = vld [vmem:[%s1] sm:$0xff]
  %v24 = vld [vmem:[%s1 + $0x8] sm:$0xff]
  %v25 = vld [vmem:[%s1 + $0x10] sm:$0xff]
  %v26 = vld [vmem:[%s1 + $0x18] sm:$0xff]
  %v27 = vld [vmem:[%s2] sm:$0x1]
  %v29 = vlaneseq
  %v30 = vshrl.u32 %v29, 7
  %v31 = vsub.s32 0, %v30
  %v32 = vrot.slane %v27, %v31
  %vm34 = vcmask 261120
  %v36 = vsel %vm34, %v20, 0
  %v39 = vsel %vm34, %v21, 0
  %v42 = vsel %vm34, %v22, 0
  %44 = vmatprep.subr.mxu0 0.0
  %v45 = vand.u32 %v23, 4294901760
  %46 = vmatpush1.msra.mxu0 %v45
  %47 = vmatprep.subr.mxu0 0.0
  %v48 = vand.u32 %v24, 4294901760
  %49 = vmatpush1.msra.mxu0 %v48
  %50 = vmatprep.subr.mxu0 0.0
  %v51 = vand.u32 %v25, 4294901760
  %52 = vmatpush1.msra.mxu0 %v51
  %53 = vmatprep.subr.mxu0 0.0
  %v54 = vand.u32 %v26, 4294901760
  %55 = vmatpush1.msra.mxu0 %v54
  %56 = vmatprep.subr.mxu0 0.0
  %57 = vmatpush1.msra.mxu0 0.0
  %58 = vmatprep.subr.mxu0 0.0
  %59 = vmatpush1.msra.mxu0 0.0
  %60 = vmatprep.subr.mxu0 0.0
  %61 = vmatpush1.msra.mxu0 0.0
  %62 = vmatprep.subr.mxu0 0.0
  %63 = vmatpush1.msra.mxu0 0.0
  %64 = vmatprep.subr.mxu0 0.0
  %65 = vmatpush1.msra.mxu0 0.0
  %66 = vmatprep.subr.mxu0 0.0
  %67 = vmatpush1.msra.mxu0 0.0
  %68 = vmatprep.subr.mxu0 0.0
  %69 = vmatpush1.msra.mxu0 0.0
  %70 = vmatprep.subr.mxu0 0.0
  %71 = vmatpush1.msra.mxu0 0.0
  %72 = vmatprep.subr.mxu0 0.0
  %73 = vmatpush1.msra.mxu0 0.0
  %74 = vmatprep.subr.mxu0 0.0
  %75 = vmatpush1.msra.mxu0 0.0
  %76 = vmatprep.subr.mxu0 0.0
  %77 = vmatpush1.msra.mxu0 0.0
  %78 = vmatprep.subr.mxu0 0.0
  %79 = vmatpush1.msra.mxu0 0.0
  %80 = vmatprep.subr.mxu0 0.0
  %81 = vmatpush1.msra.mxu0 0.0
  %82 = vmatprep.subr.mxu0 0.0
  %83 = vmatpush1.msra.mxu0 0.0
  %84 = vmatprep.subr.mxu0 0.0
  %85 = vmatpush1.msra.mxu0 0.0
  %86 = vmatprep.subr.mxu0 0.0
  %87 = vmatpush1.msra.mxu0 0.0
  %88 = vmatprep.subr.mxu0 0.0
  %89 = vmatpush1.msra.mxu0 0.0
  %90 = vmatprep.subr.mxu0 0.0
  %91 = vmatpush1.msra.mxu0 0.0
  %92 = vmatprep.subr.mxu0 0.0
  %93 = vmatpush1.msra.mxu0 0.0
  %94 = vmatprep.subr.mxu0 0.0
  %95 = vmatpush1.msra.mxu0 0.0
  %96 = vmatprep.subr.mxu0 0.0
  %97 = vmatpush1.msra.mxu0 0.0
  %98 = vmatprep.subr.mxu0 0.0
  %99 = vmatpush1.msra.mxu0 0.0
  %100 = vmatprep.subr.mxu0 0.0
  %101 = vmatpush1.msra.mxu0 0.0
  %102 = vmatprep.subr.mxu0 0.0
  %103 = vmatpush1.msra.mxu0 0.0
  %104 = vmatprep.subr.mxu0 0.0
  %105 = vmatpush1.msra.mxu0 0.0
  %106 = vmatprep.subr.mxu0 0.0
  %107 = vmatpush1.msra.mxu0 0.0
  %108 = vmatprep.subr.mxu0 0.0
  %109 = vmatpush1.msra.mxu0 0.0
  %110 = vmatprep.subr.mxu0 0.0
  %111 = vmatpush1.msra.mxu0 0.0
  %112 = vmatprep.mubr.f32.mxu0 0.0
  %v113 = vand.u32 %v36, 4294901760
  %v114 = vsub.f32 %v36, %v113
  %v115 = vand.u32 %v114, 4294901760
  %v116 = vsub.f32 %v114, %v115
  %v117 = vand.u32 %v116, 4294901760
  %118 = vmatmul.mubr.f32.gmra.mrb[0].mxu0 %v117
  %v119 = vpop.f32.mrb[0].mxu0
  %v120 = vadd.f32 %v32, %v119
  %v121 = vpop.f32.mrb[0].mxu0
  %122 = vmatprep.mubr.f32.mxu0 0.0
  %v123 = vand.u32 %v39, 4294901760
  %v124 = vsub.f32 %v39, %v123
  %v125 = vand.u32 %v124, 4294901760
  %v126 = vsub.f32 %v124, %v125
  %v127 = vand.u32 %v126, 4294901760
  %128 = vmatmul.mubr.f32.gmra.mrb[0].mxu0 %v127
  %v129 = vpop.f32.mrb[0].mxu0
  %v130 = vadd.f32 %v32, %v129
  %v131 = vpop.f32.mrb[0].mxu0
  %132 = vmatprep.mubr.f32.mxu0 0.0
  %v133 = vand.u32 %v42, 4294901760
  %v134 = vsub.f32 %v42, %v133
  %v135 = vand.u32 %v134, 4294901760
  %v136 = vsub.f32 %v134, %v135
  %v137 = vand.u32 %v136, 4294901760
  %138 = vmatmul.mubr.f32.gmra.mrb[0].mxu0 %v137
  %v139 = vpop.f32.mrb[0].mxu0
  %v140 = vadd.f32 %v32, %v139
  %v141 = vpop.f32.mrb[0].mxu0
  %142 = vdwg.mxu0
  %143 = vmatprep.subr.mxu0 0.0
  %v144 = vand.u32 %v23, 4294901760
  %v145 = vsub.f32 %v23, %v144
  %v146 = vand.u32 %v145, 4294901760
  %v147 = vsub.f32 %v145, %v146
  %v148 = vand.u32 %v147, 4294901760
  %149 = vmatpush1.msra.mxu0 %v148
  %150 = vmatprep.subr.mxu0 0.0
  %v151 = vand.u32 %v24, 4294901760
  %v152 = vsub.f32 %v24, %v151
  %v153 = vand.u32 %v152, 4294901760
  %v154 = vsub.f32 %v152, %v153
  %v155 = vand.u32 %v154, 4294901760
  %156 = vmatpush1.msra.mxu0 %v155
  %157 = vmatprep.subr.mxu0 0.0
  %v158 = vand.u32 %v25, 4294901760
  %v159 = vsub.f32 %v25, %v158
  %v160 = vand.u32 %v159, 4294901760
  %v161 = vsub.f32 %v159, %v160
  %v162 = vand.u32 %v161, 4294901760
  %163 = vmatpush1.msra.mxu0 %v162
  %164 = vmatprep.subr.mxu0 0.0
  %v165 = vand.u32 %v26, 4294901760
  %v166 = vsub.f32 %v26, %v165
  %v167 = vand.u32 %v166, 4294901760
  %v168 = vsub.f32 %v166, %v167
  %v169 = vand.u32 %v168, 4294901760
  %170 = vmatpush1.msra.mxu0 %v169
  %171 = vmatprep.subr.mxu0 0.0
  %172 = vmatpush1.msra.mxu0 0.0
  %173 = vmatprep.subr.mxu0 0.0
  %174 = vmatpush1.msra.mxu0 0.0
  %175 = vmatprep.subr.mxu0 0.0
  %176 = vmatpush1.msra.mxu0 0.0
  %177 = vmatprep.subr.mxu0 0.0
  %178 = vmatpush1.msra.mxu0 0.0
  %179 = vmatprep.subr.mxu0 0.0
  %180 = vmatpush1.msra.mxu0 0.0
  %181 = vmatprep.subr.mxu0 0.0
  %182 = vmatpush1.msra.mxu0 0.0
  %183 = vmatprep.subr.mxu0 0.0
  %184 = vmatpush1.msra.mxu0 0.0
  %185 = vmatprep.subr.mxu0 0.0
  %186 = vmatpush1.msra.mxu0 0.0
  %187 = vmatprep.subr.mxu0 0.0
  %188 = vmatpush1.msra.mxu0 0.0
  %189 = vmatprep.subr.mxu0 0.0
  %190 = vmatpush1.msra.mxu0 0.0
  %191 = vmatprep.subr.mxu0 0.0
  %192 = vmatpush1.msra.mxu0 0.0
  %193 = vmatprep.subr.mxu0 0.0
  %194 = vmatpush1.msra.mxu0 0.0
  %195 = vmatprep.subr.mxu0 0.0
  %196 = vmatpush1.msra.mxu0 0.0
  %197 = vmatprep.subr.mxu0 0.0
  %198 = vmatpush1.msra.mxu0 0.0
  %199 = vmatprep.subr.mxu0 0.0
  %200 = vmatpush1.msra.mxu0 0.0
  %201 = vmatprep.subr.mxu0 0.0
  %202 = vmatpush1.msra.mxu0 0.0
  %203 = vmatprep.subr.mxu0 0.0
  %204 = vmatpush1.msra.mxu0 0.0
  %205 = vmatprep.subr.mxu0 0.0
  %206 = vmatpush1.msra.mxu0 0.0
  %207 = vmatprep.subr.mxu0 0.0
  %208 = vmatpush1.msra.mxu0 0.0
  %209 = vmatprep.subr.mxu0 0.0
  %210 = vmatpush1.msra.mxu0 0.0
  %211 = vmatprep.subr.mxu0 0.0
  %212 = vmatpush1.msra.mxu0 0.0
  %213 = vmatprep.subr.mxu0 0.0
  %214 = vmatpush1.msra.mxu0 0.0
  %215 = vmatprep.subr.mxu0 0.0
  %216 = vmatpush1.msra.mxu0 0.0
  %217 = vmatprep.subr.mxu0 0.0
  %218 = vmatpush1.msra.mxu0 0.0
  %219 = vmatprep.subr.mxu0 0.0
  %220 = vmatpush1.msra.mxu0 0.0
  %221 = vmatprep.subr.mxu0 0.0
  %222 = vmatpush1.msra.mxu0 0.0
  %223 = vmatprep.subr.mxu0 0.0
  %224 = vmatpush1.msra.mxu0 0.0
  %225 = vmatprep.subr.mxu0 0.0
  %226 = vmatpush1.msra.mxu0 0.0
  %227 = vmatprep.mubr.f32.mxu0 0.0
  %v228 = vand.u32 %v36, 4294901760
  %229 = vmatmul.mubr.f32.gmra.mrb[0].mxu0 %v228
  %v230 = vpop.f32.mrb[0].mxu0
  %v231 = vadd.f32 %v120, %v230
  %v232 = vpop.f32.mrb[0].mxu0
  %233 = vmatprep.mubr.f32.mxu0 0.0
  %v234 = vand.u32 %v39, 4294901760
  %235 = vmatmul.mubr.f32.gmra.mrb[0].mxu0 %v234
  %v236 = vpop.f32.mrb[0].mxu0
  %v237 = vadd.f32 %v130, %v236
  %v238 = vpop.f32.mrb[0].mxu0
  %239 = vmatprep.mubr.f32.mxu0 0.0
  %v240 = vand.u32 %v42, 4294901760
  %241 = vmatmul.mubr.f32.gmra.mrb[0].mxu0 %v240
  %v242 = vpop.f32.mrb[0].mxu0
  %v243 = vadd.f32 %v140, %v242
  %v244 = vpop.f32.mrb[0].mxu0
  %245 = vdwg.mxu0
  %246 = vmatprep.subr.mxu0 0.0
  %v247 = vand.u32 %v23, 4294901760
  %v248 = vsub.f32 %v23, %v247
  %249 = vmatpush1.msra.mxu0 %v248
  %250 = vmatprep.subr.mxu0 0.0
  %v251 = vand.u32 %v24, 4294901760
  %v252 = vsub.f32 %v24, %v251
  %253 = vmatpush1.msra.mxu0 %v252
  %254 = vmatprep.subr.mxu0 0.0
  %v255 = vand.u32 %v25, 4294901760
  %v256 = vsub.f32 %v25, %v255
  %257 = vmatpush1.msra.mxu0 %v256
  %258 = vmatprep.subr.mxu0 0.0
  %v259 = vand.u32 %v26, 4294901760
  %v260 = vsub.f32 %v26, %v259
  %261 = vmatpush1.msra.mxu0 %v260
  %262 = vmatprep.subr.mxu0 0.0
  %263 = vmatpush1.msra.mxu0 0.0
  %264 = vmatprep.subr.mxu0 0.0
  %265 = vmatpush1.msra.mxu0 0.0
  %266 = vmatprep.subr.mxu0 0.0
  %267 = vmatpush1.msra.mxu0 0.0
  %268 = vmatprep.subr.mxu0 0.0
  %269 = vmatpush1.msra.mxu0 0.0
  %270 = vmatprep.subr.mxu0 0.0
  %271 = vmatpush1.msra.mxu0 0.0
  %272 = vmatprep.subr.mxu0 0.0
  %273 = vmatpush1.msra.mxu0 0.0
  %274 = vmatprep.subr.mxu0 0.0
  %275 = vmatpush1.msra.mxu0 0.0
  %276 = vmatprep.subr.mxu0 0.0
  %277 = vmatpush1.msra.mxu0 0.0
  %278 = vmatprep.subr.mxu0 0.0
  %279 = vmatpush1.msra.mxu0 0.0
  %280 = vmatprep.subr.mxu0 0.0
  %281 = vmatpush1.msra.mxu0 0.0
  %282 = vmatprep.subr.mxu0 0.0
  %283 = vmatpush1.msra.mxu0 0.0
  %284 = vmatprep.subr.mxu0 0.0
  %285 = vmatpush1.msra.mxu0 0.0
  %286 = vmatprep.subr.mxu0 0.0
  %287 = vmatpush1.msra.mxu0 0.0
  %288 = vmatprep.subr.mxu0 0.0
  %289 = vmatpush1.msra.mxu0 0.0
  %290 = vmatprep.subr.mxu0 0.0
  %291 = vmatpush1.msra.mxu0 0.0
  %292 = vmatprep.subr.mxu0 0.0
  %293 = vmatpush1.msra.mxu0 0.0
  %294 = vmatprep.subr.mxu0 0.0
  %295 = vmatpush1.msra.mxu0 0.0
  %296 = vmatprep.subr.mxu0 0.0
  %297 = vmatpush1.msra.mxu0 0.0
  %298 = vmatprep.subr.mxu0 0.0
  %299 = vmatpush1.msra.mxu0 0.0
  %300 = vmatprep.subr.mxu0 0.0
  %301 = vmatpush1.msra.mxu0 0.0
  %302 = vmatprep.subr.mxu0 0.0
  %303 = vmatpush1.msra.mxu0 0.0
  %304 = vmatprep.subr.mxu0 0.0
  %305 = vmatpush1.msra.mxu0 0.0
  %306 = vmatprep.subr.mxu0 0.0
  %307 = vmatpush1.msra.mxu0 0.0
  %308 = vmatprep.subr.mxu0 0.0
  %309 = vmatpush1.msra.mxu0 0.0
  %310 = vmatprep.subr.mxu0 0.0
  %311 = vmatpush1.msra.mxu0 0.0
  %312 = vmatprep.subr.mxu0 0.0
  %313 = vmatpush1.msra.mxu0 0.0
  %314 = vmatprep.subr.mxu0 0.0
  %315 = vmatpush1.msra.mxu0 0.0
  %316 = vmatprep.subr.mxu0 0.0
  %317 = vmatpush1.msra.mxu0 0.0
  %318 = vmatprep.mubr.f32.mxu0 0.0
  %v319 = vand.u32 %v36, 4294901760
  %v320 = vsub.f32 %v36, %v319
  %321 = vmatmul.mubr.f32.gmra.mrb[0].mxu0 %v320
  %v322 = vpop.f32.mrb[0].mxu0
  %v323 = vadd.f32 %v231, %v322
  %v324 = vpop.f32.mrb[0].mxu0
  %325 = vmatprep.mubr.f32.mxu0 0.0
  %v326 = vand.u32 %v39, 4294901760
  %v327 = vsub.f32 %v39, %v326
  %328 = vmatmul.mubr.f32.gmra.mrb[0].mxu0 %v327
  %v329 = vpop.f32.mrb[0].mxu0
  %v330 = vadd.f32 %v237, %v329
  %v331 = vpop.f32.mrb[0].mxu0
  %332 = vmatprep.mubr.f32.mxu0 0.0
  %v333 = vand.u32 %v42, 4294901760
  %v334 = vsub.f32 %v42, %v333
  %335 = vmatmul.mubr.f32.gmra.mrb[0].mxu0 %v334
  %v336 = vpop.f32.mrb[0].mxu0
  %v337 = vadd.f32 %v243, %v336
  %v338 = vpop.f32.mrb[0].mxu0
  %339 = vdwg.mxu0
  %340 = vmatprep.subr.mxu0 0.0
  %v341 = vand.u32 %v23, 4294901760
  %342 = vmatpush1.msra.mxu0 %v341
  %343 = vmatprep.subr.mxu0 0.0
  %v344 = vand.u32 %v24, 4294901760
  %345 = vmatpush1.msra.mxu0 %v344
  %346 = vmatprep.subr.mxu0 0.0
  %v347 = vand.u32 %v25, 4294901760
  %348 = vmatpush1.msra.mxu0 %v347
  %349 = vmatprep.subr.mxu0 0.0
  %v350 = vand.u32 %v26, 4294901760
  %351 = vmatpush1.msra.mxu0 %v350
  %352 = vmatprep.subr.mxu0 0.0
  %353 = vmatpush1.msra.mxu0 0.0
  %354 = vmatprep.subr.mxu0 0.0
  %355 = vmatpush1.msra.mxu0 0.0
  %356 = vmatprep.subr.mxu0 0.0
  %357 = vmatpush1.msra.mxu0 0.0
  %358 = vmatprep.subr.mxu0 0.0
  %359 = vmatpush1.msra.mxu0 0.0
  %360 = vmatprep.subr.mxu0 0.0
  %361 = vmatpush1.msra.mxu0 0.0
  %362 = vmatprep.subr.mxu0 0.0
  %363 = vmatpush1.msra.mxu0 0.0
  %364 = vmatprep.subr.mxu0 0.0
  %365 = vmatpush1.msra.mxu0 0.0
  %366 = vmatprep.subr.mxu0 0.0
  %367 = vmatpush1.msra.mxu0 0.0
  %368 = vmatprep.subr.mxu0 0.0
  %369 = vmatpush1.msra.mxu0 0.0
  %370 = vmatprep.subr.mxu0 0.0
  %371 = vmatpush1.msra.mxu0 0.0
  %372 = vmatprep.subr.mxu0 0.0
  %373 = vmatpush1.msra.mxu0 0.0
  %374 = vmatprep.subr.mxu0 0.0
  %375 = vmatpush1.msra.mxu0 0.0
  %376 = vmatprep.subr.mxu0 0.0
  %377 = vmatpush1.msra.mxu0 0.0
  %378 = vmatprep.subr.mxu0 0.0
  %379 = vmatpush1.msra.mxu0 0.0
  %380 = vmatprep.subr.mxu0 0.0
  %381 = vmatpush1.msra.mxu0 0.0
  %382 = vmatprep.subr.mxu0 0.0
  %383 = vmatpush1.msra.mxu0 0.0
  %384 = vmatprep.subr.mxu0 0.0
  %385 = vmatpush1.msra.mxu0 0.0
  %386 = vmatprep.subr.mxu0 0.0
  %387 = vmatpush1.msra.mxu0 0.0
  %388 = vmatprep.subr.mxu0 0.0
  %389 = vmatpush1.msra.mxu0 0.0
  %390 = vmatprep.subr.mxu0 0.0
  %391 = vmatpush1.msra.mxu0 0.0
  %392 = vmatprep.subr.mxu0 0.0
  %393 = vmatpush1.msra.mxu0 0.0
  %394 = vmatprep.subr.mxu0 0.0
  %395 = vmatpush1.msra.mxu0 0.0
  %396 = vmatprep.subr.mxu0 0.0
  %397 = vmatpush1.msra.mxu0 0.0
  %398 = vmatprep.subr.mxu0 0.0
  %399 = vmatpush1.msra.mxu0 0.0
  %400 = vmatprep.subr.mxu0 0.0
  %401 = vmatpush1.msra.mxu0 0.0
  %402 = vmatprep.subr.mxu0 0.0
  %403 = vmatpush1.msra.mxu0 0.0
  %404 = vmatprep.subr.mxu0 0.0
  %405 = vmatpush1.msra.mxu0 0.0
  %406 = vmatprep.subr.mxu0 0.0
  %407 = vmatpush1.msra.mxu0 0.0
  %408 = vmatprep.mubr.f32.mxu0 0.0
  %v409 = vand.u32 %v36, 4294901760
  %v410 = vsub.f32 %v36, %v409
  %v411 = vand.u32 %v410, 4294901760
  %412 = vmatmul.mubr.f32.gmra.mrb[0].mxu0 %v411
  %v413 = vpop.f32.mrb[0].mxu0
  %v414 = vadd.f32 %v323, %v413
  %v415 = vpop.f32.mrb[0].mxu0
  %416 = vmatprep.mubr.f32.mxu0 0.0
  %v417 = vand.u32 %v39, 4294901760
  %v418 = vsub.f32 %v39, %v417
  %v419 = vand.u32 %v418, 4294901760
  %420 = vmatmul.mubr.f32.gmra.mrb[0].mxu0 %v419
  %v421 = vpop.f32.mrb[0].mxu0
  %v422 = vadd.f32 %v330, %v421
  %v423 = vpop.f32.mrb[0].mxu0
  %424 = vmatprep.mubr.f32.mxu0 0.0
  %v425 = vand.u32 %v42, 4294901760
  %v426 = vsub.f32 %v42, %v425
  %v427 = vand.u32 %v426, 4294901760
  %428 = vmatmul.mubr.f32.gmra.mrb[0].mxu0 %v427
  %v429 = vpop.f32.mrb[0].mxu0
  %v430 = vadd.f32 %v337, %v429
  %v431 = vpop.f32.mrb[0].mxu0
  %432 = vdwg.mxu0
  %433 = vmatprep.subr.mxu0 0.0
  %v434 = vand.u32 %v23, 4294901760
  %v435 = vsub.f32 %v23, %v434
  %v436 = vand.u32 %v435, 4294901760
  %437 = vmatpush1.msra.mxu0 %v436
  %438 = vmatprep.subr.mxu0 0.0
  %v439 = vand.u32 %v24, 4294901760
  %v440 = vsub.f32 %v24, %v439
  %v441 = vand.u32 %v440, 4294901760
  %442 = vmatpush1.msra.mxu0 %v441
  %443 = vmatprep.subr.mxu0 0.0
  %v444 = vand.u32 %v25, 4294901760
  %v445 = vsub.f32 %v25, %v444
  %v446 = vand.u32 %v445, 4294901760
  %447 = vmatpush1.msra.mxu0 %v446
  %448 = vmatprep.subr.mxu0 0.0
  %v449 = vand.u32 %v26, 4294901760
  %v450 = vsub.f32 %v26, %v449
  %v451 = vand.u32 %v450, 4294901760
  %452 = vmatpush1.msra.mxu0 %v451
  %453 = vmatprep.subr.mxu0 0.0
  %454 = vmatpush1.msra.mxu0 0.0
  %455 = vmatprep.subr.mxu0 0.0
  %456 = vmatpush1.msra.mxu0 0.0
  %457 = vmatprep.subr.mxu0 0.0
  %458 = vmatpush1.msra.mxu0 0.0
  %459 = vmatprep.subr.mxu0 0.0
  %460 = vmatpush1.msra.mxu0 0.0
  %461 = vmatprep.subr.mxu0 0.0
  %462 = vmatpush1.msra.mxu0 0.0
  %463 = vmatprep.subr.mxu0 0.0
  %464 = vmatpush1.msra.mxu0 0.0
  %465 = vmatprep.subr.mxu0 0.0
  %466 = vmatpush1.msra.mxu0 0.0
  %467 = vmatprep.subr.mxu0 0.0
  %468 = vmatpush1.msra.mxu0 0.0
  %469 = vmatprep.subr.mxu0 0.0
  %470 = vmatpush1.msra.mxu0 0.0
  %471 = vmatprep.subr.mxu0 0.0
  %472 = vmatpush1.msra.mxu0 0.0
  %473 = vmatprep.subr.mxu0 0.0
  %474 = vmatpush1.msra.mxu0 0.0
  %475 = vmatprep.subr.mxu0 0.0
  %476 = vmatpush1.msra.mxu0 0.0
  %477 = vmatprep.subr.mxu0 0.0
  %478 = vmatpush1.msra.mxu0 0.0
  %479 = vmatprep.subr.mxu0 0.0
  %480 = vmatpush1.msra.mxu0 0.0
  %481 = vmatprep.subr.mxu0 0.0
  %482 = vmatpush1.msra.mxu0 0.0
  %483 = vmatprep.subr.mxu0 0.0
  %484 = vmatpush1.msra.mxu0 0.0
  %485 = vmatprep.subr.mxu0 0.0
  %486 = vmatpush1.msra.mxu0 0.0
  %487 = vmatprep.subr.mxu0 0.0
  %488 = vmatpush1.msra.mxu0 0.0
  %489 = vmatprep.subr.mxu0 0.0
  %490 = vmatpush1.msra.mxu0 0.0
  %491 = vmatprep.subr.mxu0 0.0
  %492 = vmatpush1.msra.mxu0 0.0
  %493 = vmatprep.subr.mxu0 0.0
  %494 = vmatpush1.msra.mxu0 0.0
  %495 = vmatprep.subr.mxu0 0.0
  %496 = vmatpush1.msra.mxu0 0.0
  %497 = vmatprep.subr.mxu0 0.0
  %498 = vmatpush1.msra.mxu0 0.0
  %499 = vmatprep.subr.mxu0 0.0
  %500 = vmatpush1.msra.mxu0 0.0
  %501 = vmatprep.subr.mxu0 0.0
  %502 = vmatpush1.msra.mxu0 0.0
  %503 = vmatprep.subr.mxu0 0.0
  %504 = vmatpush1.msra.mxu0 0.0
  %505 = vmatprep.subr.mxu0 0.0
  %506 = vmatpush1.msra.mxu0 0.0
  %507 = vmatprep.subr.mxu0 0.0
  %508 = vmatpush1.msra.mxu0 0.0
  %509 = vmatprep.mubr.f32.mxu0 0.0
  %v510 = vand.u32 %v36, 4294901760
  %511 = vmatmul.mubr.f32.gmra.mrb[0].mxu0 %v510
  %v512 = vpop.f32.mrb[0].mxu0
  %v513 = vadd.f32 %v414, %v512
  %v514 = vpop.f32.mrb[0].mxu0
  %515 = vmatprep.mubr.f32.mxu0 0.0
  %v516 = vand.u32 %v39, 4294901760
  %517 = vmatmul.mubr.f32.gmra.mrb[0].mxu0 %v516
  %v518 = vpop.f32.mrb[0].mxu0
  %v519 = vadd.f32 %v422, %v518
  %v520 = vpop.f32.mrb[0].mxu0
  %521 = vmatprep.mubr.f32.mxu0 0.0
  %v522 = vand.u32 %v42, 4294901760
  %523 = vmatmul.mubr.f32.gmra.mrb[0].mxu0 %v522
  %v524 = vpop.f32.mrb[0].mxu0
  %v525 = vadd.f32 %v430, %v524
  %v526 = vpop.f32.mrb[0].mxu0
  %527 = vdwg.mxu0
  %528 = vmatprep.subr.mxu0 0.0
  %v529 = vand.u32 %v23, 4294901760
  %530 = vmatpush1.msra.mxu0 %v529
  %531 = vmatprep.subr.mxu0 0.0
  %v532 = vand.u32 %v24, 4294901760
  %533 = vmatpush1.msra.mxu0 %v532
  %534 = vmatprep.subr.mxu0 0.0
  %v535 = vand.u32 %v25, 4294901760
  %536 = vmatpush1.msra.mxu0 %v535
  %537 = vmatprep.subr.mxu0 0.0
  %v538 = vand.u32 %v26, 4294901760
  %539 = vmatpush1.msra.mxu0 %v538
  %540 = vmatprep.subr.mxu0 0.0
  %541 = vmatpush1.msra.mxu0 0.0
  %542 = vmatprep.subr.mxu0 0.0
  %543 = vmatpush1.msra.mxu0 0.0
  %544 = vmatprep.subr.mxu0 0.0
  %545 = vmatpush1.msra.mxu0 0.0
  %546 = vmatprep.subr.mxu0 0.0
  %547 = vmatpush1.msra.mxu0 0.0
  %548 = vmatprep.subr.mxu0 0.0
  %549 = vmatpush1.msra.mxu0 0.0
  %550 = vmatprep.subr.mxu0 0.0
  %551 = vmatpush1.msra.mxu0 0.0
  %552 = vmatprep.subr.mxu0 0.0
  %553 = vmatpush1.msra.mxu0 0.0
  %554 = vmatprep.subr.mxu0 0.0
  %555 = vmatpush1.msra.mxu0 0.0
  %556 = vmatprep.subr.mxu0 0.0
  %557 = vmatpush1.msra.mxu0 0.0
  %558 = vmatprep.subr.mxu0 0.0
  %559 = vmatpush1.msra.mxu0 0.0
  %560 = vmatprep.subr.mxu0 0.0
  %561 = vmatpush1.msra.mxu0 0.0
  %562 = vmatprep.subr.mxu0 0.0
  %563 = vmatpush1.msra.mxu0 0.0
  %564 = vmatprep.subr.mxu0 0.0
  %565 = vmatpush1.msra.mxu0 0.0
  %566 = vmatprep.subr.mxu0 0.0
  %567 = vmatpush1.msra.mxu0 0.0
  %568 = vmatprep.subr.mxu0 0.0
  %569 = vmatpush1.msra.mxu0 0.0
  %570 = vmatprep.subr.mxu0 0.0
  %571 = vmatpush1.msra.mxu0 0.0
  %572 = vmatprep.subr.mxu0 0.0
  %573 = vmatpush1.msra.mxu0 0.0
  %574 = vmatprep.subr.mxu0 0.0
  %575 = vmatpush1.msra.mxu0 0.0
  %576 = vmatprep.subr.mxu0 0.0
  %577 = vmatpush1.msra.mxu0 0.0
  %578 = vmatprep.subr.mxu0 0.0
  %579 = vmatpush1.msra.mxu0 0.0
  %580 = vmatprep.subr.mxu0 0.0
  %581 = vmatpush1.msra.mxu0 0.0
  %582 = vmatprep.subr.mxu0 0.0
  %583 = vmatpush1.msra.mxu0 0.0
  %584 = vmatprep.subr.mxu0 0.0
  %585 = vmatpush1.msra.mxu0 0.0
  %586 = vmatprep.subr.mxu0 0.0
  %587 = vmatpush1.msra.mxu0 0.0
  %588 = vmatprep.subr.mxu0 0.0
  %589 = vmatpush1.msra.mxu0 0.0
  %590 = vmatprep.subr.mxu0 0.0
  %591 = vmatpush1.msra.mxu0 0.0
  %592 = vmatprep.subr.mxu0 0.0
  %593 = vmatpush1.msra.mxu0 0.0
  %594 = vmatprep.subr.mxu0 0.0
  %595 = vmatpush1.msra.mxu0 0.0
  %596 = vmatprep.mubr.f32.mxu0 0.0
  %v597 = vand.u32 %v36, 4294901760
  %598 = vmatmul.mubr.f32.gmra.mrb[0].mxu0 %v597
  %v599 = vpop.f32.mrb[0].mxu0
  %v600 = vadd.f32 %v513, %v599
  %v601 = vpop.f32.mrb[0].mxu0
  %602 = vmatprep.mubr.f32.mxu0 0.0
  %v603 = vand.u32 %v39, 4294901760
  %604 = vmatmul.mubr.f32.gmra.mrb[0].mxu0 %v603
  %v605 = vpop.f32.mrb[0].mxu0
  %v606 = vadd.f32 %v519, %v605
  %v607 = vpop.f32.mrb[0].mxu0
  %608 = vmatprep.mubr.f32.mxu0 0.0
  %v609 = vand.u32 %v42, 4294901760
  %610 = vmatmul.mubr.f32.gmra.mrb[0].mxu0 %v609
  %v611 = vpop.f32.mrb[0].mxu0
  %v612 = vadd.f32 %v525, %v611
  %v613 = vpop.f32.mrb[0].mxu0
  %614 = vdwg.mxu0
  %v615 = vmax.f32 %v600, 0.0
  %v616 = vmax.f32 %v606, 0.0
  %v617 = vmax.f32 %v612, 0.0
  %v618 = vld [vmem:[%s3] sm:$0xff]
  %v619 = vld [vmem:[%s3 + $0x8] sm:$0xff]
  %v620 = vld [vmem:[%s3 + $0x10] sm:$0xff]
  %v621 = vld [vmem:[%s3 + $0x18] sm:$0xff]
  %v622 = vld [vmem:[%s3 + $0x20] sm:$0xff]
  %v623 = vld [vmem:[%s3 + $0x28] sm:$0xff]
  %v624 = vld [vmem:[%s3 + $0x30] sm:$0xff]
  %v625 = vld [vmem:[%s3 + $0x38] sm:$0xff]
  %v626 = vld [vmem:[%s4] sm:$0x1]
  %v628 = vlaneseq
  %v629 = vshrl.u32 %v628, 7
  %v630 = vsub.s32 0, %v629
  %v631 = vrot.slane %v626, %v630
  %vm633 = vcmask 523264
  %v635 = vsel %vm633, %v615, 0
  %v638 = vsel %vm633, %v616, 0
  %v641 = vsel %vm633, %v617, 0
  %643 = vmatprep.subr.mxu0 0.0
  %v644 = vand.u32 %v618, 4294901760
  %645 = vmatpush1.msra.mxu0 %v644
  %646 = vmatprep.subr.mxu0 0.0
  %v647 = vand.u32 %v619, 4294901760
  %648 = vmatpush1.msra.mxu0 %v647
  %649 = vmatprep.subr.mxu0 0.0
  %v650 = vand.u32 %v620, 4294901760
  %651 = vmatpush1.msra.mxu0 %v650
  %652 = vmatprep.subr.mxu0 0.0
  %v653 = vand.u32 %v621, 4294901760
  %654 = vmatpush1.msra.mxu0 %v653
  %655 = vmatprep.subr.mxu0 0.0
  %v656 = vand.u32 %v622, 4294901760
  %657 = vmatpush1.msra.mxu0 %v656
  %658 = vmatprep.subr.mxu0 0.0
  %v659 = vand.u32 %v623, 4294901760
  %660 = vmatpush1.msra.mxu0 %v659
  %661 = vmatprep.subr.mxu0 0.0
  %v662 = vand.u32 %v624, 4294901760
  %663 = vmatpush1.msra.mxu0 %v662
  %664 = vmatprep.subr.mxu0 0.0
  %v665 = vand.u32 %v625, 4294901760
  %666 = vmatpush1.msra.mxu0 %v665
  %667 = vmatprep.subr.mxu0 0.0
  %668 = vmatpush1.msra.mxu0 0.0
  %669 = vmatprep.subr.mxu0 0.0
  %670 = vmatpush1.msra.mxu0 0.0
  %671 = vmatprep.subr.mxu0 0.0
  %672 = vmatpush1.msra.mxu0 0.0
  %673 = vmatprep.subr.mxu0 0.0
  %674 = vmatpush1.msra.mxu0 0.0
  %675 = vmatprep.subr.mxu0 0.0
  %676 = vmatpush1.msra.mxu0 0.0
  %677 = vmatprep.subr.mxu0 0.0
  %678 = vmatpush1.msra.mxu0 0.0
  %679 = vmatprep.subr.mxu0 0.0
  %680 = vmatpush1.msra.mxu0 0.0
  %681 = vmatprep.subr.mxu0 0.0
  %682 = vmatpush1.msra.mxu0 0.0
  %683 = vmatprep.subr.mxu0 0.0
  %684 = vmatpush1.msra.mxu0 0.0
  %685 = vmatprep.subr.mxu0 0.0
  %686 = vmatpush1.msra.mxu0 0.0
  %687 = vmatprep.subr.mxu0 0.0
  %688 = vmatpush1.msra.mxu0 0.0
  %689 = vmatprep.subr.mxu0 0.0
  %690 = vmatpush1.msra.mxu0 0.0
  %691 = vmatprep.subr.mxu0 0.0
  %692 = vmatpush1.msra.mxu0 0.0
  %693 = vmatprep.subr.mxu0 0.0
  %694 = vmatpush1.msra.mxu0 0.0
  %695 = vmatprep.subr.mxu0 0.0
  %696 = vmatpush1.msra.mxu0 0.0
  %697 = vmatprep.subr.mxu0 0.0
  %698 = vmatpush1.msra.mxu0 0.0
  %699 = vmatprep.subr.mxu0 0.0
  %700 = vmatpush1.msra.mxu0 0.0
  %701 = vmatprep.subr.mxu0 0.0
  %702 = vmatpush1.msra.mxu0 0.0
  %703 = vmatprep.subr.mxu0 0.0
  %704 = vmatpush1.msra.mxu0 0.0
  %705 = vmatprep.subr.mxu0 0.0
  %706 = vmatpush1.msra.mxu0 0.0
  %707 = vmatprep.subr.mxu0 0.0
  %708 = vmatpush1.msra.mxu0 0.0
  %709 = vmatprep.subr.mxu0 0.0
  %710 = vmatpush1.msra.mxu0 0.0
  %711 = vmatprep.subr.mxu0 0.0
  %712 = vmatpush1.msra.mxu0 0.0
  %713 = vmatprep.subr.mxu0 0.0
  %714 = vmatpush1.msra.mxu0 0.0
  %715 = vmatprep.mubr.f32.mxu0 0.0
  %v716 = vand.u32 %v635, 4294901760
  %v717 = vsub.f32 %v635, %v716
  %v718 = vand.u32 %v717, 4294901760
  %v719 = vsub.f32 %v717, %v718
  %v720 = vand.u32 %v719, 4294901760
  %721 = vmatmul.mubr.f32.gmra.mrb[0].mxu0 %v720
  %v722 = vpop.f32.mrb[0].mxu0
  %v723 = vadd.f32 %v631, %v722
  %v724 = vpop.f32.mrb[0].mxu0
  %725 = vmatprep.mubr.f32.mxu0 0.0
  %v726 = vand.u32 %v638, 4294901760
  %v727 = vsub.f32 %v638, %v726
  %v728 = vand.u32 %v727, 4294901760
  %v729 = vsub.f32 %v727, %v728
  %v730 = vand.u32 %v729, 4294901760
  %731 = vmatmul.mubr.f32.gmra.mrb[0].mxu0 %v730
  %v732 = vpop.f32.mrb[0].mxu0
  %v733 = vadd.f32 %v631, %v732
  %v734 = vpop.f32.mrb[0].mxu0
  %735 = vmatprep.mubr.f32.mxu0 0.0
  %v736 = vand.u32 %v641, 4294901760
  %v737 = vsub.f32 %v641, %v736
  %v738 = vand.u32 %v737, 4294901760
  %v739 = vsub.f32 %v737, %v738
  %v740 = vand.u32 %v739, 4294901760
  %741 = vmatmul.mubr.f32.gmra.mrb[0].mxu0 %v740
  %v742 = vpop.f32.mrb[0].mxu0
  %v743 = vadd.f32 %v631, %v742
  %v744 = vpop.f32.mrb[0].mxu0
  %745 = vdwg.mxu0
  %746 = vmatprep.subr.mxu0 0.0
  %v747 = vand.u32 %v618, 4294901760
  %v748 = vsub.f32 %v618, %v747
  %v749 = vand.u32 %v748, 4294901760
  %v750 = vsub.f32 %v748, %v749
  %v751 = vand.u32 %v750, 4294901760
  %752 = vmatpush1.msra.mxu0 %v751
  %753 = vmatprep.subr.mxu0 0.0
  %v754 = vand.u32 %v619, 4294901760
  %v755 = vsub.f32 %v619, %v754
  %v756 = vand.u32 %v755, 4294901760
  %v757 = vsub.f32 %v755, %v756
  %v758 = vand.u32 %v757, 4294901760
  %759 = vmatpush1.msra.mxu0 %v758
  %760 = vmatprep.subr.mxu0 0.0
  %v761 = vand.u32 %v620, 4294901760
  %v762 = vsub.f32 %v620, %v761
  %v763 = vand.u32 %v762, 4294901760
  %v764 = vsub.f32 %v762, %v763
  %v765 = vand.u32 %v764, 4294901760
  %766 = vmatpush1.msra.mxu0 %v765
  %767 = vmatprep.subr.mxu0 0.0
  %v768 = vand.u32 %v621, 4294901760
  %v769 = vsub.f32 %v621, %v768
  %v770 = vand.u32 %v769, 4294901760
  %v771 = vsub.f32 %v769, %v770
  %v772 = vand.u32 %v771, 4294901760
  %773 = vmatpush1.msra.mxu0 %v772
  %774 = vmatprep.subr.mxu0 0.0
  %v775 = vand.u32 %v622, 4294901760
  %v776 = vsub.f32 %v622, %v775
  %v777 = vand.u32 %v776, 4294901760
  %v778 = vsub.f32 %v776, %v777
  %v779 = vand.u32 %v778, 4294901760
  %780 = vmatpush1.msra.mxu0 %v779
  %781 = vmatprep.subr.mxu0 0.0
  %v782 = vand.u32 %v623, 4294901760
  %v783 = vsub.f32 %v623, %v782
  %v784 = vand.u32 %v783, 4294901760
  %v785 = vsub.f32 %v783, %v784
  %v786 = vand.u32 %v785, 4294901760
  %787 = vmatpush1.msra.mxu0 %v786
  %788 = vmatprep.subr.mxu0 0.0
  %v789 = vand.u32 %v624, 4294901760
  %v790 = vsub.f32 %v624, %v789
  %v791 = vand.u32 %v790, 4294901760
  %v792 = vsub.f32 %v790, %v791
  %v793 = vand.u32 %v792, 4294901760
  %794 = vmatpush1.msra.mxu0 %v793
  %795 = vmatprep.subr.mxu0 0.0
  %v796 = vand.u32 %v625, 4294901760
  %v797 = vsub.f32 %v625, %v796
  %v798 = vand.u32 %v797, 4294901760
  %v799 = vsub.f32 %v797, %v798
  %v800 = vand.u32 %v799, 4294901760
  %801 = vmatpush1.msra.mxu0 %v800
  %802 = vmatprep.subr.mxu0 0.0
  %803 = vmatpush1.msra.mxu0 0.0
  %804 = vmatprep.subr.mxu0 0.0
  %805 = vmatpush1.msra.mxu0 0.0
  %806 = vmatprep.subr.mxu0 0.0
  %807 = vmatpush1.msra.mxu0 0.0
  %808 = vmatprep.subr.mxu0 0.0
  %809 = vmatpush1.msra.mxu0 0.0
  %810 = vmatprep.subr.mxu0 0.0
  %811 = vmatpush1.msra.mxu0 0.0
  %812 = vmatprep.subr.mxu0 0.0
  %813 = vmatpush1.msra.mxu0 0.0
  %814 = vmatprep.subr.mxu0 0.0
  %815 = vmatpush1.msra.mxu0 0.0
  %816 = vmatprep.subr.mxu0 0.0
  %817 = vmatpush1.msra.mxu0 0.0
  %818 = vmatprep.subr.mxu0 0.0
  %819 = vmatpush1.msra.mxu0 0.0
  %820 = vmatprep.subr.mxu0 0.0
  %821 = vmatpush1.msra.mxu0 0.0
  %822 = vmatprep.subr.mxu0 0.0
  %823 = vmatpush1.msra.mxu0 0.0
  %824 = vmatprep.subr.mxu0 0.0
  %825 = vmatpush1.msra.mxu0 0.0
  %826 = vmatprep.subr.mxu0 0.0
  %827 = vmatpush1.msra.mxu0 0.0
  %828 = vmatprep.subr.mxu0 0.0
  %829 = vmatpush1.msra.mxu0 0.0
  %830 = vmatprep.subr.mxu0 0.0
  %831 = vmatpush1.msra.mxu0 0.0
  %832 = vmatprep.subr.mxu0 0.0
  %833 = vmatpush1.msra.mxu0 0.0
  %834 = vmatprep.subr.mxu0 0.0
  %835 = vmatpush1.msra.mxu0 0.0
  %836 = vmatprep.subr.mxu0 0.0
  %837 = vmatpush1.msra.mxu0 0.0
  %838 = vmatprep.subr.mxu0 0.0
  %839 = vmatpush1.msra.mxu0 0.0
  %840 = vmatprep.subr.mxu0 0.0
  %841 = vmatpush1.msra.mxu0 0.0
  %842 = vmatprep.subr.mxu0 0.0
  %843 = vmatpush1.msra.mxu0 0.0
  %844 = vmatprep.subr.mxu0 0.0
  %845 = vmatpush1.msra.mxu0 0.0
  %846 = vmatprep.subr.mxu0 0.0
  %847 = vmatpush1.msra.mxu0 0.0
  %848 = vmatprep.subr.mxu0 0.0
  %849 = vmatpush1.msra.mxu0 0.0
  %850 = vmatprep.mubr.f32.mxu0 0.0
  %v851 = vand.u32 %v635, 4294901760
  %852 = vmatmul.mubr.f32.gmra.mrb[0].mxu0 %v851
  %v853 = vpop.f32.mrb[0].mxu0
  %v854 = vadd.f32 %v723, %v853
  %v855 = vpop.f32.mrb[0].mxu0
  %856 = vmatprep.mubr.f32.mxu0 0.0
  %v857 = vand.u32 %v638, 4294901760
  %858 = vmatmul.mubr.f32.gmra.mrb[0].mxu0 %v857
  %v859 = vpop.f32.mrb[0].mxu0
  %v860 = vadd.f32 %v733, %v859
  %v861 = vpop.f32.mrb[0].mxu0
  %862 = vmatprep.mubr.f32.mxu0 0.0
  %v863 = vand.u32 %v641, 4294901760
  %864 = vmatmul.mubr.f32.gmra.mrb[0].mxu0 %v863
  %v865 = vpop.f32.mrb[0].mxu0
  %v866 = vadd.f32 %v743, %v865
  %v867 = vpop.f32.mrb[0].mxu0
  %868 = vdwg.mxu0
  %869 = vmatprep.subr.mxu0 0.0
  %v870 = vand.u32 %v618, 4294901760
  %v871 = vsub.f32 %v618, %v870
  %872 = vmatpush1.msra.mxu0 %v871
  %873 = vmatprep.subr.mxu0 0.0
  %v874 = vand.u32 %v619, 4294901760
  %v875 = vsub.f32 %v619, %v874
  %876 = vmatpush1.msra.mxu0 %v875
  %877 = vmatprep.subr.mxu0 0.0
  %v878 = vand.u32 %v620, 4294901760
  %v879 = vsub.f32 %v620, %v878
  %880 = vmatpush1.msra.mxu0 %v879
  %881 = vmatprep.subr.mxu0 0.0
  %v882 = vand.u32 %v621, 4294901760
  %v883 = vsub.f32 %v621, %v882
  %884 = vmatpush1.msra.mxu0 %v883
  %885 = vmatprep.subr.mxu0 0.0
  %v886 = vand.u32 %v622, 4294901760
  %v887 = vsub.f32 %v622, %v886
  %888 = vmatpush1.msra.mxu0 %v887
  %889 = vmatprep.subr.mxu0 0.0
  %v890 = vand.u32 %v623, 4294901760
  %v891 = vsub.f32 %v623, %v890
  %892 = vmatpush1.msra.mxu0 %v891
  %893 = vmatprep.subr.mxu0 0.0
  %v894 = vand.u32 %v624, 4294901760
  %v895 = vsub.f32 %v624, %v894
  %896 = vmatpush1.msra.mxu0 %v895
  %897 = vmatprep.subr.mxu0 0.0
  %v898 = vand.u32 %v625, 4294901760
  %v899 = vsub.f32 %v625, %v898
  %900 = vmatpush1.msra.mxu0 %v899
  %901 = vmatprep.subr.mxu0 0.0
  %902 = vmatpush1.msra.mxu0 0.0
  %903 = vmatprep.subr.mxu0 0.0
  %904 = vmatpush1.msra.mxu0 0.0
  %905 = vmatprep.subr.mxu0 0.0
  %906 = vmatpush1.msra.mxu0 0.0
  %907 = vmatprep.subr.mxu0 0.0
  %908 = vmatpush1.msra.mxu0 0.0
  %909 = vmatprep.subr.mxu0 0.0
  %910 = vmatpush1.msra.mxu0 0.0
  %911 = vmatprep.subr.mxu0 0.0
  %912 = vmatpush1.msra.mxu0 0.0
  %913 = vmatprep.subr.mxu0 0.0
  %914 = vmatpush1.msra.mxu0 0.0
  %915 = vmatprep.subr.mxu0 0.0
  %916 = vmatpush1.msra.mxu0 0.0
  %917 = vmatprep.subr.mxu0 0.0
  %918 = vmatpush1.msra.mxu0 0.0
  %919 = vmatprep.subr.mxu0 0.0
  %920 = vmatpush1.msra.mxu0 0.0
  %921 = vmatprep.subr.mxu0 0.0
  %922 = vmatpush1.msra.mxu0 0.0
  %923 = vmatprep.subr.mxu0 0.0
  %924 = vmatpush1.msra.mxu0 0.0
  %925 = vmatprep.subr.mxu0 0.0
  %926 = vmatpush1.msra.mxu0 0.0
  %927 = vmatprep.subr.mxu0 0.0
  %928 = vmatpush1.msra.mxu0 0.0
  %929 = vmatprep.subr.mxu0 0.0
  %930 = vmatpush1.msra.mxu0 0.0
  %931 = vmatprep.subr.mxu0 0.0
  %932 = vmatpush1.msra.mxu0 0.0
  %933 = vmatprep.subr.mxu0 0.0
  %934 = vmatpush1.msra.mxu0 0.0
  %935 = vmatprep.subr.mxu0 0.0
  %936 = vmatpush1.msra.mxu0 0.0
  %937 = vmatprep.subr.mxu0 0.0
  %938 = vmatpush1.msra.mxu0 0.0
  %939 = vmatprep.subr.mxu0 0.0
  %940 = vmatpush1.msra.mxu0 0.0
  %941 = vmatprep.subr.mxu0 0.0
  %942 = vmatpush1.msra.mxu0 0.0
  %943 = vmatprep.subr.mxu0 0.0
  %944 = vmatpush1.msra.mxu0 0.0
  %945 = vmatprep.subr.mxu0 0.0
  %946 = vmatpush1.msra.mxu0 0.0
  %947 = vmatprep.subr.mxu0 0.0
  %948 = vmatpush1.msra.mxu0 0.0
  %949 = vmatprep.mubr.f32.mxu0 0.0
  %v950 = vand.u32 %v635, 4294901760
  %v951 = vsub.f32 %v635, %v950
  %952 = vmatmul.mubr.f32.gmra.mrb[0].mxu0 %v951
  %v953 = vpop.f32.mrb[0].mxu0
  %v954 = vadd.f32 %v854, %v953
  %v955 = vpop.f32.mrb[0].mxu0
  %956 = vmatprep.mubr.f32.mxu0 0.0
  %v957 = vand.u32 %v638, 4294901760
  %v958 = vsub.f32 %v638, %v957
  %959 = vmatmul.mubr.f32.gmra.mrb[0].mxu0 %v958
  %v960 = vpop.f32.mrb[0].mxu0
  %v961 = vadd.f32 %v860, %v960
  %v962 = vpop.f32.mrb[0].mxu0
  %963 = vmatprep.mubr.f32.mxu0 0.0
  %v964 = vand.u32 %v641, 4294901760
  %v965 = vsub.f32 %v641, %v964
  %966 = vmatmul.mubr.f32.gmra.mrb[0].mxu0 %v965
  %v967 = vpop.f32.mrb[0].mxu0
  %v968 = vadd.f32 %v866, %v967
  %v969 = vpop.f32.mrb[0].mxu0
  %970 = vdwg.mxu0
  %971 = vmatprep.subr.mxu0 0.0
  %v972 = vand.u32 %v618, 4294901760
  %973 = vmatpush1.msra.mxu0 %v972
  %974 = vmatprep.subr.mxu0 0.0
  %v975 = vand.u32 %v619, 4294901760
  %976 = vmatpush1.msra.mxu0 %v975
  %977 = vmatprep.subr.mxu0 0.0
  %v978 = vand.u32 %v620, 4294901760
  %979 = vmatpush1.msra.mxu0 %v978
  %980 = vmatprep.subr.mxu0 0.0
  %v981 = vand.u32 %v621, 4294901760
  %982 = vmatpush1.msra.mxu0 %v981
  %983 = vmatprep.subr.mxu0 0.0
  %v984 = vand.u32 %v622, 4294901760
  %985 = vmatpush1.msra.mxu0 %v984
  %986 = vmatprep.subr.mxu0 0.0
  %v987 = vand.u32 %v623, 4294901760
  %988 = vmatpush1.msra.mxu0 %v987
  %989 = vmatprep.subr.mxu0 0.0
  %v990 = vand.u32 %v624, 4294901760
  %991 = vmatpush1.msra.mxu0 %v990
  %992 = vmatprep.subr.mxu0 0.0
  %v993 = vand.u32 %v625, 4294901760
  %994 = vmatpush1.msra.mxu0 %v993
  %995 = vmatprep.subr.mxu0 0.0
  %996 = vmatpush1.msra.mxu0 0.0
  %997 = vmatprep.subr.mxu0 0.0
  %998 = vmatpush1.msra.mxu0 0.0
  %999 = vmatprep.subr.mxu0 0.0
  %1000 = vmatpush1.msra.mxu0 0.0
  %1001 = vmatprep.subr.mxu0 0.0
  %1002 = vmatpush1.msra.mxu0 0.0
  %1003 = vmatprep.subr.mxu0 0.0
  %1004 = vmatpush1.msra.mxu0 0.0
  %1005 = vmatprep.subr.mxu0 0.0
  %1006 = vmatpush1.msra.mxu0 0.0
  %1007 = vmatprep.subr.mxu0 0.0
  %1008 = vmatpush1.msra.mxu0 0.0
  %1009 = vmatprep.subr.mxu0 0.0
  %1010 = vmatpush1.msra.mxu0 0.0
  %1011 = vmatprep.subr.mxu0 0.0
  %1012 = vmatpush1.msra.mxu0 0.0
  %1013 = vmatprep.subr.mxu0 0.0
  %1014 = vmatpush1.msra.mxu0 0.0
  %1015 = vmatprep.subr.mxu0 0.0
  %1016 = vmatpush1.msra.mxu0 0.0
  %1017 = vmatprep.subr.mxu0 0.0
  %1018 = vmatpush1.msra.mxu0 0.0
  %1019 = vmatprep.subr.mxu0 0.0
  %1020 = vmatpush1.msra.mxu0 0.0
  %1021 = vmatprep.subr.mxu0 0.0
  %1022 = vmatpush1.msra.mxu0 0.0
  %1023 = vmatprep.subr.mxu0 0.0
  %1024 = vmatpush1.msra.mxu0 0.0
  %1025 = vmatprep.subr.mxu0 0.0
  %1026 = vmatpush1.msra.mxu0 0.0
  %1027 = vmatprep.subr.mxu0 0.0
  %1028 = vmatpush1.msra.mxu0 0.0
  %1029 = vmatprep.subr.mxu0 0.0
  %1030 = vmatpush1.msra.mxu0 0.0
  %1031 = vmatprep.subr.mxu0 0.0
  %1032 = vmatpush1.msra.mxu0 0.0
  %1033 = vmatprep.subr.mxu0 0.0
  %1034 = vmatpush1.msra.mxu0 0.0
  %1035 = vmatprep.subr.mxu0 0.0
  %1036 = vmatpush1.msra.mxu0 0.0
  %1037 = vmatprep.subr.mxu0 0.0
  %1038 = vmatpush1.msra.mxu0 0.0
  %1039 = vmatprep.subr.mxu0 0.0
  %1040 = vmatpush1.msra.mxu0 0.0
  %1041 = vmatprep.subr.mxu0 0.0
  %1042 = vmatpush1.msra.mxu0 0.0
  %1043 = vmatprep.mubr.f32.mxu0 0.0
  %v1044 = vand.u32 %v635, 4294901760
  %v1045 = vsub.f32 %v635, %v1044
  %v1046 = vand.u32 %v1045, 4294901760
  %1047 = vmatmul.mubr.f32.gmra.mrb[0].mxu0 %v1046
  %v1048 = vpop.f32.mrb[0].mxu0
  %v1049 = vadd.f32 %v954, %v1048
  %v1050 = vpop.f32.mrb[0].mxu0
  %1051 = vmatprep.mubr.f32.mxu0 0.0
  %v1052 = vand.u32 %v638, 4294901760
  %v1053 = vsub.f32 %v638, %v1052
  %v1054 = vand.u32 %v1053, 4294901760
  %1055 = vmatmul.mubr.f32.gmra.mrb[0].mxu0 %v1054
  %v1056 = vpop.f32.mrb[0].mxu0
  %v1057 = vadd.f32 %v961, %v1056
  %v1058 = vpop.f32.mrb[0].mxu0
  %1059 = vmatprep.mubr.f32.mxu0 0.0
  %v1060 = vand.u32 %v641, 4294901760
  %v1061 = vsub.f32 %v641, %v1060
  %v1062 = vand.u32 %v1061, 4294901760
  %1063 = vmatmul.mubr.f32.gmra.mrb[0].mxu0 %v1062
  %v1064 = vpop.f32.mrb[0].mxu0
  %v1065 = vadd.f32 %v968, %v1064
  %v1066 = vpop.f32.mrb[0].mxu0
  %1067 = vdwg.mxu0
  %1068 = vmatprep.subr.mxu0 0.0
  %v1069 = vand.u32 %v618, 4294901760
  %v1070 = vsub.f32 %v618, %v1069
  %v1071 = vand.u32 %v1070, 4294901760
  %1072 = vmatpush1.msra.mxu0 %v1071
  %1073 = vmatprep.subr.mxu0 0.0
  %v1074 = vand.u32 %v619, 4294901760
  %v1075 = vsub.f32 %v619, %v1074
  %v1076 = vand.u32 %v1075, 4294901760
  %1077 = vmatpush1.msra.mxu0 %v1076
  %1078 = vmatprep.subr.mxu0 0.0
  %v1079 = vand.u32 %v620, 4294901760
  %v1080 = vsub.f32 %v620, %v1079
  %v1081 = vand.u32 %v1080, 4294901760
  %1082 = vmatpush1.msra.mxu0 %v1081
  %1083 = vmatprep.subr.mxu0 0.0
  %v1084 = vand.u32 %v621, 4294901760
  %v1085 = vsub.f32 %v621, %v1084
  %v1086 = vand.u32 %v1085, 4294901760
  %1087 = vmatpush1.msra.mxu0 %v1086
  %1088 = vmatprep.subr.mxu0 0.0
  %v1089 = vand.u32 %v622, 4294901760
  %v1090 = vsub.f32 %v622, %v1089
  %v1091 = vand.u32 %v1090, 4294901760
  %1092 = vmatpush1.msra.mxu0 %v1091
  %1093 = vmatprep.subr.mxu0 0.0
  %v1094 = vand.u32 %v623, 4294901760
  %v1095 = vsub.f32 %v623, %v1094
  %v1096 = vand.u32 %v1095, 4294901760
  %1097 = vmatpush1.msra.mxu0 %v1096
  %1098 = vmatprep.subr.mxu0 0.0
  %v1099 = vand.u32 %v624, 4294901760
  %v1100 = vsub.f32 %v624, %v1099
  %v1101 = vand.u32 %v1100, 4294901760
  %1102 = vmatpush1.msra.mxu0 %v1101
  %1103 = vmatprep.subr.mxu0 0.0
  %v1104 = vand.u32 %v625, 4294901760
  %v1105 = vsub.f32 %v625, %v1104
  %v1106 = vand.u32 %v1105, 4294901760
  %1107 = vmatpush1.msra.mxu0 %v1106
  %1108 = vmatprep.subr.mxu0 0.0
  %1109 = vmatpush1.msra.mxu0 0.0
  %1110 = vmatprep.subr.mxu0 0.0
  %1111 = vmatpush1.msra.mxu0 0.0
  %1112 = vmatprep.subr.mxu0 0.0
  %1113 = vmatpush1.msra.mxu0 0.0
  %1114 = vmatprep.subr.mxu0 0.0
  %1115 = vmatpush1.msra.mxu0 0.0
  %1116 = vmatprep.subr.mxu0 0.0
  %1117 = vmatpush1.msra.mxu0 0.0
  %1118 = vmatprep.subr.mxu0 0.0
  %1119 = vmatpush1.msra.mxu0 0.0
  %1120 = vmatprep.subr.mxu0 0.0
  %1121 = vmatpush1.msra.mxu0 0.0
  %1122 = vmatprep.subr.mxu0 0.0
  %1123 = vmatpush1.msra.mxu0 0.0
  %1124 = vmatprep.subr.mxu0 0.0
  %1125 = vmatpush1.msra.mxu0 0.0
  %1126 = vmatprep.subr.mxu0 0.0
  %1127 = vmatpush1.msra.mxu0 0.0
  %1128 = vmatprep.subr.mxu0 0.0
  %1129 = vmatpush1.msra.mxu0 0.0
  %1130 = vmatprep.subr.mxu0 0.0
  %1131 = vmatpush1.msra.mxu0 0.0
  %1132 = vmatprep.subr.mxu0 0.0
  %1133 = vmatpush1.msra.mxu0 0.0
  %1134 = vmatprep.subr.mxu0 0.0
  %1135 = vmatpush1.msra.mxu0 0.0
  %1136 = vmatprep.subr.mxu0 0.0
  %1137 = vmatpush1.msra.mxu0 0.0
  %1138 = vmatprep.subr.mxu0 0.0
  %1139 = vmatpush1.msra.mxu0 0.0
  %1140 = vmatprep.subr.mxu0 0.0
  %1141 = vmatpush1.msra.mxu0 0.0
  %1142 = vmatprep.subr.mxu0 0.0
  %1143 = vmatpush1.msra.mxu0 0.0
  %1144 = vmatprep.subr.mxu0 0.0
  %1145 = vmatpush1.msra.mxu0 0.0
  %1146 = vmatprep.subr.mxu0 0.0
  %1147 = vmatpush1.msra.mxu0 0.0
  %1148 = vmatprep.subr.mxu0 0.0
  %1149 = vmatpush1.msra.mxu0 0.0
  %1150 = vmatprep.subr.mxu0 0.0
  %1151 = vmatpush1.msra.mxu0 0.0
  %1152 = vmatprep.subr.mxu0 0.0
  %1153 = vmatpush1.msra.mxu0 0.0
  %1154 = vmatprep.subr.mxu0 0.0
  %1155 = vmatpush1.msra.mxu0 0.0
  %1156 = vmatprep.mubr.f32.mxu0 0.0
  %v1157 = vand.u32 %v635, 4294901760
  %1158 = vmatmul.mubr.f32.gmra.mrb[0].mxu0 %v1157
  %v1159 = vpop.f32.mrb[0].mxu0
  %v1160 = vadd.f32 %v1049, %v1159
  %v1161 = vpop.f32.mrb[0].mxu0
  %1162 = vmatprep.mubr.f32.mxu0 0.0
  %v1163 = vand.u32 %v638, 4294901760
  %1164 = vmatmul.mubr.f32.gmra.mrb[0].mxu0 %v1163
  %v1165 = vpop.f32.mrb[0].mxu0
  %v1166 = vadd.f32 %v1057, %v1165
  %v1167 = vpop.f32.mrb[0].mxu0
  %1168 = vmatprep.mubr.f32.mxu0 0.0
  %v1169 = vand.u32 %v641, 4294901760
  %1170 = vmatmul.mubr.f32.gmra.mrb[0].mxu0 %v1169
  %v1171 = vpop.f32.mrb[0].mxu0
  %v1172 = vadd.f32 %v1065, %v1171
  %v1173 = vpop.f32.mrb[0].mxu0
  %1174 = vdwg.mxu0
  %1175 = vmatprep.subr.mxu0 0.0
  %v1176 = vand.u32 %v618, 4294901760
  %1177 = vmatpush1.msra.mxu0 %v1176
  %1178 = vmatprep.subr.mxu0 0.0
  %v1179 = vand.u32 %v619, 4294901760
  %1180 = vmatpush1.msra.mxu0 %v1179
  %1181 = vmatprep.subr.mxu0 0.0
  %v1182 = vand.u32 %v620, 4294901760
  %1183 = vmatpush1.msra.mxu0 %v1182
  %1184 = vmatprep.subr.mxu0 0.0
  %v1185 = vand.u32 %v621, 4294901760
  %1186 = vmatpush1.msra.mxu0 %v1185
  %1187 = vmatprep.subr.mxu0 0.0
  %v1188 = vand.u32 %v622, 4294901760
  %1189 = vmatpush1.msra.mxu0 %v1188
  %1190 = vmatprep.subr.mxu0 0.0
  %v1191 = vand.u32 %v623, 4294901760
  %1192 = vmatpush1.msra.mxu0 %v1191
  %1193 = vmatprep.subr.mxu0 0.0
  %v1194 = vand.u32 %v624, 4294901760
  %1195 = vmatpush1.msra.mxu0 %v1194
  %1196 = vmatprep.subr.mxu0 0.0
  %v1197 = vand.u32 %v625, 4294901760
  %1198 = vmatpush1.msra.mxu0 %v1197
  %1199 = vmatprep.subr.mxu0 0.0
  %1200 = vmatpush1.msra.mxu0 0.0
  %1201 = vmatprep.subr.mxu0 0.0
  %1202 = vmatpush1.msra.mxu0 0.0
  %1203 = vmatprep.subr.mxu0 0.0
  %1204 = vmatpush1.msra.mxu0 0.0
  %1205 = vmatprep.subr.mxu0 0.0
  %1206 = vmatpush1.msra.mxu0 0.0
  %1207 = vmatprep.subr.mxu0 0.0
  %1208 = vmatpush1.msra.mxu0 0.0
  %1209 = vmatprep.subr.mxu0 0.0
  %1210 = vmatpush1.msra.mxu0 0.0
  %1211 = vmatprep.subr.mxu0 0.0
  %1212 = vmatpush1.msra.mxu0 0.0
  %1213 = vmatprep.subr.mxu0 0.0
  %1214 = vmatpush1.msra.mxu0 0.0
  %1215 = vmatprep.subr.mxu0 0.0
  %1216 = vmatpush1.msra.mxu0 0.0
  %1217 = vmatprep.subr.mxu0 0.0
  %1218 = vmatpush1.msra.mxu0 0.0
  %1219 = vmatprep.subr.mxu0 0.0
  %1220 = vmatpush1.msra.mxu0 0.0
  %1221 = vmatprep.subr.mxu0 0.0
  %1222 = vmatpush1.msra.mxu0 0.0
  %1223 = vmatprep.subr.mxu0 0.0
  %1224 = vmatpush1.msra.mxu0 0.0
  %1225 = vmatprep.subr.mxu0 0.0
  %1226 = vmatpush1.msra.mxu0 0.0
  %1227 = vmatprep.subr.mxu0 0.0
  %1228 = vmatpush1.msra.mxu0 0.0
  %1229 = vmatprep.subr.mxu0 0.0
  %1230 = vmatpush1.msra.mxu0 0.0
  %1231 = vmatprep.subr.mxu0 0.0
  %1232 = vmatpush1.msra.mxu0 0.0
  %1233 = vmatprep.subr.mxu0 0.0
  %1234 = vmatpush1.msra.mxu0 0.0
  %1235 = vmatprep.subr.mxu0 0.0
  %1236 = vmatpush1.msra.mxu0 0.0
  %1237 = vmatprep.subr.mxu0 0.0
  %1238 = vmatpush1.msra.mxu0 0.0
  %1239 = vmatprep.subr.mxu0 0.0
  %1240 = vmatpush1.msra.mxu0 0.0
  %1241 = vmatprep.subr.mxu0 0.0
  %1242 = vmatpush1.msra.mxu0 0.0
  %1243 = vmatprep.subr.mxu0 0.0
  %1244 = vmatpush1.msra.mxu0 0.0
  %1245 = vmatprep.subr.mxu0 0.0
  %1246 = vmatpush1.msra.mxu0 0.0
  %1247 = vmatprep.mubr.f32.mxu0 0.0
  %v1248 = vand.u32 %v635, 4294901760
  %1249 = vmatmul.mubr.f32.gmra.mrb[0].mxu0 %v1248
  %v1250 = vpop.f32.mrb[0].mxu0
  %v1251 = vadd.f32 %v1160, %v1250
  %v1252 = vpop.f32.mrb[0].mxu0
  %1253 = vmatprep.mubr.f32.mxu0 0.0
  %v1254 = vand.u32 %v638, 4294901760
  %1255 = vmatmul.mubr.f32.gmra.mrb[0].mxu0 %v1254
  %v1256 = vpop.f32.mrb[0].mxu0
  %v1257 = vadd.f32 %v1166, %v1256
  %v1258 = vpop.f32.mrb[0].mxu0
  %1259 = vmatprep.mubr.f32.mxu0 0.0
  %v1260 = vand.u32 %v641, 4294901760
  %1261 = vmatmul.mubr.f32.gmra.mrb[0].mxu0 %v1260
  %v1262 = vpop.f32.mrb[0].mxu0
  %v1263 = vadd.f32 %v1172, %v1262
  %v1264 = vpop.f32.mrb[0].mxu0
  %1265 = vdwg.mxu0
  %1266 = vst.msk [vmem:[%s5] sm:$0xff] %vm34, %v1251
  %1267 = vst.msk [vmem:[%s5 + $0x8] sm:$0xff] %vm34, %v1257
  %1268 = vst.msk [vmem:[%s5 + $0x10] sm:$0xff] %vm34, %v1263
  // Predicated region
  $region22: #{transformer_forward.55} parent=0 // pred_check
    _
  $region23: #{transformer_forward.55} parent=0 // pred_check_branch
    %1270 = sbr.rel (0) target = $region25
  $region24: #{transformer_forward.55} parent=0 // pred_region
    _
  $region25: #{transformer_forward.55} parent=0 // pred_fallthru
    _
  // Predicated region
  $region26: #{transformer_forward.55} parent=0 // pred_check
    _
  $region27: #{transformer_forward.55} parent=0 // pred_check_branch
    %1272 = sbr.rel (0) target = $region29
  $region28: #{transformer_forward.55} parent=0 // pred_region
    _
  $region29: #{transformer_forward.55} parent=0 // pred_fallthru
    _

// kernel: transformer_forward.76
$region0: #{transformer_forward.76}
  #allocation0 [shape = 'u32[]', space=smem, size = 0x4, offset = 0x4, fixed_abs, tag = 'smem constant byte address 0x4 - core index']
  #allocation1 [shape = 'u32[144,128]{1,0:T(1,128)}', space=vmem, size = 0x12000, scoped, tag = 'internal scratch']
  %s0 = inlined_call_operand.vmem [shape: f32[16,32], index: 0, kind: input, shape index: {}]
  %s1 = inlined_call_operand.vmem [shape: f32[16,32], index: 1, kind: input, shape index: {}]
  %s2 = inlined_call_operand.hbm [shape: f32[1,32], index: 2, kind: input, shape index: {}]
  %s3 = inlined_call_operand.hbm [shape: f32[1,32], index: 3, kind: input, shape index: {}]
  %s4 = inlined_call_operand.vmem [shape: f32[16,32], index: 4, kind: output, shape index: {}]
  %s5 = sld [smem:[#allocation0]]
  $region34: #{transformer_forward.76} parent=0
    _
  %s7 = ssub.s32 1, %s5
  %s8 = scalar_select 0, %s7, %s5
  $region1: #{transformer_forward.76} parent=0
    #allocation2 [shape = 'u8[512]{0}', space=vmem, size = 0x400, scoped, tag = 'input window, operand 2, single buffered']
    #allocation3 [shape = 's32[1]{0}', space=sflag, size = 0x4, scoped, tag = 'scoped memory for transformer_forward.76']
    #allocation4 [shape = 'u8[512]{0}', space=vmem, size = 0x400, scoped, tag = 'input window, operand 3, single buffered']
    #allocation5 [shape = 's32[1]{0}', space=sflag, size = 0x4, scoped, tag = 'scoped memory for transformer_forward.76']
    %9 = vsyncpa [#allocation3], 0
    %10 = vsyncpa [#allocation5], 0
    // Predicated region
    $region2: #{transformer_forward.76} parent=1 // pred_check
      _
    $region3: #{transformer_forward.76} parent=1 // pred_check_branch
      %12 = sbr.rel (0) target = $region5
    $region4: #{transformer_forward.76} parent=1 // pred_region
      _
    $region5: #{transformer_forward.76} parent=1 // pred_fallthru
      _
    // Predicated region
    $region6: #{transformer_forward.76} parent=1 // pred_check
      _
    $region7: #{transformer_forward.76} parent=1 // pred_check_branch
      %14 = sbr.rel (0) target = $region9
    $region8: #{transformer_forward.76} parent=1 // pred_region
      _
    $region9: #{transformer_forward.76} parent=1 // pred_fallthru
      _
    // Predicated region
    $region10: #{transformer_forward.76} parent=1 // pred_check
      _
    $region11: #{transformer_forward.76} parent=1 // pred_check_branch
      %16 = sbr.rel (0) target = $region13
    $region12: #{transformer_forward.76} parent=1 // pred_region
      %s18 = ssub.s32 16, 16
      %19 = vsyncadd [#allocation3], %s18
      %s21 = sshll.u32 [#allocation2], 4
      %s22 = int_to_ptr.vmem [resolvable:$true] %s21
      %24 = dma.hbm_to_vmem [thread:$0]  %s2, 16, %s22, [#allocation3]
    $region13: #{transformer_forward.76} parent=1 // pred_fallthru
      _
    // Predicated region
    $region14: #{transformer_forward.76} parent=1 // pred_check
      _
    $region15: #{transformer_forward.76} parent=1 // pred_check_branch
      %26 = sbr.rel (0) target = $region17
    $region16: #{transformer_forward.76} parent=1 // pred_region
      %s28 = ssub.s32 16, 16
      %29 = vsyncadd [#allocation5], %s28
      %s31 = sshll.u32 [#allocation4], 4
      %s32 = int_to_ptr.vmem [resolvable:$true] %s31
      %34 = dma.hbm_to_vmem [thread:$0]  %s3, 16, %s32, [#allocation5]
    $region17: #{transformer_forward.76} parent=1 // pred_fallthru
      _
    // Predicated region
    $region18: #{transformer_forward.76} parent=1 // pred_check
      _
    $region19: #{transformer_forward.76} parent=1 // pred_check_branch
      %36 = sbr.rel (0) target = $region21
    $region20: #{transformer_forward.76} parent=1 // pred_region
      %37 = dma.done [#allocation3], 16
    $region21: #{transformer_forward.76} parent=1 // pred_fallthru
      _
    // Predicated region
    $region22: #{transformer_forward.76} parent=1 // pred_check
      _
    $region23: #{transformer_forward.76} parent=1 // pred_check_branch
      %39 = sbr.rel (0) target = $region25
    $region24: #{transformer_forward.76} parent=1 // pred_region
      %40 = dma.done [#allocation5], 16
    $region25: #{transformer_forward.76} parent=1 // pred_fallthru
      _
    %v41 = vld [vmem:[%s0] sm:$0xff]
    %v42 = vld [vmem:[%s0 + $0x8] sm:$0xff]
    %v43 = vld [vmem:[%s1] sm:$0xff]
    %v44 = vld [vmem:[%s1 + $0x8] sm:$0xff]
    %v45 = vadd.f32 %v41, %v43
    %v46 = vadd.f32 %v42, %v44
    %vm47 = vcmask 261120
    %v48 = vsel %vm47, %v45, 0.0
    %49 = vadd.xlane.f32.xlu0 %v48
    %v50 = vpop.xlane.xlu0 %49
    %v51 = vsel %vm47, %v46, 0.0
    %52 = vadd.xlane.f32.xlu0 %v51
    %v53 = vpop.xlane.xlu0 %52
    %v54 = vrcp.pop 32.0
    %v55 = vmul.f32 %v50, %v54
    %v56 = vmul.f32 %v53, %v54
    %v57 = vsub.f32 %v45, %v55
    %v58 = vsub.f32 %v46, %v56
    %v59 = vmul.f32 %v57, %v57
    %v60 = vmul.f32 %v58, %v58
    %v61 = vsel %vm47, %v59, 0.0
    %62 = vadd.xlane.f32.xlu0 %v61
    %v63 = vpop.xlane.xlu0 %62
    %v64 = vsel %vm47, %v60, 0.0
    %65 = vadd.xlane.f32.xlu0 %v64
    %v66 = vpop.xlane.xlu0 %65
    %v67 = vmul.f32 %v63, %v54
    %v68 = vmul.f32 %v66, %v54
    %v69 = vadd.f32 %v67, 1e-05
    %v70 = vadd.f32 %v68, 1e-05
    %v71 = vrsqrt.pop %v69
    %v72 = vrsqrt.pop %v70
    %v73 = vmul.f32 %v57, %v71
    %v74 = vmul.f32 %v58, %v72
    %v75 = vld [vmem:[#allocation2] sm:$0x1]
    %v77 = vlaneseq
    %v78 = vshrl.u32 %v77, 7
    %v79 = vsub.s32 0, %v78
    %v80 = vrot.slane %v75, %v79
    %v82 = vmul.f32 %v73, %v80
    %v83 = vmul.f32 %v74, %v80
    %v84 = vld [vmem:[#allocation4] sm:$0x1]
    %v86 = vlaneseq
    %v87 = vshrl.u32 %v86, 7
    %v88 = vsub.s32 0, %v87
    %v89 = vrot.slane %v84, %v88
    %v91 = vadd.f32 %v82, %v89
    %v92 = vadd.f32 %v83, %v89
    %93 = vst.msk [vmem:[%s4] sm:$0xff] %vm47, %v91
    %94 = vst.msk [vmem:[%s4 + $0x8] sm:$0xff] %vm47, %v92
    // Predicated region
    $region26: #{transformer_forward.76} parent=1 // pred_check
      _
    $region27: #{transformer_forward.76} parent=1 // pred_check_branch
      %96 = sbr.rel (0) target = $region29
    $region28: #{transformer_forward.76} parent=1 // pred_region
      _
    $region29: #{transformer_forward.76} parent=1 // pred_fallthru
      _
    // Predicated region
    $region30: #{transformer_forward.76} parent=1 // pred_check
      _
    $region31: #{transformer_forward.76} parent=1 // pred_check_branch
      %98 = sbr.rel (0) target = $region33
    $region32: #{transformer_forward.76} parent=1 // pred_region
      _
    $region33: #{transformer_forward.76} parent=1 // pred_fallthru
      _
    %99 = vsyncpa [#allocation3], 1
    %100 = vsyncpa [#allocation5], 1

// kernel: transformer_forward.74
$region0: #{transformer_forward.74}
  #allocation0 [shape = 'u32[]', space=smem, size = 0x4, offset = 0x4, fixed_abs, tag = 'smem constant byte address 0x4 - core index']
  #allocation1 [shape = 'u32[144,128]{1,0:T(1,128)}', space=vmem, size = 0x12000, scoped, tag = 'internal scratch']
  %s0 = inlined_call_operand.vmem [shape: f32[8,8,8], index: 0, kind: input, shape index: {}]
  %s1 = inlined_call_operand.vmem [shape: f32[8,12,8], index: 1, kind: input, shape index: {}]
  %s2 = inlined_call_operand.vmem [shape: f32[8,12,8], index: 2, kind: input, shape index: {}]
  %s3 = inlined_call_operand.vmem [shape: f32[8,8,12], index: 3, kind: input, shape index: {}]
  %s4 = inlined_call_operand.vmem [shape: f32[8,8,8], index: 4, kind: output, shape index: {}]
  %s5 = sld [smem:[#allocation0]]
  $region49: #{transformer_forward.74} parent=0
    _
  %s7 = ssub.s32 1, %s5
  %s8 = scalar_select 0, %s7, %s5
  loop: start=0, step=1, limit=10
  $region2: #{transformer_forward.74} parent=0 // loop_pre_header
    _
  $region3: #{transformer_forward.74} parent=0 // loop_header
    %s10 = sphi 0, %s14
    %p11 = scmp.ge.s32.totalorder %s10, 10
    %s20 = sphi 0, %s22
    %s23 = sphi 0, %s20
    %s24 = sphi 0, %s23
    %s40 = sphi 0, %s24
    %s46 = sphi 0, %s48
    %s49 = sphi 0, %s46
    %s50 = sphi 0, %s49
    %s66 = sphi 0, %s50
    %s72 = sphi 0, %s74
    %s75 = sphi 0, %s72
    %s76 = sphi 0, %s75
    %s92 = sphi 0, %s76
    %s98 = sphi 0, %s100
    %s101 = sphi 0, %s98
    %s102 = sphi 0, %s101
    %s118 = sphi 0, %s102
    %s124 = sphi 0, %s126
    %s127 = sphi 0, %s124
    %s128 = sphi 0, %s127
    %s144 = sphi 0, %s128
  $region4: #{transformer_forward.74} parent=0 // loop_header_branch
    %13 = sbr.rel (%p11) target = $region8
  $region5: #{transformer_forward.74} parent=0 // loop_body
    %s15 = ssub.s32 %s10, 1
    %s16 = ssub.s32 %s10, 2
    %s17 = sadd.s32 %s10, 1
    %s18 = ssub.s32 %s10, %s17
    %p19 = scmp.eq.s32.totalorder %s18, 0
    %s21 = sadd.s32 %s20, 1
    %s22 = scalar_select %p19, %s20, %s21
    %p25 = pneg %p19
    %p26 = scmp.eq.s32.totalorder %s10, 7
    %p27 = por %p25, %p26
    %p28 = scmp.ne.s32.totalorder %s20, %s23
    %p29 = scmp.eq.s32.totalorder %s10, 0
    %p30 = por %p28, %p29
    %p31 = scmp.ne.s32.totalorder %s20, %s23
    %p32 = scmp.eq.s32.totalorder %s15, 7
    %p33 = por %p31, %p32
    %p34 = scmp.ne.s32.totalorder %s23, %s24
    %p35 = scmp.eq.s32.totalorder %s15, 0
    %p36 = por %p34, %p35
    %p37 = scmp.ne.s32.totalorder %s23, %s24
    %p38 = scmp.eq.s32.totalorder %s16, 7
    %p39 = por %p37, %p38
    %p41 = scmp.ne.s32.totalorder %s24, %s40
    %p42 = scmp.eq.s32.totalorder %s16, 0
    %p43 = por %p41, %p42
    %s44 = ssub.s32 %s10, %s17
    %p45 = scmp.eq.s32.totalorder %s44, 0
    %s47 = sadd.s32 %s46, 1
    %s48 = scalar_select %p45, %s46, %s47
    %p51 = pneg %p45
    %p52 = scmp.eq.s32.totalorder %s10, 7
    %p53 = por %p51, %p52
    %p54 = scmp.ne.s32.totalorder %s46, %s49
    %p55 = scmp.eq.s32.totalorder %s10, 0
    %p56 = por %p54, %p55
    %p57 = scmp.ne.s32.totalorder %s46, %s49
    %p58 = scmp.eq.s32.totalorder %s15, 7
    %p59 = por %p57, %p58
    %p60 = scmp.ne.s32.totalorder %s49, %s50
    %p61 = scmp.eq.s32.totalorder %s15, 0
    %p62 = por %p60, %p61
    %p63 = scmp.ne.s32.totalorder %s49, %s50
    %p64 = scmp.eq.s32.totalorder %s16, 7
    %p65 = por %p63, %p64
    %p67 = scmp.ne.s32.totalorder %s50, %s66
    %p68 = scmp.eq.s32.totalorder %s16, 0
    %p69 = por %p67, %p68
    %s70 = ssub.s32 %s10, %s17
    %p71 = scmp.eq.s32.totalorder %s70, 0
    %s73 = sadd.s32 %s72, 1
    %s74 = scalar_select %p71, %s72, %s73
    %p77 = pneg %p71
    %p78 = scmp.eq.s32.totalorder %s10, 7
    %p79 = por %p77, %p78
    %p80 = scmp.ne.s32.totalorder %s72, %s75
    %p81 = scmp.eq.s32.totalorder %s10, 0
    %p82 = por %p80, %p81
    %p83 = scmp.ne.s32.totalorder %s72, %s75
    %p84 = scmp.eq.s32.totalorder %s15, 7
    %p85 = por %p83, %p84
    %p86 = scmp.ne.s32.totalorder %s75, %s76
    %p87 = scmp.eq.s32.totalorder %s15, 0
    %p88 = por %p86, %p87
    %p89 = scmp.ne.s32.totalorder %s75, %s76
    %p90 = scmp.eq.s32.totalorder %s16, 7
    %p91 = por %p89, %p90
    %p93 = scmp.ne.s32.totalorder %s76, %s92
    %p94 = scmp.eq.s32.totalorder %s16, 0
    %p95 = por %p93, %p94
    %s96 = ssub.s32 %s10, %s17
    %p97 = scmp.eq.s32.totalorder %s96, 0
    %s99 = sadd.s32 %s98, 1
    %s100 = scalar_select %p97, %s98, %s99
    %p103 = pneg %p97
    %p104 = scmp.eq.s32.totalorder %s10, 7
    %p105 = por %p103, %p104
    %p106 = scmp.ne.s32.totalorder %s98, %s101
    %p107 = scmp.eq.s32.totalorder %s10, 0
    %p108 = por %p106, %p107
    %p109 = scmp.ne.s32.totalorder %s98, %s101
    %p110 = scmp.eq.s32.totalorder %s15, 7
    %p111 = por %p109, %p110
    %p112 = scmp.ne.s32.totalorder %s101, %s102
    %p113 = scmp.eq.s32.totalorder %s15, 0
    %p114 = por %p112, %p113
    %p115 = scmp.ne.s32.totalorder %s101, %s102
    %p116 = scmp.eq.s32.totalorder %s16, 7
    %p117 = por %p115, %p116
    %p119 = scmp.ne.s32.totalorder %s102, %s118
    %p120 = scmp.eq.s32.totalorder %s16, 0
    %p121 = por %p119, %p120
    %s122 = ssub.s32 %s10, %s17
    %p123 = scmp.eq.s32.totalorder %s122, 0
    %s125 = sadd.s32 %s124, 1
    %s126 = scalar_select %p123, %s124, %s125
    %p129 = pneg %p123
    %p130 = scmp.eq.s32.totalorder %s10, 7
    %p131 = por %p129, %p130
    %p132 = scmp.ne.s32.totalorder %s124, %s127
    %p133 = scmp.eq.s32.totalorder %s10, 0
    %p134 = por %p132, %p133
    %p135 = scmp.ne.s32.totalorder %s124, %s127
    %p136 = scmp.eq.s32.totalorder %s15, 7
    %p137 = por %p135, %p136
    %p138 = scmp.ne.s32.totalorder %s127, %s128
    %p139 = scmp.eq.s32.totalorder %s15, 0
    %p140 = por %p138, %p139
    %p141 = scmp.ne.s32.totalorder %s127, %s128
    %p142 = scmp.eq.s32.totalorder %s16, 7
    %p143 = por %p141, %p142
    %p145 = scmp.ne.s32.totalorder %s128, %s144
    %p146 = scmp.eq.s32.totalorder %s16, 0
    %p147 = por %p145, %p146
    %p148 = scmp.le.s32.totalorder 1, %s10
    %p149 = scmp.lt.s32.totalorder %s10, 9
    %p150 = pnand %p148, %p149
    %p151 = pneg %p150
    // Predicated region
    $region9: #{transformer_forward.74} parent=5 // pred_check
      _
    $region10: #{transformer_forward.74} parent=5 // pred_check_branch
      %153 = sbr.rel (%p150) target = $region12
    $region11: #{transformer_forward.74} parent=5 // pred_region
      %s154 = ssub.s32 %s10, 1
    $region12: #{transformer_forward.74} parent=5 // pred_fallthru
      _
    %p155 = scmp.lt.s32.totalorder %s10, 8
    // Predicated region
    $region13: #{transformer_forward.74} parent=5 // pred_check
      %p156 = pneg %p155
    $region14: #{transformer_forward.74} parent=5 // pred_check_branch
      %158 = sbr.rel (%p156) target = $region16
    $region15: #{transformer_forward.74} parent=5 // pred_region
      // Predicated region
      $region17: #{transformer_forward.74} parent=15 // pred_check
        %p159 = pneg %p30
      $region18: #{transformer_forward.74} parent=15 // pred_check_branch
        %161 = sbr.rel (%p159) target = $region20
      $region19: #{transformer_forward.74} parent=15 // pred_region
        %p162 = scmp.lt.s32.totalorder %s10, 7
        %s163 = scalar_select %p162, %s10, 7
        %s164 = smul.addr %s163, 8
        %s165 = scalar_lea.vmem %s0, %s164
      $region20: #{transformer_forward.74} parent=15 // pred_fallthru
        _
      // Predicated region
      $region21: #{transformer_forward.74} parent=15 // pred_check
        %p166 = pneg %p56
      $region22: #{transformer_forward.74} parent=15 // pred_check_branch
        %168 = sbr.rel (%p166) target = $region24
      $region23: #{transformer_forward.74} parent=15 // pred_region
        %p169 = scmp.lt.s32.totalorder %s10, 7
        %s170 = scalar_select %p169, %s10, 7
        %s171 = smul.addr %s170, 2
        %s172 = smul.addr %s171, 8
        %s173 = scalar_lea.vmem %s1, %s172
      $region24: #{transformer_forward.74} parent=15 // pred_fallthru
        _
      // Predicated region
      $region25: #{transformer_forward.74} parent=15 // pred_check
        %p174 = pneg %p82
      $region26: #{transformer_forward.74} parent=15 // pred_check_branch
        %176 = sbr.rel (%p174) target = $region28
      $region27: #{transformer_forward.74} parent=15 // pred_region
        %p177 = scmp.lt.s32.totalorder %s10, 7
        %s178 = scalar_select %p177, %s10, 7
        %s179 = smul.addr %s178, 2
        %s180 = smul.addr %s179, 8
        %s181 = scalar_lea.vmem %s2, %s180
      $region28: #{transformer_forward.74} parent=15 // pred_fallthru
        _
      // Predicated region
      $region29: #{transformer_forward.74} parent=15 // pred_check
        %p182 = pneg %p108
      $region30: #{transformer_forward.74} parent=15 // pred_check_branch
        %184 = sbr.rel (%p182) target = $region32
      $region31: #{transformer_forward.74} parent=15 // pred_region
        %p185 = scmp.lt.s32.totalorder %s10, 7
        %s186 = scalar_select %p185, %s10, 7
        %s187 = smul.addr %s186, 8
        %s188 = scalar_lea.vmem %s3, %s187
      $region32: #{transformer_forward.74} parent=15 // pred_fallthru
        _
    $region16: #{transformer_forward.74} parent=5 // pred_fallthru
      _
    %p189 = scmp.le.s32.totalorder 1, %s10
    %p190 = scmp.lt.s32.totalorder %s10, 9
    %p191 = pnand %p189, %p190
    %p192 = pneg %p191
    // Predicated region
    $region33: #{transformer_forward.74} parent=5 // pred_check
      _
    $region34: #{transformer_forward.74} parent=5 // pred_check_branch
      %194 = sbr.rel (%p191) target = $region36
    $region35: #{transformer_forward.74} parent=5 // pred_region
      %s195 = ssub.s32 %s10, 1
      %p196 = scmp.lt.s32.totalorder %s15, 7
      %s197 = scalar_select %p196, %s15, 7
      %s198 = smul.addr %s197, 8
      %s199 = scalar_lea.vmem %s0, %s198
      %p200 = pneg %p36
      %p201 = pneg %p33
      %p202 = scmp.lt.s32.totalorder %s15, 7
      %s203 = scalar_select %p202, %s15, 7
      %s204 = smul.addr %s203, 2
      %s205 = smul.addr %s204, 8
      %s206 = scalar_lea.vmem %s1, %s205
      %p207 = pneg %p62
      %p208 = pneg %p59
      %p209 = scmp.lt.s32.totalorder %s15, 7
      %s210 = scalar_select %p209, %s15, 7
      %s211 = smul.addr %s210, 2
      %s212 = smul.addr %s211, 8
      %s213 = scalar_lea.vmem %s2, %s212
      %p214 = pneg %p88
      %p215 = pneg %p85
      %p216 = scmp.lt.s32.totalorder %s15, 7
      %s217 = scalar_select %p216, %s15, 7
      %s218 = smul.addr %s217, 8
      %s219 = scalar_lea.vmem %s3, %s218
      %p220 = pneg %p114
      %p221 = pneg %p111
      %p222 = pneg %p140
      %p223 = pneg %p137
      %p224 = scmp.lt.s32.totalorder %s15, 7
      %s225 = scalar_select %p224, %s15, 7
      %s226 = smul.addr %s225, 8
      %s227 = scalar_lea.vmem %s4, %s226
      %p228 = scmp.lt.s32.totalorder %s15, 7
      %s229 = scalar_select %p228, %s15, 7
      %s230 = smul.addr %s229, 8
      %s231 = scalar_lea.vmem %s0, %s230
      %p232 = scmp.lt.s32.totalorder %s15, 7
      %s233 = scalar_select %p232, %s15, 7
      %s234 = smul.addr %s233, 2
      %s235 = smul.addr %s234, 8
      %s236 = scalar_lea.vmem %s1, %s235
      %p237 = scmp.lt.s32.totalorder %s15, 7
      %s238 = scalar_select %p237, %s15, 7
      %s239 = smul.addr %s238, 2
      %s240 = smul.addr %s239, 8
      %s241 = scalar_lea.vmem %s2, %s240
      %p242 = scmp.lt.s32.totalorder %s15, 7
      %s243 = scalar_select %p242, %s15, 7
      %s244 = smul.addr %s243, 8
      %s245 = scalar_lea.vmem %s3, %s244
      %p246 = scmp.lt.s32.totalorder %s15, 7
      %s247 = scalar_select %p246, %s15, 7
      %s248 = smul.addr %s247, 8
      %s249 = scalar_lea.vmem %s4, %s248
      %v250 = vld [vmem:[%s231] sm:$0xff]
      %v251 = vld [vmem:[%s236] sm:$0xff]
      %v252 = vld [vmem:[%s236 + $0x8] sm:$0xf]
      %v253 = vld [vmem:[%s241] sm:$0xff]
      %v254 = vld [vmem:[%s241 + $0x8] sm:$0xf]
      %vm255 = vcmask 64512
      %v257 = vsel %vm255, %v250, 0
      %v260 = vsel %vm255, %v251, 0
      %v263 = vsel %vm255, %v252, 0
      %265 = vmatprep.subr.mxu0 0.0
      %v266 = vand.u32 %v260, 4294901760
      %267 = vmatpush1.xpose.msra.mxu0 %v266
      %268 = vmatprep.subr.mxu0 0.0
      %v269 = vand.u32 %v263, 4294901760
      %270 = vmatpush1.xpose.msra.mxu0 %v269
      %271 = vmatprep.subr.mxu0 0.0
      %272 = vmatpush1.xpose.msra.mxu0 0.0
      %273 = vmatprep.subr.mxu0 0.0
      %274 = vmatpush1.xpose.msra.mxu0 0.0
      %275 = vmatprep.subr.mxu0 0.0
      %276 = vmatpush1.xpose.msra.mxu0 0.0
      %277 = vmatprep.subr.mxu0 0.0
      %278 = vmatpush1.xpose.msra.mxu0 0.0
      %279 = vmatprep.subr.mxu0 0.0
      %280 = vmatpush1.xpose.msra.mxu0 0.0
      %281 = vmatprep.subr.mxu0 0.0
      %282 = vmatpush1.xpose.msra.mxu0 0.0
      %283 = vmatprep.subr.mxu0 0.0
      %284 = vmatpush1.xpose.msra.mxu0 0.0
      %285 = vmatprep.subr.mxu0 0.0
      %286 = vmatpush1.xpose.msra.mxu0 0.0
      %287 = vmatprep.subr.mxu0 0.0
      %288 = vmatpush1.xpose.msra.mxu0 0.0
      %289 = vmatprep.subr.mxu0 0.0
      %290 = vmatpush1.xpose.msra.mxu0 0.0
      %291 = vmatprep.subr.mxu0 0.0
      %292 = vmatpush1.xpose.msra.mxu0 0.0
      %293 = vmatprep.subr.mxu0 0.0
      %294 = vmatpush1.xpose.msra.mxu0 0.0
      %295 = vmatprep.subr.mxu0 0.0
      %296 = vmatpush1.xpose.msra.mxu0 0.0
      %297 = vmatprep.subr.mxu0 0.0
      %298 = vmatpush1.xpose.msra.mxu0 0.0
      %299 = vmatprep.subr.mxu0 0.0
      %300 = vmatpush1.xpose.msra.mxu0 0.0
      %301 = vmatprep.subr.mxu0 0.0
      %302 = vmatpush1.xpose.msra.mxu0 0.0
      %303 = vmatprep.subr.mxu0 0.0
      %304 = vmatpush1.xpose.msra.mxu0 0.0
      %305 = vmatprep.subr.mxu0 0.0
      %306 = vmatpush1.xpose.msra.mxu0 0.0
      %307 = vmatprep.subr.mxu0 0.0
      %308 = vmatpush1.xpose.msra.mxu0 0.0
      %309 = vmatprep.subr.mxu0 0.0
      %310 = vmatpush1.xpose.msra.mxu0 0.0
      %311 = vmatprep.subr.mxu0 0.0
      %312 = vmatpush1.xpose.msra.mxu0 0.0
      %313 = vmatprep.subr.mxu0 0.0
      %314 = vmatpush1.xpose.msra.mxu0 0.0
      %315 = vmatprep.subr.mxu0 0.0
      %316 = vmatpush1.xpose.msra.mxu0 0.0
      %317 = vmatprep.subr.mxu0 0.0
      %318 = vmatpush1.xpose.msra.mxu0 0.0
      %319 = vmatprep.subr.mxu0 0.0
      %320 = vmatpush1.xpose.msra.mxu0 0.0
      %321 = vmatprep.subr.mxu0 0.0
      %322 = vmatpush1.xpose.msra.mxu0 0.0
      %323 = vmatprep.subr.mxu0 0.0
      %324 = vmatpush1.xpose.msra.mxu0 0.0
      %325 = vmatprep.subr.mxu0 0.0
      %326 = vmatpush1.xpose.msra.mxu0 0.0
      %327 = vmatprep.subr.mxu0 0.0
      %328 = vmatpush1.xpose.msra.mxu0 0.0
      %329 = vmatprep.subr.mxu0 0.0
      %330 = vmatpush1.xpose.msra.mxu0 0.0
      %331 = vmatprep.mubr.f32.mxu0 0.0
      %v332 = vand.u32 %v257, 4294901760
      %v333 = vsub.f32 %v257, %v332
      %v334 = vand.u32 %v333, 4294901760
      %v335 = vsub.f32 %v333, %v334
      %v336 = vand.u32 %v335, 4294901760
      %337 = vmatmul.mubr.f32.gmra.mrb[0].mxu0 %v336
      %v338 = vpop.f32.mrb[0].mxu0
      %v339 = vadd.f32 0.0, %v338
      %v340 = vpop.f32.mrb[0].mxu0
      %341 = vdwg.mxu0
      %342 = vmatprep.subr.mxu0 0.0
      %v343 = vand.u32 %v260, 4294901760
      %v344 = vsub.f32 %v260, %v343
      %v345 = vand.u32 %v344, 4294901760
      %v346 = vsub.f32 %v344, %v345
      %v347 = vand.u32 %v346, 4294901760
      %348 = vmatpush1.xpose.msra.mxu0 %v347
      %349 = vmatprep.subr.mxu0 0.0
      %v350 = vand.u32 %v263, 4294901760
      %v351 = vsub.f32 %v263, %v350
      %v352 = vand.u32 %v351, 4294901760
      %v353 = vsub.f32 %v351, %v352
      %v354 = vand.u32 %v353, 4294901760
      %355 = vmatpush1.xpose.msra.mxu0 %v354
      %356 = vmatprep.subr.mxu0 0.0
      %357 = vmatpush1.xpose.msra.mxu0 0.0
      %358 = vmatprep.subr.mxu0 0.0
      %359 = vmatpush1.xpose.msra.mxu0 0.0
      %360 = vmatprep.subr.mxu0 0.0
      %361 = vmatpush1.xpose.msra.mxu0 0.0
      %362 = vmatprep.subr.mxu0 0.0
      %363 = vmatpush1.xpose.msra.mxu0 0.0
      %364 = vmatprep.subr.mxu0 0.0
      %365 = vmatpush1.xpose.msra.mxu0 0.0
      %366 = vmatprep.subr.mxu0 0.0
      %367 = vmatpush1.xpose.msra.mxu0 0.0
      %368 = vmatprep.subr.mxu0 0.0
      %369 = vmatpush1.xpose.msra.mxu0 0.0
      %370 = vmatprep.subr.mxu0 0.0
      %371 = vmatpush1.xpose.msra.mxu0 0.0
      %372 = vmatprep.subr.mxu0 0.0
      %373 = vmatpush1.xpose.msra.mxu0 0.0
      %374 = vmatprep.subr.mxu0 0.0
      %375 = vmatpush1.xpose.msra.mxu0 0.0
      %376 = vmatprep.subr.mxu0 0.0
      %377 = vmatpush1.xpose.msra.mxu0 0.0
      %378 = vmatprep.subr.mxu0 0.0
      %379 = vmatpush1.xpose.msra.mxu0 0.0
      %380 = vmatprep.subr.mxu0 0.0
      %381 = vmatpush1.xpose.msra.mxu0 0.0
      %382 = vmatprep.subr.mxu0 0.0
      %383 = vmatpush1.xpose.msra.mxu0 0.0
      %384 = vmatprep.subr.mxu0 0.0
      %385 = vmatpush1.xpose.msra.mxu0 0.0
      %386 = vmatprep.subr.mxu0 0.0
      %387 = vmatpush1.xpose.msra.mxu0 0.0
      %388 = vmatprep.subr.mxu0 0.0
      %389 = vmatpush1.xpose.msra.mxu0 0.0
      %390 = vmatprep.subr.mxu0 0.0
      %391 = vmatpush1.xpose.msra.mxu0 0.0
      %392 = vmatprep.subr.mxu0 0.0
      %393 = vmatpush1.xpose.msra.mxu0 0.0
      %394 = vmatprep.subr.mxu0 0.0
      %395 = vmatpush1.xpose.msra.mxu0 0.0
      %396 = vmatprep.subr.mxu0 0.0
      %397 = vmatpush1.xpose.msra.mxu0 0.0
      %398 = vmatprep.subr.mxu0 0.0
      %399 = vmatpush1.xpose.msra.mxu0 0.0
      %400 = vmatprep.subr.mxu0 0.0
      %401 = vmatpush1.xpose.msra.mxu0 0.0
      %402 = vmatprep.subr.mxu0 0.0
      %403 = vmatpush1.xpose.msra.mxu0 0.0
      %404 = vmatprep.subr.mxu0 0.0
      %405 = vmatpush1.xpose.msra.mxu0 0.0
      %406 = vmatprep.subr.mxu0 0.0
      %407 = vmatpush1.xpose.msra.mxu0 0.0
      %408 = vmatprep.subr.mxu0 0.0
      %409 = vmatpush1.xpose.msra.mxu0 0.0
      %410 = vmatprep.subr.mxu0 0.0
      %411 = vmatpush1.xpose.msra.mxu0 0.0
      %412 = vmatprep.subr.mxu0 0.0
      %413 = vmatpush1.xpose.msra.mxu0 0.0
      %414 = vmatprep.subr.mxu0 0.0
      %415 = vmatpush1.xpose.msra.mxu0 0.0
      %416 = vmatprep.mubr.f32.mxu0 0.0
      %v417 = vand.u32 %v257, 4294901760
      %418 = vmatmul.mubr.f32.gmra.mrb[0].mxu0 %v417
      %v419 = vpop.f32.mrb[0].mxu0
      %v420 = vadd.f32 %v339, %v419
      %v421 = vpop.f32.mrb[0].mxu0
      %422 = vdwg.mxu0
      %423 = vmatprep.subr.mxu0 0.0
      %v424 = vand.u32 %v260, 4294901760
      %v425 = vsub.f32 %v260, %v424
      %426 = vmatpush1.xpose.msra.mxu0 %v425
      %427 = vmatprep.subr.mxu0 0.0
      %v428 = vand.u32 %v263, 4294901760
      %v429 = vsub.f32 %v263, %v428
      %430 = vmatpush1.xpose.msra.mxu0 %v429
      %431 = vmatprep.subr.mxu0 0.0
      %432 = vmatpush1.xpose.msra.mxu0 0.0
      %433 = vmatprep.subr.mxu0 0.0
      %434 = vmatpush1.xpose.msra.mxu0 0.0
      %435 = vmatprep.subr.mxu0 0.0
      %436 = vmatpush1.xpose.msra.mxu0 0.0
      %437 = vmatprep.subr.mxu0 0.0
      %438 = vmatpush1.xpose.msra.mxu0 0.0
      %439 = vmatprep.subr.mxu0 0.0
      %440 = vmatpush1.xpose.msra.mxu0 0.0
      %441 = vmatprep.subr.mxu0 0.0
      %442 = vmatpush1.xpose.msra.mxu0 0.0
      %443 = vmatprep.subr.mxu0 0.0
      %444 = vmatpush1.xpose.msra.mxu0 0.0
      %445 = vmatprep.subr.mxu0 0.0
      %446 = vmatpush1.xpose.msra.mxu0 0.0
      %447 = vmatprep.subr.mxu0 0.0
      %448 = vmatpush1.xpose.msra.mxu0 0.0
      %449 = vmatprep.subr.mxu0 0.0
      %450 = vmatpush1.xpose.msra.mxu0 0.0
      %451 = vmatprep.subr.mxu0 0.0
      %452 = vmatpush1.xpose.msra.mxu0 0.0
      %453 = vmatprep.subr.mxu0 0.0
      %454 = vmatpush1.xpose.msra.mxu0 0.0
      %455 = vmatprep.subr.mxu0 0.0
      %456 = vmatpush1.xpose.msra.mxu0 0.0
      %457 = vmatprep.subr.mxu0 0.0
      %458 = vmatpush1.xpose.msra.mxu0 0.0
      %459 = vmatprep.subr.mxu0 0.0
      %460 = vmatpush1.xpose.msra.mxu0 0.0
      %461 = vmatprep.subr.mxu0 0.0
      %462 = vmatpush1.xpose.msra.mxu0 0.0
      %463 = vmatprep.subr.mxu0 0.0
      %464 = vmatpush1.xpose.msra.mxu0 0.0
      %465 = vmatprep.subr.mxu0 0.0
      %466 = vmatpush1.xpose.msra.mxu0 0.0
      %467 = vmatprep.subr.mxu0 0.0
      %468 = vmatpush1.xpose.msra.mxu0 0.0
      %469 = vmatprep.subr.mxu0 0.0
      %470 = vmatpush1.xpose.msra.mxu0 0.0
      %471 = vmatprep.subr.mxu0 0.0
      %472 = vmatpush1.xpose.msra.mxu0 0.0
      %473 = vmatprep.subr.mxu0 0.0
      %474 = vmatpush1.xpose.msra.mxu0 0.0
      %475 = vmatprep.subr.mxu0 0.0
      %476 = vmatpush1.xpose.msra.mxu0 0.0
      %477 = vmatprep.subr.mxu0 0.0
      %478 = vmatpush1.xpose.msra.mxu0 0.0
      %479 = vmatprep.subr.mxu0 0.0
      %480 = vmatpush1.xpose.msra.mxu0 0.0
      %481 = vmatprep.subr.mxu0 0.0
      %482 = vmatpush1.xpose.msra.mxu0 0.0
      %483 = vmatprep.subr.mxu0 0.0
      %484 = vmatpush1.xpose.msra.mxu0 0.0
      %485 = vmatprep.subr.mxu0 0.0
      %486 = vmatpush1.xpose.msra.mxu0 0.0
      %487 = vmatprep.subr.mxu0 0.0
      %488 = vmatpush1.xpose.msra.mxu0 0.0
      %489 = vmatprep.subr.mxu0 0.0
      %490 = vmatpush1.xpose.msra.mxu0 0.0
      %491 = vmatprep.mubr.f32.mxu0 0.0
      %v492 = vand.u32 %v257, 4294901760
      %v493 = vsub.f32 %v257, %v492
      %494 = vmatmul.mubr.f32.gmra.mrb[0].mxu0 %v493
      %v495 = vpop.f32.mrb[0].mxu0
      %v496 = vadd.f32 %v420, %v495
      %v497 = vpop.f32.mrb[0].mxu0
      %498 = vdwg.mxu0
      %499 = vmatprep.subr.mxu0 0.0
      %v500 = vand.u32 %v260, 4294901760
      %501 = vmatpush1.xpose.msra.mxu0 %v500
      %502 = vmatprep.subr.mxu0 0.0
      %v503 = vand.u32 %v263, 4294901760
      %504 = vmatpush1.xpose.msra.mxu0 %v503
      %505 = vmatprep.subr.mxu0 0.0
      %506 = vmatpush1.xpose.msra.mxu0 0.0
      %507 = vmatprep.subr.mxu0 0.0
      %508 = vmatpush1.xpose.msra.mxu0 0.0
      %509 = vmatprep.subr.mxu0 0.0
      %510 = vmatpush1.xpose.msra.mxu0 0.0
      %511 = vmatprep.subr.mxu0 0.0
      %512 = vmatpush1.xpose.msra.mxu0 0.0
      %513 = vmatprep.subr.mxu0 0.0
      %514 = vmatpush1.xpose.msra.mxu0 0.0
      %515 = vmatprep.subr.mxu0 0.0
      %516 = vmatpush1.xpose.msra.mxu0 0.0
      %517 = vmatprep.subr.mxu0 0.0
      %518 = vmatpush1.xpose.msra.mxu0 0.0
      %519 = vmatprep.subr.mxu0 0.0
      %520 = vmatpush1.xpose.msra.mxu0 0.0
      %521 = vmatprep.subr.mxu0 0.0
      %522 = vmatpush1.xpose.msra.mxu0 0.0
      %523 = vmatprep.subr.mxu0 0.0
      %524 = vmatpush1.xpose.msra.mxu0 0.0
      %525 = vmatprep.subr.mxu0 0.0
      %526 = vmatpush1.xpose.msra.mxu0 0.0
      %527 = vmatprep.subr.mxu0 0.0
      %528 = vmatpush1.xpose.msra.mxu0 0.0
      %529 = vmatprep.subr.mxu0 0.0
      %530 = vmatpush1.xpose.msra.mxu0 0.0
      %531 = vmatprep.subr.mxu0 0.0
      %532 = vmatpush1.xpose.msra.mxu0 0.0
      %533 = vmatprep.subr.mxu0 0.0
      %534 = vmatpush1.xpose.msra.mxu0 0.0
      %535 = vmatprep.subr.mxu0 0.0
      %536 = vmatpush1.xpose.msra.mxu0 0.0
      %537 = vmatprep.subr.mxu0 0.0
      %538 = vmatpush1.xpose.msra.mxu0 0.0
      %539 = vmatprep.subr.mxu0 0.0
      %540 = vmatpush1.xpose.msra.mxu0 0.0
      %541 = vmatprep.subr.mxu0 0.0
      %542 = vmatpush1.xpose.msra.mxu0 0.0
      %543 = vmatprep.subr.mxu0 0.0
      %544 = vmatpush1.xpose.msra.mxu0 0.0
      %545 = vmatprep.subr.mxu0 0.0
      %546 = vmatpush1.xpose.msra.mxu0 0.0
      %547 = vmatprep.subr.mxu0 0.0
      %548 = vmatpush1.xpose.msra.mxu0 0.0
      %549 = vmatprep.subr.mxu0 0.0
      %550 = vmatpush1.xpose.msra.mxu0 0.0
      %551 = vmatprep.subr.mxu0 0.0
      %552 = vmatpush1.xpose.msra.mxu0 0.0
      %553 = vmatprep.subr.mxu0 0.0
      %554 = vmatpush1.xpose.msra.mxu0 0.0
      %555 = vmatprep.subr.mxu0 0.0
      %556 = vmatpush1.xpose.msra.mxu0 0.0
      %557 = vmatprep.subr.mxu0 0.0
      %558 = vmatpush1.xpose.msra.mxu0 0.0
      %559 = vmatprep.subr.mxu0 0.0
      %560 = vmatpush1.xpose.msra.mxu0 0.0
      %561 = vmatprep.subr.mxu0 0.0
      %562 = vmatpush1.xpose.msra.mxu0 0.0
      %563 = vmatprep.subr.mxu0 0.0
      %564 = vmatpush1.xpose.msra.mxu0 0.0
      %565 = vmatprep.mubr.f32.mxu0 0.0
      %v566 = vand.u32 %v257, 4294901760
      %v567 = vsub.f32 %v257, %v566
      %v568 = vand.u32 %v567, 4294901760
      %569 = vmatmul.mubr.f32.gmra.mrb[0].mxu0 %v568
      %v570 = vpop.f32.mrb[0].mxu0
      %v571 = vadd.f32 %v496, %v570
      %v572 = vpop.f32.mrb[0].mxu0
      %573 = vdwg.mxu0
      %574 = vmatprep.subr.mxu0 0.0
      %v575 = vand.u32 %v260, 4294901760
      %v576 = vsub.f32 %v260, %v575
      %v577 = vand.u32 %v576, 4294901760
      %578 = vmatpush1.xpose.msra.mxu0 %v577
      %579 = vmatprep.subr.mxu0 0.0
      %v580 = vand.u32 %v263, 4294901760
      %v581 = vsub.f32 %v263, %v580
      %v582 = vand.u32 %v581, 4294901760
      %583 = vmatpush1.xpose.msra.mxu0 %v582
      %584 = vmatprep.subr.mxu0 0.0
      %585 = vmatpush1.xpose.msra.mxu0 0.0
      %586 = vmatprep.subr.mxu0 0.0
      %587 = vmatpush1.xpose.msra.mxu0 0.0
      %588 = vmatprep.subr.mxu0 0.0
      %589 = vmatpush1.xpose.msra.mxu0 0.0
      %590 = vmatprep.subr.mxu0 0.0
      %591 = vmatpush1.xpose.msra.mxu0 0.0
      %592 = vmatprep.subr.mxu0 0.0
      %593 = vmatpush1.xpose.msra.mxu0 0.0
      %594 = vmatprep.subr.mxu0 0.0
      %595 = vmatpush1.xpose.msra.mxu0 0.0
      %596 = vmatprep.subr.mxu0 0.0
      %597 = vmatpush1.xpose.msra.mxu0 0.0
      %598 = vmatprep.subr.mxu0 0.0
      %599 = vmatpush1.xpose.msra.mxu0 0.0
      %600 = vmatprep.subr.mxu0 0.0
      %601 = vmatpush1.xpose.msra.mxu0 0.0
      %602 = vmatprep.subr.mxu0 0.0
      %603 = vmatpush1.xpose.msra.mxu0 0.0
      %604 = vmatprep.subr.mxu0 0.0
      %605 = vmatpush1.xpose.msra.mxu0 0.0
      %606 = vmatprep.subr.mxu0 0.0
      %607 = vmatpush1.xpose.msra.mxu0 0.0
      %608 = vmatprep.subr.mxu0 0.0
      %609 = vmatpush1.xpose.msra.mxu0 0.0
      %610 = vmatprep.subr.mxu0 0.0
      %611 = vmatpush1.xpose.msra.mxu0 0.0
      %612 = vmatprep.subr.mxu0 0.0
      %613 = vmatpush1.xpose.msra.mxu0 0.0
      %614 = vmatprep.subr.mxu0 0.0
      %615 = vmatpush1.xpose.msra.mxu0 0.0
      %616 = vmatprep.subr.mxu0 0.0
      %617 = vmatpush1.xpose.msra.mxu0 0.0
      %618 = vmatprep.subr.mxu0 0.0
      %619 = vmatpush1.xpose.msra.mxu0 0.0
      %620 = vmatprep.subr.mxu0 0.0
      %621 = vmatpush1.xpose.msra.mxu0 0.0
      %622 = vmatprep.subr.mxu0 0.0
      %623 = vmatpush1.xpose.msra.mxu0 0.0
      %624 = vmatprep.subr.mxu0 0.0
      %625 = vmatpush1.xpose.msra.mxu0 0.0
      %626 = vmatprep.subr.mxu0 0.0
      %627 = vmatpush1.xpose.msra.mxu0 0.0
      %628 = vmatprep.subr.mxu0 0.0
      %629 = vmatpush1.xpose.msra.mxu0 0.0
      %630 = vmatprep.subr.mxu0 0.0
      %631 = vmatpush1.xpose.msra.mxu0 0.0
      %632 = vmatprep.subr.mxu0 0.0
      %633 = vmatpush1.xpose.msra.mxu0 0.0
      %634 = vmatprep.subr.mxu0 0.0
      %635 = vmatpush1.xpose.msra.mxu0 0.0
      %636 = vmatprep.subr.mxu0 0.0
      %637 = vmatpush1.xpose.msra.mxu0 0.0
      %638 = vmatprep.subr.mxu0 0.0
      %639 = vmatpush1.xpose.msra.mxu0 0.0
      %640 = vmatprep.subr.mxu0 0.0
      %641 = vmatpush1.xpose.msra.mxu0 0.0
      %642 = vmatprep.subr.mxu0 0.0
      %643 = vmatpush1.xpose.msra.mxu0 0.0
      %644 = vmatprep.mubr.f32.mxu0 0.0
      %v645 = vand.u32 %v257, 4294901760
      %646 = vmatmul.mubr.f32.gmra.mrb[0].mxu0 %v645
      %v647 = vpop.f32.mrb[0].mxu0
      %v648 = vadd.f32 %v571, %v647
      %v649 = vpop.f32.mrb[0].mxu0
      %650 = vdwg.mxu0
      %651 = vmatprep.subr.mxu0 0.0
      %v652 = vand.u32 %v260, 4294901760
      %653 = vmatpush1.xpose.msra.mxu0 %v652
      %654 = vmatprep.subr.mxu0 0.0
      %v655 = vand.u32 %v263, 4294901760
      %656 = vmatpush1.xpose.msra.mxu0 %v655
      %657 = vmatprep.subr.mxu0 0.0
      %658 = vmatpush1.xpose.msra.mxu0 0.0
      %659 = vmatprep.subr.mxu0 0.0
      %660 = vmatpush1.xpose.msra.mxu0 0.0
      %661 = vmatprep.subr.mxu0 0.0
      %662 = vmatpush1.xpose.msra.mxu0 0.0
      %663 = vmatprep.subr.mxu0 0.0
      %664 = vmatpush1.xpose.msra.mxu0 0.0
      %665 = vmatprep.subr.mxu0 0.0
      %666 = vmatpush1.xpose.msra.mxu0 0.0
      %667 = vmatprep.subr.mxu0 0.0
      %668 = vmatpush1.xpose.msra.mxu0 0.0
      %669 = vmatprep.subr.mxu0 0.0
      %670 = vmatpush1.xpose.msra.mxu0 0.0
      %671 = vmatprep.subr.mxu0 0.0
      %672 = vmatpush1.xpose.msra.mxu0 0.0
      %673 = vmatprep.subr.mxu0 0.0
      %674 = vmatpush1.xpose.msra.mxu0 0.0
      %675 = vmatprep.subr.mxu0 0.0
      %676 = vmatpush1.xpose.msra.mxu0 0.0
      %677 = vmatprep.subr.mxu0 0.0
      %678 = vmatpush1.xpose.msra.mxu0 0.0
      %679 = vmatprep.subr.mxu0 0.0
      %680 = vmatpush1.xpose.msra.mxu0 0.0
      %681 = vmatprep.subr.mxu0 0.0
      %682 = vmatpush1.xpose.msra.mxu0 0.0
      %683 = vmatprep.subr.mxu0 0.0
      %684 = vmatpush1.xpose.msra.mxu0 0.0
      %685 = vmatprep.subr.mxu0 0.0
      %686 = vmatpush1.xpose.msra.mxu0 0.0
      %687 = vmatprep.subr.mxu0 0.0
      %688 = vmatpush1.xpose.msra.mxu0 0.0
      %689 = vmatprep.subr.mxu0 0.0
      %690 = vmatpush1.xpose.msra.mxu0 0.0
      %691 = vmatprep.subr.mxu0 0.0
      %692 = vmatpush1.xpose.msra.mxu0 0.0
      %693 = vmatprep.subr.mxu0 0.0
      %694 = vmatpush1.xpose.msra.mxu0 0.0
      %695 = vmatprep.subr.mxu0 0.0
      %696 = vmatpush1.xpose.msra.mxu0 0.0
      %697 = vmatprep.subr.mxu0 0.0
      %698 = vmatpush1.xpose.msra.mxu0 0.0
      %699 = vmatprep.subr.mxu0 0.0
      %700 = vmatpush1.xpose.msra.mxu0 0.0
      %701 = vmatprep.subr.mxu0 0.0
      %702 = vmatpush1.xpose.msra.mxu0 0.0
      %703 = vmatprep.subr.mxu0 0.0
      %704 = vmatpush1.xpose.msra.mxu0 0.0
      %705 = vmatprep.subr.mxu0 0.0
      %706 = vmatpush1.xpose.msra.mxu0 0.0
      %707 = vmatprep.subr.mxu0 0.0
      %708 = vmatpush1.xpose.msra.mxu0 0.0
      %709 = vmatprep.subr.mxu0 0.0
      %710 = vmatpush1.xpose.msra.mxu0 0.0
      %711 = vmatprep.subr.mxu0 0.0
      %712 = vmatpush1.xpose.msra.mxu0 0.0
      %713 = vmatprep.subr.mxu0 0.0
      %714 = vmatpush1.xpose.msra.mxu0 0.0
      %715 = vmatprep.subr.mxu0 0.0
      %716 = vmatpush1.xpose.msra.mxu0 0.0
      %717 = vmatprep.mubr.f32.mxu0 0.0
      %v718 = vand.u32 %v257, 4294901760
      %719 = vmatmul.mubr.f32.gmra.mrb[0].mxu0 %v718
      %v720 = vpop.f32.mrb[0].mxu0
      %v721 = vadd.f32 %v648, %v720
      %v722 = vpop.f32.mrb[0].mxu0
      %723 = vdwg.mxu0
      %v724 = vmul.f32 %v721, 0.35355338
      %v725 = vld [vmem:[%s245] sm:$0xff]
      %v726 = vadd.f32 %v724, %v725
      %vm727 = vcmask 97280
      %v728 = vsel %vm727, %v726, -inf
      %729 = vmax.xlane.f32.xlu0 %v728
      %v730 = vpop.xlane.xlu0 %729
      %v731 = vsub.f32 %v726, %v730
      %v732 = vmul.f32 %v731, 1.442695
      %v733 = vpow.pop %v732
      %v734 = vsel %vm727, %v733, 0.0
      %735 = vadd.xlane.f32.xlu0 %v734
      %v736 = vpop.xlane.xlu0 %735
      %v737 = vrcp.pop %v736
      %v738 = vmul.f32 %v733, %v737
      %v740 = vsel %vm727, %v738, 0
      %vm742 = vcmask 1043456
      %v744 = vsel %vm742, %v254, 0
      %746 = vmatprep.subr.mxu0 0.0
      %v747 = vand.u32 %v253, 4294901760
      %748 = vmatpush1.msra.mxu0 %v747
      %749 = vmatprep.subr.mxu0 0.0
      %v750 = vand.u32 %v744, 4294901760
      %751 = vmatpush1.msra.mxu0 %v750
      %752 = vmatprep.subr.mxu0 0.0
      %753 = vmatpush1.msra.mxu0 0.0
      %754 = vmatprep.subr.mxu0 0.0
      %755 = vmatpush1.msra.mxu0 0.0
      %756 = vmatprep.subr.mxu0 0.0
      %757 = vmatpush1.msra.mxu0 0.0
      %758 = vmatprep.subr.mxu0 0.0
      %759 = vmatpush1.msra.mxu0 0.0
      %760 = vmatprep.subr.mxu0 0.0
      %761 = vmatpush1.msra.mxu0 0.0
      %762 = vmatprep.subr.mxu0 0.0
      %763 = vmatpush1.msra.mxu0 0.0
      %764 = vmatprep.subr.mxu0 0.0
      %765 = vmatpush1.msra.mxu0 0.0
      %766 = vmatprep.subr.mxu0 0.0
      %767 = vmatpush1.msra.mxu0 0.0
      %768 = vmatprep.subr.mxu0 0.0
      %769 = vmatpush1.msra.mxu0 0.0
      %770 = vmatprep.subr.mxu0 0.0
      %771 = vmatpush1.msra.mxu0 0.0
      %772 = vmatprep.subr.mxu0 0.0
      %773 = vmatpush1.msra.mxu0 0.0
      %774 = vmatprep.subr.mxu0 0.0
      %775 = vmatpush1.msra.mxu0 0.0
      %776 = vmatprep.subr.mxu0 0.0
      %777 = vmatpush1.msra.mxu0 0.0
      %778 = vmatprep.subr.mxu0 0.0
      %779 = vmatpush1.msra.mxu0 0.0
      %780 = vmatprep.subr.mxu0 0.0
      %781 = vmatpush1.msra.mxu0 0.0
      %782 = vmatprep.subr.mxu0 0.0
      %783 = vmatpush1.msra.mxu0 0.0
      %784 = vmatprep.subr.mxu0 0.0
      %785 = vmatpush1.msra.mxu0 0.0
      %786 = vmatprep.subr.mxu0 0.0
      %787 = vmatpush1.msra.mxu0 0.0
      %788 = vmatprep.subr.mxu0 0.0
      %789 = vmatpush1.msra.mxu0 0.0
      %790 = vmatprep.subr.mxu0 0.0
      %791 = vmatpush1.msra.mxu0 0.0
      %792 = vmatprep.subr.mxu0 0.0
      %793 = vmatpush1.msra.mxu0 0.0
      %794 = vmatprep.subr.mxu0 0.0
      %795 = vmatpush1.msra.mxu0 0.0
      %796 = vmatprep.subr.mxu0 0.0
      %797 = vmatpush1.msra.mxu0 0.0
      %798 = vmatprep.subr.mxu0 0.0
      %799 = vmatpush1.msra.mxu0 0.0
      %800 = vmatprep.subr.mxu0 0.0
      %801 = vmatpush1.msra.mxu0 0.0
      %802 = vmatprep.subr.mxu0 0.0
      %803 = vmatpush1.msra.mxu0 0.0
      %804 = vmatprep.subr.mxu0 0.0
      %805 = vmatpush1.msra.mxu0 0.0
      %806 = vmatprep.subr.mxu0 0.0
      %807 = vmatpush1.msra.mxu0 0.0
      %808 = vmatprep.subr.mxu0 0.0
      %809 = vmatpush1.msra.mxu0 0.0
      %810 = vmatprep.subr.mxu0 0.0
      %811 = vmatpush1.msra.mxu0 0.0
      %812 = vmatprep.mubr.f32.mxu0 0.0
      %v813 = vand.u32 %v740, 4294901760
      %v814 = vsub.f32 %v740, %v813
      %v815 = vand.u32 %v814, 4294901760
      %v816 = vsub.f32 %v814, %v815
      %v817 = vand.u32 %v816, 4294901760
      %818 = vmatmul.mubr.f32.gmra.mrb[0].mxu0 %v817
      %v819 = vpop.f32.mrb[0].mxu0
      %v820 = vadd.f32 0.0, %v819
      %v821 = vpop.f32.mrb[0].mxu0
      %822 = vdwg.mxu0
      %823 = vmatprep.subr.mxu0 0.0
      %v824 = vand.u32 %v253, 4294901760
      %v825 = vsub.f32 %v253, %v824
      %v826 = vand.u32 %v825, 4294901760
      %v827 = vsub.f32 %v825, %v826
      %v828 = vand.u32 %v827, 4294901760
      %829 = vmatpush1.msra.mxu0 %v828
      %830 = vmatprep.subr.mxu0 0.0
      %v831 = vand.u32 %v744, 4294901760
      %v832 = vsub.f32 %v744, %v831
      %v833 = vand.u32 %v832, 4294901760
      %v834 = vsub.f32 %v832, %v833
      %v835 = vand.u32 %v834, 4294901760
      %836 = vmatpush1.msra.mxu0 %v835
      %837 = vmatprep.subr.mxu0 0.0
      %838 = vmatpush1.msra.mxu0 0.0
      %839 = vmatprep.subr.mxu0 0.0
      %840 = vmatpush1.msra.mxu0 0.0
      %841 = vmatprep.subr.mxu0 0.0
      %842 = vmatpush1.msra.mxu0 0.0
      %843 = vmatprep.subr.mxu0 0.0
      %844 = vmatpush1.msra.mxu0 0.0
      %845 = vmatprep.subr.mxu0 0.0
      %846 = vmatpush1.msra.mxu0 0.0
      %847 = vmatprep.subr.mxu0 0.0
      %848 = vmatpush1.msra.mxu0 0.0
      %849 = vmatprep.subr.mxu0 0.0
      %850 = vmatpush1.msra.mxu0 0.0
      %851 = vmatprep.subr.mxu0 0.0
      %852 = vmatpush1.msra.mxu0 0.0
      %853 = vmatprep.subr.mxu0 0.0
      %854 = vmatpush1.msra.mxu0 0.0
      %855 = vmatprep.subr.mxu0 0.0
      %856 = vmatpush1.msra.mxu0 0.0
      %857 = vmatprep.subr.mxu0 0.0
      %858 = vmatpush1.msra.mxu0 0.0
      %859 = vmatprep.subr.mxu0 0.0
      %860 = vmatpush1.msra.mxu0 0.0
      %861 = vmatprep.subr.mxu0 0.0
      %862 = vmatpush1.msra.mxu0 0.0
      %863 = vmatprep.subr.mxu0 0.0
      %864 = vmatpush1.msra.mxu0 0.0
      %865 = vmatprep.subr.mxu0 0.0
      %866 = vmatpush1.msra.mxu0 0.0
      %867 = vmatprep.subr.mxu0 0.0
      %868 = vmatpush1.msra.mxu0 0.0
      %869 = vmatprep.subr.mxu0 0.0
      %870 = vmatpush1.msra.mxu0 0.0
      %871 = vmatprep.subr.mxu0 0.0
      %872 = vmatpush1.msra.mxu0 0.0
      %873 = vmatprep.subr.mxu0 0.0
      %874 = vmatpush1.msra.mxu0 0.0
      %875 = vmatprep.subr.mxu0 0.0
      %876 = vmatpush1.msra.mxu0 0.0
      %877 = vmatprep.subr.mxu0 0.0
      %878 = vmatpush1.msra.mxu0 0.0
      %879 = vmatprep.subr.mxu0 0.0
      %880 = vmatpush1.msra.mxu0 0.0
      %881 = vmatprep.subr.mxu0 0.0
      %882 = vmatpush1.msra.mxu0 0.0
      %883 = vmatprep.subr.mxu0 0.0
      %884 = vmatpush1.msra.mxu0 0.0
      %885 = vmatprep.subr.mxu0 0.0
      %886 = vmatpush1.msra.mxu0 0.0
      %887 = vmatprep.subr.mxu0 0.0
      %888 = vmatpush1.msra.mxu0 0.0
      %889 = vmatprep.subr.mxu0 0.0
      %890 = vmatpush1.msra.mxu0 0.0
      %891 = vmatprep.subr.mxu0 0.0
      %892 = vmatpush1.msra.mxu0 0.0
      %893 = vmatprep.subr.mxu0 0.0
      %894 = vmatpush1.msra.mxu0 0.0
      %895 = vmatprep.subr.mxu0 0.0
      %896 = vmatpush1.msra.mxu0 0.0
      %897 = vmatprep.mubr.f32.mxu0 0.0
      %v898 = vand.u32 %v740, 4294901760
      %899 = vmatmul.mubr.f32.gmra.mrb[0].mxu0 %v898
      %v900 = vpop.f32.mrb[0].mxu0
      %v901 = vadd.f32 %v820, %v900
      %v902 = vpop.f32.mrb[0].mxu0
      %903 = vdwg.mxu0
      %904 = vmatprep.subr.mxu0 0.0
      %v905 = vand.u32 %v253, 4294901760
      %v906 = vsub.f32 %v253, %v905
      %907 = vmatpush1.msra.mxu0 %v906
      %908 = vmatprep.subr.mxu0 0.0
      %v909 = vand.u32 %v744, 4294901760
      %v910 = vsub.f32 %v744, %v909
      %911 = vmatpush1.msra.mxu0 %v910
      %912 = vmatprep.subr.mxu0 0.0
      %913 = vmatpush1.msra.mxu0 0.0
      %914 = vmatprep.subr.mxu0 0.0
      %915 = vmatpush1.msra.mxu0 0.0
      %916 = vmatprep.subr.mxu0 0.0
      %917 = vmatpush1.msra.mxu0 0.0
      %918 = vmatprep.subr.mxu0 0.0
      %919 = vmatpush1.msra.mxu0 0.0
      %920 = vmatprep.subr.mxu0 0.0
      %921 = vmatpush1.msra.mxu0 0.0
      %922 = vmatprep.subr.mxu0 0.0
      %923 = vmatpush1.msra.mxu0 0.0
      %924 = vmatprep.subr.mxu0 0.0
      %925 = vmatpush1.msra.mxu0 0.0
      %926 = vmatprep.subr.mxu0 0.0
      %927 = vmatpush1.msra.mxu0 0.0
      %928 = vmatprep.subr.mxu0 0.0
      %929 = vmatpush1.msra.mxu0 0.0
      %930 = vmatprep.subr.mxu0 0.0
      %931 = vmatpush1.msra.mxu0 0.0
      %932 = vmatprep.subr.mxu0 0.0
      %933 = vmatpush1.msra.mxu0 0.0
      %934 = vmatprep.subr.mxu0 0.0
      %935 = vmatpush1.msra.mxu0 0.0
      %936 = vmatprep.subr.mxu0 0.0
      %937 = vmatpush1.msra.mxu0 0.0
      %938 = vmatprep.subr.mxu0 0.0
      %939 = vmatpush1.msra.mxu0 0.0
      %940 = vmatprep.subr.mxu0 0.0
      %941 = vmatpush1.msra.mxu0 0.0
      %942 = vmatprep.subr.mxu0 0.0
      %943 = vmatpush1.msra.mxu0 0.0
      %944 = vmatprep.subr.mxu0 0.0
      %945 = vmatpush1.msra.mxu0 0.0
      %946 = vmatprep.subr.mxu0 0.0
      %947 = vmatpush1.msra.mxu0 0.0
      %948 = vmatprep.subr.mxu0 0.0
      %949 = vmatpush1.msra.mxu0 0.0
      %950 = vmatprep.subr.mxu0 0.0
      %951 = vmatpush1.msra.mxu0 0.0
      %952 = vmatprep.subr.mxu0 0.0
      %953 = vmatpush1.msra.mxu0 0.0
      %954 = vmatprep.subr.mxu0 0.0
      %955 = vmatpush1.msra.mxu0 0.0
      %956 = vmatprep.subr.mxu0 0.0
      %957 = vmatpush1.msra.mxu0 0.0
      %958 = vmatprep.subr.mxu0 0.0
      %959 = vmatpush1.msra.mxu0 0.0
      %960 = vmatprep.subr.mxu0 0.0
      %961 = vmatpush1.msra.mxu0 0.0
      %962 = vmatprep.subr.mxu0 0.0
      %963 = vmatpush1.msra.mxu0 0.0
      %964 = vmatprep.subr.mxu0 0.0
      %965 = vmatpush1.msra.mxu0 0.0
      %966 = vmatprep.subr.mxu0 0.0
      %967 = vmatpush1.msra.mxu0 0.0
      %968 = vmatprep.subr.mxu0 0.0
      %969 = vmatpush1.msra.mxu0 0.0
      %970 = vmatprep.subr.mxu0 0.0
      %971 = vmatpush1.msra.mxu0 0.0
      %972 = vmatprep.mubr.f32.mxu0 0.0
      %v973 = vand.u32 %v740, 4294901760
      %v974 = vsub.f32 %v740, %v973
      %975 = vmatmul.mubr.f32.gmra.mrb[0].mxu0 %v974
      %v976 = vpop.f32.mrb[0].mxu0
      %v977 = vadd.f32 %v901, %v976
      %v978 = vpop.f32.mrb[0].mxu0
      %979 = vdwg.mxu0
      %980 = vmatprep.subr.mxu0 0.0
      %v981 = vand.u32 %v253, 4294901760
      %982 = vmatpush1.msra.mxu0 %v981
      %983 = vmatprep.subr.mxu0 0.0
      %v984 = vand.u32 %v744, 4294901760
      %985 = vmatpush1.msra.mxu0 %v984
      %986 = vmatprep.subr.mxu0 0.0
      %987 = vmatpush1.msra.mxu0 0.0
      %988 = vmatprep.subr.mxu0 0.0
      %989 = vmatpush1.msra.mxu0 0.0
      %990 = vmatprep.subr.mxu0 0.0
      %991 = vmatpush1.msra.mxu0 0.0
      %992 = vmatprep.subr.mxu0 0.0
      %993 = vmatpush1.msra.mxu0 0.0
      %994 = vmatprep.subr.mxu0 0.0
      %995 = vmatpush1.msra.mxu0 0.0
      %996 = vmatprep.subr.mxu0 0.0
      %997 = vmatpush1.msra.mxu0 0.0
      %998 = vmatprep.subr.mxu0 0.0
      %999 = vmatpush1.msra.mxu0 0.0
      %1000 = vmatprep.subr.mxu0 0.0
      %1001 = vmatpush1.msra.mxu0 0.0
      %1002 = vmatprep.subr.mxu0 0.0
      %1003 = vmatpush1.msra.mxu0 0.0
      %1004 = vmatprep.subr.mxu0 0.0
      %1005 = vmatpush1.msra.mxu0 0.0
      %1006 = vmatprep.subr.mxu0 0.0
      %1007 = vmatpush1.msra.mxu0 0.0
      %1008 = vmatprep.subr.mxu0 0.0
      %1009 = vmatpush1.msra.mxu0 0.0
      %1010 = vmatprep.subr.mxu0 0.0
      %1011 = vmatpush1.msra.mxu0 0.0
      %1012 = vmatprep.subr.mxu0 0.0
      %1013 = vmatpush1.msra.mxu0 0.0
      %1014 = vmatprep.subr.mxu0 0.0
      %1015 = vmatpush1.msra.mxu0 0.0
      %1016 = vmatprep.subr.mxu0 0.0
      %1017 = vmatpush1.msra.mxu0 0.0
      %1018 = vmatprep.subr.mxu0 0.0
      %1019 = vmatpush1.msra.mxu0 0.0
      %1020 = vmatprep.subr.mxu0 0.0
      %1021 = vmatpush1.msra.mxu0 0.0
      %1022 = vmatprep.subr.mxu0 0.0
      %1023 = vmatpush1.msra.mxu0 0.0
      %1024 = vmatprep.subr.mxu0 0.0
      %1025 = vmatpush1.msra.mxu0 0.0
      %1026 = vmatprep.subr.mxu0 0.0
      %1027 = vmatpush1.msra.mxu0 0.0
      %1028 = vmatprep.subr.mxu0 0.0
      %1029 = vmatpush1.msra.mxu0 0.0
      %1030 = vmatprep.subr.mxu0 0.0
      %1031 = vmatpush1.msra.mxu0 0.0
      %1032 = vmatprep.subr.mxu0 0.0
      %1033 = vmatpush1.msra.mxu0 0.0
      %1034 = vmatprep.subr.mxu0 0.0
      %1035 = vmatpush1.msra.mxu0 0.0
      %1036 = vmatprep.subr.mxu0 0.0
      %1037 = vmatpush1.msra.mxu0 0.0
      %1038 = vmatprep.subr.mxu0 0.0
      %1039 = vmatpush1.msra.mxu0 0.0
      %1040 = vmatprep.subr.mxu0 0.0
      %1041 = vmatpush1.msra.mxu0 0.0
      %1042 = vmatprep.subr.mxu0 0.0
      %1043 = vmatpush1.msra.mxu0 0.0
      %1044 = vmatprep.subr.mxu0 0.0
      %1045 = vmatpush1.msra.mxu0 0.0
      %1046 = vmatprep.mubr.f32.mxu0 0.0
      %v1047 = vand.u32 %v740, 4294901760
      %v1048 = vsub.f32 %v740, %v1047
      %v1049 = vand.u32 %v1048, 4294901760
      %1050 = vmatmul.mubr.f32.gmra.mrb[0].mxu0 %v1049
      %v1051 = vpop.f32.mrb[0].mxu0
      %v1052 = vadd.f32 %v977, %v1051
      %v1053 = vpop.f32.mrb[0].mxu0
      %1054 = vdwg.mxu0
      %1055 = vmatprep.subr.mxu0 0.0
      %v1056 = vand.u32 %v253, 4294901760
      %v1057 = vsub.f32 %v253, %v1056
      %v1058 = vand.u32 %v1057, 4294901760
      %1059 = vmatpush1.msra.mxu0 %v1058
      %1060 = vmatprep.subr.mxu0 0.0
      %v1061 = vand.u32 %v744, 4294901760
      %v1062 = vsub.f32 %v744, %v1061
      %v1063 = vand.u32 %v1062, 4294901760
      %1064 = vmatpush1.msra.mxu0 %v1063
      %1065 = vmatprep.subr.mxu0 0.0
      %1066 = vmatpush1.msra.mxu0 0.0
      %1067 = vmatprep.subr.mxu0 0.0
      %1068 = vmatpush1.msra.mxu0 0.0
      %1069 = vmatprep.subr.mxu0 0.0
      %1070 = vmatpush1.msra.mxu0 0.0
      %1071 = vmatprep.subr.mxu0 0.0
      %1072 = vmatpush1.msra.mxu0 0.0
      %1073 = vmatprep.subr.mxu0 0.0
      %1074 = vmatpush1.msra.mxu0 0.0
      %1075 = vmatprep.subr.mxu0 0.0
      %1076 = vmatpush1.msra.mxu0 0.0
      %1077 = vmatprep.subr.mxu0 0.0
      %1078 = vmatpush1.msra.mxu0 0.0
      %1079 = vmatprep.subr.mxu0 0.0
      %1080 = vmatpush1.msra.mxu0 0.0
      %1081 = vmatprep.subr.mxu0 0.0
      %1082 = vmatpush1.msra.mxu0 0.0
      %1083 = vmatprep.subr.mxu0 0.0
      %1084 = vmatpush1.msra.mxu0 0.0
      %1085 = vmatprep.subr.mxu0 0.0
      %1086 = vmatpush1.msra.mxu0 0.0
      %1087 = vmatprep.subr.mxu0 0.0
      %1088 = vmatpush1.msra.mxu0 0.0
      %1089 = vmatprep.subr.mxu0 0.0
      %1090 = vmatpush1.msra.mxu0 0.0
      %1091 = vmatprep.subr.mxu0 0.0
      %1092 = vmatpush1.msra.mxu0 0.0
      %1093 = vmatprep.subr.mxu0 0.0
      %1094 = vmatpush1.msra.mxu0 0.0
      %1095 = vmatprep.subr.mxu0 0.0
      %1096 = vmatpush1.msra.mxu0 0.0
      %1097 = vmatprep.subr.mxu0 0.0
      %1098 = vmatpush1.msra.mxu0 0.0
      %1099 = vmatprep.subr.mxu0 0.0
      %1100 = vmatpush1.msra.mxu0 0.0
      %1101 = vmatprep.subr.mxu0 0.0
      %1102 = vmatpush1.msra.mxu0 0.0
      %1103 = vmatprep.subr.mxu0 0.0
      %1104 = vmatpush1.msra.mxu0 0.0
      %1105 = vmatprep.subr.mxu0 0.0
      %1106 = vmatpush1.msra.mxu0 0.0
      %1107 = vmatprep.subr.mxu0 0.0
      %1108 = vmatpush1.msra.mxu0 0.0
      %1109 = vmatprep.subr.mxu0 0.0
      %1110 = vmatpush1.msra.mxu0 0.0
      %1111 = vmatprep.subr.mxu0 0.0
      %1112 = vmatpush1.msra.mxu0 0.0
      %1113 = vmatprep.subr.mxu0 0.0
      %1114 = vmatpush1.msra.mxu0 0.0
      %1115 = vmatprep.subr.mxu0 0.0
      %1116 = vmatpush1.msra.mxu0 0.0
      %1117 = vmatprep.subr.mxu0 0.0
      %1118 = vmatpush1.msra.mxu0 0.0
      %1119 = vmatprep.subr.mxu0 0.0
      %1120 = vmatpush1.msra.mxu0 0.0
      %1121 = vmatprep.subr.mxu0 0.0
      %1122 = vmatpush1.msra.mxu0 0.0
      %1123 = vmatprep.subr.mxu0 0.0
      %1124 = vmatpush1.msra.mxu0 0.0
      %1125 = vmatprep.mubr.f32.mxu0 0.0
      %v1126 = vand.u32 %v740, 4294901760
      %1127 = vmatmul.mubr.f32.gmra.mrb[0].mxu0 %v1126
      %v1128 = vpop.f32.mrb[0].mxu0
      %v1129 = vadd.f32 %v1052, %v1128
      %v1130 = vpop.f32.mrb[0].mxu0
      %1131 = vdwg.mxu0
      %1132 = vmatprep.subr.mxu0 0.0
      %v1133 = vand.u32 %v253, 4294901760
      %1134 = vmatpush1.msra.mxu0 %v1133
      %1135 = vmatprep.subr.mxu0 0.0
      %v1136 = vand.u32 %v744, 4294901760
      %1137 = vmatpush1.msra.mxu0 %v1136
      %1138 = vmatprep.subr.mxu0 0.0
      %1139 = vmatpush1.msra.mxu0 0.0
      %1140 = vmatprep.subr.mxu0 0.0
      %1141 = vmatpush1.msra.mxu0 0.0
      %1142 = vmatprep.subr.mxu0 0.0
      %1143 = vmatpush1.msra.mxu0 0.0
      %1144 = vmatprep.subr.mxu0 0.0
      %1145 = vmatpush1.msra.mxu0 0.0
      %1146 = vmatprep.subr.mxu0 0.0
      %1147 = vmatpush1.msra.mxu0 0.0
      %1148 = vmatprep.subr.mxu0 0.0
      %1149 = vmatpush1.msra.mxu0 0.0
      %1150 = vmatprep.subr.mxu0 0.0
      %1151 = vmatpush1.msra.mxu0 0.0
      %1152 = vmatprep.subr.mxu0 0.0
      %1153 = vmatpush1.msra.mxu0 0.0
      %1154 = vmatprep.subr.mxu0 0.0
      %1155 = vmatpush1.msra.mxu0 0.0
      %1156 = vmatprep.subr.mxu0 0.0
      %1157 = vmatpush1.msra.mxu0 0.0
      %1158 = vmatprep.subr.mxu0 0.0
      %1159 = vmatpush1.msra.mxu0 0.0
      %1160 = vmatprep.subr.mxu0 0.0
      %1161 = vmatpush1.msra.mxu0 0.0
      %1162 = vmatprep.subr.mxu0 0.0
      %1163 = vmatpush1.msra.mxu0 0.0
      %1164 = vmatprep.subr.mxu0 0.0
      %1165 = vmatpush1.msra.mxu0 0.0
      %1166 = vmatprep.subr.mxu0 0.0
      %1167 = vmatpush1.msra.mxu0 0.0
      %1168 = vmatprep.subr.mxu0 0.0
      %1169 = vmatpush1.msra.mxu0 0.0
      %1170 = vmatprep.subr.mxu0 0.0
      %1171 = vmatpush1.msra.mxu0 0.0
      %1172 = vmatprep.subr.mxu0 0.0
      %1173 = vmatpush1.msra.mxu0 0.0
      %1174 = vmatprep.subr.mxu0 0.0
      %1175 = vmatpush1.msra.mxu0 0.0
      %1176 = vmatprep.subr.mxu0 0.0
      %1177 = vmatpush1.msra.mxu0 0.0
      %1178 = vmatprep.subr.mxu0 0.0
      %1179 = vmatpush1.msra.mxu0 0.0
      %1180 = vmatprep.subr.mxu0 0.0
      %1181 = vmatpush1.msra.mxu0 0.0
      %1182 = vmatprep.subr.mxu0 0.0
      %1183 = vmatpush1.msra.mxu0 0.0
      %1184 = vmatprep.subr.mxu0 0.0
      %1185 = vmatpush1.msra.mxu0 0.0
      %1186 = vmatprep.subr.mxu0 0.0
      %1187 = vmatpush1.msra.mxu0 0.0
      %1188 = vmatprep.subr.mxu0 0.0
      %1189 = vmatpush1.msra.mxu0 0.0
      %1190 = vmatprep.subr.mxu0 0.0
      %1191 = vmatpush1.msra.mxu0 0.0
      %1192 = vmatprep.subr.mxu0 0.0
      %1193 = vmatpush1.msra.mxu0 0.0
      %1194 = vmatprep.subr.mxu0 0.0
      %1195 = vmatpush1.msra.mxu0 0.0
      %1196 = vmatprep.subr.mxu0 0.0
      %1197 = vmatpush1.msra.mxu0 0.0
      %1198 = vmatprep.mubr.f32.mxu0 0.0
      %v1199 = vand.u32 %v740, 4294901760
      %1200 = vmatmul.mubr.f32.gmra.mrb[0].mxu0 %v1199
      %v1201 = vpop.f32.mrb[0].mxu0
      %v1202 = vadd.f32 %v1129, %v1201
      %v1203 = vpop.f32.mrb[0].mxu0
      %1204 = vdwg.mxu0
      %1205 = vst.msk [vmem:[%s249] sm:$0xff] %vm255, %v1202
      %p1206 = scmp.lt.s32.totalorder %s15, 7
      %s1207 = scalar_select %p1206, %s15, 7
      %s1208 = smul.addr %s1207, 8
      %s1209 = scalar_lea.vmem %s4, %s1208
      // Predicated region
      $region37: #{transformer_forward.74} parent=35 // pred_check
        %p1210 = pneg %p137
      $region38: #{transformer_forward.74} parent=35 // pred_check_branch
        %1212 = sbr.rel (%p1210) target = $region40
      $region39: #{transformer_forward.74} parent=35 // pred_region
        _
      $region40: #{transformer_forward.74} parent=35 // pred_fallthru
        _
    $region36: #{transformer_forward.74} parent=5 // pred_fallthru
      _
    %p1213 = scmp.le.s32.totalorder 2, %s10
    // Predicated region
    $region41: #{transformer_forward.74} parent=5 // pred_check
      %p1214 = pneg %p1213
    $region42: #{transformer_forward.74} parent=5 // pred_check_branch
      %1216 = sbr.rel (%p1214) target = $region44
    $region43: #{transformer_forward.74} parent=5 // pred_region
      %s1217 = ssub.s32 %s10, 2
      // Predicated region
      $region45: #{transformer_forward.74} parent=43 // pred_check
        %p1218 = pneg %p143
      $region46: #{transformer_forward.74} parent=43 // pred_check_branch
        %1220 = sbr.rel (%p1218) target = $region48
      $region47: #{transformer_forward.74} parent=43 // pred_region
        %p1221 = scmp.lt.s32.totalorder %s16, 7
        %s1222 = scalar_select %p1221, %s16, 7
        %s1223 = smul.addr %s1222, 8
        %s1224 = scalar_lea.vmem %s4, %s1223
      $region48: #{transformer_forward.74} parent=43 // pred_fallthru
        _
    $region44: #{transformer_forward.74} parent=5 // pred_fallthru
      _
  $region6: #{transformer_forward.74} parent=0 // loop_footer
    %s14 = sadd.s32 1, %s10
  $region7: #{transformer_forward.74} parent=0 // loop_footer_branch
    %9 = sbr.rel target = $region3
  $region8: #{transformer_forward.74} parent=0 // loop_exit
    _

// kernel: transformer_forward.77
$region0: #{transformer_forward.77}
  #allocation0 [shape = 'u32[]', space=smem, size = 0x4, offset = 0x4, fixed_abs, tag = 'smem constant byte address 0x4 - core index']
  #allocation1 [shape = 'u32[144,128]{1,0:T(1,128)}', space=vmem, size = 0x12000, scoped, tag = 'internal scratch']
  %s0 = inlined_call_operand.vmem [shape: f32[16,32], index: 0, kind: input, shape index: {}]
  %s1 = inlined_call_operand.vmem [shape: f32[32,64], index: 1, kind: input, shape index: {}]
  %s2 = inlined_call_operand.vmem [shape: f32[1,64], index: 2, kind: input, shape index: {}]
  %s3 = inlined_call_operand.vmem [shape: f32[64,32], index: 3, kind: input, shape index: {}]
  %s4 = inlined_call_operand.vmem [shape: f32[1,32], index: 4, kind: input, shape index: {}]
  %s5 = inlined_call_operand.vmem [shape: f32[16,32], index: 5, kind: output, shape index: {}]
  %s6 = sld [smem:[#allocation0]]
  $region30: #{transformer_forward.77} parent=0
    _
  %s8 = ssub.s32 1, %s6
  %s9 = scalar_select 0, %s8, %s6
  // Predicated region
  $region2: #{transformer_forward.77} parent=0 // pred_check
    _
  $region3: #{transformer_forward.77} parent=0 // pred_check_branch
    %11 = sbr.rel (0) target = $region5
  $region4: #{transformer_forward.77} parent=0 // pred_region
    _
  $region5: #{transformer_forward.77} parent=0 // pred_fallthru
    _
  // Predicated region
  $region6: #{transformer_forward.77} parent=0 // pred_check
    _
  $region7: #{transformer_forward.77} parent=0 // pred_check_branch
    %13 = sbr.rel (0) target = $region9
  $region8: #{transformer_forward.77} parent=0 // pred_region
    _
  $region9: #{transformer_forward.77} parent=0 // pred_fallthru
    _
  // Predicated region
  $region10: #{transformer_forward.77} parent=0 // pred_check
    _
  $region11: #{transformer_forward.77} parent=0 // pred_check_branch
    %15 = sbr.rel (0) target = $region13
  $region12: #{transformer_forward.77} parent=0 // pred_region
    _
  $region13: #{transformer_forward.77} parent=0 // pred_fallthru
    _
  // Predicated region
  $region14: #{transformer_forward.77} parent=0 // pred_check
    _
  $region15: #{transformer_forward.77} parent=0 // pred_check_branch
    %17 = sbr.rel (0) target = $region17
  $region16: #{transformer_forward.77} parent=0 // pred_region
    _
  $region17: #{transformer_forward.77} parent=0 // pred_fallthru
    _
  // Predicated region
  $region18: #{transformer_forward.77} parent=0 // pred_check
    _
  $region19: #{transformer_forward.77} parent=0 // pred_check_branch
    %19 = sbr.rel (0) target = $region21
  $region20: #{transformer_forward.77} parent=0 // pred_region
    _
  $region21: #{transformer_forward.77} parent=0 // pred_fallthru
    _
  %v20 = vld [vmem:[%s0] sm:$0xff]
  %v21 = vld [vmem:[%s0 + $0x8] sm:$0xff]
  %v22 = vld [vmem:[%s1] sm:$0xff]
  %v23 = vld [vmem:[%s1 + $0x8] sm:$0xff]
  %v24 = vld [vmem:[%s1 + $0x10] sm:$0xff]
  %v25 = vld [vmem:[%s1 + $0x18] sm:$0xff]
  %v26 = vld [vmem:[%s2] sm:$0x1]
  %v28 = vlaneseq
  %v29 = vshrl.u32 %v28, 7
  %v30 = vsub.s32 0, %v29
  %v31 = vrot.slane %v26, %v30
  %vm33 = vcmask 261120
  %v35 = vsel %vm33, %v20, 0
  %v38 = vsel %vm33, %v21, 0
  %40 = vmatprep.subr.mxu0 0.0
  %v41 = vand.u32 %v22, 4294901760
  %42 = vmatpush1.msra.mxu0 %v41
  %43 = vmatprep.subr.mxu0 0.0
  %v44 = vand.u32 %v23, 4294901760
  %45 = vmatpush1.msra.mxu0 %v44
  %46 = vmatprep.subr.mxu0 0.0
  %v47 = vand.u32 %v24, 4294901760
  %48 = vmatpush1.msra.mxu0 %v47
  %49 = vmatprep.subr.mxu0 0.0
  %v50 = vand.u32 %v25, 4294901760
  %51 = vmatpush1.msra.mxu0 %v50
  %52 = vmatprep.subr.mxu0 0.0
  %53 = vmatpush1.msra.mxu0 0.0
  %54 = vmatprep.subr.mxu0 0.0
  %55 = vmatpush1.msra.mxu0 0.0
  %56 = vmatprep.subr.mxu0 0.0
  %57 = vmatpush1.msra.mxu0 0.0
  %58 = vmatprep.subr.mxu0 0.0
  %59 = vmatpush1.msra.mxu0 0.0
  %60 = vmatprep.subr.mxu0 0.0
  %61 = vmatpush1.msra.mxu0 0.0
  %62 = vmatprep.subr.mxu0 0.0
  %63 = vmatpush1.msra.mxu0 0.0
  %64 = vmatprep.subr.mxu0 0.0
  %65 = vmatpush1.msra.mxu0 0.0
  %66 = vmatprep.subr.mxu0 0.0
  %67 = vmatpush1.msra.mxu0 0.0
  %68 = vmatprep.subr.mxu0 0.0
  %69 = vmatpush1.msra.mxu0 0.0
  %70 = vmatprep.subr.mxu0 0.0
  %71 = vmatpush1.msra.mxu0 0.0
  %72 = vmatprep.subr.mxu0 0.0
  %73 = vmatpush1.msra.mxu0 0.0
  %74 = vmatprep.subr.mxu0 0.0
  %75 = vmatpush1.msra.mxu0 0.0
  %76 = vmatprep.subr.mxu0 0.0
  %77 = vmatpush1.msra.mxu0 0.0
  %78 = vmatprep.subr.mxu0 0.0
  %79 = vmatpush1.msra.mxu0 0.0
  %80 = vmatprep.subr.mxu0 0.0
  %81 = vmatpush1.msra.mxu0 0.0
  %82 = vmatprep.subr.mxu0 0.0
  %83 = vmatpush1.msra.mxu0 0.0
  %84 = vmatprep.subr.mxu0 0.0
  %85 = vmatpush1.msra.mxu0 0.0
  %86 = vmatprep.subr.mxu0 0.0
  %87 = vmatpush1.msra.mxu0 0.0
  %88 = vmatprep.subr.mxu0 0.0
  %89 = vmatpush1.msra.mxu0 0.0
  %90 = vmatprep.subr.mxu0 0.0
  %91 = vmatpush1.msra.mxu0 0.0
  %92 = vmatprep.subr.mxu0 0.0
  %93 = vmatpush1.msra.mxu0 0.0
  %94 = vmatprep.subr.mxu0 0.0
  %95 = vmatpush1.msra.mxu0 0.0
  %96 = vmatprep.subr.mxu0 0.0
  %97 = vmatpush1.msra.mxu0 0.0
  %98 = vmatprep.subr.mxu0 0.0
  %99 = vmatpush1.msra.mxu0 0.0
  %100 = vmatprep.subr.mxu0 0.0
  %101 = vmatpush1.msra.mxu0 0.0
  %102 = vmatprep.subr.mxu0 0.0
  %103 = vmatpush1.msra.mxu0 0.0
  %104 = vmatprep.subr.mxu0 0.0
  %105 = vmatpush1.msra.mxu0 0.0
  %106 = vmatprep.subr.mxu0 0.0
  %107 = vmatpush1.msra.mxu0 0.0
  %108 = vmatprep.mubr.f32.mxu0 0.0
  %v109 = vand.u32 %v35, 4294901760
  %v110 = vsub.f32 %v35, %v109
  %v111 = vand.u32 %v110, 4294901760
  %v112 = vsub.f32 %v110, %v111
  %v113 = vand.u32 %v112, 4294901760
  %114 = vmatmul.mubr.f32.gmra.mrb[0].mxu0 %v113
  %v115 = vpop.f32.mrb[0].mxu0
  %v116 = vadd.f32 %v31, %v115
  %v117 = vpop.f32.mrb[0].mxu0
  %118 = vmatprep.mubr.f32.mxu0 0.0
  %v119 = vand.u32 %v38, 4294901760
  %v120 = vsub.f32 %v38, %v119
  %v121 = vand.u32 %v120, 4294901760
  %v122 = vsub.f32 %v120, %v121
  %v123 = vand.u32 %v122, 4294901760
  %124 = vmatmul.mubr.f32.gmra.mrb[0].mxu0 %v123
  %v125 = vpop.f32.mrb[0].mxu0
  %v126 = vadd.f32 %v31, %v125
  %v127 = vpop.f32.mrb[0].mxu0
  %128 = vdwg.mxu0
  %129 = vmatprep.subr.mxu0 0.0
  %v130 = vand.u32 %v22, 4294901760
  %v131 = vsub.f32 %v22, %v130
  %v132 = vand.u32 %v131, 4294901760
  %v133 = vsub.f32 %v131, %v132
  %v134 = vand.u32 %v133, 4294901760
  %135 = vmatpush1.msra.mxu0 %v134
  %136 = vmatprep.subr.mxu0 0.0
  %v137 = vand.u32 %v23, 4294901760
  %v138 = vsub.f32 %v23, %v137
  %v139 = vand.u32 %v138, 4294901760
  %v140 = vsub.f32 %v138, %v139
  %v141 = vand.u32 %v140, 4294901760
  %142 = vmatpush1.msra.mxu0 %v141
  %143 = vmatprep.subr.mxu0 0.0
  %v144 = vand.u32 %v24, 4294901760
  %v145 = vsub.f32 %v24, %v144
  %v146 = vand.u32 %v145, 4294901760
  %v147 = vsub.f32 %v145, %v146
  %v148 = vand.u32 %v147, 4294901760
  %149 = vmatpush1.msra.mxu0 %v148
  %150 = vmatprep.subr.mxu0 0.0
  %v151 = vand.u32 %v25, 4294901760
  %v152 = vsub.f32 %v25, %v151
  %v153 = vand.u32 %v152, 4294901760
  %v154 = vsub.f32 %v152, %v153
  %v155 = vand.u32 %v154, 4294901760
  %156 = vmatpush1.msra.mxu0 %v155
  %157 = vmatprep.subr.mxu0 0.0
  %158 = vmatpush1.msra.mxu0 0.0
  %159 = vmatprep.subr.mxu0 0.0
  %160 = vmatpush1.msra.mxu0 0.0
  %161 = vmatprep.subr.mxu0 0.0
  %162 = vmatpush1.msra.mxu0 0.0
  %163 = vmatprep.subr.mxu0 0.0
  %164 = vmatpush1.msra.mxu0 0.0
  %165 = vmatprep.subr.mxu0 0.0
  %166 = vmatpush1.msra.mxu0 0.0
  %167 = vmatprep.subr.mxu0 0.0
  %168 = vmatpush1.msra.mxu0 0.0
  %169 = vmatprep.subr.mxu0 0.0
  %170 = vmatpush1.msra.mxu0 0.0
  %171 = vmatprep.subr.mxu0 0.0
  %172 = vmatpush1.msra.mxu0 0.0
  %173 = vmatprep.subr.mxu0 0.0
  %174 = vmatpush1.msra.mxu0 0.0
  %175 = vmatprep.subr.mxu0 0.0
  %176 = vmatpush1.msra.mxu0 0.0
  %177 = vmatprep.subr.mxu0 0.0
  %178 = vmatpush1.msra.mxu0 0.0
  %179 = vmatprep.subr.mxu0 0.0
  %180 = vmatpush1.msra.mxu0 0.0
  %181 = vmatprep.subr.mxu0 0.0
  %182 = vmatpush1.msra.mxu0 0.0
  %183 = vmatprep.subr.mxu0 0.0
  %184 = vmatpush1.msra.mxu0 0.0
  %185 = vmatprep.subr.mxu0 0.0
  %186 = vmatpush1.msra.mxu0 0.0
  %187 = vmatprep.subr.mxu0 0.0
  %188 = vmatpush1.msra.mxu0 0.0
  %189 = vmatprep.subr.mxu0 0.0
  %190 = vmatpush1.msra.mxu0 0.0
  %191 = vmatprep.subr.mxu0 0.0
  %192 = vmatpush1.msra.mxu0 0.0
  %193 = vmatprep.subr.mxu0 0.0
  %194 = vmatpush1.msra.mxu0 0.0
  %195 = vmatprep.subr.mxu0 0.0
  %196 = vmatpush1.msra.mxu0 0.0
  %197 = vmatprep.subr.mxu0 0.0
  %198 = vmatpush1.msra.mxu0 0.0
  %199 = vmatprep.subr.mxu0 0.0
  %200 = vmatpush1.msra.mxu0 0.0
  %201 = vmatprep.subr.mxu0 0.0
  %202 = vmatpush1.msra.mxu0 0.0
  %203 = vmatprep.subr.mxu0 0.0
  %204 = vmatpush1.msra.mxu0 0.0
  %205 = vmatprep.subr.mxu0 0.0
  %206 = vmatpush1.msra.mxu0 0.0
  %207 = vmatprep.subr.mxu0 0.0
  %208 = vmatpush1.msra.mxu0 0.0
  %209 = vmatprep.subr.mxu0 0.0
  %210 = vmatpush1.msra.mxu0 0.0
  %211 = vmatprep.subr.mxu0 0.0
  %212 = vmatpush1.msra.mxu0 0.0
  %213 = vmatprep.mubr.f32.mxu0 0.0
  %v214 = vand.u32 %v35, 4294901760
  %215 = vmatmul.mubr.f32.gmra.mrb[0].mxu0 %v214
  %v216 = vpop.f32.mrb[0].mxu0
  %v217 = vadd.f32 %v116, %v216
  %v218 = vpop.f32.mrb[0].mxu0
  %219 = vmatprep.mubr.f32.mxu0 0.0
  %v220 = vand.u32 %v38, 4294901760
  %221 = vmatmul.mubr.f32.gmra.mrb[0].mxu0 %v220
  %v222 = vpop.f32.mrb[0].mxu0
  %v223 = vadd.f32 %v126, %v222
  %v224 = vpop.f32.mrb[0].mxu0
  %225 = vdwg.mxu0
  %226 = vmatprep.subr.mxu0 0.0
  %v227 = vand.u32 %v22, 4294901760
  %v228 = vsub.f32 %v22, %v227
  %229 = vmatpush1.msra.mxu0 %v228
  %230 = vmatprep.subr.mxu0 0.0
  %v231 = vand.u32 %v23, 4294901760
  %v232 = vsub.f32 %v23, %v231
  %233 = vmatpush1.msra.mxu0 %v232
  %234 = vmatprep.subr.mxu0 0.0
  %v235 = vand.u32 %v24, 4294901760
  %v236 = vsub.f32 %v24, %v235
  %237 = vmatpush1.msra.mxu0 %v236
  %238 = vmatprep.subr.mxu0 0.0
  %v239 = vand.u32 %v25, 4294901760
  %v240 = vsub.f32 %v25, %v239
  %241 = vmatpush1.msra.mxu0 %v240
  %242 = vmatprep.subr.mxu0 0.0
  %243 = vmatpush1.msra.mxu0 0.0
  %244 = vmatprep.subr.mxu0 0.0
  %245 = vmatpush1.msra.mxu0 0.0
  %246 = vmatprep.subr.mxu0 0.0
  %247 = vmatpush1.msra.mxu0 0.0
  %248 = vmatprep.subr.mxu0 0.0
  %249 = vmatpush1.msra.mxu0 0.0
  %250 = vmatprep.subr.mxu0 0.0
  %251 = vmatpush1.msra.mxu0 0.0
  %252 = vmatprep.subr.mxu0 0.0
  %253 = vmatpush1.msra.mxu0 0.0
  %254 = vmatprep.subr.mxu0 0.0
  %255 = vmatpush1.msra.mxu0 0.0
  %256 = vmatprep.subr.mxu0 0.0
  %257 = vmatpush1.msra.mxu0 0.0
  %258 = vmatprep.subr.mxu0 0.0
  %259 = vmatpush1.msra.mxu0 0.0
  %260 = vmatprep.subr.mxu0 0.0
  %261 = vmatpush1.msra.mxu0 0.0
  %262 = vmatprep.subr.mxu0 0.0
  %263 = vmatpush1.msra.mxu0 0.0
  %264 = vmatprep.subr.mxu0 0.0
  %265 = vmatpush1.msra.mxu0 0.0
  %266 = vmatprep.subr.mxu0 0.0
  %267 = vmatpush1.msra.mxu0 0.0
  %268 = vmatprep.subr.mxu0 0.0
  %269 = vmatpush1.msra.mxu0 0.0
  %270 = vmatprep.subr.mxu0 0.0
  %271 = vmatpush1.msra.mxu0 0.0
  %272 = vmatprep.subr.mxu0 0.0
  %273 = vmatpush1.msra.mxu0 0.0
  %274 = vmatprep.subr.mxu0 0.0
  %275 = vmatpush1.msra.mxu0 0.0
  %276 = vmatprep.subr.mxu0 0.0
  %277 = vmatpush1.msra.mxu0 0.0
  %278 = vmatprep.subr.mxu0 0.0
  %279 = vmatpush1.msra.mxu0 0.0
  %280 = vmatprep.subr.mxu0 0.0
  %281 = vmatpush1.msra.mxu0 0.0
  %282 = vmatprep.subr.mxu0 0.0
  %283 = vmatpush1.msra.mxu0 0.0
  %284 = vmatprep.subr.mxu0 0.0
  %285 = vmatpush1.msra.mxu0 0.0
  %286 = vmatprep.subr.mxu0 0.0
  %287 = vmatpush1.msra.mxu0 0.0
  %288 = vmatprep.subr.mxu0 0.0
  %289 = vmatpush1.msra.mxu0 0.0
  %290 = vmatprep.subr.mxu0 0.0
  %291 = vmatpush1.msra.mxu0 0.0
  %292 = vmatprep.subr.mxu0 0.0
  %293 = vmatpush1.msra.mxu0 0.0
  %294 = vmatprep.subr.mxu0 0.0
  %295 = vmatpush1.msra.mxu0 0.0
  %296 = vmatprep.subr.mxu0 0.0
  %297 = vmatpush1.msra.mxu0 0.0
  %298 = vmatprep.mubr.f32.mxu0 0.0
  %v299 = vand.u32 %v35, 4294901760
  %v300 = vsub.f32 %v35, %v299
  %301 = vmatmul.mubr.f32.gmra.mrb[0].mxu0 %v300
  %v302 = vpop.f32.mrb[0].mxu0
  %v303 = vadd.f32 %v217, %v302
  %v304 = vpop.f32.mrb[0].mxu0
  %305 = vmatprep.mubr.f32.mxu0 0.0
  %v306 = vand.u32 %v38, 4294901760
  %v307 = vsub.f32 %v38, %v306
  %308 = vmatmul.mubr.f32.gmra.mrb[0].mxu0 %v307
  %v309 = vpop.f32.mrb[0].mxu0
  %v310 = vadd.f32 %v223, %v309
  %v311 = vpop.f32.mrb[0].mxu0
  %312 = vdwg.mxu0
  %313 = vmatprep.subr.mxu0 0.0
  %v314 = vand.u32 %v22, 4294901760
  %315 = vmatpush1.msra.mxu0 %v314
  %316 = vmatprep.subr.mxu0 0.0
  %v317 = vand.u32 %v23, 4294901760
  %318 = vmatpush1.msra.mxu0 %v317
  %319 = vmatprep.subr.mxu0 0.0
  %v320 = vand.u32 %v24, 4294901760
  %321 = vmatpush1.msra.mxu0 %v320
  %322 = vmatprep.subr.mxu0 0.0
  %v323 = vand.u32 %v25, 4294901760
  %324 = vmatpush1.msra.mxu0 %v323
  %325 = vmatprep.subr.mxu0 0.0
  %326 = vmatpush1.msra.mxu0 0.0
  %327 = vmatprep.subr.mxu0 0.0
  %328 = vmatpush1.msra.mxu0 0.0
  %329 = vmatprep.subr.mxu0 0.0
  %330 = vmatpush1.msra.mxu0 0.0
  %331 = vmatprep.subr.mxu0 0.0
  %332 = vmatpush1.msra.mxu0 0.0
  %333 = vmatprep.subr.mxu0 0.0
  %334 = vmatpush1.msra.mxu0 0.0
  %335 = vmatprep.subr.mxu0 0.0
  %336 = vmatpush1.msra.mxu0 0.0
  %337 = vmatprep.subr.mxu0 0.0
  %338 = vmatpush1.msra.mxu0 0.0
  %339 = vmatprep.subr.mxu0 0.0
  %340 = vmatpush1.msra.mxu0 0.0
  %341 = vmatprep.subr.mxu0 0.0
  %342 = vmatpush1.msra.mxu0 0.0
  %343 = vmatprep.subr.mxu0 0.0
  %344 = vmatpush1.msra.mxu0 0.0
  %345 = vmatprep.subr.mxu0 0.0
  %346 = vmatpush1.msra.mxu0 0.0
  %347 = vmatprep.subr.mxu0 0.0
  %348 = vmatpush1.msra.mxu0 0.0
  %349 = vmatprep.subr.mxu0 0.0
  %350 = vmatpush1.msra.mxu0 0.0
  %351 = vmatprep.subr.mxu0 0.0
  %352 = vmatpush1.msra.mxu0 0.0
  %353 = vmatprep.subr.mxu0 0.0
  %354 = vmatpush1.msra.mxu0 0.0
  %355 = vmatprep.subr.mxu0 0.0
  %356 = vmatpush1.msra.mxu0 0.0
  %357 = vmatprep.subr.mxu0 0.0
  %358 = vmatpush1.msra.mxu0 0.0
  %359 = vmatprep.subr.mxu0 0.0
  %360 = vmatpush1.msra.mxu0 0.0
  %361 = vmatprep.subr.mxu0 0.0
  %362 = vmatpush1.msra.mxu0 0.0
  %363 = vmatprep.subr.mxu0 0.0
  %364 = vmatpush1.msra.mxu0 0.0
  %365 = vmatprep.subr.mxu0 0.0
  %366 = vmatpush1.msra.mxu0 0.0
  %367 = vmatprep.subr.mxu0 0.0
  %368 = vmatpush1.msra.mxu0 0.0
  %369 = vmatprep.subr.mxu0 0.0
  %370 = vmatpush1.msra.mxu0 0.0
  %371 = vmatprep.subr.mxu0 0.0
  %372 = vmatpush1.msra.mxu0 0.0
  %373 = vmatprep.subr.mxu0 0.0
  %374 = vmatpush1.msra.mxu0 0.0
  %375 = vmatprep.subr.mxu0 0.0
  %376 = vmatpush1.msra.mxu0 0.0
  %377 = vmatprep.subr.mxu0 0.0
  %378 = vmatpush1.msra.mxu0 0.0
  %379 = vmatprep.subr.mxu0 0.0
  %380 = vmatpush1.msra.mxu0 0.0
  %381 = vmatprep.mubr.f32.mxu0 0.0
  %v382 = vand.u32 %v35, 4294901760
  %v383 = vsub.f32 %v35, %v382
  %v384 = vand.u32 %v383, 4294901760
  %385 = vmatmul.mubr.f32.gmra.mrb[0].mxu0 %v384
  %v386 = vpop.f32.mrb[0].mxu0
  %v387 = vadd.f32 %v303, %v386
  %v388 = vpop.f32.mrb[0].mxu0
  %389 = vmatprep.mubr.f32.mxu0 0.0
  %v390 = vand.u32 %v38, 4294901760
  %v391 = vsub.f32 %v38, %v390
  %v392 = vand.u32 %v391, 4294901760
  %393 = vmatmul.mubr.f32.gmra.mrb[0].mxu0 %v392
  %v394 = vpop.f32.mrb[0].mxu0
  %v395 = vadd.f32 %v310, %v394
  %v396 = vpop.f32.mrb[0].mxu0
  %397 = vdwg.mxu0
  %398 = vmatprep.subr.mxu0 0.0
  %v399 = vand.u32 %v22, 4294901760
  %v400 = vsub.f32 %v22, %v399
  %v401 = vand.u32 %v400, 4294901760
  %402 = vmatpush1.msra.mxu0 %v401
  %403 = vmatprep.subr.mxu0 0.0
  %v404 = vand.u32 %v23, 4294901760
  %v405 = vsub.f32 %v23, %v404
  %v406 = vand.u32 %v405, 4294901760
  %407 = vmatpush1.msra.mxu0 %v406
  %408 = vmatprep.subr.mxu0 0.0
  %v409 = vand.u32 %v24, 4294901760
  %v410 = vsub.f32 %v24, %v409
  %v411 = vand.u32 %v410, 4294901760
  %412 = vmatpush1.msra.mxu0 %v411
  %413 = vmatprep.subr.mxu0 0.0
  %v414 = vand.u32 %v25, 4294901760
  %v415 = vsub.f32 %v25, %v414
  %v416 = vand.u32 %v415, 4294901760
  %417 = vmatpush1.msra.mxu0 %v416
  %418 = vmatprep.subr.mxu0 0.0
  %419 = vmatpush1.msra.mxu0 0.0
  %420 = vmatprep.subr.mxu0 0.0
  %421 = vmatpush1.msra.mxu0 0.0
  %422 = vmatprep.subr.mxu0 0.0
  %423 = vmatpush1.msra.mxu0 0.0
  %424 = vmatprep.subr.mxu0 0.0
  %425 = vmatpush1.msra.mxu0 0.0
  %426 = vmatprep.subr.mxu0 0.0
  %427 = vmatpush1.msra.mxu0 0.0
  %428 = vmatprep.subr.mxu0 0.0
  %429 = vmatpush1.msra.mxu0 0.0
  %430 = vmatprep.subr.mxu0 0.0
  %431 = vmatpush1.msra.mxu0 0.0
  %432 = vmatprep.subr.mxu0 0.0
  %433 = vmatpush1.msra.mxu0 0.0
  %434 = vmatprep.subr.mxu0 0.0
  %435 = vmatpush1.msra.mxu0 0.0
  %436 = vmatprep.subr.mxu0 0.0
  %437 = vmatpush1.msra.mxu0 0.0
  %438 = vmatprep.subr.mxu0 0.0
  %439 = vmatpush1.msra.mxu0 0.0
  %440 = vmatprep.subr.mxu0 0.0
  %441 = vmatpush1.msra.mxu0 0.0
  %442 = vmatprep.subr.mxu0 0.0
  %443 = vmatpush1.msra.mxu0 0.0
  %444 = vmatprep.subr.mxu0 0.0
  %445 = vmatpush1.msra.mxu0 0.0
  %446 = vmatprep.subr.mxu0 0.0
  %447 = vmatpush1.msra.mxu0 0.0
  %448 = vmatprep.subr.mxu0 0.0
  %449 = vmatpush1.msra.mxu0 0.0
  %450 = vmatprep.subr.mxu0 0.0
  %451 = vmatpush1.msra.mxu0 0.0
  %452 = vmatprep.subr.mxu0 0.0
  %453 = vmatpush1.msra.mxu0 0.0
  %454 = vmatprep.subr.mxu0 0.0
  %455 = vmatpush1.msra.mxu0 0.0
  %456 = vmatprep.subr.mxu0 0.0
  %457 = vmatpush1.msra.mxu0 0.0
  %458 = vmatprep.subr.mxu0 0.0
  %459 = vmatpush1.msra.mxu0 0.0
  %460 = vmatprep.subr.mxu0 0.0
  %461 = vmatpush1.msra.mxu0 0.0
  %462 = vmatprep.subr.mxu0 0.0
  %463 = vmatpush1.msra.mxu0 0.0
  %464 = vmatprep.subr.mxu0 0.0
  %465 = vmatpush1.msra.mxu0 0.0
  %466 = vmatprep.subr.mxu0 0.0
  %467 = vmatpush1.msra.mxu0 0.0
  %468 = vmatprep.subr.mxu0 0.0
  %469 = vmatpush1.msra.mxu0 0.0
  %470 = vmatprep.subr.mxu0 0.0
  %471 = vmatpush1.msra.mxu0 0.0
  %472 = vmatprep.subr.mxu0 0.0
  %473 = vmatpush1.msra.mxu0 0.0
  %474 = vmatprep.mubr.f32.mxu0 0.0
  %v475 = vand.u32 %v35, 4294901760
  %476 = vmatmul.mubr.f32.gmra.mrb[0].mxu0 %v475
  %v477 = vpop.f32.mrb[0].mxu0
  %v478 = vadd.f32 %v387, %v477
  %v479 = vpop.f32.mrb[0].mxu0
  %480 = vmatprep.mubr.f32.mxu0 0.0
  %v481 = vand.u32 %v38, 4294901760
  %482 = vmatmul.mubr.f32.gmra.mrb[0].mxu0 %v481
  %v483 = vpop.f32.mrb[0].mxu0
  %v484 = vadd.f32 %v395, %v483
  %v485 = vpop.f32.mrb[0].mxu0
  %486 = vdwg.mxu0
  %487 = vmatprep.subr.mxu0 0.0
  %v488 = vand.u32 %v22, 4294901760
  %489 = vmatpush1.msra.mxu0 %v488
  %490 = vmatprep.subr.mxu0 0.0
  %v491 = vand.u32 %v23, 4294901760
  %492 = vmatpush1.msra.mxu0 %v491
  %493 = vmatprep.subr.mxu0 0.0
  %v494 = vand.u32 %v24, 4294901760
  %495 = vmatpush1.msra.mxu0 %v494
  %496 = vmatprep.subr.mxu0 0.0
  %v497 = vand.u32 %v25, 4294901760
  %498 = vmatpush1.msra.mxu0 %v497
  %499 = vmatprep.subr.mxu0 0.0
  %500 = vmatpush1.msra.mxu0 0.0
  %501 = vmatprep.subr.mxu0 0.0
  %502 = vmatpush1.msra.mxu0 0.0
  %503 = vmatprep.subr.mxu0 0.0
  %504 = vmatpush1.msra.mxu0 0.0
  %505 = vmatprep.subr.mxu0 0.0
  %506 = vmatpush1.msra.mxu0 0.0
  %507 = vmatprep.subr.mxu0 0.0
  %508 = vmatpush1.msra.mxu0 0.0
  %509 = vmatprep.subr.mxu0 0.0
  %510 = vmatpush1.msra.mxu0 0.0
  %511 = vmatprep.subr.mxu0 0.0
  %512 = vmatpush1.msra.mxu0 0.0
  %513 = vmatprep.subr.mxu0 0.0
  %514 = vmatpush1.msra.mxu0 0.0
  %515 = vmatprep.subr.mxu0 0.0
  %516 = vmatpush1.msra.mxu0 0.0
  %517 = vmatprep.subr.mxu0 0.0
  %518 = vmatpush1.msra.mxu0 0.0
  %519 = vmatprep.subr.mxu0 0.0
  %520 = vmatpush1.msra.mxu0 0.0
  %521 = vmatprep.subr.mxu0 0.0
  %522 = vmatpush1.msra.mxu0 0.0
  %523 = vmatprep.subr.mxu0 0.0
  %524 = vmatpush1.msra.mxu0 0.0
  %525 = vmatprep.subr.mxu0 0.0
  %526 = vmatpush1.msra.mxu0 0.0
  %527 = vmatprep.subr.mxu0 0.0
  %528 = vmatpush1.msra.mxu0 0.0
  %529 = vmatprep.subr.mxu0 0.0
  %530 = vmatpush1.msra.mxu0 0.0
  %531 = vmatprep.subr.mxu0 0.0
  %532 = vmatpush1.msra.mxu0 0.0
  %533 = vmatprep.subr.mxu0 0.0
  %534 = vmatpush1.msra.mxu0 0.0
  %535 = vmatprep.subr.mxu0 0.0
  %536 = vmatpush1.msra.mxu0 0.0
  %537 = vmatprep.subr.mxu0 0.0
  %538 = vmatpush1.msra.mxu0 0.0
  %539 = vmatprep.subr.mxu0 0.0
  %540 = vmatpush1.msra.mxu0 0.0
  %541 = vmatprep.subr.mxu0 0.0
  %542 = vmatpush1.msra.mxu0 0.0
  %543 = vmatprep.subr.mxu0 0.0
  %544 = vmatpush1.msra.mxu0 0.0
  %545 = vmatprep.subr.mxu0 0.0
  %546 = vmatpush1.msra.mxu0 0.0
  %547 = vmatprep.subr.mxu0 0.0
  %548 = vmatpush1.msra.mxu0 0.0
  %549 = vmatprep.subr.mxu0 0.0
  %550 = vmatpush1.msra.mxu0 0.0
  %551 = vmatprep.subr.mxu0 0.0
  %552 = vmatpush1.msra.mxu0 0.0
  %553 = vmatprep.subr.mxu0 0.0
  %554 = vmatpush1.msra.mxu0 0.0
  %555 = vmatprep.mubr.f32.mxu0 0.0
  %v556 = vand.u32 %v35, 4294901760
  %557 = vmatmul.mubr.f32.gmra.mrb[0].mxu0 %v556
  %v558 = vpop.f32.mrb[0].mxu0
  %v559 = vadd.f32 %v478, %v558
  %v560 = vpop.f32.mrb[0].mxu0
  %561 = vmatprep.mubr.f32.mxu0 0.0
  %v562 = vand.u32 %v38, 4294901760
  %563 = vmatmul.mubr.f32.gmra.mrb[0].mxu0 %v562
  %v564 = vpop.f32.mrb[0].mxu0
  %v565 = vadd.f32 %v484, %v564
  %v566 = vpop.f32.mrb[0].mxu0
  %567 = vdwg.mxu0
  %v568 = vmax.f32 %v559, 0.0
  %v569 = vmax.f32 %v565, 0.0
  %v570 = vld [vmem:[%s3] sm:$0xff]
  %v571 = vld [vmem:[%s3 + $0x8] sm:$0xff]
  %v572 = vld [vmem:[%s3 + $0x10] sm:$0xff]
  %v573 = vld [vmem:[%s3 + $0x18] sm:$0xff]
  %v574 = vld [vmem:[%s3 + $0x20] sm:$0xff]
  %v575 = vld [vmem:[%s3 + $0x28] sm:$0xff]
  %v576 = vld [vmem:[%s3 + $0x30] sm:$0xff]
  %v577 = vld [vmem:[%s3 + $0x38] sm:$0xff]
  %v578 = vld [vmem:[%s4] sm:$0x1]
  %v580 = vlaneseq
  %v581 = vshrl.u32 %v580, 7
  %v582 = vsub.s32 0, %v581
  %v583 = vrot.slane %v578, %v582
  %vm585 = vcmask 523264
  %v587 = vsel %vm585, %v568, 0
  %v590 = vsel %vm585, %v569, 0
  %592 = vmatprep.subr.mxu0 0.0
  %v593 = vand.u32 %v570, 4294901760
  %594 = vmatpush1.msra.mxu0 %v593
  %595 = vmatprep.subr.mxu0 0.0
  %v596 = vand.u32 %v571, 4294901760
  %597 = vmatpush1.msra.mxu0 %v596
  %598 = vmatprep.subr.mxu0 0.0
  %v599 = vand.u32 %v572, 4294901760
  %600 = vmatpush1.msra.mxu0 %v599
  %601 = vmatprep.subr.mxu0 0.0
  %v602 = vand.u32 %v573, 4294901760
  %603 = vmatpush1.msra.mxu0 %v602
  %604 = vmatprep.subr.mxu0 0.0
  %v605 = vand.u32 %v574, 4294901760
  %606 = vmatpush1.msra.mxu0 %v605
  %607 = vmatprep.subr.mxu0 0.0
  %v608 = vand.u32 %v575, 4294901760
  %609 = vmatpush1.msra.mxu0 %v608
  %610 = vmatprep.subr.mxu0 0.0
  %v611 = vand.u32 %v576, 4294901760
  %612 = vmatpush1.msra.mxu0 %v611
  %613 = vmatprep.subr.mxu0 0.0
  %v614 = vand.u32 %v577, 4294901760
  %615 = vmatpush1.msra.mxu0 %v614
  %616 = vmatprep.subr.mxu0 0.0
  %617 = vmatpush1.msra.mxu0 0.0
  %618 = vmatprep.subr.mxu0 0.0
  %619 = vmatpush1.msra.mxu0 0.0
  %620 = vmatprep.subr.mxu0 0.0
  %621 = vmatpush1.msra.mxu0 0.0
  %622 = vmatprep.subr.mxu0 0.0
  %623 = vmatpush1.msra.mxu0 0.0
  %624 = vmatprep.subr.mxu0 0.0
  %625 = vmatpush1.msra.mxu0 0.0
  %626 = vmatprep.subr.mxu0 0.0
  %627 = vmatpush1.msra.mxu0 0.0
  %628 = vmatprep.subr.mxu0 0.0
  %629 = vmatpush1.msra.mxu0 0.0
  %630 = vmatprep.subr.mxu0 0.0
  %631 = vmatpush1.msra.mxu0 0.0
  %632 = vmatprep.subr.mxu0 0.0
  %633 = vmatpush1.msra.mxu0 0.0
  %634 = vmatprep.subr.mxu0 0.0
  %635 = vmatpush1.msra.mxu0 0.0
  %636 = vmatprep.subr.mxu0 0.0
  %637 = vmatpush1.msra.mxu0 0.0
  %638 = vmatprep.subr.mxu0 0.0
  %639 = vmatpush1.msra.mxu0 0.0
  %640 = vmatprep.subr.mxu0 0.0
  %641 = vmatpush1.msra.mxu0 0.0
  %642 = vmatprep.subr.mxu0 0.0
  %643 = vmatpush1.msra.mxu0 0.0
  %644 = vmatprep.subr.mxu0 0.0
  %645 = vmatpush1.msra.mxu0 0.0
  %646 = vmatprep.subr.mxu0 0.0
  %647 = vmatpush1.msra.mxu0 0.0
  %648 = vmatprep.subr.mxu0 0.0
  %649 = vmatpush1.msra.mxu0 0.0
  %650 = vmatprep.subr.mxu0 0.0
  %651 = vmatpush1.msra.mxu0 0.0
  %652 = vmatprep.subr.mxu0 0.0
  %653 = vmatpush1.msra.mxu0 0.0
  %654 = vmatprep.subr.mxu0 0.0
  %655 = vmatpush1.msra.mxu0 0.0
  %656 = vmatprep.subr.mxu0 0.0
  %657 = vmatpush1.msra.mxu0 0.0
  %658 = vmatprep.subr.mxu0 0.0
  %659 = vmatpush1.msra.mxu0 0.0
  %660 = vmatprep.subr.mxu0 0.0
  %661 = vmatpush1.msra.mxu0 0.0
  %662 = vmatprep.subr.mxu0 0.0
  %663 = vmatpush1.msra.mxu0 0.0
  %664 = vmatprep.mubr.f32.mxu0 0.0
  %v665 = vand.u32 %v587, 4294901760
  %v666 = vsub.f32 %v587, %v665
  %v667 = vand.u32 %v666, 4294901760
  %v668 = vsub.f32 %v666, %v667
  %v669 = vand.u32 %v668, 4294901760
  %670 = vmatmul.mubr.f32.gmra.mrb[0].mxu0 %v669
  %v671 = vpop.f32.mrb[0].mxu0
  %v672 = vadd.f32 %v583, %v671
  %v673 = vpop.f32.mrb[0].mxu0
  %674 = vmatprep.mubr.f32.mxu0 0.0
  %v675 = vand.u32 %v590, 4294901760
  %v676 = vsub.f32 %v590, %v675
  %v677 = vand.u32 %v676, 4294901760
  %v678 = vsub.f32 %v676, %v677
  %v679 = vand.u32 %v678, 4294901760
  %680 = vmatmul.mubr.f32.gmra.mrb[0].mxu0 %v679
  %v681 = vpop.f32.mrb[0].mxu0
  %v682 = vadd.f32 %v583, %v681
  %v683 = vpop.f32.mrb[0].mxu0
  %684 = vdwg.mxu0
  %685 = vmatprep.subr.mxu0 0.0
  %v686 = vand.u32 %v570, 4294901760
  %v687 = vsub.f32 %v570, %v686
  %v688 = vand.u32 %v687, 4294901760
  %v689 = vsub.f32 %v687, %v688
  %v690 = vand.u32 %v689, 4294901760
  %691 = vmatpush1.msra.mxu0 %v690
  %692 = vmatprep.subr.mxu0 0.0
  %v693 = vand.u32 %v571, 4294901760
  %v694 = vsub.f32 %v571, %v693
  %v695 = vand.u32 %v694, 4294901760
  %v696 = vsub.f32 %v694, %v695
  %v697 = vand.u32 %v696, 4294901760
  %698 = vmatpush1.msra.mxu0 %v697
  %699 = vmatprep.subr.mxu0 0.0
  %v700 = vand.u32 %v572, 4294901760
  %v701 = vsub.f32 %v572, %v700
  %v702 = vand.u32 %v701, 4294901760
  %v703 = vsub.f32 %v701, %v702
  %v704 = vand.u32 %v703, 4294901760
  %705 = vmatpush1.msra.mxu0 %v704
  %706 = vmatprep.subr.mxu0 0.0
  %v707 = vand.u32 %v573, 4294901760
  %v708 = vsub.f32 %v573, %v707
  %v709 = vand.u32 %v708, 4294901760
  %v710 = vsub.f32 %v708, %v709
  %v711 = vand.u32 %v710, 4294901760
  %712 = vmatpush1.msra.mxu0 %v711
  %713 = vmatprep.subr.mxu0 0.0
  %v714 = vand.u32 %v574, 4294901760
  %v715 = vsub.f32 %v574, %v714
  %v716 = vand.u32 %v715, 4294901760
  %v717 = vsub.f32 %v715, %v716
  %v718 = vand.u32 %v717, 4294901760
  %719 = vmatpush1.msra.mxu0 %v718
  %720 = vmatprep.subr.mxu0 0.0
  %v721 = vand.u32 %v575, 4294901760
  %v722 = vsub.f32 %v575, %v721
  %v723 = vand.u32 %v722, 4294901760
  %v724 = vsub.f32 %v722, %v723
  %v725 = vand.u32 %v724, 4294901760
  %726 = vmatpush1.msra.mxu0 %v725
  %727 = vmatprep.subr.mxu0 0.0
  %v728 = vand.u32 %v576, 4294901760
  %v729 = vsub.f32 %v576, %v728
  %v730 = vand.u32 %v729, 4294901760
  %v731 = vsub.f32 %v729, %v730
  %v732 = vand.u32 %v731, 4294901760
  %733 = vmatpush1.msra.mxu0 %v732
  %734 = vmatprep.subr.mxu0 0.0
  %v735 = vand.u32 %v577, 4294901760
  %v736 = vsub.f32 %v577, %v735
  %v737 = vand.u32 %v736, 4294901760
  %v738 = vsub.f32 %v736, %v737
  %v739 = vand.u32 %v738, 4294901760
  %740 = vmatpush1.msra.mxu0 %v739
  %741 = vmatprep.subr.mxu0 0.0
  %742 = vmatpush1.msra.mxu0 0.0
  %743 = vmatprep.subr.mxu0 0.0
  %744 = vmatpush1.msra.mxu0 0.0
  %745 = vmatprep.subr.mxu0 0.0
  %746 = vmatpush1.msra.mxu0 0.0
  %747 = vmatprep.subr.mxu0 0.0
  %748 = vmatpush1.msra.mxu0 0.0
  %749 = vmatprep.subr.mxu0 0.0
  %750 = vmatpush1.msra.mxu0 0.0
  %751 = vmatprep.subr.mxu0 0.0
  %752 = vmatpush1.msra.mxu0 0.0
  %753 = vmatprep.subr.mxu0 0.0
  %754 = vmatpush1.msra.mxu0 0.0
  %755 = vmatprep.subr.mxu0 0.0
  %756 = vmatpush1.msra.mxu0 0.0
  %757 = vmatprep.subr.mxu0 0.0
  %758 = vmatpush1.msra.mxu0 0.0
  %759 = vmatprep.subr.mxu0 0.0
  %760 = vmatpush1.msra.mxu0 0.0
  %761 = vmatprep.subr.mxu0 0.0
  %762 = vmatpush1.msra.mxu0 0.0
  %763 = vmatprep.subr.mxu0 0.0
  %764 = vmatpush1.msra.mxu0 0.0
  %765 = vmatprep.subr.mxu0 0.0
  %766 = vmatpush1.msra.mxu0 0.0
  %767 = vmatprep.subr.mxu0 0.0
  %768 = vmatpush1.msra.mxu0 0.0
  %769 = vmatprep.subr.mxu0 0.0
  %770 = vmatpush1.msra.mxu0 0.0
  %771 = vmatprep.subr.mxu0 0.0
  %772 = vmatpush1.msra.mxu0 0.0
  %773 = vmatprep.subr.mxu0 0.0
  %774 = vmatpush1.msra.mxu0 0.0
  %775 = vmatprep.subr.mxu0 0.0
  %776 = vmatpush1.msra.mxu0 0.0
  %777 = vmatprep.subr.mxu0 0.0
  %778 = vmatpush1.msra.mxu0 0.0
  %779 = vmatprep.subr.mxu0 0.0
  %780 = vmatpush1.msra.mxu0 0.0
  %781 = vmatprep.subr.mxu0 0.0
  %782 = vmatpush1.msra.mxu0 0.0
  %783 = vmatprep.subr.mxu0 0.0
  %784 = vmatpush1.msra.mxu0 0.0
  %785 = vmatprep.subr.mxu0 0.0
  %786 = vmatpush1.msra.mxu0 0.0
  %787 = vmatprep.subr.mxu0 0.0
  %788 = vmatpush1.msra.mxu0 0.0
  %789 = vmatprep.mubr.f32.mxu0 0.0
  %v790 = vand.u32 %v587, 4294901760
  %791 = vmatmul.mubr.f32.gmra.mrb[0].mxu0 %v790
  %v792 = vpop.f32.mrb[0].mxu0
  %v793 = vadd.f32 %v672, %v792
  %v794 = vpop.f32.mrb[0].mxu0
  %795 = vmatprep.mubr.f32.mxu0 0.0
  %v796 = vand.u32 %v590, 4294901760
  %797 = vmatmul.mubr.f32.gmra.mrb[0].mxu0 %v796
  %v798 = vpop.f32.mrb[0].mxu0
  %v799 = vadd.f32 %v682, %v798
  %v800 = vpop.f32.mrb[0].mxu0
  %801 = vdwg.mxu0
  %802 = vmatprep.subr.mxu0 0.0
  %v803 = vand.u32 %v570, 4294901760
  %v804 = vsub.f32 %v570, %v803
  %805 = vmatpush1.msra.mxu0 %v804
  %806 = vmatprep.subr.mxu0 0.0
  %v807 = vand.u32 %v571, 4294901760
  %v808 = vsub.f32 %v571, %v807
  %809 = vmatpush1.msra.mxu0 %v808
  %810 = vmatprep.subr.mxu0 0.0
  %v811 = vand.u32 %v572, 4294901760
  %v812 = vsub.f32 %v572, %v811
  %813 = vmatpush1.msra.mxu0 %v812
  %814 = vmatprep.subr.mxu0 0.0
  %v815 = vand.u32 %v573, 4294901760
  %v816 = vsub.f32 %v573, %v815
  %817 = vmatpush1.msra.mxu0 %v816
  %818 = vmatprep.subr.mxu0 0.0
  %v819 = vand.u32 %v574, 4294901760
  %v820 = vsub.f32 %v574, %v819
  %821 = vmatpush1.msra.mxu0 %v820
  %822 = vmatprep.subr.mxu0 0.0
  %v823 = vand.u32 %v575, 4294901760
  %v824 = vsub.f32 %v575, %v823
  %825 = vmatpush1.msra.mxu0 %v824
  %826 = vmatprep.subr.mxu0 0.0
  %v827 = vand.u32 %v576, 4294901760
  %v828 = vsub.f32 %v576, %v827
  %829 = vmatpush1.msra.mxu0 %v828
  %830 = vmatprep.subr.mxu0 0.0
  %v831 = vand.u32 %v577, 4294901760
  %v832 = vsub.f32 %v577, %v831
  %833 = vmatpush1.msra.mxu0 %v832
  %834 = vmatprep.subr.mxu0 0.0
  %835 = vmatpush1.msra.mxu0 0.0
  %836 = vmatprep.subr.mxu0 0.0
  %837 = vmatpush1.msra.mxu0 0.0
  %838 = vmatprep.subr.mxu0 0.0
  %839 = vmatpush1.msra.mxu0 0.0
  %840 = vmatprep.subr.mxu0 0.0
  %841 = vmatpush1.msra.mxu0 0.0
  %842 = vmatprep.subr.mxu0 0.0
  %843 = vmatpush1.msra.mxu0 0.0
  %844 = vmatprep.subr.mxu0 0.0
  %845 = vmatpush1.msra.mxu0 0.0
  %846 = vmatprep.subr.mxu0 0.0
  %847 = vmatpush1.msra.mxu0 0.0
  %848 = vmatprep.subr.mxu0 0.0
  %849 = vmatpush1.msra.mxu0 0.0
  %850 = vmatprep.subr.mxu0 0.0
  %851 = vmatpush1.msra.mxu0 0.0
  %852 = vmatprep.subr.mxu0 0.0
  %853 = vmatpush1.msra.mxu0 0.0
  %854 = vmatprep.subr.mxu0 0.0
  %855 = vmatpush1.msra.mxu0 0.0
  %856 = vmatprep.subr.mxu0 0.0
  %857 = vmatpush1.msra.mxu0 0.0
  %858 = vmatprep.subr.mxu0 0.0
  %859 = vmatpush1.msra.mxu0 0.0
  %860 = vmatprep.subr.mxu0 0.0
  %861 = vmatpush1.msra.mxu0 0.0
  %862 = vmatprep.subr.mxu0 0.0
  %863 = vmatpush1.msra.mxu0 0.0
  %864 = vmatprep.subr.mxu0 0.0
  %865 = vmatpush1.msra.mxu0 0.0
  %866 = vmatprep.subr.mxu0 0.0
  %867 = vmatpush1.msra.mxu0 0.0
  %868 = vmatprep.subr.mxu0 0.0
  %869 = vmatpush1.msra.mxu0 0.0
  %870 = vmatprep.subr.mxu0 0.0
  %871 = vmatpush1.msra.mxu0 0.0
  %872 = vmatprep.subr.mxu0 0.0
  %873 = vmatpush1.msra.mxu0 0.0
  %874 = vmatprep.subr.mxu0 0.0
  %875 = vmatpush1.msra.mxu0 0.0
  %876 = vmatprep.subr.mxu0 0.0
  %877 = vmatpush1.msra.mxu0 0.0
  %878 = vmatprep.subr.mxu0 0.0
  %879 = vmatpush1.msra.mxu0 0.0
  %880 = vmatprep.subr.mxu0 0.0
  %881 = vmatpush1.msra.mxu0 0.0
  %882 = vmatprep.mubr.f32.mxu0 0.0
  %v883 = vand.u32 %v587, 4294901760
  %v884 = vsub.f32 %v587, %v883
  %885 = vmatmul.mubr.f32.gmra.mrb[0].mxu0 %v884
  %v886 = vpop.f32.mrb[0].mxu0
  %v887 = vadd.f32 %v793, %v886
  %v888 = vpop.f32.mrb[0].mxu0
  %889 = vmatprep.mubr.f32.mxu0 0.0
  %v890 = vand.u32 %v590, 4294901760
  %v891 = vsub.f32 %v590, %v890
  %892 = vmatmul.mubr.f32.gmra.mrb[0].mxu0 %v891
  %v893 = vpop.f32.mrb[0].mxu0
  %v894 = vadd.f32 %v799, %v893
  %v895 = vpop.f32.mrb[0].mxu0
  %896 = vdwg.mxu0
  %897 = vmatprep.subr.mxu0 0.0
  %v898 = vand.u32 %v570, 4294901760
  %899 = vmatpush1.msra.mxu0 %v898
  %900 = vmatprep.subr.mxu0 0.0
  %v901 = vand.u32 %v571, 4294901760
  %902 = vmatpush1.msra.mxu0 %v901
  %903 = vmatprep.subr.mxu0 0.0
  %v904 = vand.u32 %v572, 4294901760
  %905 = vmatpush1.msra.mxu0 %v904
  %906 = vmatprep.subr.mxu0 0.0
  %v907 = vand.u32 %v573, 4294901760
  %908 = vmatpush1.msra.mxu0 %v907
  %909 = vmatprep.subr.mxu0 0.0
  %v910 = vand.u32 %v574, 4294901760
  %911 = vmatpush1.msra.mxu0 %v910
  %912 = vmatprep.subr.mxu0 0.0
  %v913 = vand.u32 %v575, 4294901760
  %914 = vmatpush1.msra.mxu0 %v913
  %915 = vmatprep.subr.mxu0 0.0
  %v916 = vand.u32 %v576, 4294901760
  %917 = vmatpush1.msra.mxu0 %v916
  %918 = vmatprep.subr.mxu0 0.0
  %v919 = vand.u32 %v577, 4294901760
  %920 = vmatpush1.msra.mxu0 %v919
  %921 = vmatprep.subr.mxu0 0.0
  %922 = vmatpush1.msra.mxu0 0.0
  %923 = vmatprep.subr.mxu0 0.0
  %924 = vmatpush1.msra.mxu0 0.0
  %925 = vmatprep.subr.mxu0 0.0
  %926 = vmatpush1.msra.mxu0 0.0
  %927 = vmatprep.subr.mxu0 0.0
  %928 = vmatpush1.msra.mxu0 0.0
  %929 = vmatprep.subr.mxu0 0.0
  %930 = vmatpush1.msra.mxu0 0.0
  %931 = vmatprep.subr.mxu0 0.0
  %932 = vmatpush1.msra.mxu0 0.0
  %933 = vmatprep.subr.mxu0 0.0
  %934 = vmatpush1.msra.mxu0 0.0
  %935 = vmatprep.subr.mxu0 0.0
  %936 = vmatpush1.msra.mxu0 0.0
  %937 = vmatprep.subr.mxu0 0.0
  %938 = vmatpush1.msra.mxu0 0.0
  %939 = vmatprep.subr.mxu0 0.0
  %940 = vmatpush1.msra.mxu0 0.0
  %941 = vmatprep.subr.mxu0 0.0
  %942 = vmatpush1.msra.mxu0 0.0
  %943 = vmatprep.subr.mxu0 0.0
  %944 = vmatpush1.msra.mxu0 0.0
  %945 = vmatprep.subr.mxu0 0.0
  %946 = vmatpush1.msra.mxu0 0.0
  %947 = vmatprep.subr.mxu0 0.0
  %948 = vmatpush1.msra.mxu0 0.0
  %949 = vmatprep.subr.mxu0 0.0
  %950 = vmatpush1.msra.mxu0 0.0
  %951 = vmatprep.subr.mxu0 0.0
  %952 = vmatpush1.msra.mxu0 0.0
  %953 = vmatprep.subr.mxu0 0.0
  %954 = vmatpush1.msra.mxu0 0.0
  %955 = vmatprep.subr.mxu0 0.0
  %956 = vmatpush1.msra.mxu0 0.0
  %957 = vmatprep.subr.mxu0 0.0
  %958 = vmatpush1.msra.mxu0 0.0
  %959 = vmatprep.subr.mxu0 0.0
  %960 = vmatpush1.msra.mxu0 0.0
  %961 = vmatprep.subr.mxu0 0.0
  %962 = vmatpush1.msra.mxu0 0.0
  %963 = vmatprep.subr.mxu0 0.0
  %964 = vmatpush1.msra.mxu0 0.0
  %965 = vmatprep.subr.mxu0 0.0
  %966 = vmatpush1.msra.mxu0 0.0
  %967 = vmatprep.subr.mxu0 0.0
  %968 = vmatpush1.msra.mxu0 0.0
  %969 = vmatprep.mubr.f32.mxu0 0.0
  %v970 = vand.u32 %v587, 4294901760
  %v971 = vsub.f32 %v587, %v970
  %v972 = vand.u32 %v971, 4294901760
  %973 = vmatmul.mubr.f32.gmra.mrb[0].mxu0 %v972
  %v974 = vpop.f32.mrb[0].mxu0
  %v975 = vadd.f32 %v887, %v974
  %v976 = vpop.f32.mrb[0].mxu0
  %977 = vmatprep.mubr.f32.mxu0 0.0
  %v978 = vand.u32 %v590, 4294901760
  %v979 = vsub.f32 %v590, %v978
  %v980 = vand.u32 %v979, 4294901760
  %981 = vmatmul.mubr.f32.gmra.mrb[0].mxu0 %v980
  %v982 = vpop.f32.mrb[0].mxu0
  %v983 = vadd.f32 %v894, %v982
  %v984 = vpop.f32.mrb[0].mxu0
  %985 = vdwg.mxu0
  %986 = vmatprep.subr.mxu0 0.0
  %v987 = vand.u32 %v570, 4294901760
  %v988 = vsub.f32 %v570, %v987
  %v989 = vand.u32 %v988, 4294901760
  %990 = vmatpush1.msra.mxu0 %v989
  %991 = vmatprep.subr.mxu0 0.0
  %v992 = vand.u32 %v571, 4294901760
  %v993 = vsub.f32 %v571, %v992
  %v994 = vand.u32 %v993, 4294901760
  %995 = vmatpush1.msra.mxu0 %v994
  %996 = vmatprep.subr.mxu0 0.0
  %v997 = vand.u32 %v572, 4294901760
  %v998 = vsub.f32 %v572, %v997
  %v999 = vand.u32 %v998, 4294901760
  %1000 = vmatpush1.msra.mxu0 %v999
  %1001 = vmatprep.subr.mxu0 0.0
  %v1002 = vand.u32 %v573, 4294901760
  %v1003 = vsub.f32 %v573, %v1002
  %v1004 = vand.u32 %v1003, 4294901760
  %1005 = vmatpush1.msra.mxu0 %v1004
  %1006 = vmatprep.subr.mxu0 0.0
  %v1007 = vand.u32 %v574, 4294901760
  %v1008 = vsub.f32 %v574, %v1007
  %v1009 = vand.u32 %v1008, 4294901760
  %1010 = vmatpush1.msra.mxu0 %v1009
  %1011 = vmatprep.subr.mxu0 0.0
  %v1012 = vand.u32 %v575, 4294901760
  %v1013 = vsub.f32 %v575, %v1012
  %v1014 = vand.u32 %v1013, 4294901760
  %1015 = vmatpush1.msra.mxu0 %v1014
  %1016 = vmatprep.subr.mxu0 0.0
  %v1017 = vand.u32 %v576, 4294901760
  %v1018 = vsub.f32 %v576, %v1017
  %v1019 = vand.u32 %v1018, 4294901760
  %1020 = vmatpush1.msra.mxu0 %v1019
  %1021 = vmatprep.subr.mxu0 0.0
  %v1022 = vand.u32 %v577, 4294901760
  %v1023 = vsub.f32 %v577, %v1022
  %v1024 = vand.u32 %v1023, 4294901760
  %1025 = vmatpush1.msra.mxu0 %v1024
  %1026 = vmatprep.subr.mxu0 0.0
  %1027 = vmatpush1.msra.mxu0 0.0
  %1028 = vmatprep.subr.mxu0 0.0
  %1029 = vmatpush1.msra.mxu0 0.0
  %1030 = vmatprep.subr.mxu0 0.0
  %1031 = vmatpush1.msra.mxu0 0.0
  %1032 = vmatprep.subr.mxu0 0.0
  %1033 = vmatpush1.msra.mxu0 0.0
  %1034 = vmatprep.subr.mxu0 0.0
  %1035 = vmatpush1.msra.mxu0 0.0
  %1036 = vmatprep.subr.mxu0 0.0
  %1037 = vmatpush1.msra.mxu0 0.0
  %1038 = vmatprep.subr.mxu0 0.0
  %1039 = vmatpush1.msra.mxu0 0.0
  %1040 = vmatprep.subr.mxu0 0.0
  %1041 = vmatpush1.msra.mxu0 0.0
  %1042 = vmatprep.subr.mxu0 0.0
  %1043 = vmatpush1.msra.mxu0 0.0
  %1044 = vmatprep.subr.mxu0 0.0
  %1045 = vmatpush1.msra.mxu0 0.0
  %1046 = vmatprep.subr.mxu0 0.0
  %1047 = vmatpush1.msra.mxu0 0.0
  %1048 = vmatprep.subr.mxu0 0.0
  %1049 = vmatpush1.msra.mxu0 0.0
  %1050 = vmatprep.subr.mxu0 0.0
  %1051 = vmatpush1.msra.mxu0 0.0
  %1052 = vmatprep.subr.mxu0 0.0
  %1053 = vmatpush1.msra.mxu0 0.0
  %1054 = vmatprep.subr.mxu0 0.0
  %1055 = vmatpush1.msra.mxu0 0.0
  %1056 = vmatprep.subr.mxu0 0.0
  %1057 = vmatpush1.msra.mxu0 0.0
  %1058 = vmatprep.subr.mxu0 0.0
  %1059 = vmatpush1.msra.mxu0 0.0
  %1060 = vmatprep.subr.mxu0 0.0
  %1061 = vmatpush1.msra.mxu0 0.0
  %1062 = vmatprep.subr.mxu0 0.0
  %1063 = vmatpush1.msra.mxu0 0.0
  %1064 = vmatprep.subr.mxu0 0.0
  %1065 = vmatpush1.msra.mxu0 0.0
  %1066 = vmatprep.subr.mxu0 0.0
  %1067 = vmatpush1.msra.mxu0 0.0
  %1068 = vmatprep.subr.mxu0 0.0
  %1069 = vmatpush1.msra.mxu0 0.0
  %1070 = vmatprep.subr.mxu0 0.0
  %1071 = vmatpush1.msra.mxu0 0.0
  %1072 = vmatprep.subr.mxu0 0.0
  %1073 = vmatpush1.msra.mxu0 0.0
  %1074 = vmatprep.mubr.f32.mxu0 0.0
  %v1075 = vand.u32 %v587, 4294901760
  %1076 = vmatmul.mubr.f32.gmra.mrb[0].mxu0 %v1075
  %v1077 = vpop.f32.mrb[0].mxu0
  %v1078 = vadd.f32 %v975, %v1077
  %v1079 = vpop.f32.mrb[0].mxu0
  %1080 = vmatprep.mubr.f32.mxu0 0.0
  %v1081 = vand.u32 %v590, 4294901760
  %1082 = vmatmul.mubr.f32.gmra.mrb[0].mxu0 %v1081
  %v1083 = vpop.f32.mrb[0].mxu0
  %v1084 = vadd.f32 %v983, %v1083
  %v1085 = vpop.f32.mrb[0].mxu0
  %1086 = vdwg.mxu0
  %1087 = vmatprep.subr.mxu0 0.0
  %v1088 = vand.u32 %v570, 4294901760
  %1089 = vmatpush1.msra.mxu0 %v1088
  %1090 = vmatprep.subr.mxu0 0.0
  %v1091 = vand.u32 %v571, 4294901760
  %1092 = vmatpush1.msra.mxu0 %v1091
  %1093 = vmatprep.subr.mxu0 0.0
  %v1094 = vand.u32 %v572, 4294901760
  %1095 = vmatpush1.msra.mxu0 %v1094
  %1096 = vmatprep.subr.mxu0 0.0
  %v1097 = vand.u32 %v573, 4294901760
  %1098 = vmatpush1.msra.mxu0 %v1097
  %1099 = vmatprep.subr.mxu0 0.0
  %v1100 = vand.u32 %v574, 4294901760
  %1101 = vmatpush1.msra.mxu0 %v1100
  %1102 = vmatprep.subr.mxu0 0.0
  %v1103 = vand.u32 %v575, 4294901760
  %1104 = vmatpush1.msra.mxu0 %v1103
  %1105 = vmatprep.subr.mxu0 0.0
  %v1106 = vand.u32 %v576, 4294901760
  %1107 = vmatpush1.msra.mxu0 %v1106
  %1108 = vmatprep.subr.mxu0 0.0
  %v1109 = vand.u32 %v577, 4294901760
  %1110 = vmatpush1.msra.mxu0 %v1109
  %1111 = vmatprep.subr.mxu0 0.0
  %1112 = vmatpush1.msra.mxu0 0.0
  %1113 = vmatprep.subr.mxu0 0.0
  %1114 = vmatpush1.msra.mxu0 0.0
  %1115 = vmatprep.subr.mxu0 0.0
  %1116 = vmatpush1.msra.mxu0 0.0
  %1117 = vmatprep.subr.mxu0 0.0
  %1118 = vmatpush1.msra.mxu0 0.0
  %1119 = vmatprep.subr.mxu0 0.0
  %1120 = vmatpush1.msra.mxu0 0.0
  %1121 = vmatprep.subr.mxu0 0.0
  %1122 = vmatpush1.msra.mxu0 0.0
  %1123 = vmatprep.subr.mxu0 0.0
  %1124 = vmatpush1.msra.mxu0 0.0
  %1125 = vmatprep.subr.mxu0 0.0
  %1126 = vmatpush1.msra.mxu0 0.0
  %1127 = vmatprep.subr.mxu0 0.0
  %1128 = vmatpush1.msra.mxu0 0.0
  %1129 = vmatprep.subr.mxu0 0.0
  %1130 = vmatpush1.msra.mxu0 0.0
  %1131 = vmatprep.subr.mxu0 0.0
  %1132 = vmatpush1.msra.mxu0 0.0
  %1133 = vmatprep.subr.mxu0 0.0
  %1134 = vmatpush1.msra.mxu0 0.0
  %1135 = vmatprep.subr.mxu0 0.0
  %1136 = vmatpush1.msra.mxu0 0.0
  %1137 = vmatprep.subr.mxu0 0.0
  %1138 = vmatpush1.msra.mxu0 0.0
  %1139 = vmatprep.subr.mxu0 0.0
  %1140 = vmatpush1.msra.mxu0 0.0
  %1141 = vmatprep.subr.mxu0 0.0
  %1142 = vmatpush1.msra.mxu0 0.0
  %1143 = vmatprep.subr.mxu0 0.0
  %1144 = vmatpush1.msra.mxu0 0.0
  %1145 = vmatprep.subr.mxu0 0.0
  %1146 = vmatpush1.msra.mxu0 0.0
  %1147 = vmatprep.subr.mxu0 0.0
  %1148 = vmatpush1.msra.mxu0 0.0
  %1149 = vmatprep.subr.mxu0 0.0
  %1150 = vmatpush1.msra.mxu0 0.0
  %1151 = vmatprep.subr.mxu0 0.0
  %1152 = vmatpush1.msra.mxu0 0.0
  %1153 = vmatprep.subr.mxu0 0.0
  %1154 = vmatpush1.msra.mxu0 0.0
  %1155 = vmatprep.subr.mxu0 0.0
  %1156 = vmatpush1.msra.mxu0 0.0
  %1157 = vmatprep.subr.mxu0 0.0
  %1158 = vmatpush1.msra.mxu0 0.0
  %1159 = vmatprep.mubr.f32.mxu0 0.0
  %v1160 = vand.u32 %v587, 4294901760
  %1161 = vmatmul.mubr.f32.gmra.mrb[0].mxu0 %v1160
  %v1162 = vpop.f32.mrb[0].mxu0
  %v1163 = vadd.f32 %v1078, %v1162
  %v1164 = vpop.f32.mrb[0].mxu0
  %1165 = vmatprep.mubr.f32.mxu0 0.0
  %v1166 = vand.u32 %v590, 4294901760
  %1167 = vmatmul.mubr.f32.gmra.mrb[0].mxu0 %v1166
  %v1168 = vpop.f32.mrb[0].mxu0
  %v1169 = vadd.f32 %v1084, %v1168
  %v1170 = vpop.f32.mrb[0].mxu0
  %1171 = vdwg.mxu0
  %1172 = vst.msk [vmem:[%s5] sm:$0xff] %vm33, %v1163
  %1173 = vst.msk [vmem:[%s5 + $0x8] sm:$0xff] %vm33, %v1169
  // Predicated region
  $region22: #{transformer_forward.77} parent=0 // pred_check
    _
  $region23: #{transformer_forward.77} parent=0 // pred_check_branch
    %1175 = sbr.rel (0) target = $region25
  $region24: #{transformer_forward.77} parent=0 // pred_region
    _
  $region25: #{transformer_forward.77} parent=0 // pred_fallthru
    _
  // Predicated region
  $region26: #{transformer_forward.77} parent=0 // pred_check
    _
  $region27: #{transformer_forward.77} parent=0 // pred_check_branch
    %1177 = sbr.rel (0) target = $region29
  $region28: #{transformer_forward.77} parent=0 // pred_region
    _
  $region29: #{transformer_forward.77} parent=0 // pred_fallthru
    _

// kernel: transformer_forward.78
$region0: #{transformer_forward.78}
  #allocation0 [shape = 'u32[]', space=smem, size = 0x4, offset = 0x4, fixed_abs, tag = 'smem constant byte address 0x4 - core index']
  #allocation1 [shape = 'u32[144,128]{1,0:T(1,128)}', space=vmem, size = 0x12000, scoped, tag = 'internal scratch']
  %s0 = inlined_call_operand.vmem [shape: f32[16,32], index: 0, kind: input, shape index: {}]
  %s1 = inlined_call_operand.vmem [shape: f32[16,32], index: 1, kind: input, shape index: {}]
  %s2 = inlined_call_operand.vmem [shape: f32[1,32], index: 2, kind: input, shape index: {}]
  %s3 = inlined_call_operand.hbm [shape: f32[1,32], index: 3, kind: input, shape index: {}]
  %s4 = inlined_call_operand.vmem [shape: f32[16,32], index: 4, kind: output, shape index: {}]
  %s5 = sld [smem:[#allocation0]]
  $region30: #{transformer_forward.78} parent=0
    _
  %s7 = ssub.s32 1, %s5
  %s8 = scalar_select 0, %s7, %s5
  $region1: #{transformer_forward.78} parent=0
    #allocation2 [shape = 'u8[512]{0}', space=vmem, size = 0x400, scoped, tag = 'input window, operand 3, single buffered']
    #allocation3 [shape = 's32[1]{0}', space=sflag, size = 0x4, scoped, tag = 'scoped memory for transformer_forward.78']
    %9 = vsyncpa [#allocation3], 0
    // Predicated region
    $region2: #{transformer_forward.78} parent=1 // pred_check
      _
    $region3: #{transformer_forward.78} parent=1 // pred_check_branch
      %11 = sbr.rel (0) target = $region5
    $region4: #{transformer_forward.78} parent=1 // pred_region
      _
    $region5: #{transformer_forward.78} parent=1 // pred_fallthru
      _
    // Predicated region
    $region6: #{transformer_forward.78} parent=1 // pred_check
      _
    $region7: #{transformer_forward.78} parent=1 // pred_check_branch
      %13 = sbr.rel (0) target = $region9
    $region8: #{transformer_forward.78} parent=1 // pred_region
      _
    $region9: #{transformer_forward.78} parent=1 // pred_fallthru
      _
    // Predicated region
    $region10: #{transformer_forward.78} parent=1 // pred_check
      _
    $region11: #{transformer_forward.78} parent=1 // pred_check_branch
      %15 = sbr.rel (0) target = $region13
    $region12: #{transformer_forward.78} parent=1 // pred_region
      _
    $region13: #{transformer_forward.78} parent=1 // pred_fallthru
      _
    // Predicated region
    $region14: #{transformer_forward.78} parent=1 // pred_check
      _
    $region15: #{transformer_forward.78} parent=1 // pred_check_branch
      %17 = sbr.rel (0) target = $region17
    $region16: #{transformer_forward.78} parent=1 // pred_region
      %s19 = ssub.s32 16, 16
      %20 = vsyncadd [#allocation3], %s19
      %s22 = sshll.u32 [#allocation2], 4
      %s23 = int_to_ptr.vmem [resolvable:$true] %s22
      %25 = dma.hbm_to_vmem [thread:$0]  %s3, 16, %s23, [#allocation3]
    $region17: #{transformer_forward.78} parent=1 // pred_fallthru
      _
    // Predicated region
    $region18: #{transformer_forward.78} parent=1 // pred_check
      _
    $region19: #{transformer_forward.78} parent=1 // pred_check_branch
      %27 = sbr.rel (0) target = $region21
    $region20: #{transformer_forward.78} parent=1 // pred_region
      %28 = dma.done [#allocation3], 16
    $region21: #{transformer_forward.78} parent=1 // pred_fallthru
      _
    %v29 = vld [vmem:[%s0] sm:$0xff]
    %v30 = vld [vmem:[%s0 + $0x8] sm:$0xff]
    %v31 = vld [vmem:[%s1] sm:$0xff]
    %v32 = vld [vmem:[%s1 + $0x8] sm:$0xff]
    %v33 = vadd.f32 %v29, %v31
    %v34 = vadd.f32 %v30, %v32
    %vm35 = vcmask 261120
    %v36 = vsel %vm35, %v33, 0.0
    %37 = vadd.xlane.f32.xlu0 %v36
    %v38 = vpop.xlane.xlu0 %37
    %v39 = vsel %vm35, %v34, 0.0
    %40 = vadd.xlane.f32.xlu0 %v39
    %v41 = vpop.xlane.xlu0 %40
    %v42 = vrcp.pop 32.0
    %v43 = vmul.f32 %v38, %v42
    %v44 = vmul.f32 %v41, %v42
    %v45 = vsub.f32 %v33, %v43
    %v46 = vsub.f32 %v34, %v44
    %v47 = vmul.f32 %v45, %v45
    %v48 = vmul.f32 %v46, %v46
    %v49 = vsel %vm35, %v47, 0.0
    %50 = vadd.xlane.f32.xlu0 %v49
    %v51 = vpop.xlane.xlu0 %50
    %v52 = vsel %vm35, %v48, 0.0
    %53 = vadd.xlane.f32.xlu0 %v52
    %v54 = vpop.xlane.xlu0 %53
    %v55 = vmul.f32 %v51, %v42
    %v56 = vmul.f32 %v54, %v42
    %v57 = vadd.f32 %v55, 1e-05
    %v58 = vadd.f32 %v56, 1e-05
    %v59 = vrsqrt.pop %v57
    %v60 = vrsqrt.pop %v58
    %v61 = vmul.f32 %v45, %v59
    %v62 = vmul.f32 %v46, %v60
    %v63 = vld [vmem:[%s2] sm:$0x1]
    %v65 = vlaneseq
    %v66 = vshrl.u32 %v65, 7
    %v67 = vsub.s32 0, %v66
    %v68 = vrot.slane %v63, %v67
    %v70 = vmul.f32 %v61, %v68
    %v71 = vmul.f32 %v62, %v68
    %v72 = vld [vmem:[#allocation2] sm:$0x1]
    %v74 = vlaneseq
    %v75 = vshrl.u32 %v74, 7
    %v76 = vsub.s32 0, %v75
    %v77 = vrot.slane %v72, %v76
    %v79 = vadd.f32 %v70, %v77
    %v80 = vadd.f32 %v71, %v77
    %81 = vst.msk [vmem:[%s4] sm:$0xff] %vm35, %v79
    %82 = vst.msk [vmem:[%s4 + $0x8] sm:$0xff] %vm35, %v80
    // Predicated region
    $region22: #{transformer_forward.78} parent=1 // pred_check
      _
    $region23: #{transformer_forward.78} parent=1 // pred_check_branch
      %84 = sbr.rel (0) target = $region25
    $region24: #{transformer_forward.78} parent=1 // pred_region
      _
    $region25: #{transformer_forward.78} parent=1 // pred_fallthru
      _
    // Predicated region
    $region26: #{transformer_forward.78} parent=1 // pred_check
      _
    $region27: #{transformer_forward.78} parent=1 // pred_check_branch
      %86 = sbr.rel (0) target = $region29
    $region28: #{transformer_forward.78} parent=1 // pred_region
      _
    $region29: #{transformer_forward.78} parent=1 // pred_fallthru
      _
    %87 = vsyncpa [#allocation3], 1

// kernel: transformer_forward.93
$region0: #{transformer_forward.93}
  #allocation0 [shape = 'u32[]', space=smem, size = 0x4, offset = 0x4, fixed_abs, tag = 'smem constant byte address 0x4 - core index']
  #allocation1 [shape = 'u32[144,128]{1,0:T(1,128)}', space=vmem, size = 0x12000, scoped, tag = 'internal scratch']
  %s0 = inlined_call_operand.vmem [shape: f32[16,32], index: 0, kind: input, shape index: {}]
  %s1 = inlined_call_operand.vmem [shape: f32[32,16], index: 1, kind: input, shape index: {}]
  %s2 = inlined_call_operand.vmem [shape: f32[1,16], index: 2, kind: input, shape index: {}]
  %s3 = inlined_call_operand.hbm [shape: f32[16,16], index: 3, kind: output, shape index: {}]
  %s4 = sld [smem:[#allocation0]]
  $region22: #{transformer_forward.93} parent=0
    _
  %s6 = ssub.s32 1, %s4
  %s7 = scalar_select 0, %s6, %s4
  $region1: #{transformer_forward.93} parent=0
    #allocation2 [shape = 'u8[8192]{0}', space=vmem, size = 0x2000, scoped, tag = 'output window, operand 0, single buffered']
    #allocation3 [shape = 's32[1]{0}', space=sflag, size = 0x4, scoped, tag = 'scoped memory for transformer_forward.93']
    %8 = vsyncpa [#allocation3], 0
    // Predicated region
    $region2: #{transformer_forward.93} parent=1 // pred_check
      _
    $region3: #{transformer_forward.93} parent=1 // pred_check_branch
      %10 = sbr.rel (0) target = $region5
    $region4: #{transformer_forward.93} parent=1 // pred_region
      _
    $region5: #{transformer_forward.93} parent=1 // pred_fallthru
      _
    // Predicated region
    $region6: #{transformer_forward.93} parent=1 // pred_check
      _
    $region7: #{transformer_forward.93} parent=1 // pred_check_branch
      %12 = sbr.rel (0) target = $region9
    $region8: #{transformer_forward.93} parent=1 // pred_region
      _
    $region9: #{transformer_forward.93} parent=1 // pred_fallthru
      _
    // Predicated region
    $region10: #{transformer_forward.93} parent=1 // pred_check
      _
    $region11: #{transformer_forward.93} parent=1 // pred_check_branch
      %14 = sbr.rel (0) target = $region13
    $region12: #{transformer_forward.93} parent=1 // pred_region
      _
    $region13: #{transformer_forward.93} parent=1 // pred_fallthru
      _
    %v15 = vld [vmem:[%s0] sm:$0xff]
    %v16 = vld [vmem:[%s0 + $0x8] sm:$0xff]
    %v17 = vld [vmem:[%s1] sm:$0xff]
    %v18 = vld [vmem:[%s1 + $0x8] sm:$0xff]
    %v19 = vld [vmem:[%s1 + $0x10] sm:$0xff]
    %v20 = vld [vmem:[%s1 + $0x18] sm:$0xff]
    %v21 = vld [vmem:[%s2] sm:$0x1]
    %v23 = vlaneseq
    %v24 = vshrl.u32 %v23, 7
    %v25 = vsub.s32 0, %v24
    %v26 = vrot.slane %v21, %v25
    %vm28 = vcmask 261120
    %v30 = vsel %vm28, %v15, 0
    %v33 = vsel %vm28, %v16, 0
    %35 = vmatprep.subr.mxu0 0.0
    %v36 = vand.u32 %v17, 4294901760
    %37 = vmatpush1.msra.mxu0 %v36
    %38 = vmatprep.subr.mxu0 0.0
    %v39 = vand.u32 %v18, 4294901760
    %40 = vmatpush1.msra.mxu0 %v39
    %41 = vmatprep.subr.mxu0 0.0
    %v42 = vand.u32 %v19, 4294901760
    %43 = vmatpush1.msra.mxu0 %v42
    %44 = vmatprep.subr.mxu0 0.0
    %v45 = vand.u32 %v20, 4294901760
    %46 = vmatpush1.msra.mxu0 %v45
    %47 = vmatprep.subr.mxu0 0.0
    %48 = vmatpush1.msra.mxu0 0.0
    %49 = vmatprep.subr.mxu0 0.0
    %50 = vmatpush1.msra.mxu0 0.0
    %51 = vmatprep.subr.mxu0 0.0
    %52 = vmatpush1.msra.mxu0 0.0
    %53 = vmatprep.subr.mxu0 0.0
    %54 = vmatpush1.msra.mxu0 0.0
    %55 = vmatprep.subr.mxu0 0.0
    %56 = vmatpush1.msra.mxu0 0.0
    %57 = vmatprep.subr.mxu0 0.0
    %58 = vmatpush1.msra.mxu0 0.0
    %59 = vmatprep.subr.mxu0 0.0
    %60 = vmatpush1.msra.mxu0 0.0
    %61 = vmatprep.subr.mxu0 0.0
    %62 = vmatpush1.msra.mxu0 0.0
    %63 = vmatprep.subr.mxu0 0.0
    %64 = vmatpush1.msra.mxu0 0.0
    %65 = vmatprep.subr.mxu0 0.0
    %66 = vmatpush1.msra.mxu0 0.0
    %67 = vmatprep.subr.mxu0 0.0
    %68 = vmatpush1.msra.mxu0 0.0
    %69 = vmatprep.subr.mxu0 0.0
    %70 = vmatpush1.msra.mxu0 0.0
    %71 = vmatprep.subr.mxu0 0.0
    %72 = vmatpush1.msra.mxu0 0.0
    %73 = vmatprep.subr.mxu0 0.0
    %74 = vmatpush1.msra.mxu0 0.0
    %75 = vmatprep.subr.mxu0 0.0
    %76 = vmatpush1.msra.mxu0 0.0
    %77 = vmatprep.subr.mxu0 0.0
    %78 = vmatpush1.msra.mxu0 0.0
    %79 = vmatprep.subr.mxu0 0.0
    %80 = vmatpush1.msra.mxu0 0.0
    %81 = vmatprep.subr.mxu0 0.0
    %82 = vmatpush1.msra.mxu0 0.0
    %83 = vmatprep.subr.mxu0 0.0
    %84 = vmatpush1.msra.mxu0 0.0
    %85 = vmatprep.subr.mxu0 0.0
    %86 = vmatpush1.msra.mxu0 0.0
    %87 = vmatprep.subr.mxu0 0.0
    %88 = vmatpush1.msra.mxu0 0.0
    %89 = vmatprep.subr.mxu0 0.0
    %90 = vmatpush1.msra.mxu0 0.0
    %91 = vmatprep.subr.mxu0 0.0
    %92 = vmatpush1.msra.mxu0 0.0
    %93 = vmatprep.subr.mxu0 0.0
    %94 = vmatpush1.msra.mxu0 0.0
    %95 = vmatprep.subr.mxu0 0.0
    %96 = vmatpush1.msra.mxu0 0.0
    %97 = vmatprep.subr.mxu0 0.0
    %98 = vmatpush1.msra.mxu0 0.0
    %99 = vmatprep.subr.mxu0 0.0
    %100 = vmatpush1.msra.mxu0 0.0
    %101 = vmatprep.subr.mxu0 0.0
    %102 = vmatpush1.msra.mxu0 0.0
    %103 = vmatprep.mubr.f32.mxu0 0.0
    %v104 = vand.u32 %v30, 4294901760
    %v105 = vsub.f32 %v30, %v104
    %v106 = vand.u32 %v105, 4294901760
    %v107 = vsub.f32 %v105, %v106
    %v108 = vand.u32 %v107, 4294901760
    %109 = vmatmul.mubr.f32.gmra.mrb[0].mxu0 %v108
    %v110 = vpop.f32.mrb[0].mxu0
    %v111 = vadd.f32 %v26, %v110
    %v112 = vpop.f32.mrb[0].mxu0
    %113 = vmatprep.mubr.f32.mxu0 0.0
    %v114 = vand.u32 %v33, 4294901760
    %v115 = vsub.f32 %v33, %v114
    %v116 = vand.u32 %v115, 4294901760
    %v117 = vsub.f32 %v115, %v116
    %v118 = vand.u32 %v117, 4294901760
    %119 = vmatmul.mubr.f32.gmra.mrb[0].mxu0 %v118
    %v120 = vpop.f32.mrb[0].mxu0
    %v121 = vadd.f32 %v26, %v120
    %v122 = vpop.f32.mrb[0].mxu0
    %123 = vdwg.mxu0
    %124 = vmatprep.subr.mxu0 0.0
    %v125 = vand.u32 %v17, 4294901760
    %v126 = vsub.f32 %v17, %v125
    %v127 = vand.u32 %v126, 4294901760
    %v128 = vsub.f32 %v126, %v127
    %v129 = vand.u32 %v128, 4294901760
    %130 = vmatpush1.msra.mxu0 %v129
    %131 = vmatprep.subr.mxu0 0.0
    %v132 = vand.u32 %v18, 4294901760
    %v133 = vsub.f32 %v18, %v132
    %v134 = vand.u32 %v133, 4294901760
    %v135 = vsub.f32 %v133, %v134
    %v136 = vand.u32 %v135, 4294901760
    %137 = vmatpush1.msra.mxu0 %v136
    %138 = vmatprep.subr.mxu0 0.0
    %v139 = vand.u32 %v19, 4294901760
    %v140 = vsub.f32 %v19, %v139
    %v141 = vand.u32 %v140, 4294901760
    %v142 = vsub.f32 %v140, %v141
    %v143 = vand.u32 %v142, 4294901760
    %144 = vmatpush1.msra.mxu0 %v143
    %145 = vmatprep.subr.mxu0 0.0
    %v146 = vand.u32 %v20, 4294901760
    %v147 = vsub.f32 %v20, %v146
    %v148 = vand.u32 %v147, 4294901760
    %v149 = vsub.f32 %v147, %v148
    %v150 = vand.u32 %v149, 4294901760
    %151 = vmatpush1.msra.mxu0 %v150
    %152 = vmatprep.subr.mxu0 0.0
    %153 = vmatpush1.msra.mxu0 0.0
    %154 = vmatprep.subr.mxu0 0.0
    %155 = vmatpush1.msra.mxu0 0.0
    %156 = vmatprep.subr.mxu0 0.0
    %157 = vmatpush1.msra.mxu0 0.0
    %158 = vmatprep.subr.mxu0 0.0
    %159 = vmatpush1.msra.mxu0 0.0
    %160 = vmatprep.subr.mxu0 0.0
    %161 = vmatpush1.msra.mxu0 0.0
    %162 = vmatprep.subr.mxu0 0.0
    %163 = vmatpush1.msra.mxu0 0.0
    %164 = vmatprep.subr.mxu0 0.0
    %165 = vmatpush1.msra.mxu0 0.0
    %166 = vmatprep.subr.mxu0 0.0
    %167 = vmatpush1.msra.mxu0 0.0
    %168 = vmatprep.subr.mxu0 0.0
    %169 = vmatpush1.msra.mxu0 0.0
    %170 = vmatprep.subr.mxu0 0.0
    %171 = vmatpush1.msra.mxu0 0.0
    %172 = vmatprep.subr.mxu0 0.0
    %173 = vmatpush1.msra.mxu0 0.0
    %174 = vmatprep.subr.mxu0 0.0
    %175 = vmatpush1.msra.mxu0 0.0
    %176 = vmatprep.subr.mxu0 0.0
    %177 = vmatpush1.msra.mxu0 0.0
    %178 = vmatprep.subr.mxu0 0.0
    %179 = vmatpush1.msra.mxu0 0.0
    %180 = vmatprep.subr.mxu0 0.0
    %181 = vmatpush1.msra.mxu0 0.0
    %182 = vmatprep.subr.mxu0 0.0
    %183 = vmatpush1.msra.mxu0 0.0
    %184 = vmatprep.subr.mxu0 0.0
    %185 = vmatpush1.msra.mxu0 0.0
    %186 = vmatprep.subr.mxu0 0.0
    %187 = vmatpush1.msra.mxu0 0.0
    %188 = vmatprep.subr.mxu0 0.0
    %189 = vmatpush1.msra.mxu0 0.0
    %190 = vmatprep.subr.mxu0 0.0
    %191 = vmatpush1.msra.mxu0 0.0
    %192 = vmatprep.subr.mxu0 0.0
    %193 = vmatpush1.msra.mxu0 0.0
    %194 = vmatprep.subr.mxu0 0.0
    %195 = vmatpush1.msra.mxu0 0.0
    %196 = vmatprep.subr.mxu0 0.0
    %197 = vmatpush1.msra.mxu0 0.0
    %198 = vmatprep.subr.mxu0 0.0
    %199 = vmatpush1.msra.mxu0 0.0
    %200 = vmatprep.subr.mxu0 0.0
    %201 = vmatpush1.msra.mxu0 0.0
    %202 = vmatprep.subr.mxu0 0.0
    %203 = vmatpush1.msra.mxu0 0.0
    %204 = vmatprep.subr.mxu0 0.0
    %205 = vmatpush1.msra.mxu0 0.0
    %206 = vmatprep.subr.mxu0 0.0
    %207 = vmatpush1.msra.mxu0 0.0
    %208 = vmatprep.mubr.f32.mxu0 0.0
    %v209 = vand.u32 %v30, 4294901760
    %210 = vmatmul.mubr.f32.gmra.mrb[0].mxu0 %v209
    %v211 = vpop.f32.mrb[0].mxu0
    %v212 = vadd.f32 %v111, %v211
    %v213 = vpop.f32.mrb[0].mxu0
    %214 = vmatprep.mubr.f32.mxu0 0.0
    %v215 = vand.u32 %v33, 4294901760
    %216 = vmatmul.mubr.f32.gmra.mrb[0].mxu0 %v215
    %v217 = vpop.f32.mrb[0].mxu0
    %v218 = vadd.f32 %v121, %v217
    %v219 = vpop.f32.mrb[0].mxu0
    %220 = vdwg.mxu0
    %221 = vmatprep.subr.mxu0 0.0
    %v222 = vand.u32 %v17, 4294901760
    %v223 = vsub.f32 %v17, %v222
    %224 = vmatpush1.msra.mxu0 %v223
    %225 = vmatprep.subr.mxu0 0.0
    %v226 = vand.u32 %v18, 4294901760
    %v227 = vsub.f32 %v18, %v226
    %228 = vmatpush1.msra.mxu0 %v227
    %229 = vmatprep.subr.mxu0 0.0
    %v230 = vand.u32 %v19, 4294901760
    %v231 = vsub.f32 %v19, %v230
    %232 = vmatpush1.msra.mxu0 %v231
    %233 = vmatprep.subr.mxu0 0.0
    %v234 = vand.u32 %v20, 4294901760
    %v235 = vsub.f32 %v20, %v234
    %236 = vmatpush1.msra.mxu0 %v235
    %237 = vmatprep.subr.mxu0 0.0
    %238 = vmatpush1.msra.mxu0 0.0
    %239 = vmatprep.subr.mxu0 0.0
    %240 = vmatpush1.msra.mxu0 0.0
    %241 = vmatprep.subr.mxu0 0.0
    %242 = vmatpush1.msra.mxu0 0.0
    %243 = vmatprep.subr.mxu0 0.0
    %244 = vmatpush1.msra.mxu0 0.0
    %245 = vmatprep.subr.mxu0 0.0
    %246 = vmatpush1.msra.mxu0 0.0
    %247 = vmatprep.subr.mxu0 0.0
    %248 = vmatpush1.msra.mxu0 0.0
    %249 = vmatprep.subr.mxu0 0.0
    %250 = vmatpush1.msra.mxu0 0.0
    %251 = vmatprep.subr.mxu0 0.0
    %252 = vmatpush1.msra.mxu0 0.0
    %253 = vmatprep.subr.mxu0 0.0
    %254 = vmatpush1.msra.mxu0 0.0
    %255 = vmatprep.subr.mxu0 0.0
    %256 = vmatpush1.msra.mxu0 0.0
    %257 = vmatprep.subr.mxu0 0.0
    %258 = vmatpush1.msra.mxu0 0.0
    %259 = vmatprep.subr.mxu0 0.0
    %260 = vmatpush1.msra.mxu0 0.0
    %261 = vmatprep.subr.mxu0 0.0
    %262 = vmatpush1.msra.mxu0 0.0
    %263 = vmatprep.subr.mxu0 0.0
    %264 = vmatpush1.msra.mxu0 0.0
    %265 = vmatprep.subr.mxu0 0.0
    %266 = vmatpush1.msra.mxu0 0.0
    %267 = vmatprep.subr.mxu0 0.0
    %268 = vmatpush1.msra.mxu0 0.0
    %269 = vmatprep.subr.mxu0 0.0
    %270 = vmatpush1.msra.mxu0 0.0
    %271 = vmatprep.subr.mxu0 0.0
    %272 = vmatpush1.msra.mxu0 0.0
    %273 = vmatprep.subr.mxu0 0.0
    %274 = vmatpush1.msra.mxu0 0.0
    %275 = vmatprep.subr.mxu0 0.0
    %276 = vmatpush1.msra.mxu0 0.0
    %277 = vmatprep.subr.mxu0 0.0
    %278 = vmatpush1.msra.mxu0 0.0
    %279 = vmatprep.subr.mxu0 0.0
    %280 = vmatpush1.msra.mxu0 0.0
    %281 = vmatprep.subr.mxu0 0.0
    %282 = vmatpush1.msra.mxu0 0.0
    %283 = vmatprep.subr.mxu0 0.0
    %284 = vmatpush1.msra.mxu0 0.0
    %285 = vmatprep.subr.mxu0 0.0
    %286 = vmatpush1.msra.mxu0 0.0
    %287 = vmatprep.subr.mxu0 0.0
    %288 = vmatpush1.msra.mxu0 0.0
    %289 = vmatprep.subr.mxu0 0.0
    %290 = vmatpush1.msra.mxu0 0.0
    %291 = vmatprep.subr.mxu0 0.0
    %292 = vmatpush1.msra.mxu0 0.0
    %293 = vmatprep.mubr.f32.mxu0 0.0
    %v294 = vand.u32 %v30, 4294901760
    %v295 = vsub.f32 %v30, %v294
    %296 = vmatmul.mubr.f32.gmra.mrb[0].mxu0 %v295
    %v297 = vpop.f32.mrb[0].mxu0
    %v298 = vadd.f32 %v212, %v297
    %v299 = vpop.f32.mrb[0].mxu0
    %300 = vmatprep.mubr.f32.mxu0 0.0
    %v301 = vand.u32 %v33, 4294901760
    %v302 = vsub.f32 %v33, %v301
    %303 = vmatmul.mubr.f32.gmra.mrb[0].mxu0 %v302
    %v304 = vpop.f32.mrb[0].mxu0
    %v305 = vadd.f32 %v218, %v304
    %v306 = vpop.f32.mrb[0].mxu0
    %307 = vdwg.mxu0
    %308 = vmatprep.subr.mxu0 0.0
    %v309 = vand.u32 %v17, 4294901760
    %310 = vmatpush1.msra.mxu0 %v309
    %311 = vmatprep.subr.mxu0 0.0
    %v312 = vand.u32 %v18, 4294901760
    %313 = vmatpush1.msra.mxu0 %v312
    %314 = vmatprep.subr.mxu0 0.0
    %v315 = vand.u32 %v19, 4294901760
    %316 = vmatpush1.msra.mxu0 %v315
    %317 = vmatprep.subr.mxu0 0.0
    %v318 = vand.u32 %v20, 4294901760
    %319 = vmatpush1.msra.mxu0 %v318
    %320 = vmatprep.subr.mxu0 0.0
    %321 = vmatpush1.msra.mxu0 0.0
    %322 = vmatprep.subr.mxu0 0.0
    %323 = vmatpush1.msra.mxu0 0.0
    %324 = vmatprep.subr.mxu0 0.0
    %325 = vmatpush1.msra.mxu0 0.0
    %326 = vmatprep.subr.mxu0 0.0
    %327 = vmatpush1.msra.mxu0 0.0
    %328 = vmatprep.subr.mxu0 0.0
    %329 = vmatpush1.msra.mxu0 0.0
    %330 = vmatprep.subr.mxu0 0.0
    %331 = vmatpush1.msra.mxu0 0.0
    %332 = vmatprep.subr.mxu0 0.0
    %333 = vmatpush1.msra.mxu0 0.0
    %334 = vmatprep.subr.mxu0 0.0
    %335 = vmatpush1.msra.mxu0 0.0
    %336 = vmatprep.subr.mxu0 0.0
    %337 = vmatpush1.msra.mxu0 0.0
    %338 = vmatprep.subr.mxu0 0.0
    %339 = vmatpush1.msra.mxu0 0.0
    %340 = vmatprep.subr.mxu0 0.0
    %341 = vmatpush1.msra.mxu0 0.0
    %342 = vmatprep.subr.mxu0 0.0
    %343 = vmatpush1.msra.mxu0 0.0
    %344 = vmatprep.subr.mxu0 0.0
    %345 = vmatpush1.msra.mxu0 0.0
    %346 = vmatprep.subr.mxu0 0.0
    %347 = vmatpush1.msra.mxu0 0.0
    %348 = vmatprep.subr.mxu0 0.0
    %349 = vmatpush1.msra.mxu0 0.0
    %350 = vmatprep.subr.mxu0 0.0
    %351 = vmatpush1.msra.mxu0 0.0
    %352 = vmatprep.subr.mxu0 0.0
    %353 = vmatpush1.msra.mxu0 0.0
    %354 = vmatprep.subr.mxu0 0.0
    %355 = vmatpush1.msra.mxu0 0.0
    %356 = vmatprep.subr.mxu0 0.0
    %357 = vmatpush1.msra.mxu0 0.0
    %358 = vmatprep.subr.mxu0 0.0
    %359 = vmatpush1.msra.mxu0 0.0
    %360 = vmatprep.subr.mxu0 0.0
    %361 = vmatpush1.msra.mxu0 0.0
    %362 = vmatprep.subr.mxu0 0.0
    %363 = vmatpush1.msra.mxu0 0.0
    %364 = vmatprep.subr.mxu0 0.0
    %365 = vmatpush1.msra.mxu0 0.0
    %366 = vmatprep.subr.mxu0 0.0
    %367 = vmatpush1.msra.mxu0 0.0
    %368 = vmatprep.subr.mxu0 0.0
    %369 = vmatpush1.msra.mxu0 0.0
    %370 = vmatprep.subr.mxu0 0.0
    %371 = vmatpush1.msra.mxu0 0.0
    %372 = vmatprep.subr.mxu0 0.0
    %373 = vmatpush1.msra.mxu0 0.0
    %374 = vmatprep.subr.mxu0 0.0
    %375 = vmatpush1.msra.mxu0 0.0
    %376 = vmatprep.mubr.f32.mxu0 0.0
    %v377 = vand.u32 %v30, 4294901760
    %v378 = vsub.f32 %v30, %v377
    %v379 = vand.u32 %v378, 4294901760
    %380 = vmatmul.mubr.f32.gmra.mrb[0].mxu0 %v379
    %v381 = vpop.f32.mrb[0].mxu0
    %v382 = vadd.f32 %v298, %v381
    %v383 = vpop.f32.mrb[0].mxu0
    %384 = vmatprep.mubr.f32.mxu0 0.0
    %v385 = vand.u32 %v33, 4294901760
    %v386 = vsub.f32 %v33, %v385
    %v387 = vand.u32 %v386, 4294901760
    %388 = vmatmul.mubr.f32.gmra.mrb[0].mxu0 %v387
    %v389 = vpop.f32.mrb[0].mxu0
    %v390 = vadd.f32 %v305, %v389
    %v391 = vpop.f32.mrb[0].mxu0
    %392 = vdwg.mxu0
    %393 = vmatprep.subr.mxu0 0.0
    %v394 = vand.u32 %v17, 4294901760
    %v395 = vsub.f32 %v17, %v394
    %v396 = vand.u32 %v395, 4294901760
    %397 = vmatpush1.msra.mxu0 %v396
    %398 = vmatprep.subr.mxu0 0.0
    %v399 = vand.u32 %v18, 4294901760
    %v400 = vsub.f32 %v18, %v399
    %v401 = vand.u32 %v400, 4294901760
    %402 = vmatpush1.msra.mxu0 %v401
    %403 = vmatprep.subr.mxu0 0.0
    %v404 = vand.u32 %v19, 4294901760
    %v405 = vsub.f32 %v19, %v404
    %v406 = vand.u32 %v405, 4294901760
    %407 = vmatpush1.msra.mxu0 %v406
    %408 = vmatprep.subr.mxu0 0.0
    %v409 = vand.u32 %v20, 4294901760
    %v410 = vsub.f32 %v20, %v409
    %v411 = vand.u32 %v410, 4294901760
    %412 = vmatpush1.msra.mxu0 %v411
    %413 = vmatprep.subr.mxu0 0.0
    %414 = vmatpush1.msra.mxu0 0.0
    %415 = vmatprep.subr.mxu0 0.0
    %416 = vmatpush1.msra.mxu0 0.0
    %417 = vmatprep.subr.mxu0 0.0
    %418 = vmatpush1.msra.mxu0 0.0
    %419 = vmatprep.subr.mxu0 0.0
    %420 = vmatpush1.msra.mxu0 0.0
    %421 = vmatprep.subr.mxu0 0.0
    %422 = vmatpush1.msra.mxu0 0.0
    %423 = vmatprep.subr.mxu0 0.0
    %424 = vmatpush1.msra.mxu0 0.0
    %425 = vmatprep.subr.mxu0 0.0
    %426 = vmatpush1.msra.mxu0 0.0
    %427 = vmatprep.subr.mxu0 0.0
    %428 = vmatpush1.msra.mxu0 0.0
    %429 = vmatprep.subr.mxu0 0.0
    %430 = vmatpush1.msra.mxu0 0.0
    %431 = vmatprep.subr.mxu0 0.0
    %432 = vmatpush1.msra.mxu0 0.0
    %433 = vmatprep.subr.mxu0 0.0
    %434 = vmatpush1.msra.mxu0 0.0
    %435 = vmatprep.subr.mxu0 0.0
    %436 = vmatpush1.msra.mxu0 0.0
    %437 = vmatprep.subr.mxu0 0.0
    %438 = vmatpush1.msra.mxu0 0.0
    %439 = vmatprep.subr.mxu0 0.0
    %440 = vmatpush1.msra.mxu0 0.0
    %441 = vmatprep.subr.mxu0 0.0
    %442 = vmatpush1.msra.mxu0 0.0
    %443 = vmatprep.subr.mxu0 0.0
    %444 = vmatpush1.msra.mxu0 0.0
    %445 = vmatprep.subr.mxu0 0.0
    %446 = vmatpush1.msra.mxu0 0.0
    %447 = vmatprep.subr.mxu0 0.0
    %448 = vmatpush1.msra.mxu0 0.0
    %449 = vmatprep.subr.mxu0 0.0
    %450 = vmatpush1.msra.mxu0 0.0
    %451 = vmatprep.subr.mxu0 0.0
    %452 = vmatpush1.msra.mxu0 0.0
    %453 = vmatprep.subr.mxu0 0.0
    %454 = vmatpush1.msra.mxu0 0.0
    %455 = vmatprep.subr.mxu0 0.0
    %456 = vmatpush1.msra.mxu0 0.0
    %457 = vmatprep.subr.mxu0 0.0
    %458 = vmatpush1.msra.mxu0 0.0
    %459 = vmatprep.subr.mxu0 0.0
    %460 = vmatpush1.msra.mxu0 0.0
    %461 = vmatprep.subr.mxu0 0.0
    %462 = vmatpush1.msra.mxu0 0.0
    %463 = vmatprep.subr.mxu0 0.0
    %464 = vmatpush1.msra.mxu0 0.0
    %465 = vmatprep.subr.mxu0 0.0
    %466 = vmatpush1.msra.mxu0 0.0
    %467 = vmatprep.subr.mxu0 0.0
    %468 = vmatpush1.msra.mxu0 0.0
    %469 = vmatprep.mubr.f32.mxu0 0.0
    %v470 = vand.u32 %v30, 4294901760
    %471 = vmatmul.mubr.f32.gmra.mrb[0].mxu0 %v470
    %v472 = vpop.f32.mrb[0].mxu0
    %v473 = vadd.f32 %v382, %v472
    %v474 = vpop.f32.mrb[0].mxu0
    %475 = vmatprep.mubr.f32.mxu0 0.0
    %v476 = vand.u32 %v33, 4294901760
    %477 = vmatmul.mubr.f32.gmra.mrb[0].mxu0 %v476
    %v478 = vpop.f32.mrb[0].mxu0
    %v479 = vadd.f32 %v390, %v478
    %v480 = vpop.f32.mrb[0].mxu0
    %481 = vdwg.mxu0
    %482 = vmatprep.subr.mxu0 0.0
    %v483 = vand.u32 %v17, 4294901760
    %484 = vmatpush1.msra.mxu0 %v483
    %485 = vmatprep.subr.mxu0 0.0
    %v486 = vand.u32 %v18, 4294901760
    %487 = vmatpush1.msra.mxu0 %v486
    %488 = vmatprep.subr.mxu0 0.0
    %v489 = vand.u32 %v19, 4294901760
    %490 = vmatpush1.msra.mxu0 %v489
    %491 = vmatprep.subr.mxu0 0.0
    %v492 = vand.u32 %v20, 4294901760
    %493 = vmatpush1.msra.mxu0 %v492
    %494 = vmatprep.subr.mxu0 0.0
    %495 = vmatpush1.msra.mxu0 0.0
    %496 = vmatprep.subr.mxu0 0.0
    %497 = vmatpush1.msra.mxu0 0.0
    %498 = vmatprep.subr.mxu0 0.0
    %499 = vmatpush1.msra.mxu0 0.0
    %500 = vmatprep.subr.mxu0 0.0
    %501 = vmatpush1.msra.mxu0 0.0
    %502 = vmatprep.subr.mxu0 0.0
    %503 = vmatpush1.msra.mxu0 0.0
    %504 = vmatprep.subr.mxu0 0.0
    %505 = vmatpush1.msra.mxu0 0.0
    %506 = vmatprep.subr.mxu0 0.0
    %507 = vmatpush1.msra.mxu0 0.0
    %508 = vmatprep.subr.mxu0 0.0
    %509 = vmatpush1.msra.mxu0 0.0
    %510 = vmatprep.subr.mxu0 0.0
    %511 = vmatpush1.msra.mxu0 0.0
    %512 = vmatprep.subr.mxu0 0.0
    %513 = vmatpush1.msra.mxu0 0.0
    %514 = vmatprep.subr.mxu0 0.0
    %515 = vmatpush1.msra.mxu0 0.0
    %516 = vmatprep.subr.mxu0 0.0
    %517 = vmatpush1.msra.mxu0 0.0
    %518 = vmatprep.subr.mxu0 0.0
    %519 = vmatpush1.msra.mxu0 0.0
    %520 = vmatprep.subr.mxu0 0.0
    %521 = vmatpush1.msra.mxu0 0.0
    %522 = vmatprep.subr.mxu0 0.0
    %523 = vmatpush1.msra.mxu0 0.0
    %524 = vmatprep.subr.mxu0 0.0
    %525 = vmatpush1.msra.mxu0 0.0
    %526 = vmatprep.subr.mxu0 0.0
    %527 = vmatpush1.msra.mxu0 0.0
    %528 = vmatprep.subr.mxu0 0.0
    %529 = vmatpush1.msra.mxu0 0.0
    %530 = vmatprep.subr.mxu0 0.0
    %531 = vmatpush1.msra.mxu0 0.0
    %532 = vmatprep.subr.mxu0 0.0
    %533 = vmatpush1.msra.mxu0 0.0
    %534 = vmatprep.subr.mxu0 0.0
    %535 = vmatpush1.msra.mxu0 0.0
    %536 = vmatprep.subr.mxu0 0.0
    %537 = vmatpush1.msra.mxu0 0.0
    %538 = vmatprep.subr.mxu0 0.0
    %539 = vmatpush1.msra.mxu0 0.0
    %540 = vmatprep.subr.mxu0 0.0
    %541 = vmatpush1.msra.mxu0 0.0
    %542 = vmatprep.subr.mxu0 0.0
    %543 = vmatpush1.msra.mxu0 0.0
    %544 = vmatprep.subr.mxu0 0.0
    %545 = vmatpush1.msra.mxu0 0.0
    %546 = vmatprep.subr.mxu0 0.0
    %547 = vmatpush1.msra.mxu0 0.0
    %548 = vmatprep.subr.mxu0 0.0
    %549 = vmatpush1.msra.mxu0 0.0
    %550 = vmatprep.mubr.f32.mxu0 0.0
    %v551 = vand.u32 %v30, 4294901760
    %552 = vmatmul.mubr.f32.gmra.mrb[0].mxu0 %v551
    %v553 = vpop.f32.mrb[0].mxu0
    %v554 = vadd.f32 %v473, %v553
    %v555 = vpop.f32.mrb[0].mxu0
    %556 = vmatprep.mubr.f32.mxu0 0.0
    %v557 = vand.u32 %v33, 4294901760
    %558 = vmatmul.mubr.f32.gmra.mrb[0].mxu0 %v557
    %v559 = vpop.f32.mrb[0].mxu0
    %v560 = vadd.f32 %v479, %v559
    %v561 = vpop.f32.mrb[0].mxu0
    %562 = vdwg.mxu0
    %vm563 = vcmask 130048
    %564 = vst.msk [vmem:[#allocation2] sm:$0xff] %vm563, %v554
    %565 = vst.msk [vmem:[#allocation2 + $0x8] sm:$0xff] %vm563, %v560
    // Predicated region
    $region14: #{transformer_forward.93} parent=1 // pred_check
      _
    $region15: #{transformer_forward.93} parent=1 // pred_check_branch
      %567 = sbr.rel (0) target = $region17
    $region16: #{transformer_forward.93} parent=1 // pred_region
      %s569 = ssub.s32 256, 256
      %570 = vsyncadd [#allocation3], %s569
      %s571 = sshll.u32 [#allocation2], 4
      %s572 = int_to_ptr.vmem [resolvable:$true] %s571
      %577 = dma.vmem_to_hbm [thread:$0]  %s572, 256, %s3, [#allocation3], 128, 128, 8
    $region17: #{transformer_forward.93} parent=1 // pred_fallthru
      _
    // Predicated region
    $region18: #{transformer_forward.93} parent=1 // pred_check
      _
    $region19: #{transformer_forward.93} parent=1 // pred_check_branch
      %579 = sbr.rel (0) target = $region21
    $region20: #{transformer_forward.93} parent=1 // pred_region
      %580 = dma.done [#allocation3], 256
    $region21: #{transformer_forward.93} parent=1 // pred_fallthru
      _
    %581 = vsyncpa [#allocation3], 1

</llo_original>
